<compile_context>
chip_gen: v7x
topology: tpu7x:2x2x1
jax: 0.10.0
libtpu: 0.0.40
codegen_flags: <defaults>
</compile_context>

<pallas_src>
import functools

import jax
import jax.numpy as jnp
from jax.experimental import pallas as pl
from jax.experimental.pallas import tpu as pltpu


# --------------------------------------------------------------------------
# Pallas kernels
# --------------------------------------------------------------------------
def _mm_bias_kernel(x_ref, w_ref, b_ref, o_ref, acc_ref, *, relu):
    """K-tiled matmul: acc += x @ w ; epilogue adds bias (+ optional relu)."""
    k = pl.program_id(1)

    @pl.when(k == 0)
    def _():
        acc_ref[...] = jnp.zeros_like(acc_ref)

    acc_ref[...] += jnp.dot(x_ref[...], w_ref[...],
                            preferred_element_type=jnp.float32)

    @pl.when(k == pl.num_programs(1) - 1)
    def _():
        out = acc_ref[...] + b_ref[...]
        if relu:
            out = jnp.maximum(out, 0.0)
        o_ref[...] = out.astype(o_ref.dtype)


def _conv_res_gap_kernel(col_ref, w_ref, b_ref, res_ref, o_ref, *, hw):
    """Final residual conv fused with global average pooling.

    Block covers whole images, so the full [*,H,W,Cout] activation never
    touches HBM; only the pooled [imgs, Cout] features are written out.
    """
    acc = jnp.dot(col_ref[...], w_ref[...], preferred_element_type=jnp.float32)
    acc = jnp.maximum(acc + b_ref[...] + res_ref[...], 0.0)
    n_img = o_ref.shape[1]
    cout = o_ref.shape[2]
    pooled = jnp.mean(acc.reshape(n_img, hw, cout), axis=1)     # [n_img, Cout]
    o_ref[...] = pooled.reshape(1, n_img, cout).astype(o_ref.dtype)


def _lstm_head_kernel(xproj_ref, wih_ref, whh_ref, b_ref,
                      fc1w_ref, fc1b_ref, fc2w_ref, fc2b_ref,
                      out_ref, h_ref, c_ref, *, num_layers, hidden):
    """One grid step == one timestep over the whole LSTM stack.

    h/c for every layer live in VMEM scratch across grid steps; the layer-0
    input projection (feats @ W_ih + b) is hoisted outside (xproj).  The MLP
    head runs only on the final timestep.
    """
    t = pl.program_id(0)
    H = hidden

    @pl.when(t == 0)
    def _():
        h_ref[...] = jnp.zeros_like(h_ref)
        c_ref[...] = jnp.zeros_like(c_ref)

    layer_in = None
    for l in range(num_layers):
        if l == 0:
            gates = xproj_ref[0] + jnp.dot(
                h_ref[0], whh_ref[0], preferred_element_type=jnp.float32)
        else:
            gates = (jnp.dot(layer_in, wih_ref[l - 1],
                             preferred_element_type=jnp.float32)
                     + jnp.dot(h_ref[l], whh_ref[l],
                               preferred_element_type=jnp.float32)
                     + b_ref[l - 1])
        # PyTorch LSTM gate order: i, f, g, o (128-lane-aligned slices).
        i = jax.nn.sigmoid(gates[:, 0 * H:1 * H])
        f = jax.nn.sigmoid(gates[:, 1 * H:2 * H])
        g = jnp.tanh(gates[:, 2 * H:3 * H])
        o = jax.nn.sigmoid(gates[:, 3 * H:4 * H])
        c_new = f * c_ref[l] + i * g
        h_new = o * jnp.tanh(c_new)
        c_ref[l] = c_new
        h_ref[l] = h_new
        layer_in = h_new    # lstm_dropout = 0.0 -> identity between layers

    @pl.when(t == pl.num_programs(0) - 1)
    def _():
        # fc1 -> relu -> dropout(p=0.0 == identity) -> fc2
        hh = jnp.maximum(
            jnp.dot(layer_in, fc1w_ref[...], preferred_element_type=jnp.float32)
            + fc1b_ref[...], 0.0)
        logits = (jnp.dot(hh, fc2w_ref[...], preferred_element_type=jnp.float32)
                  + fc2b_ref[...])
        out_ref[...] = logits.astype(out_ref.dtype)


# --------------------------------------------------------------------------
# Pallas wrappers
# --------------------------------------------------------------------------
def _pick_block_m(M, desired=512):
    for cand in (desired, 512, 256, 128, 64, 32, 16, 8):
        if cand <= M and M % cand == 0:
            return cand
    return M


def _pick_block_k(K, desired=384):
    if K <= desired:
        return K
    for cand in (desired, 256, 128):
        if K % cand == 0:
            return cand
    return K


def matmul_bias(x, w, b, *, relu=False):
    M, K = x.shape
    _, N = w.shape
    bm = _pick_block_m(M)
    bk = _pick_block_k(K)
    grid = (M // bm, K // bk)
    return pl.pallas_call(
        functools.partial(_mm_bias_kernel, relu=relu),
        grid=grid,
        in_specs=[pl.BlockSpec((bm, bk), lambda i, k: (i, k)),
                  pl.BlockSpec((bk, N), lambda i, k: (k, 0)),
                  pl.BlockSpec((1, N), lambda i, k: (0, 0))],
        out_specs=pl.BlockSpec((bm, N), lambda i, k: (i, 0)),
        out_shape=jax.ShapeDtypeStruct((M, N), jnp.float32),
        scratch_shapes=[pltpu.VMEM((bm, N), jnp.float32)],
        compiler_params=pltpu.CompilerParams(
            dimension_semantics=("parallel", "arbitrary")),
    )(x, w, b)


def _im2col_3x3(x_nhwc):
    # Pure layout glue (zero-pad + 9 shifted slices).
    B, H, W, C = x_nhwc.shape
    xp = jnp.pad(x_nhwc, ((0, 0), (1, 1), (1, 1), (0, 0)))
    cols = [xp[:, kh:kh + H, kw:kw + W, :]
            for kh in range(3) for kw in range(3)]
    return jnp.concatenate(cols, axis=-1).reshape(B * H * W, 9 * C)


def conv3x3(x_nhwc, w_hwio, b, *, relu=True):
    B, H, W, Cin = x_nhwc.shape
    Cout = w_hwio.shape[-1]
    col = _im2col_3x3(x_nhwc)                      # [B*H*W, 9*Cin]
    w2d = w_hwio.reshape(9 * Cin, Cout)
    K = 9 * Cin
    Kp = ((K + 31) // 32) * 32                     # pad tiny K (stem 27 -> 32)
    if Kp != K:
        col = jnp.pad(col, ((0, 0), (0, Kp - K)))
        w2d = jnp.pad(w2d, ((0, Kp - K), (0, 0)))
    y = matmul_bias(col, w2d, b.reshape(1, Cout), relu=relu)
    return y.reshape(B, H, W, Cout)


def conv3x3_res_gap(x_nhwc, w_hwio, b, residual_nhwc, *, imgs_per_block=2):
    """conv3x3 + bias + identity residual + relu + global-average-pool, fused."""
    B, H, W, Cin = x_nhwc.shape
    Cout = w_hwio.shape[-1]
    col = _im2col_3x3(x_nhwc)                      # [B*H*W, 9*Cin]
    w2d = w_hwio.reshape(9 * Cin, Cout)
    res = residual_nhwc.reshape(B * H * W, Cout)
    bm = min(imgs_per_block, B)
    while B % bm != 0:
        bm -= 1
    n_blocks = B // bm
    hw = H * W
    out = pl.pallas_call(
        functools.partial(_conv_res_gap_kernel, hw=hw),
        grid=(n_blocks,),
        in_specs=[pl.BlockSpec((bm * hw, 9 * Cin), lambda i: (i, 0)),
                  pl.BlockSpec((9 * Cin, Cout), lambda i: (0, 0)),
                  pl.BlockSpec((1, Cout), lambda i: (0, 0)),
                  pl.BlockSpec((bm * hw, Cout), lambda i: (i, 0))],
        out_specs=pl.BlockSpec((1, bm, Cout), lambda i: (i, 0, 0)),
        out_shape=jax.ShapeDtypeStruct((n_blocks, bm, Cout), jnp.float32),
        compiler_params=pltpu.CompilerParams(
            dimension_semantics=("parallel",)),
    )(col, w2d, b.reshape(1, Cout), res)
    return out.reshape(B, Cout)                    # pooled features


def lstm_stack_head(x_proj, wih_rest, whh_all, b_rest,
                    fc1_w_t, fc1_b, fc2_w_t, fc2_b, *, num_layers, hidden):
    T, B, G = x_proj.shape                         # G == 4*hidden
    num_classes = fc2_w_t.shape[1]
    return pl.pallas_call(
        functools.partial(_lstm_head_kernel,
                          num_layers=num_layers, hidden=hidden),
        grid=(T,),
        in_specs=[
            pl.BlockSpec((1, B, G), lambda t: (t, 0, 0)),
            pl.BlockSpec(wih_rest.shape, lambda t: (0, 0, 0)),
            pl.BlockSpec(whh_all.shape, lambda t: (0, 0, 0)),
            pl.BlockSpec(b_rest.shape, lambda t: (0, 0, 0)),
            pl.BlockSpec(fc1_w_t.shape, lambda t: (0, 0)),
            pl.BlockSpec(fc1_b.shape, lambda t: (0, 0)),
            pl.BlockSpec(fc2_w_t.shape, lambda t: (0, 0)),
            pl.BlockSpec(fc2_b.shape, lambda t: (0, 0)),
        ],
        out_specs=pl.BlockSpec((B, num_classes), lambda t: (0, 0)),
        out_shape=jax.ShapeDtypeStruct((B, num_classes), jnp.float32),
        scratch_shapes=[pltpu.VMEM((num_layers, B, hidden), jnp.float32),
                        pltpu.VMEM((num_layers, B, hidden), jnp.float32)],
        compiler_params=pltpu.CompilerParams(
            dimension_semantics=("arbitrary",)),
    )(x_proj, wih_rest, whh_all, b_rest, fc1_w_t, fc1_b, fc2_w_t, fc2_b)


# --------------------------------------------------------------------------
# Model forward (mirrors ResNetConvLSTM.forward)
# --------------------------------------------------------------------------
def resnet_convlstm_forward(x_3d, params):
    """x_3d: [B, T, C, H, W] (PyTorch layout)."""
    B, T, C, H, W = x_3d.shape

    # NCHW -> NHWC once for the whole clip, then batch the backbone over B*T.
    frames = jnp.transpose(x_3d, (0, 1, 3, 4, 2)).reshape(B * T, H, W, C)

    x = conv3x3(frames, params["stem_w"], params["stem_b"], relu=True)
    identity = x
    x = conv3x3(x, params["blk_w1"], params["blk_b1"], relu=True)
    feats = conv3x3_res_gap(x, params["blk_w2"], params["blk_b2"], identity)
    # feats: [B*T, feat]  ==  resnet(x).view(B, -1) per frame

    feat_dim = feats.shape[-1]
    hidden = params["lstm"][0]["whh_t"].shape[0]
    L = len(params["lstm"])

    # Hoist the layer-0 input-to-hidden projection over ALL timesteps.
    feats_tb = jnp.transpose(feats.reshape(B, T, feat_dim), (1, 0, 2))
    xproj = matmul_bias(feats_tb.reshape(T * B, feat_dim),
                        params["lstm"][0]["wih_t"], params["lstm"][0]["b"])
    xproj = xproj.reshape(T, B, 4 * hidden)

    whh_all = jnp.stack([p["whh_t"] for p in params["lstm"]])        # [L,H,4H]
    if L > 1:
        wih_rest = jnp.stack([p["wih_t"] for p in params["lstm"][1:]])
        b_rest = jnp.stack([p["b"] for p in params["lstm"][1:]])
    else:
        wih_rest = jnp.zeros((1, hidden, 4 * hidden), jnp.float32)
        b_rest = jnp.zeros((1, 1, 4 * hidden), jnp.float32)

    # Whole recurrence (L layers x T steps) + fc1/relu/fc2 head in ONE call.
    return lstm_stack_head(xproj, wih_rest, whh_all, b_rest,
                           params["fc1_w_t"], params["fc1_b"],
                           params["fc2_w_t"], params["fc2_b"],
                           num_layers=L, hidden=hidden)


# --------------------------------------------------------------------------
# Deterministic parameter initialization (synthetic, no checkpoint)
# --------------------------------------------------------------------------
def init_params(key, *, in_ch=3, feat=128, hidden=128, layers=3,
                fc1_out=128, num_classes=2):
    # feat / hidden / fc1_out chosen as multiples of 128 for lane-dense stores.
    def nrm(k, shape, scale):
        return scale * jax.random.normal(k, shape, dtype=jnp.float32)

    keys = iter(jax.random.split(key, 40))
    p = {}
    p["stem_w"] = nrm(next(keys), (3, 3, in_ch, feat), 0.10)     # HWIO
    p["stem_b"] = nrm(next(keys), (feat,), 0.01)
    p["blk_w1"] = nrm(next(keys), (3, 3, feat, feat), 0.05)
    p["blk_b1"] = nrm(next(keys), (feat,), 0.01)
    p["blk_w2"] = nrm(next(keys), (3, 3, feat, feat), 0.05)
    p["blk_b2"] = nrm(next(keys), (feat,), 0.01)

    lstm = []
    in_sz = feat
    s = 1.0 / (hidden ** 0.5)
    for _ in range(layers):
        wih = nrm(next(keys), (4 * hidden, in_sz), s)            # torch [4H, in]
        whh = nrm(next(keys), (4 * hidden, hidden), s)           # torch [4H, H]
        bih = nrm(next(keys), (4 * hidden,), s)
        bhh = nrm(next(keys), (4 * hidden,), s)
        lstm.append({"wih_t": wih.T, "whh_t": whh.T,
                     "b": (bih + bhh).reshape(1, 4 * hidden)})
        in_sz = hidden
    p["lstm"] = lstm

    p["fc1_w_t"] = nrm(next(keys), (fc1_out, hidden), 1.0 / hidden ** 0.5).T
    p["fc1_b"] = nrm(next(keys), (1, fc1_out), 0.01)
    p["fc2_w_t"] = nrm(next(keys), (num_classes, fc1_out), 1.0 / fc1_out ** 0.5).T
    p["fc2_b"] = nrm(next(keys), (1, num_classes), 0.01)
    return p


if __name__ == "__main__":
    key = jax.random.PRNGKey(0)
    kx, kp = jax.random.split(key)

    # Small shapes consistent with the module: [B, T, C=3, H, W]
    B, T, C, H, W = 2, 4, 3, 16, 16
    x_3d = jax.random.normal(kx, (B, T, C, H, W), dtype=jnp.float32)
    params = init_params(kp)

    fwd = jax.jit(lambda x: resnet_convlstm_forward(x, params))
    logits = fwd(x_3d)
    jax.block_until_ready(logits)
    assert logits.shape == (B, 2) and logits.dtype == jnp.float32
    print("KERNEL_OK")
</pallas_src>

<mosaic_0001>
module attributes {stable_mosaic.version = 11 : i64} {
  func.func @_mm_bias_kernel(%arg0: i32, %arg1: i32, %arg2: memref<512x32xf32, #tpu.memory_space<vmem>>, %arg3: memref<32x128xf32, #tpu.memory_space<vmem>>, %arg4: memref<1x128xf32, #tpu.memory_space<vmem>>, %arg5: memref<512x128xf32, #tpu.memory_space<vmem>>, %arg6: memref<512x128xf32, #tpu.memory_space<vmem>>) attributes {dimension_semantics = [#tpu.dimension_semantics<parallel>, #tpu.dimension_semantics<arbitrary>], iteration_bounds = array<i64: 4, 1>, scalar_prefetch = 0 : i64, scratch_operands = 1 : i64, tpu.core_type = #tpu.core_type<tc>, window_params = [{transform_indices = @transform_0, window_bounds = array<i64: 512, 32>}, {transform_indices = @transform_1, window_bounds = array<i64: 32, 128>}, {pipeline_mode = #tpu.pipeline_mode<synchronous>, transform_indices = @transform_2, window_bounds = array<i64: 1, 128>}, {transform_indices = @transform_3, window_bounds = array<i64: 512, 128>}]} {
    %c0_i32 = arith.constant 0 : i32
    %0 = arith.cmpi eq, %arg1, %c0_i32 : i32
    %1 = arith.extui %0 : i1 to i32
    %c0_i32_0 = arith.constant 0 : i32
    %2 = arith.cmpi ne, %1, %c0_i32_0 : i32
    scf.if %2 {
      %cst_10 = arith.constant 0.000000e+00 : f32
      %12 = vector.broadcast %cst_10 : f32 to vector<512x128xf32>
      %c0_11 = arith.constant 0 : index
      %c0_12 = arith.constant 0 : index
      %13 = vector.load %arg6[%c0_11, %c0_12] : memref<512x128xf32, #tpu.memory_space<vmem>>, vector<512x128xf32>
      tpu.vector_store %arg6[%c0_11, %c0_12], %12 {strides = array<i32>} : memref<512x128xf32, #tpu.memory_space<vmem>>, vector<512x128xf32>,
    } else {
    }
    %c0 = arith.constant 0 : index
    %c0_1 = arith.constant 0 : index
    %3 = vector.load %arg6[%c0, %c0_1] : memref<512x128xf32, #tpu.memory_space<vmem>>, vector<512x128xf32>
    %c0_2 = arith.constant 0 : index
    %c0_3 = arith.constant 0 : index
    %4 = vector.load %arg2[%c0_2, %c0_3] : memref<512x32xf32, #tpu.memory_space<vmem>>, vector<512x32xf32>
    %c0_4 = arith.constant 0 : index
    %c0_5 = arith.constant 0 : index
    %5 = vector.load %arg3[%c0_4, %c0_5] : memref<32x128xf32, #tpu.memory_space<vmem>>, vector<32x128xf32>
    %cst = arith.constant dense<0.000000e+00> : vector<512x128xf32>
    %6 = tpu.matmul %4, %5, %cst {dimension_numbers = #tpu.dot_dimension_numbers<[1], [0], [0], [1], [0, 0, 1, 1], [], []>} : vector<512x32xf32>, vector<32x128xf32>, vector<512x128xf32> -> vector<512x128xf32>
    %7 = arith.addf %3, %6 : vector<512x128xf32>
    %c0_6 = arith.constant 0 : index
    %c0_7 = arith.constant 0 : index
    %8 = vector.load %arg6[%c0_6, %c0_7] : memref<512x128xf32, #tpu.memory_space<vmem>>, vector<512x128xf32>
    tpu.vector_store %arg6[%c0_6, %c0_7], %7 {strides = array<i32>} : memref<512x128xf32, #tpu.memory_space<vmem>>, vector<512x128xf32>,
    %c0_i32_8 = arith.constant 0 : i32
    %9 = arith.cmpi eq, %arg1, %c0_i32_8 : i32
    %10 = arith.extui %9 : i1 to i32
    %c0_i32_9 = arith.constant 0 : i32
    %11 = arith.cmpi ne, %10, %c0_i32_9 : i32
    scf.if %11 {
      %c0_10 = arith.constant 0 : index
      %c0_11 = arith.constant 0 : index
      %12 = vector.load %arg6[%c0_10, %c0_11] : memref<512x128xf32, #tpu.memory_space<vmem>>, vector<512x128xf32>
      %c0_12 = arith.constant 0 : index
      %c0_13 = arith.constant 0 : index
      %13 = vector.load %arg4[%c0_12, %c0_13] : memref<1x128xf32, #tpu.memory_space<vmem>>, vector<1x128xf32>
      %14 = vector.broadcast %13 : vector<1x128xf32> to vector<512x128xf32>
      %15 = arith.addf %12, %14 : vector<512x128xf32>
      %cst_14 = arith.constant 0.000000e+00 : f32
      %16 = vector.broadcast %cst_14 : f32 to vector<512x128xf32>
      %17 = arith.maximumf %15, %16 : vector<512x128xf32>
      %c0_15 = arith.constant 0 : index
      %c0_16 = arith.constant 0 : index
      %18 = vector.load %arg5[%c0_15, %c0_16] : memref<512x128xf32, #tpu.memory_space<vmem>>, vector<512x128xf32>
      tpu.vector_store %arg5[%c0_15, %c0_16], %17 {strides = array<i32>} : memref<512x128xf32, #tpu.memory_space<vmem>>, vector<512x128xf32>,
    } else {
    }
    return
  }
  func.func @transform_0(%arg0: i32, %arg1: i32) -> (i32, i32) {
    %c0_i32 = arith.constant 0 : i32
    return %arg0, %arg1 : i32, i32
  }
  func.func @transform_1(%arg0: i32, %arg1: i32) -> (i32, i32) {
    %c0_i32 = arith.constant 0 : i32
    %c0_i32_0 = arith.constant 0 : i32
    return %arg1, %c0_i32 : i32, i32
  }
  func.func @transform_2(%arg0: i32, %arg1: i32) -> (i32, i32) {
    %c0_i32 = arith.constant 0 : i32
    %c0_i32_0 = arith.constant 0 : i32
    %c0_i32_1 = arith.constant 0 : i32
    return %c0_i32, %c0_i32_0 : i32, i32
  }
  func.func @transform_3(%arg0: i32, %arg1: i32) -> (i32, i32) {
    %c0_i32 = arith.constant 0 : i32
    %c0_i32_0 = arith.constant 0 : i32
    return %arg0, %c0_i32 : i32, i32
  }
}

module attributes {stable_mosaic.version = 11 : i64} {
  func.func @_mm_bias_kernel(%arg0: i32, %arg1: i32, %arg2: memref<512x384xf32, #tpu.memory_space<vmem>>, %arg3: memref<384x128xf32, #tpu.memory_space<vmem>>, %arg4: memref<1x128xf32, #tpu.memory_space<vmem>>, %arg5: memref<512x128xf32, #tpu.memory_space<vmem>>, %arg6: memref<512x128xf32, #tpu.memory_space<vmem>>) attributes {dimension_semantics = [#tpu.dimension_semantics<parallel>, #tpu.dimension_semantics<arbitrary>], iteration_bounds = array<i64: 4, 3>, scalar_prefetch = 0 : i64, scratch_operands = 1 : i64, tpu.core_type = #tpu.core_type<tc>, window_params = [{transform_indices = @transform_0, window_bounds = array<i64: 512, 384>}, {transform_indices = @transform_1, window_bounds = array<i64: 384, 128>}, {pipeline_mode = #tpu.pipeline_mode<synchronous>, transform_indices = @transform_2, window_bounds = array<i64: 1, 128>}, {transform_indices = @transform_3, window_bounds = array<i64: 512, 128>}]} {
    %c0_i32 = arith.constant 0 : i32
    %0 = arith.cmpi eq, %arg1, %c0_i32 : i32
    %1 = arith.extui %0 : i1 to i32
    %c0_i32_0 = arith.constant 0 : i32
    %2 = arith.cmpi ne, %1, %c0_i32_0 : i32
    scf.if %2 {
      %cst_9 = arith.constant 0.000000e+00 : f32
      %12 = vector.broadcast %cst_9 : f32 to vector<512x128xf32>
      %c0_10 = arith.constant 0 : index
      %c0_11 = arith.constant 0 : index
      %13 = vector.load %arg6[%c0_10, %c0_11] : memref<512x128xf32, #tpu.memory_space<vmem>>, vector<512x128xf32>
      tpu.vector_store %arg6[%c0_10, %c0_11], %12 {strides = array<i32>} : memref<512x128xf32, #tpu.memory_space<vmem>>, vector<512x128xf32>,
    } else {
    }
    %c0 = arith.constant 0 : index
    %c0_1 = arith.constant 0 : index
    %3 = vector.load %arg6[%c0, %c0_1] : memref<512x128xf32, #tpu.memory_space<vmem>>, vector<512x128xf32>
    %c0_2 = arith.constant 0 : index
    %c0_3 = arith.constant 0 : index
    %4 = vector.load %arg2[%c0_2, %c0_3] : memref<512x384xf32, #tpu.memory_space<vmem>>, vector<512x384xf32>
    %c0_4 = arith.constant 0 : index
    %c0_5 = arith.constant 0 : index
    %5 = vector.load %arg3[%c0_4, %c0_5] : memref<384x128xf32, #tpu.memory_space<vmem>>, vector<384x128xf32>
    %cst = arith.constant dense<0.000000e+00> : vector<512x128xf32>
    %6 = tpu.matmul %4, %5, %cst {dimension_numbers = #tpu.dot_dimension_numbers<[1], [0], [0], [1], [0, 0, 1, 1], [], []>} : vector<512x384xf32>, vector<384x128xf32>, vector<512x128xf32> -> vector<512x128xf32>
    %7 = arith.addf %3, %6 : vector<512x128xf32>
    %c0_6 = arith.constant 0 : index
    %c0_7 = arith.constant 0 : index
    %8 = vector.load %arg6[%c0_6, %c0_7] : memref<512x128xf32, #tpu.memory_space<vmem>>, vector<512x128xf32>
    tpu.vector_store %arg6[%c0_6, %c0_7], %7 {strides = array<i32>} : memref<512x128xf32, #tpu.memory_space<vmem>>, vector<512x128xf32>,
    %c2_i32 = arith.constant 2 : i32
    %9 = arith.cmpi eq, %arg1, %c2_i32 : i32
    %10 = arith.extui %9 : i1 to i32
    %c0_i32_8 = arith.constant 0 : i32
    %11 = arith.cmpi ne, %10, %c0_i32_8 : i32
    scf.if %11 {
      %c0_9 = arith.constant 0 : index
      %c0_10 = arith.constant 0 : index
      %12 = vector.load %arg6[%c0_9, %c0_10] : memref<512x128xf32, #tpu.memory_space<vmem>>, vector<512x128xf32>
      %c0_11 = arith.constant 0 : index
      %c0_12 = arith.constant 0 : index
      %13 = vector.load %arg4[%c0_11, %c0_12] : memref<1x128xf32, #tpu.memory_space<vmem>>, vector<1x128xf32>
      %14 = vector.broadcast %13 : vector<1x128xf32> to vector<512x128xf32>
      %15 = arith.addf %12, %14 : vector<512x128xf32>
      %cst_13 = arith.constant 0.000000e+00 : f32
      %16 = vector.broadcast %cst_13 : f32 to vector<512x128xf32>
      %17 = arith.maximumf %15, %16 : vector<512x128xf32>
      %c0_14 = arith.constant 0 : index
      %c0_15 = arith.constant 0 : index
      %18 = vector.load %arg5[%c0_14, %c0_15] : memref<512x128xf32, #tpu.memory_space<vmem>>, vector<512x128xf32>
      tpu.vector_store %arg5[%c0_14, %c0_15], %17 {strides = array<i32>} : memref<512x128xf32, #tpu.memory_space<vmem>>, vector<512x128xf32>,
    } else {
    }
    return
  }
  func.func @transform_0(%arg0: i32, %arg1: i32) -> (i32, i32) {
    %c0_i32 = arith.constant 0 : i32
    return %arg0, %arg1 : i32, i32
  }
  func.func @transform_1(%arg0: i32, %arg1: i32) -> (i32, i32) {
    %c0_i32 = arith.constant 0 : i32
    %c0_i32_0 = arith.constant 0 : i32
    return %arg1, %c0_i32 : i32, i32
  }
  func.func @transform_2(%arg0: i32, %arg1: i32) -> (i32, i32) {
    %c0_i32 = arith.constant 0 : i32
    %c0_i32_0 = arith.constant 0 : i32
    %c0_i32_1 = arith.constant 0 : i32
    return %c0_i32, %c0_i32_0 : i32, i32
  }
  func.func @transform_3(%arg0: i32, %arg1: i32) -> (i32, i32) {
    %c0_i32 = arith.constant 0 : i32
    %c0_i32_0 = arith.constant 0 : i32
    return %arg0, %c0_i32 : i32, i32
  }
}

module attributes {stable_mosaic.version = 11 : i64} {
  func.func @_conv_res_gap_kernel(%arg0: i32, %arg1: memref<512x1152xf32, #tpu.memory_space<vmem>>, %arg2: memref<1152x128xf32, #tpu.memory_space<vmem>>, %arg3: memref<1x128xf32, #tpu.memory_space<vmem>>, %arg4: memref<512x128xf32, #tpu.memory_space<vmem>>, %arg5: memref<1x2x128xf32, #tpu.memory_space<vmem>>) attributes {dimension_semantics = [#tpu.dimension_semantics<parallel>], iteration_bounds = array<i64: 4>, scalar_prefetch = 0 : i64, scratch_operands = 0 : i64, tpu.core_type = #tpu.core_type<tc>, window_params = [{transform_indices = @transform_0, window_bounds = array<i64: 512, 1152>}, {pipeline_mode = #tpu.pipeline_mode<synchronous>, transform_indices = @transform_1, window_bounds = array<i64: 1152, 128>}, {pipeline_mode = #tpu.pipeline_mode<synchronous>, transform_indices = @transform_2, window_bounds = array<i64: 1, 128>}, {transform_indices = @transform_3, window_bounds = array<i64: 512, 128>}, {transform_indices = @transform_4, window_bounds = array<i64: 1, 2, 128>}]} {
    %c0 = arith.constant 0 : index
    %c0_0 = arith.constant 0 : index
    %0 = vector.load %arg1[%c0, %c0_0] : memref<512x1152xf32, #tpu.memory_space<vmem>>, vector<512x1152xf32>
    %c0_1 = arith.constant 0 : index
    %c0_2 = arith.constant 0 : index
    %1 = vector.load %arg2[%c0_1, %c0_2] : memref<1152x128xf32, #tpu.memory_space<vmem>>, vector<1152x128xf32>
    %cst = arith.constant dense<0.000000e+00> : vector<512x128xf32>
    %2 = tpu.matmul %0, %1, %cst {dimension_numbers = #tpu.dot_dimension_numbers<[1], [0], [0], [1], [0, 0, 1, 1], [], []>} : vector<512x1152xf32>, vector<1152x128xf32>, vector<512x128xf32> -> vector<512x128xf32>
    %c0_3 = arith.constant 0 : index
    %c0_4 = arith.constant 0 : index
    %3 = vector.load %arg3[%c0_3, %c0_4] : memref<1x128xf32, #tpu.memory_space<vmem>>, vector<1x128xf32>
    %4 = vector.broadcast %3 : vector<1x128xf32> to vector<512x128xf32>
    %5 = arith.addf %2, %4 : vector<512x128xf32>
    %c0_5 = arith.constant 0 : index
    %c0_6 = arith.constant 0 : index
    %6 = vector.load %arg4[%c0_5, %c0_6] : memref<512x128xf32, #tpu.memory_space<vmem>>, vector<512x128xf32>
    %7 = arith.addf %5, %6 : vector<512x128xf32>
    %cst_7 = arith.constant 0.000000e+00 : f32
    %8 = vector.broadcast %cst_7 : f32 to vector<512x128xf32>
    %9 = arith.maximumf %7, %8 : vector<512x128xf32>
    %10 = vector.shape_cast %9 : vector<512x128xf32> to vector<2x256x128xf32>
    %cst_8 = arith.constant dense<0.000000e+00> : vector<2x128xf32>
    %11 = vector.multi_reduction <add>, %10, %cst_8 [1] : vector<2x256x128xf32> to vector<2x128xf32>
    %cst_9 = arith.constant 2.560000e+02 : f32
    %12 = vector.broadcast %cst_9 : f32 to vector<2x128xf32>
    %13 = arith.divf %11, %12 : vector<2x128xf32>
    %14 = vector.shape_cast %13 : vector<2x128xf32> to vector<1x2x128xf32>
    %c0_10 = arith.constant 0 : index
    %c0_11 = arith.constant 0 : index
    %c0_12 = arith.constant 0 : index
    %15 = vector.load %arg5[%c0_10, %c0_11, %c0_12] : memref<1x2x128xf32, #tpu.memory_space<vmem>>, vector<1x2x128xf32>
    tpu.vector_store %arg5[%c0_10, %c0_11, %c0_12], %14 {strides = array<i32>} : memref<1x2x128xf32, #tpu.memory_space<vmem>>, vector<1x2x128xf32>,
    return
  }
  func.func @transform_0(%arg0: i32) -> (i32, i32) {
    %c0_i32 = arith.constant 0 : i32
    %c0_i32_0 = arith.constant 0 : i32
    return %arg0, %c0_i32 : i32, i32
  }
  func.func @transform_1(%arg0: i32) -> (i32, i32) {
    %c0_i32 = arith.constant 0 : i32
    %c0_i32_0 = arith.constant 0 : i32
    %c0_i32_1 = arith.constant 0 : i32
    return %c0_i32, %c0_i32_0 : i32, i32
  }
  func.func @transform_2(%arg0: i32) -> (i32, i32) {
    %c0_i32 = arith.constant 0 : i32
    %c0_i32_0 = arith.constant 0 : i32
    %c0_i32_1 = arith.constant 0 : i32
    return %c0_i32, %c0_i32_0 : i32, i32
  }
  func.func @transform_3(%arg0: i32) -> (i32, i32) {
    %c0_i32 = arith.constant 0 : i32
    %c0_i32_0 = arith.constant 0 : i32
    return %arg0, %c0_i32 : i32, i32
  }
  func.func @transform_4(%arg0: i32) -> (i32, i32, i32) {
    %c0_i32 = arith.constant 0 : i32
    %c0_i32_0 = arith.constant 0 : i32
    %c0_i32_1 = arith.constant 0 : i32
    return %arg0, %c0_i32, %c0_i32_0 : i32, i32, i32
  }
}

module attributes {stable_mosaic.version = 11 : i64} {
  func.func @_mm_bias_kernel(%arg0: i32, %arg1: i32, %arg2: memref<8x128xf32, #tpu.memory_space<vmem>>, %arg3: memref<128x512xf32, #tpu.memory_space<vmem>>, %arg4: memref<1x512xf32, #tpu.memory_space<vmem>>, %arg5: memref<8x512xf32, #tpu.memory_space<vmem>>, %arg6: memref<8x512xf32, #tpu.memory_space<vmem>>) attributes {dimension_semantics = [#tpu.dimension_semantics<parallel>, #tpu.dimension_semantics<arbitrary>], iteration_bounds = array<i64: 1, 1>, scalar_prefetch = 0 : i64, scratch_operands = 1 : i64, tpu.core_type = #tpu.core_type<tc>, window_params = [{transform_indices = @transform_0, window_bounds = array<i64: 8, 128>}, {transform_indices = @transform_1, window_bounds = array<i64: 128, 512>}, {pipeline_mode = #tpu.pipeline_mode<synchronous>, transform_indices = @transform_2, window_bounds = array<i64: 1, 512>}, {transform_indices = @transform_3, window_bounds = array<i64: 8, 512>}]} {
    %c0_i32 = arith.constant 0 : i32
    %0 = arith.cmpi eq, %arg1, %c0_i32 : i32
    %1 = arith.extui %0 : i1 to i32
    %c0_i32_0 = arith.constant 0 : i32
    %2 = arith.cmpi ne, %1, %c0_i32_0 : i32
    scf.if %2 {
      %cst_10 = arith.constant 0.000000e+00 : f32
      %12 = vector.broadcast %cst_10 : f32 to vector<8x512xf32>
      %c0_11 = arith.constant 0 : index
      %c0_12 = arith.constant 0 : index
      %13 = vector.load %arg6[%c0_11, %c0_12] : memref<8x512xf32, #tpu.memory_space<vmem>>, vector<8x512xf32>
      tpu.vector_store %arg6[%c0_11, %c0_12], %12 {strides = array<i32>} : memref<8x512xf32, #tpu.memory_space<vmem>>, vector<8x512xf32>,
    } else {
    }
    %c0 = arith.constant 0 : index
    %c0_1 = arith.constant 0 : index
    %3 = vector.load %arg6[%c0, %c0_1] : memref<8x512xf32, #tpu.memory_space<vmem>>, vector<8x512xf32>
    %c0_2 = arith.constant 0 : index
    %c0_3 = arith.constant 0 : index
    %4 = vector.load %arg2[%c0_2, %c0_3] : memref<8x128xf32, #tpu.memory_space<vmem>>, vector<8x128xf32>
    %c0_4 = arith.constant 0 : index
    %c0_5 = arith.constant 0 : index
    %5 = vector.load %arg3[%c0_4, %c0_5] : memref<128x512xf32, #tpu.memory_space<vmem>>, vector<128x512xf32>
    %cst = arith.constant dense<0.000000e+00> : vector<8x512xf32>
    %6 = tpu.matmul %4, %5, %cst {dimension_numbers = #tpu.dot_dimension_numbers<[1], [0], [0], [1], [0, 0, 1, 1], [], []>} : vector<8x128xf32>, vector<128x512xf32>, vector<8x512xf32> -> vector<8x512xf32>
    %7 = arith.addf %3, %6 : vector<8x512xf32>
    %c0_6 = arith.constant 0 : index
    %c0_7 = arith.constant 0 : index
    %8 = vector.load %arg6[%c0_6, %c0_7] : memref<8x512xf32, #tpu.memory_space<vmem>>, vector<8x512xf32>
    tpu.vector_store %arg6[%c0_6, %c0_7], %7 {strides = array<i32>} : memref<8x512xf32, #tpu.memory_space<vmem>>, vector<8x512xf32>,
    %c0_i32_8 = arith.constant 0 : i32
    %9 = arith.cmpi eq, %arg1, %c0_i32_8 : i32
    %10 = arith.extui %9 : i1 to i32
    %c0_i32_9 = arith.constant 0 : i32
    %11 = arith.cmpi ne, %10, %c0_i32_9 : i32
    scf.if %11 {
      %c0_10 = arith.constant 0 : index
      %c0_11 = arith.constant 0 : index
      %12 = vector.load %arg6[%c0_10, %c0_11] : memref<8x512xf32, #tpu.memory_space<vmem>>, vector<8x512xf32>
      %c0_12 = arith.constant 0 : index
      %c0_13 = arith.constant 0 : index
      %13 = vector.load %arg4[%c0_12, %c0_13] : memref<1x512xf32, #tpu.memory_space<vmem>>, vector<1x512xf32>
      %14 = vector.broadcast %13 : vector<1x512xf32> to vector<8x512xf32>
      %15 = arith.addf %12, %14 : vector<8x512xf32>
      %c0_14 = arith.constant 0 : index
      %c0_15 = arith.constant 0 : index
      %16 = vector.load %arg5[%c0_14, %c0_15] : memref<8x512xf32, #tpu.memory_space<vmem>>, vector<8x512xf32>
      tpu.vector_store %arg5[%c0_14, %c0_15], %15 {strides = array<i32>} : memref<8x512xf32, #tpu.memory_space<vmem>>, vector<8x512xf32>,
    } else {
    }
    return
  }
  func.func @transform_0(%arg0: i32, %arg1: i32) -> (i32, i32) {
    %c0_i32 = arith.constant 0 : i32
    return %arg0, %arg1 : i32, i32
  }
  func.func @transform_1(%arg0: i32, %arg1: i32) -> (i32, i32) {
    %c0_i32 = arith.constant 0 : i32
    %c0_i32_0 = arith.constant 0 : i32
    return %arg1, %c0_i32 : i32, i32
  }
  func.func @transform_2(%arg0: i32, %arg1: i32) -> (i32, i32) {
    %c0_i32 = arith.constant 0 : i32
    %c0_i32_0 = arith.constant 0 : i32
    %c0_i32_1 = arith.constant 0 : i32
    return %c0_i32, %c0_i32_0 : i32, i32
  }
  func.func @transform_3(%arg0: i32, %arg1: i32) -> (i32, i32) {
    %c0_i32 = arith.constant 0 : i32
    %c0_i32_0 = arith.constant 0 : i32
    return %arg0, %c0_i32 : i32, i32
  }
}

module attributes {stable_mosaic.version = 11 : i64} {
  func.func @_lstm_head_kernel(%arg0: i32, %arg1: memref<1x2x512xf32, #tpu.memory_space<vmem>>, %arg2: memref<2x128x512xf32, #tpu.memory_space<vmem>>, %arg3: memref<3x128x512xf32, #tpu.memory_space<vmem>>, %arg4: memref<2x1x512xf32, #tpu.memory_space<vmem>>, %arg5: memref<128x128xf32, #tpu.memory_space<vmem>>, %arg6: memref<1x128xf32, #tpu.memory_space<vmem>>, %arg7: memref<128x2xf32, #tpu.memory_space<vmem>>, %arg8: memref<1x2xf32, #tpu.memory_space<vmem>>, %arg9: memref<2x2xf32, #tpu.memory_space<vmem>>, %arg10: memref<3x2x128xf32, #tpu.memory_space<vmem>>, %arg11: memref<3x2x128xf32, #tpu.memory_space<vmem>>) attributes {dimension_semantics = [#tpu.dimension_semantics<arbitrary>], iteration_bounds = array<i64: 4>, scalar_prefetch = 0 : i64, scratch_operands = 2 : i64, tpu.core_type = #tpu.core_type<tc>, window_params = [{transform_indices = @transform_0, window_bounds = array<i64: 1, 2, 512>}, {pipeline_mode = #tpu.pipeline_mode<synchronous>, transform_indices = @transform_1, window_bounds = array<i64: 2, 128, 512>}, {pipeline_mode = #tpu.pipeline_mode<synchronous>, transform_indices = @transform_2, window_bounds = array<i64: 3, 128, 512>}, {pipeline_mode = #tpu.pipeline_mode<synchronous>, transform_indices = @transform_3, window_bounds = array<i64: 2, 1, 512>}, {pipeline_mode = #tpu.pipeline_mode<synchronous>, transform_indices = @transform_4, window_bounds = array<i64: 128, 128>}, {pipeline_mode = #tpu.pipeline_mode<synchronous>, transform_indices = @transform_5, window_bounds = array<i64: 1, 128>}, {pipeline_mode = #tpu.pipeline_mode<synchronous>, transform_indices = @transform_6, window_bounds = array<i64: 128, 2>}, {pipeline_mode = #tpu.pipeline_mode<synchronous>, transform_indices = @transform_7, window_bounds = array<i64: 1, 2>}, {pipeline_mode = #tpu.pipeline_mode<synchronous>, transform_indices = @transform_8, window_bounds = array<i64: 2, 2>}]} {
    %c0_i32 = arith.constant 0 : i32
    %0 = arith.cmpi eq, %arg0, %c0_i32 : i32
    %1 = arith.extui %0 : i1 to i32
    %c0_i32_0 = arith.constant 0 : i32
    %2 = arith.cmpi ne, %1, %c0_i32_0 : i32
    scf.if %2 {
      %cst_72 = arith.constant 0.000000e+00 : f32
      %139 = vector.broadcast %cst_72 : f32 to vector<3x2x128xf32>
      %c0_73 = arith.constant 0 : index
      %c0_74 = arith.constant 0 : index
      %c0_75 = arith.constant 0 : index
      %140 = vector.load %arg10[%c0_73, %c0_74, %c0_75] : memref<3x2x128xf32, #tpu.memory_space<vmem>>, vector<3x2x128xf32>
      tpu.vector_store %arg10[%c0_73, %c0_74, %c0_75], %139 {strides = array<i32>} : memref<3x2x128xf32, #tpu.memory_space<vmem>>, vector<3x2x128xf32>,
      %cst_76 = arith.constant 0.000000e+00 : f32
      %141 = vector.broadcast %cst_76 : f32 to vector<3x2x128xf32>
      %c0_77 = arith.constant 0 : index
      %c0_78 = arith.constant 0 : index
      %c0_79 = arith.constant 0 : index
      %142 = vector.load %arg11[%c0_77, %c0_78, %c0_79] : memref<3x2x128xf32, #tpu.memory_space<vmem>>, vector<3x2x128xf32>
      tpu.vector_store %arg11[%c0_77, %c0_78, %c0_79], %141 {strides = array<i32>} : memref<3x2x128xf32, #tpu.memory_space<vmem>>, vector<3x2x128xf32>,
    } else {
    }
    %c0 = arith.constant 0 : index
    %c0_1 = arith.constant 0 : index
    %c0_2 = arith.constant 0 : index
    %3 = vector.load %arg1[%c0, %c0_1, %c0_2] : memref<1x2x512xf32, #tpu.memory_space<vmem>>, vector<1x2x512xf32>
    %4 = vector.shape_cast %3 : vector<1x2x512xf32> to vector<2x512xf32>
    %c0_3 = arith.constant 0 : index
    %c0_4 = arith.constant 0 : index
    %c0_5 = arith.constant 0 : index
    %5 = vector.load %arg10[%c0_3, %c0_4, %c0_5] : memref<3x2x128xf32, #tpu.memory_space<vmem>>, vector<1x2x128xf32>
    %6 = vector.shape_cast %5 : vector<1x2x128xf32> to vector<2x128xf32>
    %c0_6 = arith.constant 0 : index
    %c0_7 = arith.constant 0 : index
    %c0_8 = arith.constant 0 : index
    %7 = vector.load %arg3[%c0_6, %c0_7, %c0_8] : memref<3x128x512xf32, #tpu.memory_space<vmem>>, vector<1x128x512xf32>
    %8 = vector.shape_cast %7 : vector<1x128x512xf32> to vector<128x512xf32>
    %cst = arith.constant dense<0.000000e+00> : vector<2x512xf32>
    %9 = tpu.matmul %6, %8, %cst {dimension_numbers = #tpu.dot_dimension_numbers<[1], [0], [0], [1], [0, 0, 1, 1], [], []>} : vector<2x128xf32>, vector<128x512xf32>, vector<2x512xf32> -> vector<2x512xf32>
    %10 = arith.addf %4, %9 : vector<2x512xf32>
    %11 = vector.extract_strided_slice %10 {offsets = [0, 0], sizes = [2, 128], strides = [1, 1]} : vector<2x512xf32> to vector<2x128xf32>
    %12 = arith.negf %11 : vector<2x128xf32>
    %13 = math.exp %12 : vector<2x128xf32>
    %cst_9 = arith.constant 1.000000e+00 : f32
    %14 = vector.broadcast %cst_9 : f32 to vector<2x128xf32>
    %15 = arith.addf %14, %13 : vector<2x128xf32>
    %16 = arith.divf %14, %15 : vector<2x128xf32>
    %17 = vector.extract_strided_slice %10 {offsets = [0, 128], sizes = [2, 128], strides = [1, 1]} : vector<2x512xf32> to vector<2x128xf32>
    %18 = arith.negf %17 : vector<2x128xf32>
    %19 = math.exp %18 : vector<2x128xf32>
    %cst_10 = arith.constant 1.000000e+00 : f32
    %20 = vector.broadcast %cst_10 : f32 to vector<2x128xf32>
    %21 = arith.addf %20, %19 : vector<2x128xf32>
    %22 = arith.divf %20, %21 : vector<2x128xf32>
    %23 = vector.extract_strided_slice %10 {offsets = [0, 256], sizes = [2, 128], strides = [1, 1]} : vector<2x512xf32> to vector<2x128xf32>
    %24 = math.tanh %23 : vector<2x128xf32>
    %25 = vector.extract_strided_slice %10 {offsets = [0, 384], sizes = [2, 128], strides = [1, 1]} : vector<2x512xf32> to vector<2x128xf32>
    %26 = arith.negf %25 : vector<2x128xf32>
    %27 = math.exp %26 : vector<2x128xf32>
    %cst_11 = arith.constant 1.000000e+00 : f32
    %28 = vector.broadcast %cst_11 : f32 to vector<2x128xf32>
    %29 = arith.addf %28, %27 : vector<2x128xf32>
    %30 = arith.divf %28, %29 : vector<2x128xf32>
    %c0_12 = arith.constant 0 : index
    %c0_13 = arith.constant 0 : index
    %c0_14 = arith.constant 0 : index
    %31 = vector.load %arg11[%c0_12, %c0_13, %c0_14] : memref<3x2x128xf32, #tpu.memory_space<vmem>>, vector<1x2x128xf32>
    %32 = vector.shape_cast %31 : vector<1x2x128xf32> to vector<2x128xf32>
    %33 = arith.mulf %22, %32 : vector<2x128xf32>
    %34 = arith.mulf %16, %24 : vector<2x128xf32>
    %35 = arith.addf %33, %34 : vector<2x128xf32>
    %36 = math.tanh %35 : vector<2x128xf32>
    %37 = arith.mulf %30, %36 : vector<2x128xf32>
    %c0_15 = arith.constant 0 : index
    %c0_16 = arith.constant 0 : index
    %c0_17 = arith.constant 0 : index
    %38 = vector.load %arg11[%c0_15, %c0_16, %c0_17] : memref<3x2x128xf32, #tpu.memory_space<vmem>>, vector<1x2x128xf32>
    %39 = vector.shape_cast %38 : vector<1x2x128xf32> to vector<2x128xf32>
    %40 = vector.shape_cast %35 : vector<2x128xf32> to vector<1x2x128xf32>
    tpu.vector_store %arg11[%c0_15, %c0_16, %c0_17], %40 {strides = array<i32>} : memref<3x2x128xf32, #tpu.memory_space<vmem>>, vector<1x2x128xf32>,
    %c0_18 = arith.constant 0 : index
    %c0_19 = arith.constant 0 : index
    %c0_20 = arith.constant 0 : index
    %41 = vector.load %arg10[%c0_18, %c0_19, %c0_20] : memref<3x2x128xf32, #tpu.memory_space<vmem>>, vector<1x2x128xf32>
    %42 = vector.shape_cast %41 : vector<1x2x128xf32> to vector<2x128xf32>
    %43 = vector.shape_cast %37 : vector<2x128xf32> to vector<1x2x128xf32>
    tpu.vector_store %arg10[%c0_18, %c0_19, %c0_20], %43 {strides = array<i32>} : memref<3x2x128xf32, #tpu.memory_space<vmem>>, vector<1x2x128xf32>,
    %c0_21 = arith.constant 0 : index
    %c0_22 = arith.constant 0 : index
    %c0_23 = arith.constant 0 : index
    %44 = vector.load %arg2[%c0_21, %c0_22, %c0_23] : memref<2x128x512xf32, #tpu.memory_space<vmem>>, vector<1x128x512xf32>
    %45 = vector.shape_cast %44 : vector<1x128x512xf32> to vector<128x512xf32>
    %cst_24 = arith.constant dense<0.000000e+00> : vector<2x512xf32>
    %46 = tpu.matmul %37, %45, %cst_24 {dimension_numbers = #tpu.dot_dimension_numbers<[1], [0], [0], [1], [0, 0, 1, 1], [], []>} : vector<2x128xf32>, vector<128x512xf32>, vector<2x512xf32> -> vector<2x512xf32>
    %c1 = arith.constant 1 : index
    %c0_25 = arith.constant 0 : index
    %c0_26 = arith.constant 0 : index
    %47 = vector.load %arg10[%c1, %c0_25, %c0_26] : memref<3x2x128xf32, #tpu.memory_space<vmem>>, vector<1x2x128xf32>
    %48 = vector.shape_cast %47 : vector<1x2x128xf32> to vector<2x128xf32>
    %c1_27 = arith.constant 1 : index
    %c0_28 = arith.constant 0 : index
    %c0_29 = arith.constant 0 : index
    %49 = vector.load %arg3[%c1_27, %c0_28, %c0_29] : memref<3x128x512xf32, #tpu.memory_space<vmem>>, vector<1x128x512xf32>
    %50 = vector.shape_cast %49 : vector<1x128x512xf32> to vector<128x512xf32>
    %cst_30 = arith.constant dense<0.000000e+00> : vector<2x512xf32>
    %51 = tpu.matmul %48, %50, %cst_30 {dimension_numbers = #tpu.dot_dimension_numbers<[1], [0], [0], [1], [0, 0, 1, 1], [], []>} : vector<2x128xf32>, vector<128x512xf32>, vector<2x512xf32> -> vector<2x512xf32>
    %52 = arith.addf %46, %51 : vector<2x512xf32>
    %c0_31 = arith.constant 0 : index
    %c0_32 = arith.constant 0 : index
    %c0_33 = arith.constant 0 : index
    %53 = vector.load %arg4[%c0_31, %c0_32, %c0_33] : memref<2x1x512xf32, #tpu.memory_space<vmem>>, vector<1x1x512xf32>
    %54 = vector.shape_cast %53 : vector<1x1x512xf32> to vector<1x512xf32>
    %55 = vector.broadcast %54 : vector<1x512xf32> to vector<2x512xf32>
    %56 = arith.addf %52, %55 : vector<2x512xf32>
    %57 = vector.extract_strided_slice %56 {offsets = [0, 0], sizes = [2, 128], strides = [1, 1]} : vector<2x512xf32> to vector<2x128xf32>
    %58 = arith.negf %57 : vector<2x128xf32>
    %59 = math.exp %58 : vector<2x128xf32>
    %cst_34 = arith.constant 1.000000e+00 : f32
    %60 = vector.broadcast %cst_34 : f32 to vector<2x128xf32>
    %61 = arith.addf %60, %59 : vector<2x128xf32>
    %62 = arith.divf %60, %61 : vector<2x128xf32>
    %63 = vector.extract_strided_slice %56 {offsets = [0, 128], sizes = [2, 128], strides = [1, 1]} : vector<2x512xf32> to vector<2x128xf32>
    %64 = arith.negf %63 : vector<2x128xf32>
    %65 = math.exp %64 : vector<2x128xf32>
    %cst_35 = arith.constant 1.000000e+00 : f32
    %66 = vector.broadcast %cst_35 : f32 to vector<2x128xf32>
    %67 = arith.addf %66, %65 : vector<2x128xf32>
    %68 = arith.divf %66, %67 : vector<2x128xf32>
    %69 = vector.extract_strided_slice %56 {offsets = [0, 256], sizes = [2, 128], strides = [1, 1]} : vector<2x512xf32> to vector<2x128xf32>
    %70 = math.tanh %69 : vector<2x128xf32>
    %71 = vector.extract_strided_slice %56 {offsets = [0, 384], sizes = [2, 128], strides = [1, 1]} : vector<2x512xf32> to vector<2x128xf32>
    %72 = arith.negf %71 : vector<2x128xf32>
    %73 = math.exp %72 : vector<2x128xf32>
    %cst_36 = arith.constant 1.000000e+00 : f32
    %74 = vector.broadcast %cst_36 : f32 to vector<2x128xf32>
    %75 = arith.addf %74, %73 : vector<2x128xf32>
    %76 = arith.divf %74, %75 : vector<2x128xf32>
    %c1_37 = arith.constant 1 : index
    %c0_38 = arith.constant 0 : index
    %c0_39 = arith.constant 0 : index
    %77 = vector.load %arg11[%c1_37, %c0_38, %c0_39] : memref<3x2x128xf32, #tpu.memory_space<vmem>>, vector<1x2x128xf32>
    %78 = vector.shape_cast %77 : vector<1x2x128xf32> to vector<2x128xf32>
    %79 = arith.mulf %68, %78 : vector<2x128xf32>
    %80 = arith.mulf %62, %70 : vector<2x128xf32>
    %81 = arith.addf %79, %80 : vector<2x128xf32>
    %82 = math.tanh %81 : vector<2x128xf32>
    %83 = arith.mulf %76, %82 : vector<2x128xf32>
    %c1_40 = arith.constant 1 : index
    %c0_41 = arith.constant 0 : index
    %c0_42 = arith.constant 0 : index
    %84 = vector.load %arg11[%c1_40, %c0_41, %c0_42] : memref<3x2x128xf32, #tpu.memory_space<vmem>>, vector<1x2x128xf32>
    %85 = vector.shape_cast %84 : vector<1x2x128xf32> to vector<2x128xf32>
    %86 = vector.shape_cast %81 : vector<2x128xf32> to vector<1x2x128xf32>
    tpu.vector_store %arg11[%c1_40, %c0_41, %c0_42], %86 {strides = array<i32>} : memref<3x2x128xf32, #tpu.memory_space<vmem>>, vector<1x2x128xf32>,
    %c1_43 = arith.constant 1 : index
    %c0_44 = arith.constant 0 : index
    %c0_45 = arith.constant 0 : index
    %87 = vector.load %arg10[%c1_43, %c0_44, %c0_45] : memref<3x2x128xf32, #tpu.memory_space<vmem>>, vector<1x2x128xf32>
    %88 = vector.shape_cast %87 : vector<1x2x128xf32> to vector<2x128xf32>
    %89 = vector.shape_cast %83 : vector<2x128xf32> to vector<1x2x128xf32>
    tpu.vector_store %arg10[%c1_43, %c0_44, %c0_45], %89 {strides = array<i32>} : memref<3x2x128xf32, #tpu.memory_space<vmem>>, vector<1x2x128xf32>,
    %c1_46 = arith.constant 1 : index
    %c0_47 = arith.constant 0 : index
    %c0_48 = arith.constant 0 : index
    %90 = vector.load %arg2[%c1_46, %c0_47, %c0_48] : memref<2x128x512xf32, #tpu.memory_space<vmem>>, vector<1x128x512xf32>
    %91 = vector.shape_cast %90 : vector<1x128x512xf32> to vector<128x512xf32>
    %cst_49 = arith.constant dense<0.000000e+00> : vector<2x512xf32>
    %92 = tpu.matmul %83, %91, %cst_49 {dimension_numbers = #tpu.dot_dimension_numbers<[1], [0], [0], [1], [0, 0, 1, 1], [], []>} : vector<2x128xf32>, vector<128x512xf32>, vector<2x512xf32> -> vector<2x512xf32>
    %c2 = arith.constant 2 : index
    %c0_50 = arith.constant 0 : index
    %c0_51 = arith.constant 0 : index
    %93 = vector.load %arg10[%c2, %c0_50, %c0_51] : memref<3x2x128xf32, #tpu.memory_space<vmem>>, vector<1x2x128xf32>
    %94 = vector.shape_cast %93 : vector<1x2x128xf32> to vector<2x128xf32>
    %c2_52 = arith.constant 2 : index
    %c0_53 = arith.constant 0 : index
    %c0_54 = arith.constant 0 : index
    %95 = vector.load %arg3[%c2_52, %c0_53, %c0_54] : memref<3x128x512xf32, #tpu.memory_space<vmem>>, vector<1x128x512xf32>
    %96 = vector.shape_cast %95 : vector<1x128x512xf32> to vector<128x512xf32>
    %cst_55 = arith.constant dense<0.000000e+00> : vector<2x512xf32>
    %97 = tpu.matmul %94, %96, %cst_55 {dimension_numbers = #tpu.dot_dimension_numbers<[1], [0], [0], [1], [0, 0, 1, 1], [], []>} : vector<2x128xf32>, vector<128x512xf32>, vector<2x512xf32> -> vector<2x512xf32>
    %98 = arith.addf %92, %97 : vector<2x512xf32>
    %c1_56 = arith.constant 1 : index
    %c0_57 = arith.constant 0 : index
    %c0_58 = arith.constant 0 : index
    %99 = vector.load %arg4[%c1_56, %c0_57, %c0_58] : memref<2x1x512xf32, #tpu.memory_space<vmem>>, vector<1x1x512xf32>
    %100 = vector.shape_cast %99 : vector<1x1x512xf32> to vector<1x512xf32>
    %101 = vector.broadcast %100 : vector<1x512xf32> to vector<2x512xf32>
    %102 = arith.addf %98, %101 : vector<2x512xf32>
    %103 = vector.extract_strided_slice %102 {offsets = [0, 0], sizes = [2, 128], strides = [1, 1]} : vector<2x512xf32> to vector<2x128xf32>
    %104 = arith.negf %103 : vector<2x128xf32>
    %105 = math.exp %104 : vector<2x128xf32>
    %cst_59 = arith.constant 1.000000e+00 : f32
    %106 = vector.broadcast %cst_59 : f32 to vector<2x128xf32>
    %107 = arith.addf %106, %105 : vector<2x128xf32>
    %108 = arith.divf %106, %107 : vector<2x128xf32>
    %109 = vector.extract_strided_slice %102 {offsets = [0, 128], sizes = [2, 128], strides = [1, 1]} : vector<2x512xf32> to vector<2x128xf32>
    %110 = arith.negf %109 : vector<2x128xf32>
    %111 = math.exp %110 : vector<2x128xf32>
    %cst_60 = arith.constant 1.000000e+00 : f32
    %112 = vector.broadcast %cst_60 : f32 to vector<2x128xf32>
    %113 = arith.addf %112, %111 : vector<2x128xf32>
    %114 = arith.divf %112, %113 : vector<2x128xf32>
    %115 = vector.extract_strided_slice %102 {offsets = [0, 256], sizes = [2, 128], strides = [1, 1]} : vector<2x512xf32> to vector<2x128xf32>
    %116 = math.tanh %115 : vector<2x128xf32>
    %117 = vector.extract_strided_slice %102 {offsets = [0, 384], sizes = [2, 128], strides = [1, 1]} : vector<2x512xf32> to vector<2x128xf32>
    %118 = arith.negf %117 : vector<2x128xf32>
    %119 = math.exp %118 : vector<2x128xf32>
    %cst_61 = arith.constant 1.000000e+00 : f32
    %120 = vector.broadcast %cst_61 : f32 to vector<2x128xf32>
    %121 = arith.addf %120, %119 : vector<2x128xf32>
    %122 = arith.divf %120, %121 : vector<2x128xf32>
    %c2_62 = arith.constant 2 : index
    %c0_63 = arith.constant 0 : index
    %c0_64 = arith.constant 0 : index
    %123 = vector.load %arg11[%c2_62, %c0_63, %c0_64] : memref<3x2x128xf32, #tpu.memory_space<vmem>>, vector<1x2x128xf32>
    %124 = vector.shape_cast %123 : vector<1x2x128xf32> to vector<2x128xf32>
    %125 = arith.mulf %114, %124 : vector<2x128xf32>
    %126 = arith.mulf %108, %116 : vector<2x128xf32>
    %127 = arith.addf %125, %126 : vector<2x128xf32>
    %128 = math.tanh %127 : vector<2x128xf32>
    %129 = arith.mulf %122, %128 : vector<2x128xf32>
    %c2_65 = arith.constant 2 : index
    %c0_66 = arith.constant 0 : index
    %c0_67 = arith.constant 0 : index
    %130 = vector.load %arg11[%c2_65, %c0_66, %c0_67] : memref<3x2x128xf32, #tpu.memory_space<vmem>>, vector<1x2x128xf32>
    %131 = vector.shape_cast %130 : vector<1x2x128xf32> to vector<2x128xf32>
    %132 = vector.shape_cast %127 : vector<2x128xf32> to vector<1x2x128xf32>
    tpu.vector_store %arg11[%c2_65, %c0_66, %c0_67], %132 {strides = array<i32>} : memref<3x2x128xf32, #tpu.memory_space<vmem>>, vector<1x2x128xf32>,
    %c2_68 = arith.constant 2 : index
    %c0_69 = arith.constant 0 : index
    %c0_70 = arith.constant 0 : index
    %133 = vector.load %arg10[%c2_68, %c0_69, %c0_70] : memref<3x2x128xf32, #tpu.memory_space<vmem>>, vector<1x2x128xf32>
    %134 = vector.shape_cast %133 : vector<1x2x128xf32> to vector<2x128xf32>
    %135 = vector.shape_cast %129 : vector<2x128xf32> to vector<1x2x128xf32>
    tpu.vector_store %arg10[%c2_68, %c0_69, %c0_70], %135 {strides = array<i32>} : memref<3x2x128xf32, #tpu.memory_space<vmem>>, vector<1x2x128xf32>,
    %c3_i32 = arith.constant 3 : i32
    %136 = arith.cmpi eq, %arg0, %c3_i32 : i32
    %137 = arith.extui %136 : i1 to i32
    %c0_i32_71 = arith.constant 0 : i32
    %138 = arith.cmpi ne, %137, %c0_i32_71 : i32
    scf.if %138 {
      %c0_72 = arith.constant 0 : index
      %c0_73 = arith.constant 0 : index
      %139 = vector.load %arg5[%c0_72, %c0_73] : memref<128x128xf32, #tpu.memory_space<vmem>>, vector<128x128xf32>
      %cst_74 = arith.constant dense<0.000000e+00> : vector<2x128xf32>
      %140 = tpu.matmul %129, %139, %cst_74 {dimension_numbers = #tpu.dot_dimension_numbers<[1], [0], [0], [1], [0, 0, 1, 1], [], []>} : vector<2x128xf32>, vector<128x128xf32>, vector<2x128xf32> -> vector<2x128xf32>
      %c0_75 = arith.constant 0 : index
      %c0_76 = arith.constant 0 : index
      %141 = vector.load %arg6[%c0_75, %c0_76] : memref<1x128xf32, #tpu.memory_space<vmem>>, vector<1x128xf32>
      %142 = vector.broadcast %141 : vector<1x128xf32> to vector<2x128xf32>
      %143 = arith.addf %140, %142 : vector<2x128xf32>
      %cst_77 = arith.constant 0.000000e+00 : f32
      %144 = vector.broadcast %cst_77 : f32 to vector<2x128xf32>
      %145 = arith.maximumf %143, %144 : vector<2x128xf32>
      %c0_78 = arith.constant 0 : index
      %c0_79 = arith.constant 0 : index
      %146 = vector.load %arg7[%c0_78, %c0_79] : memref<128x2xf32, #tpu.memory_space<vmem>>, vector<128x2xf32>
      %cst_80 = arith.constant dense<0.000000e+00> : vector<2x2xf32>
      %147 = tpu.matmul %145, %146, %cst_80 {dimension_numbers = #tpu.dot_dimension_numbers<[1], [0], [0], [1], [0, 0, 1, 1], [], []>} : vector<2x128xf32>, vector<128x2xf32>, vector<2x2xf32> -> vector<2x2xf32>
      %c0_81 = arith.constant 0 : index
      %c0_82 = arith.constant 0 : index
      %148 = vector.load %arg8[%c0_81, %c0_82] : memref<1x2xf32, #tpu.memory_space<vmem>>, vector<1x2xf32>
      %149 = vector.broadcast %148 : vector<1x2xf32> to vector<2x2xf32>
      %150 = arith.addf %147, %149 : vector<2x2xf32>
      %c0_83 = arith.constant 0 : index
      %c0_84 = arith.constant 0 : index
      %151 = vector.load %arg9[%c0_83, %c0_84] : memref<2x2xf32, #tpu.memory_space<vmem>>, vector<2x2xf32>
      tpu.vector_store %arg9[%c0_83, %c0_84], %150 {strides = array<i32>} : memref<2x2xf32, #tpu.memory_space<vmem>>, vector<2x2xf32>,
    } else {
    }
    return
  }
  func.func @transform_0(%arg0: i32) -> (i32, i32, i32) {
    %c0_i32 = arith.constant 0 : i32
    %c0_i32_0 = arith.constant 0 : i32
    %c0_i32_1 = arith.constant 0 : i32
    return %arg0, %c0_i32, %c0_i32_0 : i32, i32, i32
  }
  func.func @transform_1(%arg0: i32) -> (i32, i32, i32) {
    %c0_i32 = arith.constant 0 : i32
    %c0_i32_0 = arith.constant 0 : i32
    %c0_i32_1 = arith.constant 0 : i32
    %c0_i32_2 = arith.constant 0 : i32
    return %c0_i32, %c0_i32_0, %c0_i32_1 : i32, i32, i32
  }
  func.func @transform_2(%arg0: i32) -> (i32, i32, i32) {
    %c0_i32 = arith.constant 0 : i32
    %c0_i32_0 = arith.constant 0 : i32
    %c0_i32_1 = arith.constant 0 : i32
    %c0_i32_2 = arith.constant 0 : i32
    return %c0_i32, %c0_i32_0, %c0_i32_1 : i32, i32, i32
  }
  func.func @transform_3(%arg0: i32) -> (i32, i32, i32) {
    %c0_i32 = arith.constant 0 : i32
    %c0_i32_0 = arith.constant 0 : i32
    %c0_i32_1 = arith.constant 0 : i32
    %c0_i32_2 = arith.constant 0 : i32
    return %c0_i32, %c0_i32_0, %c0_i32_1 : i32, i32, i32
  }
  func.func @transform_4(%arg0: i32) -> (i32, i32) {
    %c0_i32 = arith.constant 0 : i32
    %c0_i32_0 = arith.constant 0 : i32
    %c0_i32_1 = arith.constant 0 : i32
    return %c0_i32, %c0_i32_0 : i32, i32
  }
  func.func @transform_5(%arg0: i32) -> (i32, i32) {
    %c0_i32 = arith.constant 0 : i32
    %c0_i32_0 = arith.constant 0 : i32
    %c0_i32_1 = arith.constant 0 : i32
    return %c0_i32, %c0_i32_0 : i32, i32
  }
  func.func @transform_6(%arg0: i32) -> (i32, i32) {
    %c0_i32 = arith.constant 0 : i32
    %c0_i32_0 = arith.constant 0 : i32
    %c0_i32_1 = arith.constant 0 : i32
    return %c0_i32, %c0_i32_0 : i32, i32
  }
  func.func @transform_7(%arg0: i32) -> (i32, i32) {
    %c0_i32 = arith.constant 0 : i32
    %c0_i32_0 = arith.constant 0 : i32
    %c0_i32_1 = arith.constant 0 : i32
    return %c0_i32, %c0_i32_0 : i32, i32
  }
  func.func @transform_8(%arg0: i32) -> (i32, i32) {
    %c0_i32 = arith.constant 0 : i32
    %c0_i32_0 = arith.constant 0 : i32
    %c0_i32_1 = arith.constant 0 : i32
    return %c0_i32, %c0_i32_0 : i32, i32
  }
}

</mosaic_0001>

<llo_original>
// kernel: _lambda_.5
$region0: #{_lambda_.5}
  #allocation0 [shape = 'u32[]', space=smem, size = 0x4, offset = 0x4, fixed_abs, tag = 'smem constant byte address 0x4 - core index']
  #allocation1 [shape = 'u32[144,128]{1,0:T(1,128)}', space=vmem, size = 0x12000, scoped, tag = 'internal scratch']
  #allocation2 [shape = 'f32[512,128]{1,0:T(8,128)}', space=vmem, size = 0x40000, scoped, tag = 'scratch operand']
  %s0 = inlined_call_operand.vmem [shape: f32[2048,32], index: 0, kind: input, shape index: {}]
  %s1 = inlined_call_operand.hbm [shape: f32[32,128], index: 1, kind: input, shape index: {}]
  %s2 = inlined_call_operand.hbm [shape: f32[1,128], index: 2, kind: input, shape index: {}]
  %s3 = inlined_call_operand.vmem [shape: f32[2048,128], index: 3, kind: output, shape index: {}]
  %s4 = sld [smem:[#allocation0]]
  $region61: #{_lambda_.5} parent=0
    _
  %s6 = ssub.s32 1, %s4
  %s7 = scalar_select 0, %s6, %s4
  $region1: #{_lambda_.5} parent=0
    #allocation3 [shape = 'u8[16384]{0}', space=vmem, size = 0x4000, scoped, tag = 'input window, operand 1, single buffered']
    #allocation4 [shape = 's32[2]{0}', space=sflag, size = 0x8, scoped, tag = 'scoped memory for _lambda_.5']
    #allocation5 [shape = 'u8[512]{0}', space=vmem, size = 0x400, scoped, tag = 'input window, operand 2, single buffered']
    #allocation6 [shape = 's32[1]{0}', space=sflag, size = 0x4, scoped, tag = 'scoped memory for _lambda_.5']
    %8 = vsyncpa [#allocation4], 0
    %9 = vsyncpa [#allocation6], 0
    loop: start=0, step=1, limit=6
    $region2: #{_lambda_.5} parent=1 // loop_pre_header
      _
    $region3: #{_lambda_.5} parent=1 // loop_header
      %s11 = sphi 0, %s15
      %p12 = scmp.ge.s32.totalorder %s11, 6
      %s18 = sphi 0, %s30
      %s19 = sphi 0, %s26
      %s20 = sphi 0, %s18
      %s21 = sphi 0, %s19
      %s22 = sphi 0, %s20
      %s23 = sphi 0, %s21
      %s35 = sphi 0, %s37
      %s38 = sphi 0, %s35
      %s39 = sphi 0, %s38
      %s55 = sphi 0, %s39
      %s61 = sphi 0, %s63
      %s64 = sphi 0, %s61
      %s65 = sphi 0, %s64
      %s81 = sphi 0, %s65
      %s85 = sphi 0, %s85
      %s87 = sphi 0, %s85
      %s88 = sphi 0, %s87
      %s102 = sphi 0, %s88
      %s108 = sphi 0, %s110
      %s111 = sphi 0, %s108
      %s112 = sphi 0, %s111
      %s128 = sphi 0, %s112
    $region4: #{_lambda_.5} parent=1 // loop_header_branch
      %14 = sbr.rel (%p12) target = $region8
    $region5: #{_lambda_.5} parent=1 // loop_body
      %s16 = ssub.s32 %s11, 1
      %s17 = ssub.s32 %s11, 2
      %s24 = sadd.s32 1, %s19
      %p25 = scmp.ge.s32.totalorder %s24, 1
      %s26 = scalar_select %p25, 0, %s24
      %s27 = sadd.s32 1, %s18
      %s28 = scalar_select %p25, %s27, %s18
      %p29 = scmp.ge.s32.totalorder %s28, 4
      %s30 = scalar_select %p29, 0, %s28
      %s31 = ssub.s32 %s18, %s30
      %s32 = ssub.s32 %s19, %s26
      %s33 = sor.u32 %s31, %s32
      %p34 = scmp.eq.s32.totalorder %s33, 0
      %s36 = sadd.s32 %s35, 1
      %s37 = scalar_select %p34, %s35, %s36
      %p40 = pneg %p34
      %p41 = scmp.eq.s32.totalorder %s11, 3
      %p42 = por %p40, %p41
      %p43 = scmp.ne.s32.totalorder %s35, %s38
      %p44 = scmp.eq.s32.totalorder %s11, 0
      %p45 = por %p43, %p44
      %p46 = scmp.ne.s32.totalorder %s35, %s38
      %p47 = scmp.eq.s32.totalorder %s16, 3
      %p48 = por %p46, %p47
      %p49 = scmp.ne.s32.totalorder %s38, %s39
      %p50 = scmp.eq.s32.totalorder %s16, 0
      %p51 = por %p49, %p50
      %p52 = scmp.ne.s32.totalorder %s38, %s39
      %p53 = scmp.eq.s32.totalorder %s17, 3
      %p54 = por %p52, %p53
      %p56 = scmp.ne.s32.totalorder %s39, %s55
      %p57 = scmp.eq.s32.totalorder %s17, 0
      %p58 = por %p56, %p57
      %s59 = ssub.s32 %s19, %s26
      %p60 = scmp.eq.s32.totalorder %s59, 0
      %s62 = sadd.s32 %s61, 1
      %s63 = scalar_select %p60, %s61, %s62
      %p66 = pneg %p60
      %p67 = scmp.eq.s32.totalorder %s11, 3
      %p68 = por %p66, %p67
      %p69 = scmp.ne.s32.totalorder %s61, %s64
      %p70 = scmp.eq.s32.totalorder %s11, 0
      %p71 = por %p69, %p70
      %p72 = scmp.ne.s32.totalorder %s61, %s64
      %p73 = scmp.eq.s32.totalorder %s16, 3
      %p74 = por %p72, %p73
      %p75 = scmp.ne.s32.totalorder %s64, %s65
      %p76 = scmp.eq.s32.totalorder %s16, 0
      %p77 = por %p75, %p76
      %p78 = scmp.ne.s32.totalorder %s64, %s65
      %p79 = scmp.eq.s32.totalorder %s17, 3
      %p80 = por %p78, %p79
      %p82 = scmp.ne.s32.totalorder %s65, %s81
      %p83 = scmp.eq.s32.totalorder %s17, 0
      %p84 = por %p82, %p83
      %s86 = sadd.s32 %s85, 1
      %p89 = scmp.eq.s32.totalorder %s11, 3
      %p90 = scmp.ne.s32.totalorder %s85, %s87
      %p91 = scmp.eq.s32.totalorder %s11, 0
      %p92 = por %p90, %p91
      %p93 = scmp.ne.s32.totalorder %s85, %s87
      %p94 = scmp.eq.s32.totalorder %s16, 3
      %p95 = por %p93, %p94
      %p96 = scmp.ne.s32.totalorder %s87, %s88
      %p97 = scmp.eq.s32.totalorder %s16, 0
      %p98 = por %p96, %p97
      %p99 = scmp.ne.s32.totalorder %s87, %s88
      %p100 = scmp.eq.s32.totalorder %s17, 3
      %p101 = por %p99, %p100
      %p103 = scmp.ne.s32.totalorder %s88, %s102
      %p104 = scmp.eq.s32.totalorder %s17, 0
      %p105 = por %p103, %p104
      %s106 = ssub.s32 %s18, %s30
      %p107 = scmp.eq.s32.totalorder %s106, 0
      %s109 = sadd.s32 %s108, 1
      %s110 = scalar_select %p107, %s108, %s109
      %p113 = pneg %p107
      %p114 = scmp.eq.s32.totalorder %s11, 3
      %p115 = por %p113, %p114
      %p116 = scmp.ne.s32.totalorder %s108, %s111
      %p117 = scmp.eq.s32.totalorder %s11, 0
      %p118 = por %p116, %p117
      %p119 = scmp.ne.s32.totalorder %s108, %s111
      %p120 = scmp.eq.s32.totalorder %s16, 3
      %p121 = por %p119, %p120
      %p122 = scmp.ne.s32.totalorder %s111, %s112
      %p123 = scmp.eq.s32.totalorder %s16, 0
      %p124 = por %p122, %p123
      %p125 = scmp.ne.s32.totalorder %s111, %s112
      %p126 = scmp.eq.s32.totalorder %s17, 3
      %p127 = por %p125, %p126
      %p129 = scmp.ne.s32.totalorder %s112, %s128
      %p130 = scmp.eq.s32.totalorder %s17, 0
      %p131 = por %p129, %p130
      %p132 = scmp.le.s32.totalorder 1, %s11
      %p133 = scmp.lt.s32.totalorder %s11, 5
      %p134 = pnand %p132, %p133
      %p135 = pneg %p134
      // Predicated region
      $region9: #{_lambda_.5} parent=5 // pred_check
        _
      $region10: #{_lambda_.5} parent=5 // pred_check_branch
        %137 = sbr.rel (%p134) target = $region12
      $region11: #{_lambda_.5} parent=5 // pred_region
        %s138 = ssub.s32 %s11, 1
        // Predicated region
        $region13: #{_lambda_.5} parent=11 // pred_check
          %p139 = pneg %p77
        $region14: #{_lambda_.5} parent=11 // pred_check_branch
          %141 = sbr.rel (%p139) target = $region16
        $region15: #{_lambda_.5} parent=11 // pred_region
          %s142 = smul.u32 4, %s21
          %s144 = ssub.s32 512, 512
          %145 = vsyncadd [#allocation4], %s144
          %s146 = smul.addr %s142, 128
          %s147 = scalar_lea.hbm %s1, %s146
          %s148 = sshll.u32 [#allocation3], 4
          %s149 = int_to_ptr.vmem [resolvable:$true] %s148
          %154 = dma.hbm_to_vmem [thread:$0]  %s147, 512, %s149, [#allocation4], 128, 128, 8
        $region16: #{_lambda_.5} parent=11 // pred_fallthru
          _
        // Predicated region
        $region17: #{_lambda_.5} parent=11 // pred_check
          %p155 = pneg %p98
        $region18: #{_lambda_.5} parent=11 // pred_check_branch
          %157 = sbr.rel (%p155) target = $region20
        $region19: #{_lambda_.5} parent=11 // pred_region
          %s159 = ssub.s32 16, 16
          %160 = vsyncadd [#allocation6], %s159
          %s162 = sshll.u32 [#allocation5], 4
          %s163 = int_to_ptr.vmem [resolvable:$true] %s162
          %165 = dma.hbm_to_vmem [thread:$0]  %s2, 16, %s163, [#allocation6]
        $region20: #{_lambda_.5} parent=11 // pred_fallthru
          _
      $region12: #{_lambda_.5} parent=5 // pred_fallthru
        _
      %p166 = scmp.lt.s32.totalorder %s11, 4
      // Predicated region
      $region21: #{_lambda_.5} parent=5 // pred_check
        %p167 = pneg %p166
      $region22: #{_lambda_.5} parent=5 // pred_check_branch
        %169 = sbr.rel (%p167) target = $region24
      $region23: #{_lambda_.5} parent=5 // pred_region
        // Predicated region
        $region25: #{_lambda_.5} parent=23 // pred_check
          %p170 = pneg %p45
        $region26: #{_lambda_.5} parent=23 // pred_check_branch
          %172 = sbr.rel (%p170) target = $region28
        $region27: #{_lambda_.5} parent=23 // pred_region
          %s173 = smul.u32 64, %s18
          %p174 = scmp.lt.s32.totalorder %s173, 255
          %s175 = scalar_select %p174, %s173, 255
          %p176 = scmp.lt.s32.totalorder %s19, 0
          %s177 = scalar_select %p176, %s19, 0
          %s178 = sadd.s32 %s177, %s175
          %s179 = smul.addr %s178, 8
          %s180 = scalar_lea.vmem %s0, %s179
          %s181 = smul.u32 64, %s18
        $region28: #{_lambda_.5} parent=23 // pred_fallthru
          _
      $region24: #{_lambda_.5} parent=5 // pred_fallthru
        _
      %p182 = scmp.le.s32.totalorder 1, %s11
      %p183 = scmp.lt.s32.totalorder %s11, 5
      %p184 = pnand %p182, %p183
      %p185 = pneg %p184
      // Predicated region
      $region29: #{_lambda_.5} parent=5 // pred_check
        _
      $region30: #{_lambda_.5} parent=5 // pred_check_branch
        %187 = sbr.rel (%p184) target = $region32
      $region31: #{_lambda_.5} parent=5 // pred_region
        %s188 = ssub.s32 %s11, 1
        // Predicated region
        $region33: #{_lambda_.5} parent=31 // pred_check
          %p189 = pneg %p77
        $region34: #{_lambda_.5} parent=31 // pred_check_branch
          %191 = sbr.rel (%p189) target = $region36
        $region35: #{_lambda_.5} parent=31 // pred_region
          %192 = dma.done [#allocation4], 512
        $region36: #{_lambda_.5} parent=31 // pred_fallthru
          _
        // Predicated region
        $region37: #{_lambda_.5} parent=31 // pred_check
          %p193 = pneg %p98
        $region38: #{_lambda_.5} parent=31 // pred_check_branch
          %195 = sbr.rel (%p193) target = $region40
        $region39: #{_lambda_.5} parent=31 // pred_region
          %196 = dma.done [#allocation6], 16
        $region40: #{_lambda_.5} parent=31 // pred_fallthru
          _
        %s197 = smul.u32 64, %s20
        %p198 = scmp.lt.s32.totalorder %s197, 255
        %s199 = scalar_select %p198, %s197, 255
        %p200 = scmp.lt.s32.totalorder %s21, 0
        %s201 = scalar_select %p200, %s21, 0
        %s202 = sadd.s32 %s201, %s199
        %s203 = smul.addr %s202, 8
        %s204 = scalar_lea.vmem %s0, %s203
        %p205 = pneg %p51
        %p206 = pneg %p48
        %p207 = pneg %p77
        %p208 = pneg %p74
        %p209 = pneg %p98
        %p210 = pneg %p95
        %p211 = pneg %p124
        %p212 = pneg %p121
        %s213 = smul.u32 64, %s20
        %p214 = scmp.lt.s32.totalorder %s213, 255
        %s215 = scalar_select %p214, %s213, 255
        %s216 = smul.addr %s215, 8
        %s217 = scalar_lea.vmem %s3, %s216
        %s218 = smul.u32 64, %s20
        %p219 = scmp.lt.s32.totalorder %s218, 255
        %s220 = scalar_select %p219, %s218, 255
        %p221 = scmp.lt.s32.totalorder %s21, 0
        %s222 = scalar_select %p221, %s21, 0
        %s223 = sadd.s32 %s222, %s220
        %s224 = smul.addr %s223, 8
        %s225 = scalar_lea.vmem %s0, %s224
        %s226 = smul.u32 64, %s20
        %s227 = smul.u32 4, %s21
        %s228 = smul.u32 64, %s20
        %p229 = scmp.lt.s32.totalorder %s228, 255
        %s230 = scalar_select %p229, %s228, 255
        %s231 = smul.addr %s230, 8
        %s232 = scalar_lea.vmem %s3, %s231
        %s233 = smul.u32 64, %s20
        %p234 = scmp.eq.s32.totalorder %s21, 0
        // Predicated region
        $region41: #{_lambda_.5} parent=31 // pred_check
          %p235 = pneg %p234
        $region42: #{_lambda_.5} parent=31 // pred_check_branch
          %237 = sbr.rel (%p235) target = $region44
        $region43: #{_lambda_.5} parent=31 // pred_region
          %238 = vst [vmem:[#allocation2] sm:$0xff] 0.0
          %239 = vst [vmem:[#allocation2 + $0x8] sm:$0xff] 0.0
          %240 = vst [vmem:[#allocation2 + $0x10] sm:$0xff] 0.0
          %241 = vst [vmem:[#allocation2 + $0x18] sm:$0xff] 0.0
          %242 = vst [vmem:[#allocation2 + $0x20] sm:$0xff] 0.0
          %243 = vst [vmem:[#allocation2 + $0x28] sm:$0xff] 0.0
          %244 = vst [vmem:[#allocation2 + $0x30] sm:$0xff] 0.0
          %245 = vst [vmem:[#allocation2 + $0x38] sm:$0xff] 0.0
          %246 = vst [vmem:[#allocation2 + $0x40] sm:$0xff] 0.0
          %247 = vst [vmem:[#allocation2 + $0x48] sm:$0xff] 0.0
          %248 = vst [vmem:[#allocation2 + $0x50] sm:$0xff] 0.0
          %249 = vst [vmem:[#allocation2 + $0x58] sm:$0xff] 0.0
          %250 = vst [vmem:[#allocation2 + $0x60] sm:$0xff] 0.0
          %251 = vst [vmem:[#allocation2 + $0x68] sm:$0xff] 0.0
          %252 = vst [vmem:[#allocation2 + $0x70] sm:$0xff] 0.0
          %253 = vst [vmem:[#allocation2 + $0x78] sm:$0xff] 0.0
          %254 = vst [vmem:[#allocation2 + $0x80] sm:$0xff] 0.0
          %255 = vst [vmem:[#allocation2 + $0x88] sm:$0xff] 0.0
          %256 = vst [vmem:[#allocation2 + $0x90] sm:$0xff] 0.0
          %257 = vst [vmem:[#allocation2 + $0x98] sm:$0xff] 0.0
          %258 = vst [vmem:[#allocation2 + $0xa0] sm:$0xff] 0.0
          %259 = vst [vmem:[#allocation2 + $0xa8] sm:$0xff] 0.0
          %260 = vst [vmem:[#allocation2 + $0xb0] sm:$0xff] 0.0
          %261 = vst [vmem:[#allocation2 + $0xb8] sm:$0xff] 0.0
          %262 = vst [vmem:[#allocation2 + $0xc0] sm:$0xff] 0.0
          %263 = vst [vmem:[#allocation2 + $0xc8] sm:$0xff] 0.0
          %264 = vst [vmem:[#allocation2 + $0xd0] sm:$0xff] 0.0
          %265 = vst [vmem:[#allocation2 + $0xd8] sm:$0xff] 0.0
          %266 = vst [vmem:[#allocation2 + $0xe0] sm:$0xff] 0.0
          %267 = vst [vmem:[#allocation2 + $0xe8] sm:$0xff] 0.0
          %268 = vst [vmem:[#allocation2 + $0xf0] sm:$0xff] 0.0
          %269 = vst [vmem:[#allocation2 + $0xf8] sm:$0xff] 0.0
          %270 = vst [vmem:[#allocation2 + $0x100] sm:$0xff] 0.0
          %271 = vst [vmem:[#allocation2 + $0x108] sm:$0xff] 0.0
          %272 = vst [vmem:[#allocation2 + $0x110] sm:$0xff] 0.0
          %273 = vst [vmem:[#allocation2 + $0x118] sm:$0xff] 0.0
          %274 = vst [vmem:[#allocation2 + $0x120] sm:$0xff] 0.0
          %275 = vst [vmem:[#allocation2 + $0x128] sm:$0xff] 0.0
          %276 = vst [vmem:[#allocation2 + $0x130] sm:$0xff] 0.0
          %277 = vst [vmem:[#allocation2 + $0x138] sm:$0xff] 0.0
          %278 = vst [vmem:[#allocation2 + $0x140] sm:$0xff] 0.0
          %279 = vst [vmem:[#allocation2 + $0x148] sm:$0xff] 0.0
          %280 = vst [vmem:[#allocation2 + $0x150] sm:$0xff] 0.0
          %281 = vst [vmem:[#allocation2 + $0x158] sm:$0xff] 0.0
          %282 = vst [vmem:[#allocation2 + $0x160] sm:$0xff] 0.0
          %283 = vst [vmem:[#allocation2 + $0x168] sm:$0xff] 0.0
          %284 = vst [vmem:[#allocation2 + $0x170] sm:$0xff] 0.0
          %285 = vst [vmem:[#allocation2 + $0x178] sm:$0xff] 0.0
          %286 = vst [vmem:[#allocation2 + $0x180] sm:$0xff] 0.0
          %287 = vst [vmem:[#allocation2 + $0x188] sm:$0xff] 0.0
          %288 = vst [vmem:[#allocation2 + $0x190] sm:$0xff] 0.0
          %289 = vst [vmem:[#allocation2 + $0x198] sm:$0xff] 0.0
          %290 = vst [vmem:[#allocation2 + $0x1a0] sm:$0xff] 0.0
          %291 = vst [vmem:[#allocation2 + $0x1a8] sm:$0xff] 0.0
          %292 = vst [vmem:[#allocation2 + $0x1b0] sm:$0xff] 0.0
          %293 = vst [vmem:[#allocation2 + $0x1b8] sm:$0xff] 0.0
          %294 = vst [vmem:[#allocation2 + $0x1c0] sm:$0xff] 0.0
          %295 = vst [vmem:[#allocation2 + $0x1c8] sm:$0xff] 0.0
          %296 = vst [vmem:[#allocation2 + $0x1d0] sm:$0xff] 0.0
          %297 = vst [vmem:[#allocation2 + $0x1d8] sm:$0xff] 0.0
          %298 = vst [vmem:[#allocation2 + $0x1e0] sm:$0xff] 0.0
          %299 = vst [vmem:[#allocation2 + $0x1e8] sm:$0xff] 0.0
          %300 = vst [vmem:[#allocation2 + $0x1f0] sm:$0xff] 0.0
          %301 = vst [vmem:[#allocation2 + $0x1f8] sm:$0xff] 0.0
        $region44: #{_lambda_.5} parent=31 // pred_fallthru
          _
        %v302 = vld [vmem:[#allocation2] sm:$0xff]
        %v303 = vld [vmem:[#allocation2 + $0x8] sm:$0xff]
        %v304 = vld [vmem:[#allocation2 + $0x10] sm:$0xff]
        %v305 = vld [vmem:[#allocation2 + $0x18] sm:$0xff]
        %v306 = vld [vmem:[#allocation2 + $0x20] sm:$0xff]
        %v307 = vld [vmem:[#allocation2 + $0x28] sm:$0xff]
        %v308 = vld [vmem:[#allocation2 + $0x30] sm:$0xff]
        %v309 = vld [vmem:[#allocation2 + $0x38] sm:$0xff]
        %v310 = vld [vmem:[#allocation2 + $0x40] sm:$0xff]
        %v311 = vld [vmem:[#allocation2 + $0x48] sm:$0xff]
        %v312 = vld [vmem:[#allocation2 + $0x50] sm:$0xff]
        %v313 = vld [vmem:[#allocation2 + $0x58] sm:$0xff]
        %v314 = vld [vmem:[#allocation2 + $0x60] sm:$0xff]
        %v315 = vld [vmem:[#allocation2 + $0x68] sm:$0xff]
        %v316 = vld [vmem:[#allocation2 + $0x70] sm:$0xff]
        %v317 = vld [vmem:[#allocation2 + $0x78] sm:$0xff]
        %v318 = vld [vmem:[#allocation2 + $0x80] sm:$0xff]
        %v319 = vld [vmem:[#allocation2 + $0x88] sm:$0xff]
        %v320 = vld [vmem:[#allocation2 + $0x90] sm:$0xff]
        %v321 = vld [vmem:[#allocation2 + $0x98] sm:$0xff]
        %v322 = vld [vmem:[#allocation2 + $0xa0] sm:$0xff]
        %v323 = vld [vmem:[#allocation2 + $0xa8] sm:$0xff]
        %v324 = vld [vmem:[#allocation2 + $0xb0] sm:$0xff]
        %v325 = vld [vmem:[#allocation2 + $0xb8] sm:$0xff]
        %v326 = vld [vmem:[#allocation2 + $0xc0] sm:$0xff]
        %v327 = vld [vmem:[#allocation2 + $0xc8] sm:$0xff]
        %v328 = vld [vmem:[#allocation2 + $0xd0] sm:$0xff]
        %v329 = vld [vmem:[#allocation2 + $0xd8] sm:$0xff]
        %v330 = vld [vmem:[#allocation2 + $0xe0] sm:$0xff]
        %v331 = vld [vmem:[#allocation2 + $0xe8] sm:$0xff]
        %v332 = vld [vmem:[#allocation2 + $0xf0] sm:$0xff]
        %v333 = vld [vmem:[#allocation2 + $0xf8] sm:$0xff]
        %v334 = vld [vmem:[#allocation2 + $0x100] sm:$0xff]
        %v335 = vld [vmem:[#allocation2 + $0x108] sm:$0xff]
        %v336 = vld [vmem:[#allocation2 + $0x110] sm:$0xff]
        %v337 = vld [vmem:[#allocation2 + $0x118] sm:$0xff]
        %v338 = vld [vmem:[#allocation2 + $0x120] sm:$0xff]
        %v339 = vld [vmem:[#allocation2 + $0x128] sm:$0xff]
        %v340 = vld [vmem:[#allocation2 + $0x130] sm:$0xff]
        %v341 = vld [vmem:[#allocation2 + $0x138] sm:$0xff]
        %v342 = vld [vmem:[#allocation2 + $0x140] sm:$0xff]
        %v343 = vld [vmem:[#allocation2 + $0x148] sm:$0xff]
        %v344 = vld [vmem:[#allocation2 + $0x150] sm:$0xff]
        %v345 = vld [vmem:[#allocation2 + $0x158] sm:$0xff]
        %v346 = vld [vmem:[#allocation2 + $0x160] sm:$0xff]
        %v347 = vld [vmem:[#allocation2 + $0x168] sm:$0xff]
        %v348 = vld [vmem:[#allocation2 + $0x170] sm:$0xff]
        %v349 = vld [vmem:[#allocation2 + $0x178] sm:$0xff]
        %v350 = vld [vmem:[#allocation2 + $0x180] sm:$0xff]
        %v351 = vld [vmem:[#allocation2 + $0x188] sm:$0xff]
        %v352 = vld [vmem:[#allocation2 + $0x190] sm:$0xff]
        %v353 = vld [vmem:[#allocation2 + $0x198] sm:$0xff]
        %v354 = vld [vmem:[#allocation2 + $0x1a0] sm:$0xff]
        %v355 = vld [vmem:[#allocation2 + $0x1a8] sm:$0xff]
        %v356 = vld [vmem:[#allocation2 + $0x1b0] sm:$0xff]
        %v357 = vld [vmem:[#allocation2 + $0x1b8] sm:$0xff]
        %v358 = vld [vmem:[#allocation2 + $0x1c0] sm:$0xff]
        %v359 = vld [vmem:[#allocation2 + $0x1c8] sm:$0xff]
        %v360 = vld [vmem:[#allocation2 + $0x1d0] sm:$0xff]
        %v361 = vld [vmem:[#allocation2 + $0x1d8] sm:$0xff]
        %v362 = vld [vmem:[#allocation2 + $0x1e0] sm:$0xff]
        %v363 = vld [vmem:[#allocation2 + $0x1e8] sm:$0xff]
        %v364 = vld [vmem:[#allocation2 + $0x1f0] sm:$0xff]
        %v365 = vld [vmem:[#allocation2 + $0x1f8] sm:$0xff]
        %v366 = vld [vmem:[%s225] sm:$0xff]
        %v367 = vld [vmem:[%s225 + $0x8] sm:$0xff]
        %v368 = vld [vmem:[%s225 + $0x10] sm:$0xff]
        %v369 = vld [vmem:[%s225 + $0x18] sm:$0xff]
        %v370 = vld [vmem:[%s225 + $0x20] sm:$0xff]
        %v371 = vld [vmem:[%s225 + $0x28] sm:$0xff]
        %v372 = vld [vmem:[%s225 + $0x30] sm:$0xff]
        %v373 = vld [vmem:[%s225 + $0x38] sm:$0xff]
        %v374 = vld [vmem:[%s225 + $0x40] sm:$0xff]
        %v375 = vld [vmem:[%s225 + $0x48] sm:$0xff]
        %v376 = vld [vmem:[%s225 + $0x50] sm:$0xff]
        %v377 = vld [vmem:[%s225 + $0x58] sm:$0xff]
        %v378 = vld [vmem:[%s225 + $0x60] sm:$0xff]
        %v379 = vld [vmem:[%s225 + $0x68] sm:$0xff]
        %v380 = vld [vmem:[%s225 + $0x70] sm:$0xff]
        %v381 = vld [vmem:[%s225 + $0x78] sm:$0xff]
        %v382 = vld [vmem:[%s225 + $0x80] sm:$0xff]
        %v383 = vld [vmem:[%s225 + $0x88] sm:$0xff]
        %v384 = vld [vmem:[%s225 + $0x90] sm:$0xff]
        %v385 = vld [vmem:[%s225 + $0x98] sm:$0xff]
        %v386 = vld [vmem:[%s225 + $0xa0] sm:$0xff]
        %v387 = vld [vmem:[%s225 + $0xa8] sm:$0xff]
        %v388 = vld [vmem:[%s225 + $0xb0] sm:$0xff]
        %v389 = vld [vmem:[%s225 + $0xb8] sm:$0xff]
        %v390 = vld [vmem:[%s225 + $0xc0] sm:$0xff]
        %v391 = vld [vmem:[%s225 + $0xc8] sm:$0xff]
        %v392 = vld [vmem:[%s225 + $0xd0] sm:$0xff]
        %v393 = vld [vmem:[%s225 + $0xd8] sm:$0xff]
        %v394 = vld [vmem:[%s225 + $0xe0] sm:$0xff]
        %v395 = vld [vmem:[%s225 + $0xe8] sm:$0xff]
        %v396 = vld [vmem:[%s225 + $0xf0] sm:$0xff]
        %v397 = vld [vmem:[%s225 + $0xf8] sm:$0xff]
        %v398 = vld [vmem:[%s225 + $0x100] sm:$0xff]
        %v399 = vld [vmem:[%s225 + $0x108] sm:$0xff]
        %v400 = vld [vmem:[%s225 + $0x110] sm:$0xff]
        %v401 = vld [vmem:[%s225 + $0x118] sm:$0xff]
        %v402 = vld [vmem:[%s225 + $0x120] sm:$0xff]
        %v403 = vld [vmem:[%s225 + $0x128] sm:$0xff]
        %v404 = vld [vmem:[%s225 + $0x130] sm:$0xff]
        %v405 = vld [vmem:[%s225 + $0x138] sm:$0xff]
        %v406 = vld [vmem:[%s225 + $0x140] sm:$0xff]
        %v407 = vld [vmem:[%s225 + $0x148] sm:$0xff]
        %v408 = vld [vmem:[%s225 + $0x150] sm:$0xff]
        %v409 = vld [vmem:[%s225 + $0x158] sm:$0xff]
        %v410 = vld [vmem:[%s225 + $0x160] sm:$0xff]
        %v411 = vld [vmem:[%s225 + $0x168] sm:$0xff]
        %v412 = vld [vmem:[%s225 + $0x170] sm:$0xff]
        %v413 = vld [vmem:[%s225 + $0x178] sm:$0xff]
        %v414 = vld [vmem:[%s225 + $0x180] sm:$0xff]
        %v415 = vld [vmem:[%s225 + $0x188] sm:$0xff]
        %v416 = vld [vmem:[%s225 + $0x190] sm:$0xff]
        %v417 = vld [vmem:[%s225 + $0x198] sm:$0xff]
        %v418 = vld [vmem:[%s225 + $0x1a0] sm:$0xff]
        %v419 = vld [vmem:[%s225 + $0x1a8] sm:$0xff]
        %v420 = vld [vmem:[%s225 + $0x1b0] sm:$0xff]
        %v421 = vld [vmem:[%s225 + $0x1b8] sm:$0xff]
        %v422 = vld [vmem:[%s225 + $0x1c0] sm:$0xff]
        %v423 = vld [vmem:[%s225 + $0x1c8] sm:$0xff]
        %v424 = vld [vmem:[%s225 + $0x1d0] sm:$0xff]
        %v425 = vld [vmem:[%s225 + $0x1d8] sm:$0xff]
        %v426 = vld [vmem:[%s225 + $0x1e0] sm:$0xff]
        %v427 = vld [vmem:[%s225 + $0x1e8] sm:$0xff]
        %v428 = vld [vmem:[%s225 + $0x1f0] sm:$0xff]
        %v429 = vld [vmem:[%s225 + $0x1f8] sm:$0xff]
        %v430 = vld [vmem:[#allocation3] sm:$0xff]
        %v431 = vld [vmem:[#allocation3 + $0x8] sm:$0xff]
        %v432 = vld [vmem:[#allocation3 + $0x10] sm:$0xff]
        %v433 = vld [vmem:[#allocation3 + $0x18] sm:$0xff]
        %vm434 = vcmask 261120
        %v436 = vsel %vm434, %v366, 0
        %v439 = vsel %vm434, %v367, 0
        %v442 = vsel %vm434, %v368, 0
        %v445 = vsel %vm434, %v369, 0
        %v448 = vsel %vm434, %v370, 0
        %v451 = vsel %vm434, %v371, 0
        %v454 = vsel %vm434, %v372, 0
        %v457 = vsel %vm434, %v373, 0
        %v460 = vsel %vm434, %v374, 0
        %v463 = vsel %vm434, %v375, 0
        %v466 = vsel %vm434, %v376, 0
        %v469 = vsel %vm434, %v377, 0
        %v472 = vsel %vm434, %v378, 0
        %v475 = vsel %vm434, %v379, 0
        %v478 = vsel %vm434, %v380, 0
        %v481 = vsel %vm434, %v381, 0
        %v484 = vsel %vm434, %v382, 0
        %v487 = vsel %vm434, %v383, 0
        %v490 = vsel %vm434, %v384, 0
        %v493 = vsel %vm434, %v385, 0
        %v496 = vsel %vm434, %v386, 0
        %v499 = vsel %vm434, %v387, 0
        %v502 = vsel %vm434, %v388, 0
        %v505 = vsel %vm434, %v389, 0
        %v508 = vsel %vm434, %v390, 0
        %v511 = vsel %vm434, %v391, 0
        %v514 = vsel %vm434, %v392, 0
        %v517 = vsel %vm434, %v393, 0
        %v520 = vsel %vm434, %v394, 0
        %v523 = vsel %vm434, %v395, 0
        %v526 = vsel %vm434, %v396, 0
        %v529 = vsel %vm434, %v397, 0
        %v532 = vsel %vm434, %v398, 0
        %v535 = vsel %vm434, %v399, 0
        %v538 = vsel %vm434, %v400, 0
        %v541 = vsel %vm434, %v401, 0
        %v544 = vsel %vm434, %v402, 0
        %v547 = vsel %vm434, %v403, 0
        %v550 = vsel %vm434, %v404, 0
        %v553 = vsel %vm434, %v405, 0
        %v556 = vsel %vm434, %v406, 0
        %v559 = vsel %vm434, %v407, 0
        %v562 = vsel %vm434, %v408, 0
        %v565 = vsel %vm434, %v409, 0
        %v568 = vsel %vm434, %v410, 0
        %v571 = vsel %vm434, %v411, 0
        %v574 = vsel %vm434, %v412, 0
        %v577 = vsel %vm434, %v413, 0
        %v580 = vsel %vm434, %v414, 0
        %v583 = vsel %vm434, %v415, 0
        %v586 = vsel %vm434, %v416, 0
        %v589 = vsel %vm434, %v417, 0
        %v592 = vsel %vm434, %v418, 0
        %v595 = vsel %vm434, %v419, 0
        %v598 = vsel %vm434, %v420, 0
        %v601 = vsel %vm434, %v421, 0
        %v604 = vsel %vm434, %v422, 0
        %v607 = vsel %vm434, %v423, 0
        %v610 = vsel %vm434, %v424, 0
        %v613 = vsel %vm434, %v425, 0
        %v616 = vsel %vm434, %v426, 0
        %v619 = vsel %vm434, %v427, 0
        %v622 = vsel %vm434, %v428, 0
        %v625 = vsel %vm434, %v429, 0
        %627 = vmatprep.subr.mxu0 0.0
        %628 = vmatpush1.msra.mxu0 %v430
        %629 = vmatprep.subr.mxu0 0.0
        %630 = vmatpush1.msra.mxu0 %v431
        %631 = vmatprep.subr.mxu0 0.0
        %632 = vmatpush1.msra.mxu0 %v432
        %633 = vmatprep.subr.mxu0 0.0
        %634 = vmatpush1.msra.mxu0 %v433
        %635 = vmatprep.subr.mxu0 0.0
        %636 = vmatpush1.msra.mxu0 0.0
        %637 = vmatprep.subr.mxu0 0.0
        %638 = vmatpush1.msra.mxu0 0.0
        %639 = vmatprep.subr.mxu0 0.0
        %640 = vmatpush1.msra.mxu0 0.0
        %641 = vmatprep.subr.mxu0 0.0
        %642 = vmatpush1.msra.mxu0 0.0
        %643 = vmatprep.subr.mxu0 0.0
        %644 = vmatpush1.msra.mxu0 0.0
        %645 = vmatprep.subr.mxu0 0.0
        %646 = vmatpush1.msra.mxu0 0.0
        %647 = vmatprep.subr.mxu0 0.0
        %648 = vmatpush1.msra.mxu0 0.0
        %649 = vmatprep.subr.mxu0 0.0
        %650 = vmatpush1.msra.mxu0 0.0
        %651 = vmatprep.subr.mxu0 0.0
        %652 = vmatpush1.msra.mxu0 0.0
        %653 = vmatprep.subr.mxu0 0.0
        %654 = vmatpush1.msra.mxu0 0.0
        %655 = vmatprep.subr.mxu0 0.0
        %656 = vmatpush1.msra.mxu0 0.0
        %657 = vmatprep.subr.mxu0 0.0
        %658 = vmatpush1.msra.mxu0 0.0
        %659 = vmatprep.subr.mxu0 0.0
        %660 = vmatpush1.msra.mxu0 0.0
        %661 = vmatprep.subr.mxu0 0.0
        %662 = vmatpush1.msra.mxu0 0.0
        %663 = vmatprep.subr.mxu0 0.0
        %664 = vmatpush1.msra.mxu0 0.0
        %665 = vmatprep.subr.mxu0 0.0
        %666 = vmatpush1.msra.mxu0 0.0
        %667 = vmatprep.subr.mxu0 0.0
        %668 = vmatpush1.msra.mxu0 0.0
        %669 = vmatprep.subr.mxu0 0.0
        %670 = vmatpush1.msra.mxu0 0.0
        %671 = vmatprep.subr.mxu0 0.0
        %672 = vmatpush1.msra.mxu0 0.0
        %673 = vmatprep.subr.mxu0 0.0
        %674 = vmatpush1.msra.mxu0 0.0
        %675 = vmatprep.subr.mxu0 0.0
        %676 = vmatpush1.msra.mxu0 0.0
        %677 = vmatprep.subr.mxu0 0.0
        %678 = vmatpush1.msra.mxu0 0.0
        %679 = vmatprep.subr.mxu0 0.0
        %680 = vmatpush1.msra.mxu0 0.0
        %681 = vmatprep.subr.mxu0 0.0
        %682 = vmatpush1.msra.mxu0 0.0
        %683 = vmatprep.subr.mxu0 0.0
        %684 = vmatpush1.msra.mxu0 0.0
        %685 = vmatprep.subr.mxu0 0.0
        %686 = vmatpush1.msra.mxu0 0.0
        %687 = vmatprep.subr.mxu0 0.0
        %688 = vmatpush1.msra.mxu0 0.0
        %689 = vmatprep.subr.mxu0 0.0
        %690 = vmatpush1.msra.mxu0 0.0
        %691 = vmatprep.mubr.f32.mxu0 0.0
        %692 = vmatmul.mubr.f32.gmra.mrb[0].mxu0 %v436
        %v693 = vpop.f32.mrb[0].mxu0
        %v694 = vadd.f32 0.0, %v693
        %v695 = vpop.f32.mrb[0].mxu0
        %696 = vmatprep.mubr.f32.mxu0 0.0
        %697 = vmatmul.mubr.f32.gmra.mrb[0].mxu0 %v439
        %v698 = vpop.f32.mrb[0].mxu0
        %v699 = vadd.f32 0.0, %v698
        %v700 = vpop.f32.mrb[0].mxu0
        %701 = vmatprep.mubr.f32.mxu0 0.0
        %702 = vmatmul.mubr.f32.gmra.mrb[0].mxu0 %v442
        %v703 = vpop.f32.mrb[0].mxu0
        %v704 = vadd.f32 0.0, %v703
        %v705 = vpop.f32.mrb[0].mxu0
        %706 = vmatprep.mubr.f32.mxu0 0.0
        %707 = vmatmul.mubr.f32.gmra.mrb[0].mxu0 %v445
        %v708 = vpop.f32.mrb[0].mxu0
        %v709 = vadd.f32 0.0, %v708
        %v710 = vpop.f32.mrb[0].mxu0
        %711 = vmatprep.mubr.f32.mxu0 0.0
        %712 = vmatmul.mubr.f32.gmra.mrb[0].mxu0 %v448
        %v713 = vpop.f32.mrb[0].mxu0
        %v714 = vadd.f32 0.0, %v713
        %v715 = vpop.f32.mrb[0].mxu0
        %716 = vmatprep.mubr.f32.mxu0 0.0
        %717 = vmatmul.mubr.f32.gmra.mrb[0].mxu0 %v451
        %v718 = vpop.f32.mrb[0].mxu0
        %v719 = vadd.f32 0.0, %v718
        %v720 = vpop.f32.mrb[0].mxu0
        %721 = vmatprep.mubr.f32.mxu0 0.0
        %722 = vmatmul.mubr.f32.gmra.mrb[0].mxu0 %v454
        %v723 = vpop.f32.mrb[0].mxu0
        %v724 = vadd.f32 0.0, %v723
        %v725 = vpop.f32.mrb[0].mxu0
        %726 = vmatprep.mubr.f32.mxu0 0.0
        %727 = vmatmul.mubr.f32.gmra.mrb[0].mxu0 %v457
        %v728 = vpop.f32.mrb[0].mxu0
        %v729 = vadd.f32 0.0, %v728
        %v730 = vpop.f32.mrb[0].mxu0
        %731 = vmatprep.mubr.f32.mxu0 0.0
        %732 = vmatmul.mubr.f32.gmra.mrb[0].mxu0 %v460
        %v733 = vpop.f32.mrb[0].mxu0
        %v734 = vadd.f32 0.0, %v733
        %v735 = vpop.f32.mrb[0].mxu0
        %736 = vmatprep.mubr.f32.mxu0 0.0
        %737 = vmatmul.mubr.f32.gmra.mrb[0].mxu0 %v463
        %v738 = vpop.f32.mrb[0].mxu0
        %v739 = vadd.f32 0.0, %v738
        %v740 = vpop.f32.mrb[0].mxu0
        %741 = vmatprep.mubr.f32.mxu0 0.0
        %742 = vmatmul.mubr.f32.gmra.mrb[0].mxu0 %v466
        %v743 = vpop.f32.mrb[0].mxu0
        %v744 = vadd.f32 0.0, %v743
        %v745 = vpop.f32.mrb[0].mxu0
        %746 = vmatprep.mubr.f32.mxu0 0.0
        %747 = vmatmul.mubr.f32.gmra.mrb[0].mxu0 %v469
        %v748 = vpop.f32.mrb[0].mxu0
        %v749 = vadd.f32 0.0, %v748
        %v750 = vpop.f32.mrb[0].mxu0
        %751 = vmatprep.mubr.f32.mxu0 0.0
        %752 = vmatmul.mubr.f32.gmra.mrb[0].mxu0 %v472
        %v753 = vpop.f32.mrb[0].mxu0
        %v754 = vadd.f32 0.0, %v753
        %v755 = vpop.f32.mrb[0].mxu0
        %756 = vmatprep.mubr.f32.mxu0 0.0
        %757 = vmatmul.mubr.f32.gmra.mrb[0].mxu0 %v475
        %v758 = vpop.f32.mrb[0].mxu0
        %v759 = vadd.f32 0.0, %v758
        %v760 = vpop.f32.mrb[0].mxu0
        %761 = vmatprep.mubr.f32.mxu0 0.0
        %762 = vmatmul.mubr.f32.gmra.mrb[0].mxu0 %v478
        %v763 = vpop.f32.mrb[0].mxu0
        %v764 = vadd.f32 0.0, %v763
        %v765 = vpop.f32.mrb[0].mxu0
        %766 = vmatprep.mubr.f32.mxu0 0.0
        %767 = vmatmul.mubr.f32.gmra.mrb[0].mxu0 %v481
        %v768 = vpop.f32.mrb[0].mxu0
        %v769 = vadd.f32 0.0, %v768
        %v770 = vpop.f32.mrb[0].mxu0
        %771 = vmatprep.mubr.f32.mxu0 0.0
        %772 = vmatmul.mubr.f32.gmra.mrb[0].mxu0 %v484
        %v773 = vpop.f32.mrb[0].mxu0
        %v774 = vadd.f32 0.0, %v773
        %v775 = vpop.f32.mrb[0].mxu0
        %776 = vmatprep.mubr.f32.mxu0 0.0
        %777 = vmatmul.mubr.f32.gmra.mrb[0].mxu0 %v487
        %v778 = vpop.f32.mrb[0].mxu0
        %v779 = vadd.f32 0.0, %v778
        %v780 = vpop.f32.mrb[0].mxu0
        %781 = vmatprep.mubr.f32.mxu0 0.0
        %782 = vmatmul.mubr.f32.gmra.mrb[0].mxu0 %v490
        %v783 = vpop.f32.mrb[0].mxu0
        %v784 = vadd.f32 0.0, %v783
        %v785 = vpop.f32.mrb[0].mxu0
        %786 = vmatprep.mubr.f32.mxu0 0.0
        %787 = vmatmul.mubr.f32.gmra.mrb[0].mxu0 %v493
        %v788 = vpop.f32.mrb[0].mxu0
        %v789 = vadd.f32 0.0, %v788
        %v790 = vpop.f32.mrb[0].mxu0
        %791 = vmatprep.mubr.f32.mxu0 0.0
        %792 = vmatmul.mubr.f32.gmra.mrb[0].mxu0 %v496
        %v793 = vpop.f32.mrb[0].mxu0
        %v794 = vadd.f32 0.0, %v793
        %v795 = vpop.f32.mrb[0].mxu0
        %796 = vmatprep.mubr.f32.mxu0 0.0
        %797 = vmatmul.mubr.f32.gmra.mrb[0].mxu0 %v499
        %v798 = vpop.f32.mrb[0].mxu0
        %v799 = vadd.f32 0.0, %v798
        %v800 = vpop.f32.mrb[0].mxu0
        %801 = vmatprep.mubr.f32.mxu0 0.0
        %802 = vmatmul.mubr.f32.gmra.mrb[0].mxu0 %v502
        %v803 = vpop.f32.mrb[0].mxu0
        %v804 = vadd.f32 0.0, %v803
        %v805 = vpop.f32.mrb[0].mxu0
        %806 = vmatprep.mubr.f32.mxu0 0.0
        %807 = vmatmul.mubr.f32.gmra.mrb[0].mxu0 %v505
        %v808 = vpop.f32.mrb[0].mxu0
        %v809 = vadd.f32 0.0, %v808
        %v810 = vpop.f32.mrb[0].mxu0
        %811 = vmatprep.mubr.f32.mxu0 0.0
        %812 = vmatmul.mubr.f32.gmra.mrb[0].mxu0 %v508
        %v813 = vpop.f32.mrb[0].mxu0
        %v814 = vadd.f32 0.0, %v813
        %v815 = vpop.f32.mrb[0].mxu0
        %816 = vmatprep.mubr.f32.mxu0 0.0
        %817 = vmatmul.mubr.f32.gmra.mrb[0].mxu0 %v511
        %v818 = vpop.f32.mrb[0].mxu0
        %v819 = vadd.f32 0.0, %v818
        %v820 = vpop.f32.mrb[0].mxu0
        %821 = vmatprep.mubr.f32.mxu0 0.0
        %822 = vmatmul.mubr.f32.gmra.mrb[0].mxu0 %v514
        %v823 = vpop.f32.mrb[0].mxu0
        %v824 = vadd.f32 0.0, %v823
        %v825 = vpop.f32.mrb[0].mxu0
        %826 = vmatprep.mubr.f32.mxu0 0.0
        %827 = vmatmul.mubr.f32.gmra.mrb[0].mxu0 %v517
        %v828 = vpop.f32.mrb[0].mxu0
        %v829 = vadd.f32 0.0, %v828
        %v830 = vpop.f32.mrb[0].mxu0
        %831 = vmatprep.mubr.f32.mxu0 0.0
        %832 = vmatmul.mubr.f32.gmra.mrb[0].mxu0 %v520
        %v833 = vpop.f32.mrb[0].mxu0
        %v834 = vadd.f32 0.0, %v833
        %v835 = vpop.f32.mrb[0].mxu0
        %836 = vmatprep.mubr.f32.mxu0 0.0
        %837 = vmatmul.mubr.f32.gmra.mrb[0].mxu0 %v523
        %v838 = vpop.f32.mrb[0].mxu0
        %v839 = vadd.f32 0.0, %v838
        %v840 = vpop.f32.mrb[0].mxu0
        %841 = vmatprep.mubr.f32.mxu0 0.0
        %842 = vmatmul.mubr.f32.gmra.mrb[0].mxu0 %v526
        %v843 = vpop.f32.mrb[0].mxu0
        %v844 = vadd.f32 0.0, %v843
        %v845 = vpop.f32.mrb[0].mxu0
        %846 = vmatprep.mubr.f32.mxu0 0.0
        %847 = vmatmul.mubr.f32.gmra.mrb[0].mxu0 %v529
        %v848 = vpop.f32.mrb[0].mxu0
        %v849 = vadd.f32 0.0, %v848
        %v850 = vpop.f32.mrb[0].mxu0
        %851 = vmatprep.mubr.f32.mxu0 0.0
        %852 = vmatmul.mubr.f32.gmra.mrb[0].mxu0 %v532
        %v853 = vpop.f32.mrb[0].mxu0
        %v854 = vadd.f32 0.0, %v853
        %v855 = vpop.f32.mrb[0].mxu0
        %856 = vmatprep.mubr.f32.mxu0 0.0
        %857 = vmatmul.mubr.f32.gmra.mrb[0].mxu0 %v535
        %v858 = vpop.f32.mrb[0].mxu0
        %v859 = vadd.f32 0.0, %v858
        %v860 = vpop.f32.mrb[0].mxu0
        %861 = vmatprep.mubr.f32.mxu0 0.0
        %862 = vmatmul.mubr.f32.gmra.mrb[0].mxu0 %v538
        %v863 = vpop.f32.mrb[0].mxu0
        %v864 = vadd.f32 0.0, %v863
        %v865 = vpop.f32.mrb[0].mxu0
        %866 = vmatprep.mubr.f32.mxu0 0.0
        %867 = vmatmul.mubr.f32.gmra.mrb[0].mxu0 %v541
        %v868 = vpop.f32.mrb[0].mxu0
        %v869 = vadd.f32 0.0, %v868
        %v870 = vpop.f32.mrb[0].mxu0
        %871 = vmatprep.mubr.f32.mxu0 0.0
        %872 = vmatmul.mubr.f32.gmra.mrb[0].mxu0 %v544
        %v873 = vpop.f32.mrb[0].mxu0
        %v874 = vadd.f32 0.0, %v873
        %v875 = vpop.f32.mrb[0].mxu0
        %876 = vmatprep.mubr.f32.mxu0 0.0
        %877 = vmatmul.mubr.f32.gmra.mrb[0].mxu0 %v547
        %v878 = vpop.f32.mrb[0].mxu0
        %v879 = vadd.f32 0.0, %v878
        %v880 = vpop.f32.mrb[0].mxu0
        %881 = vmatprep.mubr.f32.mxu0 0.0
        %882 = vmatmul.mubr.f32.gmra.mrb[0].mxu0 %v550
        %v883 = vpop.f32.mrb[0].mxu0
        %v884 = vadd.f32 0.0, %v883
        %v885 = vpop.f32.mrb[0].mxu0
        %886 = vmatprep.mubr.f32.mxu0 0.0
        %887 = vmatmul.mubr.f32.gmra.mrb[0].mxu0 %v553
        %v888 = vpop.f32.mrb[0].mxu0
        %v889 = vadd.f32 0.0, %v888
        %v890 = vpop.f32.mrb[0].mxu0
        %891 = vmatprep.mubr.f32.mxu0 0.0
        %892 = vmatmul.mubr.f32.gmra.mrb[0].mxu0 %v556
        %v893 = vpop.f32.mrb[0].mxu0
        %v894 = vadd.f32 0.0, %v893
        %v895 = vpop.f32.mrb[0].mxu0
        %896 = vmatprep.mubr.f32.mxu0 0.0
        %897 = vmatmul.mubr.f32.gmra.mrb[0].mxu0 %v559
        %v898 = vpop.f32.mrb[0].mxu0
        %v899 = vadd.f32 0.0, %v898
        %v900 = vpop.f32.mrb[0].mxu0
        %901 = vmatprep.mubr.f32.mxu0 0.0
        %902 = vmatmul.mubr.f32.gmra.mrb[0].mxu0 %v562
        %v903 = vpop.f32.mrb[0].mxu0
        %v904 = vadd.f32 0.0, %v903
        %v905 = vpop.f32.mrb[0].mxu0
        %906 = vmatprep.mubr.f32.mxu0 0.0
        %907 = vmatmul.mubr.f32.gmra.mrb[0].mxu0 %v565
        %v908 = vpop.f32.mrb[0].mxu0
        %v909 = vadd.f32 0.0, %v908
        %v910 = vpop.f32.mrb[0].mxu0
        %911 = vmatprep.mubr.f32.mxu0 0.0
        %912 = vmatmul.mubr.f32.gmra.mrb[0].mxu0 %v568
        %v913 = vpop.f32.mrb[0].mxu0
        %v914 = vadd.f32 0.0, %v913
        %v915 = vpop.f32.mrb[0].mxu0
        %916 = vmatprep.mubr.f32.mxu0 0.0
        %917 = vmatmul.mubr.f32.gmra.mrb[0].mxu0 %v571
        %v918 = vpop.f32.mrb[0].mxu0
        %v919 = vadd.f32 0.0, %v918
        %v920 = vpop.f32.mrb[0].mxu0
        %921 = vmatprep.mubr.f32.mxu0 0.0
        %922 = vmatmul.mubr.f32.gmra.mrb[0].mxu0 %v574
        %v923 = vpop.f32.mrb[0].mxu0
        %v924 = vadd.f32 0.0, %v923
        %v925 = vpop.f32.mrb[0].mxu0
        %926 = vmatprep.mubr.f32.mxu0 0.0
        %927 = vmatmul.mubr.f32.gmra.mrb[0].mxu0 %v577
        %v928 = vpop.f32.mrb[0].mxu0
        %v929 = vadd.f32 0.0, %v928
        %v930 = vpop.f32.mrb[0].mxu0
        %931 = vmatprep.mubr.f32.mxu0 0.0
        %932 = vmatmul.mubr.f32.gmra.mrb[0].mxu0 %v580
        %v933 = vpop.f32.mrb[0].mxu0
        %v934 = vadd.f32 0.0, %v933
        %v935 = vpop.f32.mrb[0].mxu0
        %936 = vmatprep.mubr.f32.mxu0 0.0
        %937 = vmatmul.mubr.f32.gmra.mrb[0].mxu0 %v583
        %v938 = vpop.f32.mrb[0].mxu0
        %v939 = vadd.f32 0.0, %v938
        %v940 = vpop.f32.mrb[0].mxu0
        %941 = vmatprep.mubr.f32.mxu0 0.0
        %942 = vmatmul.mubr.f32.gmra.mrb[0].mxu0 %v586
        %v943 = vpop.f32.mrb[0].mxu0
        %v944 = vadd.f32 0.0, %v943
        %v945 = vpop.f32.mrb[0].mxu0
        %946 = vmatprep.mubr.f32.mxu0 0.0
        %947 = vmatmul.mubr.f32.gmra.mrb[0].mxu0 %v589
        %v948 = vpop.f32.mrb[0].mxu0
        %v949 = vadd.f32 0.0, %v948
        %v950 = vpop.f32.mrb[0].mxu0
        %951 = vmatprep.mubr.f32.mxu0 0.0
        %952 = vmatmul.mubr.f32.gmra.mrb[0].mxu0 %v592
        %v953 = vpop.f32.mrb[0].mxu0
        %v954 = vadd.f32 0.0, %v953
        %v955 = vpop.f32.mrb[0].mxu0
        %956 = vmatprep.mubr.f32.mxu0 0.0
        %957 = vmatmul.mubr.f32.gmra.mrb[0].mxu0 %v595
        %v958 = vpop.f32.mrb[0].mxu0
        %v959 = vadd.f32 0.0, %v958
        %v960 = vpop.f32.mrb[0].mxu0
        %961 = vmatprep.mubr.f32.mxu0 0.0
        %962 = vmatmul.mubr.f32.gmra.mrb[0].mxu0 %v598
        %v963 = vpop.f32.mrb[0].mxu0
        %v964 = vadd.f32 0.0, %v963
        %v965 = vpop.f32.mrb[0].mxu0
        %966 = vmatprep.mubr.f32.mxu0 0.0
        %967 = vmatmul.mubr.f32.gmra.mrb[0].mxu0 %v601
        %v968 = vpop.f32.mrb[0].mxu0
        %v969 = vadd.f32 0.0, %v968
        %v970 = vpop.f32.mrb[0].mxu0
        %971 = vmatprep.mubr.f32.mxu0 0.0
        %972 = vmatmul.mubr.f32.gmra.mrb[0].mxu0 %v604
        %v973 = vpop.f32.mrb[0].mxu0
        %v974 = vadd.f32 0.0, %v973
        %v975 = vpop.f32.mrb[0].mxu0
        %976 = vmatprep.mubr.f32.mxu0 0.0
        %977 = vmatmul.mubr.f32.gmra.mrb[0].mxu0 %v607
        %v978 = vpop.f32.mrb[0].mxu0
        %v979 = vadd.f32 0.0, %v978
        %v980 = vpop.f32.mrb[0].mxu0
        %981 = vmatprep.mubr.f32.mxu0 0.0
        %982 = vmatmul.mubr.f32.gmra.mrb[0].mxu0 %v610
        %v983 = vpop.f32.mrb[0].mxu0
        %v984 = vadd.f32 0.0, %v983
        %v985 = vpop.f32.mrb[0].mxu0
        %986 = vmatprep.mubr.f32.mxu0 0.0
        %987 = vmatmul.mubr.f32.gmra.mrb[0].mxu0 %v613
        %v988 = vpop.f32.mrb[0].mxu0
        %v989 = vadd.f32 0.0, %v988
        %v990 = vpop.f32.mrb[0].mxu0
        %991 = vmatprep.mubr.f32.mxu0 0.0
        %992 = vmatmul.mubr.f32.gmra.mrb[0].mxu0 %v616
        %v993 = vpop.f32.mrb[0].mxu0
        %v994 = vadd.f32 0.0, %v993
        %v995 = vpop.f32.mrb[0].mxu0
        %996 = vmatprep.mubr.f32.mxu0 0.0
        %997 = vmatmul.mubr.f32.gmra.mrb[0].mxu0 %v619
        %v998 = vpop.f32.mrb[0].mxu0
        %v999 = vadd.f32 0.0, %v998
        %v1000 = vpop.f32.mrb[0].mxu0
        %1001 = vmatprep.mubr.f32.mxu0 0.0
        %1002 = vmatmul.mubr.f32.gmra.mrb[0].mxu0 %v622
        %v1003 = vpop.f32.mrb[0].mxu0
        %v1004 = vadd.f32 0.0, %v1003
        %v1005 = vpop.f32.mrb[0].mxu0
        %1006 = vmatprep.mubr.f32.mxu0 0.0
        %1007 = vmatmul.mubr.f32.gmra.mrb[0].mxu0 %v625
        %v1008 = vpop.f32.mrb[0].mxu0
        %v1009 = vadd.f32 0.0, %v1008
        %v1010 = vpop.f32.mrb[0].mxu0
        %1011 = vdwg.mxu0
        %v1012 = vadd.f32 %v302, %v694
        %v1013 = vadd.f32 %v303, %v699
        %v1014 = vadd.f32 %v304, %v704
        %v1015 = vadd.f32 %v305, %v709
        %v1016 = vadd.f32 %v306, %v714
        %v1017 = vadd.f32 %v307, %v719
        %v1018 = vadd.f32 %v308, %v724
        %v1019 = vadd.f32 %v309, %v729
        %v1020 = vadd.f32 %v310, %v734
        %v1021 = vadd.f32 %v311, %v739
        %v1022 = vadd.f32 %v312, %v744
        %v1023 = vadd.f32 %v313, %v749
        %v1024 = vadd.f32 %v314, %v754
        %v1025 = vadd.f32 %v315, %v759
        %v1026 = vadd.f32 %v316, %v764
        %v1027 = vadd.f32 %v317, %v769
        %v1028 = vadd.f32 %v318, %v774
        %v1029 = vadd.f32 %v319, %v779
        %v1030 = vadd.f32 %v320, %v784
        %v1031 = vadd.f32 %v321, %v789
        %v1032 = vadd.f32 %v322, %v794
        %v1033 = vadd.f32 %v323, %v799
        %v1034 = vadd.f32 %v324, %v804
        %v1035 = vadd.f32 %v325, %v809
        %v1036 = vadd.f32 %v326, %v814
        %v1037 = vadd.f32 %v327, %v819
        %v1038 = vadd.f32 %v328, %v824
        %v1039 = vadd.f32 %v329, %v829
        %v1040 = vadd.f32 %v330, %v834
        %v1041 = vadd.f32 %v331, %v839
        %v1042 = vadd.f32 %v332, %v844
        %v1043 = vadd.f32 %v333, %v849
        %v1044 = vadd.f32 %v334, %v854
        %v1045 = vadd.f32 %v335, %v859
        %v1046 = vadd.f32 %v336, %v864
        %v1047 = vadd.f32 %v337, %v869
        %v1048 = vadd.f32 %v338, %v874
        %v1049 = vadd.f32 %v339, %v879
        %v1050 = vadd.f32 %v340, %v884
        %v1051 = vadd.f32 %v341, %v889
        %v1052 = vadd.f32 %v342, %v894
        %v1053 = vadd.f32 %v343, %v899
        %v1054 = vadd.f32 %v344, %v904
        %v1055 = vadd.f32 %v345, %v909
        %v1056 = vadd.f32 %v346, %v914
        %v1057 = vadd.f32 %v347, %v919
        %v1058 = vadd.f32 %v348, %v924
        %v1059 = vadd.f32 %v349, %v929
        %v1060 = vadd.f32 %v350, %v934
        %v1061 = vadd.f32 %v351, %v939
        %v1062 = vadd.f32 %v352, %v944
        %v1063 = vadd.f32 %v353, %v949
        %v1064 = vadd.f32 %v354, %v954
        %v1065 = vadd.f32 %v355, %v959
        %v1066 = vadd.f32 %v356, %v964
        %v1067 = vadd.f32 %v357, %v969
        %v1068 = vadd.f32 %v358, %v974
        %v1069 = vadd.f32 %v359, %v979
        %v1070 = vadd.f32 %v360, %v984
        %v1071 = vadd.f32 %v361, %v989
        %v1072 = vadd.f32 %v362, %v994
        %v1073 = vadd.f32 %v363, %v999
        %v1074 = vadd.f32 %v364, %v1004
        %v1075 = vadd.f32 %v365, %v1009
        %1076 = vst [vmem:[#allocation2] sm:$0xff] %v1012
        %1077 = vst [vmem:[#allocation2 + $0x8] sm:$0xff] %v1013
        %1078 = vst [vmem:[#allocation2 + $0x10] sm:$0xff] %v1014
        %1079 = vst [vmem:[#allocation2 + $0x18] sm:$0xff] %v1015
        %1080 = vst [vmem:[#allocation2 + $0x20] sm:$0xff] %v1016
        %1081 = vst [vmem:[#allocation2 + $0x28] sm:$0xff] %v1017
        %1082 = vst [vmem:[#allocation2 + $0x30] sm:$0xff] %v1018
        %1083 = vst [vmem:[#allocation2 + $0x38] sm:$0xff] %v1019
        %1084 = vst [vmem:[#allocation2 + $0x40] sm:$0xff] %v1020
        %1085 = vst [vmem:[#allocation2 + $0x48] sm:$0xff] %v1021
        %1086 = vst [vmem:[#allocation2 + $0x50] sm:$0xff] %v1022
        %1087 = vst [vmem:[#allocation2 + $0x58] sm:$0xff] %v1023
        %1088 = vst [vmem:[#allocation2 + $0x60] sm:$0xff] %v1024
        %1089 = vst [vmem:[#allocation2 + $0x68] sm:$0xff] %v1025
        %1090 = vst [vmem:[#allocation2 + $0x70] sm:$0xff] %v1026
        %1091 = vst [vmem:[#allocation2 + $0x78] sm:$0xff] %v1027
        %1092 = vst [vmem:[#allocation2 + $0x80] sm:$0xff] %v1028
        %1093 = vst [vmem:[#allocation2 + $0x88] sm:$0xff] %v1029
        %1094 = vst [vmem:[#allocation2 + $0x90] sm:$0xff] %v1030
        %1095 = vst [vmem:[#allocation2 + $0x98] sm:$0xff] %v1031
        %1096 = vst [vmem:[#allocation2 + $0xa0] sm:$0xff] %v1032
        %1097 = vst [vmem:[#allocation2 + $0xa8] sm:$0xff] %v1033
        %1098 = vst [vmem:[#allocation2 + $0xb0] sm:$0xff] %v1034
        %1099 = vst [vmem:[#allocation2 + $0xb8] sm:$0xff] %v1035
        %1100 = vst [vmem:[#allocation2 + $0xc0] sm:$0xff] %v1036
        %1101 = vst [vmem:[#allocation2 + $0xc8] sm:$0xff] %v1037
        %1102 = vst [vmem:[#allocation2 + $0xd0] sm:$0xff] %v1038
        %1103 = vst [vmem:[#allocation2 + $0xd8] sm:$0xff] %v1039
        %1104 = vst [vmem:[#allocation2 + $0xe0] sm:$0xff] %v1040
        %1105 = vst [vmem:[#allocation2 + $0xe8] sm:$0xff] %v1041
        %1106 = vst [vmem:[#allocation2 + $0xf0] sm:$0xff] %v1042
        %1107 = vst [vmem:[#allocation2 + $0xf8] sm:$0xff] %v1043
        %1108 = vst [vmem:[#allocation2 + $0x100] sm:$0xff] %v1044
        %1109 = vst [vmem:[#allocation2 + $0x108] sm:$0xff] %v1045
        %1110 = vst [vmem:[#allocation2 + $0x110] sm:$0xff] %v1046
        %1111 = vst [vmem:[#allocation2 + $0x118] sm:$0xff] %v1047
        %1112 = vst [vmem:[#allocation2 + $0x120] sm:$0xff] %v1048
        %1113 = vst [vmem:[#allocation2 + $0x128] sm:$0xff] %v1049
        %1114 = vst [vmem:[#allocation2 + $0x130] sm:$0xff] %v1050
        %1115 = vst [vmem:[#allocation2 + $0x138] sm:$0xff] %v1051
        %1116 = vst [vmem:[#allocation2 + $0x140] sm:$0xff] %v1052
        %1117 = vst [vmem:[#allocation2 + $0x148] sm:$0xff] %v1053
        %1118 = vst [vmem:[#allocation2 + $0x150] sm:$0xff] %v1054
        %1119 = vst [vmem:[#allocation2 + $0x158] sm:$0xff] %v1055
        %1120 = vst [vmem:[#allocation2 + $0x160] sm:$0xff] %v1056
        %1121 = vst [vmem:[#allocation2 + $0x168] sm:$0xff] %v1057
        %1122 = vst [vmem:[#allocation2 + $0x170] sm:$0xff] %v1058
        %1123 = vst [vmem:[#allocation2 + $0x178] sm:$0xff] %v1059
        %1124 = vst [vmem:[#allocation2 + $0x180] sm:$0xff] %v1060
        %1125 = vst [vmem:[#allocation2 + $0x188] sm:$0xff] %v1061
        %1126 = vst [vmem:[#allocation2 + $0x190] sm:$0xff] %v1062
        %1127 = vst [vmem:[#allocation2 + $0x198] sm:$0xff] %v1063
        %1128 = vst [vmem:[#allocation2 + $0x1a0] sm:$0xff] %v1064
        %1129 = vst [vmem:[#allocation2 + $0x1a8] sm:$0xff] %v1065
        %1130 = vst [vmem:[#allocation2 + $0x1b0] sm:$0xff] %v1066
        %1131 = vst [vmem:[#allocation2 + $0x1b8] sm:$0xff] %v1067
        %1132 = vst [vmem:[#allocation2 + $0x1c0] sm:$0xff] %v1068
        %1133 = vst [vmem:[#allocation2 + $0x1c8] sm:$0xff] %v1069
        %1134 = vst [vmem:[#allocation2 + $0x1d0] sm:$0xff] %v1070
        %1135 = vst [vmem:[#allocation2 + $0x1d8] sm:$0xff] %v1071
        %1136 = vst [vmem:[#allocation2 + $0x1e0] sm:$0xff] %v1072
        %1137 = vst [vmem:[#allocation2 + $0x1e8] sm:$0xff] %v1073
        %1138 = vst [vmem:[#allocation2 + $0x1f0] sm:$0xff] %v1074
        %1139 = vst [vmem:[#allocation2 + $0x1f8] sm:$0xff] %v1075
        // Predicated region
        $region45: #{_lambda_.5} parent=31 // pred_check
          %p1140 = pneg %p234
        $region46: #{_lambda_.5} parent=31 // pred_check_branch
          %1142 = sbr.rel (%p1140) target = $region48
        $region47: #{_lambda_.5} parent=31 // pred_region
          %v1143 = vld [vmem:[#allocation2] sm:$0xff]
          %v1144 = vld [vmem:[#allocation2 + $0x8] sm:$0xff]
          %v1145 = vld [vmem:[#allocation2 + $0x10] sm:$0xff]
          %v1146 = vld [vmem:[#allocation2 + $0x18] sm:$0xff]
          %v1147 = vld [vmem:[#allocation2 + $0x20] sm:$0xff]
          %v1148 = vld [vmem:[#allocation2 + $0x28] sm:$0xff]
          %v1149 = vld [vmem:[#allocation2 + $0x30] sm:$0xff]
          %v1150 = vld [vmem:[#allocation2 + $0x38] sm:$0xff]
          %v1151 = vld [vmem:[#allocation2 + $0x40] sm:$0xff]
          %v1152 = vld [vmem:[#allocation2 + $0x48] sm:$0xff]
          %v1153 = vld [vmem:[#allocation2 + $0x50] sm:$0xff]
          %v1154 = vld [vmem:[#allocation2 + $0x58] sm:$0xff]
          %v1155 = vld [vmem:[#allocation2 + $0x60] sm:$0xff]
          %v1156 = vld [vmem:[#allocation2 + $0x68] sm:$0xff]
          %v1157 = vld [vmem:[#allocation2 + $0x70] sm:$0xff]
          %v1158 = vld [vmem:[#allocation2 + $0x78] sm:$0xff]
          %v1159 = vld [vmem:[#allocation2 + $0x80] sm:$0xff]
          %v1160 = vld [vmem:[#allocation2 + $0x88] sm:$0xff]
          %v1161 = vld [vmem:[#allocation2 + $0x90] sm:$0xff]
          %v1162 = vld [vmem:[#allocation2 + $0x98] sm:$0xff]
          %v1163 = vld [vmem:[#allocation2 + $0xa0] sm:$0xff]
          %v1164 = vld [vmem:[#allocation2 + $0xa8] sm:$0xff]
          %v1165 = vld [vmem:[#allocation2 + $0xb0] sm:$0xff]
          %v1166 = vld [vmem:[#allocation2 + $0xb8] sm:$0xff]
          %v1167 = vld [vmem:[#allocation2 + $0xc0] sm:$0xff]
          %v1168 = vld [vmem:[#allocation2 + $0xc8] sm:$0xff]
          %v1169 = vld [vmem:[#allocation2 + $0xd0] sm:$0xff]
          %v1170 = vld [vmem:[#allocation2 + $0xd8] sm:$0xff]
          %v1171 = vld [vmem:[#allocation2 + $0xe0] sm:$0xff]
          %v1172 = vld [vmem:[#allocation2 + $0xe8] sm:$0xff]
          %v1173 = vld [vmem:[#allocation2 + $0xf0] sm:$0xff]
          %v1174 = vld [vmem:[#allocation2 + $0xf8] sm:$0xff]
          %v1175 = vld [vmem:[#allocation2 + $0x100] sm:$0xff]
          %v1176 = vld [vmem:[#allocation2 + $0x108] sm:$0xff]
          %v1177 = vld [vmem:[#allocation2 + $0x110] sm:$0xff]
          %v1178 = vld [vmem:[#allocation2 + $0x118] sm:$0xff]
          %v1179 = vld [vmem:[#allocation2 + $0x120] sm:$0xff]
          %v1180 = vld [vmem:[#allocation2 + $0x128] sm:$0xff]
          %v1181 = vld [vmem:[#allocation2 + $0x130] sm:$0xff]
          %v1182 = vld [vmem:[#allocation2 + $0x138] sm:$0xff]
          %v1183 = vld [vmem:[#allocation2 + $0x140] sm:$0xff]
          %v1184 = vld [vmem:[#allocation2 + $0x148] sm:$0xff]
          %v1185 = vld [vmem:[#allocation2 + $0x150] sm:$0xff]
          %v1186 = vld [vmem:[#allocation2 + $0x158] sm:$0xff]
          %v1187 = vld [vmem:[#allocation2 + $0x160] sm:$0xff]
          %v1188 = vld [vmem:[#allocation2 + $0x168] sm:$0xff]
          %v1189 = vld [vmem:[#allocation2 + $0x170] sm:$0xff]
          %v1190 = vld [vmem:[#allocation2 + $0x178] sm:$0xff]
          %v1191 = vld [vmem:[#allocation2 + $0x180] sm:$0xff]
          %v1192 = vld [vmem:[#allocation2 + $0x188] sm:$0xff]
          %v1193 = vld [vmem:[#allocation2 + $0x190] sm:$0xff]
          %v1194 = vld [vmem:[#allocation2 + $0x198] sm:$0xff]
          %v1195 = vld [vmem:[#allocation2 + $0x1a0] sm:$0xff]
          %v1196 = vld [vmem:[#allocation2 + $0x1a8] sm:$0xff]
          %v1197 = vld [vmem:[#allocation2 + $0x1b0] sm:$0xff]
          %v1198 = vld [vmem:[#allocation2 + $0x1b8] sm:$0xff]
          %v1199 = vld [vmem:[#allocation2 + $0x1c0] sm:$0xff]
          %v1200 = vld [vmem:[#allocation2 + $0x1c8] sm:$0xff]
          %v1201 = vld [vmem:[#allocation2 + $0x1d0] sm:$0xff]
          %v1202 = vld [vmem:[#allocation2 + $0x1d8] sm:$0xff]
          %v1203 = vld [vmem:[#allocation2 + $0x1e0] sm:$0xff]
          %v1204 = vld [vmem:[#allocation2 + $0x1e8] sm:$0xff]
          %v1205 = vld [vmem:[#allocation2 + $0x1f0] sm:$0xff]
          %v1206 = vld [vmem:[#allocation2 + $0x1f8] sm:$0xff]
          %v1207 = vld [vmem:[#allocation5] sm:$0x1]
          %v1209 = vlaneseq
          %v1210 = vshrl.u32 %v1209, 7
          %v1211 = vsub.s32 0, %v1210
          %v1212 = vrot.slane %v1207, %v1211
          %v1214 = vadd.f32 %v1143, %v1212
          %v1215 = vadd.f32 %v1144, %v1212
          %v1216 = vadd.f32 %v1145, %v1212
          %v1217 = vadd.f32 %v1146, %v1212
          %v1218 = vadd.f32 %v1147, %v1212
          %v1219 = vadd.f32 %v1148, %v1212
          %v1220 = vadd.f32 %v1149, %v1212
          %v1221 = vadd.f32 %v1150, %v1212
          %v1222 = vadd.f32 %v1151, %v1212
          %v1223 = vadd.f32 %v1152, %v1212
          %v1224 = vadd.f32 %v1153, %v1212
          %v1225 = vadd.f32 %v1154, %v1212
          %v1226 = vadd.f32 %v1155, %v1212
          %v1227 = vadd.f32 %v1156, %v1212
          %v1228 = vadd.f32 %v1157, %v1212
          %v1229 = vadd.f32 %v1158, %v1212
          %v1230 = vadd.f32 %v1159, %v1212
          %v1231 = vadd.f32 %v1160, %v1212
          %v1232 = vadd.f32 %v1161, %v1212
          %v1233 = vadd.f32 %v1162, %v1212
          %v1234 = vadd.f32 %v1163, %v1212
          %v1235 = vadd.f32 %v1164, %v1212
          %v1236 = vadd.f32 %v1165, %v1212
          %v1237 = vadd.f32 %v1166, %v1212
          %v1238 = vadd.f32 %v1167, %v1212
          %v1239 = vadd.f32 %v1168, %v1212
          %v1240 = vadd.f32 %v1169, %v1212
          %v1241 = vadd.f32 %v1170, %v1212
          %v1242 = vadd.f32 %v1171, %v1212
          %v1243 = vadd.f32 %v1172, %v1212
          %v1244 = vadd.f32 %v1173, %v1212
          %v1245 = vadd.f32 %v1174, %v1212
          %v1246 = vadd.f32 %v1175, %v1212
          %v1247 = vadd.f32 %v1176, %v1212
          %v1248 = vadd.f32 %v1177, %v1212
          %v1249 = vadd.f32 %v1178, %v1212
          %v1250 = vadd.f32 %v1179, %v1212
          %v1251 = vadd.f32 %v1180, %v1212
          %v1252 = vadd.f32 %v1181, %v1212
          %v1253 = vadd.f32 %v1182, %v1212
          %v1254 = vadd.f32 %v1183, %v1212
          %v1255 = vadd.f32 %v1184, %v1212
          %v1256 = vadd.f32 %v1185, %v1212
          %v1257 = vadd.f32 %v1186, %v1212
          %v1258 = vadd.f32 %v1187, %v1212
          %v1259 = vadd.f32 %v1188, %v1212
          %v1260 = vadd.f32 %v1189, %v1212
          %v1261 = vadd.f32 %v1190, %v1212
          %v1262 = vadd.f32 %v1191, %v1212
          %v1263 = vadd.f32 %v1192, %v1212
          %v1264 = vadd.f32 %v1193, %v1212
          %v1265 = vadd.f32 %v1194, %v1212
          %v1266 = vadd.f32 %v1195, %v1212
          %v1267 = vadd.f32 %v1196, %v1212
          %v1268 = vadd.f32 %v1197, %v1212
          %v1269 = vadd.f32 %v1198, %v1212
          %v1270 = vadd.f32 %v1199, %v1212
          %v1271 = vadd.f32 %v1200, %v1212
          %v1272 = vadd.f32 %v1201, %v1212
          %v1273 = vadd.f32 %v1202, %v1212
          %v1274 = vadd.f32 %v1203, %v1212
          %v1275 = vadd.f32 %v1204, %v1212
          %v1276 = vadd.f32 %v1205, %v1212
          %v1277 = vadd.f32 %v1206, %v1212
          %v1278 = vmax.f32 %v1214, 0.0
          %v1279 = vmax.f32 %v1215, 0.0
          %v1280 = vmax.f32 %v1216, 0.0
          %v1281 = vmax.f32 %v1217, 0.0
          %v1282 = vmax.f32 %v1218, 0.0
          %v1283 = vmax.f32 %v1219, 0.0
          %v1284 = vmax.f32 %v1220, 0.0
          %v1285 = vmax.f32 %v1221, 0.0
          %v1286 = vmax.f32 %v1222, 0.0
          %v1287 = vmax.f32 %v1223, 0.0
          %v1288 = vmax.f32 %v1224, 0.0
          %v1289 = vmax.f32 %v1225, 0.0
          %v1290 = vmax.f32 %v1226, 0.0
          %v1291 = vmax.f32 %v1227, 0.0
          %v1292 = vmax.f32 %v1228, 0.0
          %v1293 = vmax.f32 %v1229, 0.0
          %v1294 = vmax.f32 %v1230, 0.0
          %v1295 = vmax.f32 %v1231, 0.0
          %v1296 = vmax.f32 %v1232, 0.0
          %v1297 = vmax.f32 %v1233, 0.0
          %v1298 = vmax.f32 %v1234, 0.0
          %v1299 = vmax.f32 %v1235, 0.0
          %v1300 = vmax.f32 %v1236, 0.0
          %v1301 = vmax.f32 %v1237, 0.0
          %v1302 = vmax.f32 %v1238, 0.0
          %v1303 = vmax.f32 %v1239, 0.0
          %v1304 = vmax.f32 %v1240, 0.0
          %v1305 = vmax.f32 %v1241, 0.0
          %v1306 = vmax.f32 %v1242, 0.0
          %v1307 = vmax.f32 %v1243, 0.0
          %v1308 = vmax.f32 %v1244, 0.0
          %v1309 = vmax.f32 %v1245, 0.0
          %v1310 = vmax.f32 %v1246, 0.0
          %v1311 = vmax.f32 %v1247, 0.0
          %v1312 = vmax.f32 %v1248, 0.0
          %v1313 = vmax.f32 %v1249, 0.0
          %v1314 = vmax.f32 %v1250, 0.0
          %v1315 = vmax.f32 %v1251, 0.0
          %v1316 = vmax.f32 %v1252, 0.0
          %v1317 = vmax.f32 %v1253, 0.0
          %v1318 = vmax.f32 %v1254, 0.0
          %v1319 = vmax.f32 %v1255, 0.0
          %v1320 = vmax.f32 %v1256, 0.0
          %v1321 = vmax.f32 %v1257, 0.0
          %v1322 = vmax.f32 %v1258, 0.0
          %v1323 = vmax.f32 %v1259, 0.0
          %v1324 = vmax.f32 %v1260, 0.0
          %v1325 = vmax.f32 %v1261, 0.0
          %v1326 = vmax.f32 %v1262, 0.0
          %v1327 = vmax.f32 %v1263, 0.0
          %v1328 = vmax.f32 %v1264, 0.0
          %v1329 = vmax.f32 %v1265, 0.0
          %v1330 = vmax.f32 %v1266, 0.0
          %v1331 = vmax.f32 %v1267, 0.0
          %v1332 = vmax.f32 %v1268, 0.0
          %v1333 = vmax.f32 %v1269, 0.0
          %v1334 = vmax.f32 %v1270, 0.0
          %v1335 = vmax.f32 %v1271, 0.0
          %v1336 = vmax.f32 %v1272, 0.0
          %v1337 = vmax.f32 %v1273, 0.0
          %v1338 = vmax.f32 %v1274, 0.0
          %v1339 = vmax.f32 %v1275, 0.0
          %v1340 = vmax.f32 %v1276, 0.0
          %v1341 = vmax.f32 %v1277, 0.0
          %1342 = vst [vmem:[%s232] sm:$0xff] %v1278
          %1343 = vst [vmem:[%s232 + $0x8] sm:$0xff] %v1279
          %1344 = vst [vmem:[%s232 + $0x10] sm:$0xff] %v1280
          %1345 = vst [vmem:[%s232 + $0x18] sm:$0xff] %v1281
          %1346 = vst [vmem:[%s232 + $0x20] sm:$0xff] %v1282
          %1347 = vst [vmem:[%s232 + $0x28] sm:$0xff] %v1283
          %1348 = vst [vmem:[%s232 + $0x30] sm:$0xff] %v1284
          %1349 = vst [vmem:[%s232 + $0x38] sm:$0xff] %v1285
          %1350 = vst [vmem:[%s232 + $0x40] sm:$0xff] %v1286
          %1351 = vst [vmem:[%s232 + $0x48] sm:$0xff] %v1287
          %1352 = vst [vmem:[%s232 + $0x50] sm:$0xff] %v1288
          %1353 = vst [vmem:[%s232 + $0x58] sm:$0xff] %v1289
          %1354 = vst [vmem:[%s232 + $0x60] sm:$0xff] %v1290
          %1355 = vst [vmem:[%s232 + $0x68] sm:$0xff] %v1291
          %1356 = vst [vmem:[%s232 + $0x70] sm:$0xff] %v1292
          %1357 = vst [vmem:[%s232 + $0x78] sm:$0xff] %v1293
          %1358 = vst [vmem:[%s232 + $0x80] sm:$0xff] %v1294
          %1359 = vst [vmem:[%s232 + $0x88] sm:$0xff] %v1295
          %1360 = vst [vmem:[%s232 + $0x90] sm:$0xff] %v1296
          %1361 = vst [vmem:[%s232 + $0x98] sm:$0xff] %v1297
          %1362 = vst [vmem:[%s232 + $0xa0] sm:$0xff] %v1298
          %1363 = vst [vmem:[%s232 + $0xa8] sm:$0xff] %v1299
          %1364 = vst [vmem:[%s232 + $0xb0] sm:$0xff] %v1300
          %1365 = vst [vmem:[%s232 + $0xb8] sm:$0xff] %v1301
          %1366 = vst [vmem:[%s232 + $0xc0] sm:$0xff] %v1302
          %1367 = vst [vmem:[%s232 + $0xc8] sm:$0xff] %v1303
          %1368 = vst [vmem:[%s232 + $0xd0] sm:$0xff] %v1304
          %1369 = vst [vmem:[%s232 + $0xd8] sm:$0xff] %v1305
          %1370 = vst [vmem:[%s232 + $0xe0] sm:$0xff] %v1306
          %1371 = vst [vmem:[%s232 + $0xe8] sm:$0xff] %v1307
          %1372 = vst [vmem:[%s232 + $0xf0] sm:$0xff] %v1308
          %1373 = vst [vmem:[%s232 + $0xf8] sm:$0xff] %v1309
          %1374 = vst [vmem:[%s232 + $0x100] sm:$0xff] %v1310
          %1375 = vst [vmem:[%s232 + $0x108] sm:$0xff] %v1311
          %1376 = vst [vmem:[%s232 + $0x110] sm:$0xff] %v1312
          %1377 = vst [vmem:[%s232 + $0x118] sm:$0xff] %v1313
          %1378 = vst [vmem:[%s232 + $0x120] sm:$0xff] %v1314
          %1379 = vst [vmem:[%s232 + $0x128] sm:$0xff] %v1315
          %1380 = vst [vmem:[%s232 + $0x130] sm:$0xff] %v1316
          %1381 = vst [vmem:[%s232 + $0x138] sm:$0xff] %v1317
          %1382 = vst [vmem:[%s232 + $0x140] sm:$0xff] %v1318
          %1383 = vst [vmem:[%s232 + $0x148] sm:$0xff] %v1319
          %1384 = vst [vmem:[%s232 + $0x150] sm:$0xff] %v1320
          %1385 = vst [vmem:[%s232 + $0x158] sm:$0xff] %v1321
          %1386 = vst [vmem:[%s232 + $0x160] sm:$0xff] %v1322
          %1387 = vst [vmem:[%s232 + $0x168] sm:$0xff] %v1323
          %1388 = vst [vmem:[%s232 + $0x170] sm:$0xff] %v1324
          %1389 = vst [vmem:[%s232 + $0x178] sm:$0xff] %v1325
          %1390 = vst [vmem:[%s232 + $0x180] sm:$0xff] %v1326
          %1391 = vst [vmem:[%s232 + $0x188] sm:$0xff] %v1327
          %1392 = vst [vmem:[%s232 + $0x190] sm:$0xff] %v1328
          %1393 = vst [vmem:[%s232 + $0x198] sm:$0xff] %v1329
          %1394 = vst [vmem:[%s232 + $0x1a0] sm:$0xff] %v1330
          %1395 = vst [vmem:[%s232 + $0x1a8] sm:$0xff] %v1331
          %1396 = vst [vmem:[%s232 + $0x1b0] sm:$0xff] %v1332
          %1397 = vst [vmem:[%s232 + $0x1b8] sm:$0xff] %v1333
          %1398 = vst [vmem:[%s232 + $0x1c0] sm:$0xff] %v1334
          %1399 = vst [vmem:[%s232 + $0x1c8] sm:$0xff] %v1335
          %1400 = vst [vmem:[%s232 + $0x1d0] sm:$0xff] %v1336
          %1401 = vst [vmem:[%s232 + $0x1d8] sm:$0xff] %v1337
          %1402 = vst [vmem:[%s232 + $0x1e0] sm:$0xff] %v1338
          %1403 = vst [vmem:[%s232 + $0x1e8] sm:$0xff] %v1339
          %1404 = vst [vmem:[%s232 + $0x1f0] sm:$0xff] %v1340
          %1405 = vst [vmem:[%s232 + $0x1f8] sm:$0xff] %v1341
        $region48: #{_lambda_.5} parent=31 // pred_fallthru
          _
        %s1406 = smul.u32 64, %s20
        %p1407 = scmp.lt.s32.totalorder %s1406, 255
        %s1408 = scalar_select %p1407, %s1406, 255
        %s1409 = smul.addr %s1408, 8
        %s1410 = scalar_lea.vmem %s3, %s1409
        // Predicated region
        $region49: #{_lambda_.5} parent=31 // pred_check
          %p1411 = pneg %p121
        $region50: #{_lambda_.5} parent=31 // pred_check_branch
          %1413 = sbr.rel (%p1411) target = $region52
        $region51: #{_lambda_.5} parent=31 // pred_region
          %s1414 = smul.u32 64, %s20
        $region52: #{_lambda_.5} parent=31 // pred_fallthru
          _
      $region32: #{_lambda_.5} parent=5 // pred_fallthru
        _
      %p1415 = scmp.le.s32.totalorder 2, %s11
      // Predicated region
      $region53: #{_lambda_.5} parent=5 // pred_check
        %p1416 = pneg %p1415
      $region54: #{_lambda_.5} parent=5 // pred_check_branch
        %1418 = sbr.rel (%p1416) target = $region56
      $region55: #{_lambda_.5} parent=5 // pred_region
        %s1419 = ssub.s32 %s11, 2
        // Predicated region
        $region57: #{_lambda_.5} parent=55 // pred_check
          %p1420 = pneg %p127
        $region58: #{_lambda_.5} parent=55 // pred_check_branch
          %1422 = sbr.rel (%p1420) target = $region60
        $region59: #{_lambda_.5} parent=55 // pred_region
          %s1423 = smul.u32 64, %s22
          %p1424 = scmp.lt.s32.totalorder %s1423, 255
          %s1425 = scalar_select %p1424, %s1423, 255
          %s1426 = smul.addr %s1425, 8
          %s1427 = scalar_lea.vmem %s3, %s1426
        $region60: #{_lambda_.5} parent=55 // pred_fallthru
          _
      $region56: #{_lambda_.5} parent=5 // pred_fallthru
        _
    $region6: #{_lambda_.5} parent=1 // loop_footer
      %s15 = sadd.s32 1, %s11
    $region7: #{_lambda_.5} parent=1 // loop_footer_branch
      %10 = sbr.rel target = $region3
    $region8: #{_lambda_.5} parent=1 // loop_exit
      _
    %1428 = vsyncpa [#allocation4], 1
    %s1429 = scalar_lea.sflag [#allocation4], 1
    %1430 = vsyncpa %s1429, 1
    %1431 = vsyncpa [#allocation6], 1

// kernel: _lambda_.8
$region0: #{_lambda_.8}
  #allocation0 [shape = 'u32[]', space=smem, size = 0x4, offset = 0x4, fixed_abs, tag = 'smem constant byte address 0x4 - core index']
  #allocation1 [shape = 'u32[144,128]{1,0:T(1,128)}', space=vmem, size = 0x12000, scoped, tag = 'internal scratch']
  #allocation2 [shape = 'f32[8,512]{1,0:T(8,128)}', space=vmem, size = 0x4000, scoped, tag = 'scratch operand']
  %s0 = inlined_call_operand.vmem [shape: f32[8,128], index: 0, kind: input, shape index: {}]
  %s1 = inlined_call_operand.vmem [shape: f32[128,512], index: 1, kind: input, shape index: {}]
  %s2 = inlined_call_operand.vmem [shape: f32[1,512], index: 2, kind: input, shape index: {}]
  %s3 = inlined_call_operand.vmem [shape: f32[8,512], index: 3, kind: output, shape index: {}]
  %s4 = sld [smem:[#allocation0]]
  $region30: #{_lambda_.8} parent=0
    _
  %s6 = ssub.s32 1, %s4
  %s7 = scalar_select 0, %s6, %s4
  // Predicated region
  $region2: #{_lambda_.8} parent=0 // pred_check
    _
  $region3: #{_lambda_.8} parent=0 // pred_check_branch
    %9 = sbr.rel (0) target = $region5
  $region4: #{_lambda_.8} parent=0 // pred_region
    _
  $region5: #{_lambda_.8} parent=0 // pred_fallthru
    _
  // Predicated region
  $region6: #{_lambda_.8} parent=0 // pred_check
    _
  $region7: #{_lambda_.8} parent=0 // pred_check_branch
    %11 = sbr.rel (0) target = $region9
  $region8: #{_lambda_.8} parent=0 // pred_region
    _
  $region9: #{_lambda_.8} parent=0 // pred_fallthru
    _
  // Predicated region
  $region10: #{_lambda_.8} parent=0 // pred_check
    _
  $region11: #{_lambda_.8} parent=0 // pred_check_branch
    %13 = sbr.rel (0) target = $region13
  $region12: #{_lambda_.8} parent=0 // pred_region
    _
  $region13: #{_lambda_.8} parent=0 // pred_fallthru
    _
  %p14 = scmp.eq.s32.totalorder 0, 0
  // Predicated region
  $region14: #{_lambda_.8} parent=0 // pred_check
    %p15 = pneg %p14
  $region15: #{_lambda_.8} parent=0 // pred_check_branch
    %17 = sbr.rel (%p15) target = $region17
  $region16: #{_lambda_.8} parent=0 // pred_region
    %18 = vst [vmem:[#allocation2] sm:$0xff] 0.0
    %19 = vst [vmem:[#allocation2 + $0x8] sm:$0xff] 0.0
    %20 = vst [vmem:[#allocation2 + $0x10] sm:$0xff] 0.0
    %21 = vst [vmem:[#allocation2 + $0x18] sm:$0xff] 0.0
  $region17: #{_lambda_.8} parent=0 // pred_fallthru
    _
  %v22 = vld [vmem:[#allocation2] sm:$0xff]
  %v23 = vld [vmem:[#allocation2 + $0x8] sm:$0xff]
  %v24 = vld [vmem:[#allocation2 + $0x10] sm:$0xff]
  %v25 = vld [vmem:[#allocation2 + $0x18] sm:$0xff]
  %v26 = vld [vmem:[%s0] sm:$0xff]
  %v27 = vld [vmem:[%s1] sm:$0xff]
  %v28 = vld [vmem:[%s1 + $0x8] sm:$0xff]
  %v29 = vld [vmem:[%s1 + $0x10] sm:$0xff]
  %v30 = vld [vmem:[%s1 + $0x18] sm:$0xff]
  %v31 = vld [vmem:[%s1 + $0x20] sm:$0xff]
  %v32 = vld [vmem:[%s1 + $0x28] sm:$0xff]
  %v33 = vld [vmem:[%s1 + $0x30] sm:$0xff]
  %v34 = vld [vmem:[%s1 + $0x38] sm:$0xff]
  %v35 = vld [vmem:[%s1 + $0x40] sm:$0xff]
  %v36 = vld [vmem:[%s1 + $0x48] sm:$0xff]
  %v37 = vld [vmem:[%s1 + $0x50] sm:$0xff]
  %v38 = vld [vmem:[%s1 + $0x58] sm:$0xff]
  %v39 = vld [vmem:[%s1 + $0x60] sm:$0xff]
  %v40 = vld [vmem:[%s1 + $0x68] sm:$0xff]
  %v41 = vld [vmem:[%s1 + $0x70] sm:$0xff]
  %v42 = vld [vmem:[%s1 + $0x78] sm:$0xff]
  %v43 = vld [vmem:[%s1 + $0x80] sm:$0xff]
  %v44 = vld [vmem:[%s1 + $0x88] sm:$0xff]
  %v45 = vld [vmem:[%s1 + $0x90] sm:$0xff]
  %v46 = vld [vmem:[%s1 + $0x98] sm:$0xff]
  %v47 = vld [vmem:[%s1 + $0xa0] sm:$0xff]
  %v48 = vld [vmem:[%s1 + $0xa8] sm:$0xff]
  %v49 = vld [vmem:[%s1 + $0xb0] sm:$0xff]
  %v50 = vld [vmem:[%s1 + $0xb8] sm:$0xff]
  %v51 = vld [vmem:[%s1 + $0xc0] sm:$0xff]
  %v52 = vld [vmem:[%s1 + $0xc8] sm:$0xff]
  %v53 = vld [vmem:[%s1 + $0xd0] sm:$0xff]
  %v54 = vld [vmem:[%s1 + $0xd8] sm:$0xff]
  %v55 = vld [vmem:[%s1 + $0xe0] sm:$0xff]
  %v56 = vld [vmem:[%s1 + $0xe8] sm:$0xff]
  %v57 = vld [vmem:[%s1 + $0xf0] sm:$0xff]
  %v58 = vld [vmem:[%s1 + $0xf8] sm:$0xff]
  %v59 = vld [vmem:[%s1 + $0x100] sm:$0xff]
  %v60 = vld [vmem:[%s1 + $0x108] sm:$0xff]
  %v61 = vld [vmem:[%s1 + $0x110] sm:$0xff]
  %v62 = vld [vmem:[%s1 + $0x118] sm:$0xff]
  %v63 = vld [vmem:[%s1 + $0x120] sm:$0xff]
  %v64 = vld [vmem:[%s1 + $0x128] sm:$0xff]
  %v65 = vld [vmem:[%s1 + $0x130] sm:$0xff]
  %v66 = vld [vmem:[%s1 + $0x138] sm:$0xff]
  %v67 = vld [vmem:[%s1 + $0x140] sm:$0xff]
  %v68 = vld [vmem:[%s1 + $0x148] sm:$0xff]
  %v69 = vld [vmem:[%s1 + $0x150] sm:$0xff]
  %v70 = vld [vmem:[%s1 + $0x158] sm:$0xff]
  %v71 = vld [vmem:[%s1 + $0x160] sm:$0xff]
  %v72 = vld [vmem:[%s1 + $0x168] sm:$0xff]
  %v73 = vld [vmem:[%s1 + $0x170] sm:$0xff]
  %v74 = vld [vmem:[%s1 + $0x178] sm:$0xff]
  %v75 = vld [vmem:[%s1 + $0x180] sm:$0xff]
  %v76 = vld [vmem:[%s1 + $0x188] sm:$0xff]
  %v77 = vld [vmem:[%s1 + $0x190] sm:$0xff]
  %v78 = vld [vmem:[%s1 + $0x198] sm:$0xff]
  %v79 = vld [vmem:[%s1 + $0x1a0] sm:$0xff]
  %v80 = vld [vmem:[%s1 + $0x1a8] sm:$0xff]
  %v81 = vld [vmem:[%s1 + $0x1b0] sm:$0xff]
  %v82 = vld [vmem:[%s1 + $0x1b8] sm:$0xff]
  %v83 = vld [vmem:[%s1 + $0x1c0] sm:$0xff]
  %v84 = vld [vmem:[%s1 + $0x1c8] sm:$0xff]
  %v85 = vld [vmem:[%s1 + $0x1d0] sm:$0xff]
  %v86 = vld [vmem:[%s1 + $0x1d8] sm:$0xff]
  %v87 = vld [vmem:[%s1 + $0x1e0] sm:$0xff]
  %v88 = vld [vmem:[%s1 + $0x1e8] sm:$0xff]
  %v89 = vld [vmem:[%s1 + $0x1f0] sm:$0xff]
  %v90 = vld [vmem:[%s1 + $0x1f8] sm:$0xff]
  %91 = vmatprep.subr.mxu0 %v28
  %92 = vmatpush1.msra.mxu0 %v27
  %93 = vmatprep.subr.mxu0 %v32
  %94 = vmatpush1.msra.mxu0 %v31
  %95 = vmatprep.subr.mxu0 %v36
  %96 = vmatpush1.msra.mxu0 %v35
  %97 = vmatprep.subr.mxu0 %v40
  %98 = vmatpush1.msra.mxu0 %v39
  %99 = vmatprep.subr.mxu0 %v44
  %100 = vmatpush1.msra.mxu0 %v43
  %101 = vmatprep.subr.mxu0 %v48
  %102 = vmatpush1.msra.mxu0 %v47
  %103 = vmatprep.subr.mxu0 %v52
  %104 = vmatpush1.msra.mxu0 %v51
  %105 = vmatprep.subr.mxu0 %v56
  %106 = vmatpush1.msra.mxu0 %v55
  %107 = vmatprep.subr.mxu0 %v60
  %108 = vmatpush1.msra.mxu0 %v59
  %109 = vmatprep.subr.mxu0 %v64
  %110 = vmatpush1.msra.mxu0 %v63
  %111 = vmatprep.subr.mxu0 %v68
  %112 = vmatpush1.msra.mxu0 %v67
  %113 = vmatprep.subr.mxu0 %v72
  %114 = vmatpush1.msra.mxu0 %v71
  %115 = vmatprep.subr.mxu0 %v76
  %116 = vmatpush1.msra.mxu0 %v75
  %117 = vmatprep.subr.mxu0 %v80
  %118 = vmatpush1.msra.mxu0 %v79
  %119 = vmatprep.subr.mxu0 %v84
  %120 = vmatpush1.msra.mxu0 %v83
  %121 = vmatprep.subr.mxu0 %v88
  %122 = vmatpush1.msra.mxu0 %v87
  %123 = vmatprep.subr.mxu0 0.0
  %124 = vmatpush1.msra.mxu0 0.0
  %125 = vmatprep.subr.mxu0 0.0
  %126 = vmatpush1.msra.mxu0 0.0
  %127 = vmatprep.subr.mxu0 0.0
  %128 = vmatpush1.msra.mxu0 0.0
  %129 = vmatprep.subr.mxu0 0.0
  %130 = vmatpush1.msra.mxu0 0.0
  %131 = vmatprep.subr.mxu0 0.0
  %132 = vmatpush1.msra.mxu0 0.0
  %133 = vmatprep.subr.mxu0 0.0
  %134 = vmatpush1.msra.mxu0 0.0
  %135 = vmatprep.subr.mxu0 0.0
  %136 = vmatpush1.msra.mxu0 0.0
  %137 = vmatprep.subr.mxu0 0.0
  %138 = vmatpush1.msra.mxu0 0.0
  %139 = vmatprep.subr.mxu0 0.0
  %140 = vmatpush1.msra.mxu0 0.0
  %141 = vmatprep.subr.mxu0 0.0
  %142 = vmatpush1.msra.mxu0 0.0
  %143 = vmatprep.subr.mxu0 0.0
  %144 = vmatpush1.msra.mxu0 0.0
  %145 = vmatprep.subr.mxu0 0.0
  %146 = vmatpush1.msra.mxu0 0.0
  %147 = vmatprep.subr.mxu0 0.0
  %148 = vmatpush1.msra.mxu0 0.0
  %149 = vmatprep.subr.mxu0 0.0
  %150 = vmatpush1.msra.mxu0 0.0
  %151 = vmatprep.subr.mxu0 0.0
  %152 = vmatpush1.msra.mxu0 0.0
  %153 = vmatprep.subr.mxu0 0.0
  %154 = vmatpush1.msra.mxu0 0.0
  %155 = vmatprep.mubr.f32.mxu0 0.0
  %156 = vmatmul.mubr.f32.gmra.mrb[0].mxu0 %v26
  %v157 = vpop.f32.mrb[0].mxu0
  %v158 = vadd.f32 0.0, %v157
  %v159 = vpop.f32.mrb[0].mxu0
  %v160 = vadd.f32 0.0, %v159
  %161 = vdwg.mxu0
  %162 = vmatprep.subr.mxu0 %v30
  %163 = vmatpush1.msra.mxu0 %v29
  %164 = vmatprep.subr.mxu0 %v34
  %165 = vmatpush1.msra.mxu0 %v33
  %166 = vmatprep.subr.mxu0 %v38
  %167 = vmatpush1.msra.mxu0 %v37
  %168 = vmatprep.subr.mxu0 %v42
  %169 = vmatpush1.msra.mxu0 %v41
  %170 = vmatprep.subr.mxu0 %v46
  %171 = vmatpush1.msra.mxu0 %v45
  %172 = vmatprep.subr.mxu0 %v50
  %173 = vmatpush1.msra.mxu0 %v49
  %174 = vmatprep.subr.mxu0 %v54
  %175 = vmatpush1.msra.mxu0 %v53
  %176 = vmatprep.subr.mxu0 %v58
  %177 = vmatpush1.msra.mxu0 %v57
  %178 = vmatprep.subr.mxu0 %v62
  %179 = vmatpush1.msra.mxu0 %v61
  %180 = vmatprep.subr.mxu0 %v66
  %181 = vmatpush1.msra.mxu0 %v65
  %182 = vmatprep.subr.mxu0 %v70
  %183 = vmatpush1.msra.mxu0 %v69
  %184 = vmatprep.subr.mxu0 %v74
  %185 = vmatpush1.msra.mxu0 %v73
  %186 = vmatprep.subr.mxu0 %v78
  %187 = vmatpush1.msra.mxu0 %v77
  %188 = vmatprep.subr.mxu0 %v82
  %189 = vmatpush1.msra.mxu0 %v81
  %190 = vmatprep.subr.mxu0 %v86
  %191 = vmatpush1.msra.mxu0 %v85
  %192 = vmatprep.subr.mxu0 %v90
  %193 = vmatpush1.msra.mxu0 %v89
  %194 = vmatprep.subr.mxu0 0.0
  %195 = vmatpush1.msra.mxu0 0.0
  %196 = vmatprep.subr.mxu0 0.0
  %197 = vmatpush1.msra.mxu0 0.0
  %198 = vmatprep.subr.mxu0 0.0
  %199 = vmatpush1.msra.mxu0 0.0
  %200 = vmatprep.subr.mxu0 0.0
  %201 = vmatpush1.msra.mxu0 0.0
  %202 = vmatprep.subr.mxu0 0.0
  %203 = vmatpush1.msra.mxu0 0.0
  %204 = vmatprep.subr.mxu0 0.0
  %205 = vmatpush1.msra.mxu0 0.0
  %206 = vmatprep.subr.mxu0 0.0
  %207 = vmatpush1.msra.mxu0 0.0
  %208 = vmatprep.subr.mxu0 0.0
  %209 = vmatpush1.msra.mxu0 0.0
  %210 = vmatprep.subr.mxu0 0.0
  %211 = vmatpush1.msra.mxu0 0.0
  %212 = vmatprep.subr.mxu0 0.0
  %213 = vmatpush1.msra.mxu0 0.0
  %214 = vmatprep.subr.mxu0 0.0
  %215 = vmatpush1.msra.mxu0 0.0
  %216 = vmatprep.subr.mxu0 0.0
  %217 = vmatpush1.msra.mxu0 0.0
  %218 = vmatprep.subr.mxu0 0.0
  %219 = vmatpush1.msra.mxu0 0.0
  %220 = vmatprep.subr.mxu0 0.0
  %221 = vmatpush1.msra.mxu0 0.0
  %222 = vmatprep.subr.mxu0 0.0
  %223 = vmatpush1.msra.mxu0 0.0
  %224 = vmatprep.subr.mxu0 0.0
  %225 = vmatpush1.msra.mxu0 0.0
  %226 = vmatprep.mubr.f32.mxu0 0.0
  %227 = vmatmul.mubr.f32.gmra.mrb[0].mxu0 %v26
  %v228 = vpop.f32.mrb[0].mxu0
  %v229 = vadd.f32 0.0, %v228
  %v230 = vpop.f32.mrb[0].mxu0
  %v231 = vadd.f32 0.0, %v230
  %232 = vdwg.mxu0
  %v233 = vadd.f32 %v22, %v158
  %v234 = vadd.f32 %v23, %v160
  %v235 = vadd.f32 %v24, %v229
  %v236 = vadd.f32 %v25, %v231
  %237 = vst [vmem:[#allocation2] sm:$0xff] %v233
  %238 = vst [vmem:[#allocation2 + $0x8] sm:$0xff] %v234
  %239 = vst [vmem:[#allocation2 + $0x10] sm:$0xff] %v235
  %240 = vst [vmem:[#allocation2 + $0x18] sm:$0xff] %v236
  // Predicated region
  $region18: #{_lambda_.8} parent=0 // pred_check
    %p241 = pneg %p14
  $region19: #{_lambda_.8} parent=0 // pred_check_branch
    %243 = sbr.rel (%p241) target = $region21
  $region20: #{_lambda_.8} parent=0 // pred_region
    %v244 = vld [vmem:[#allocation2] sm:$0xff]
    %v245 = vld [vmem:[#allocation2 + $0x8] sm:$0xff]
    %v246 = vld [vmem:[#allocation2 + $0x10] sm:$0xff]
    %v247 = vld [vmem:[#allocation2 + $0x18] sm:$0xff]
    %v248 = vld [vmem:[%s2] sm:$0xf]
    %v250 = vlaneseq
    %v251 = vshrl.u32 %v250, 7
    %v252 = vsub.s32 0, %v251
    %v253 = vrot.slane %v248, %v252
    %v254 = vlaneseq
    %v255 = vshrl.u32 %v254, 7
    %v256 = vsub.s32 1, %v255
    %v257 = vrot.slane %v248, %v256
    %v258 = vlaneseq
    %v259 = vshrl.u32 %v258, 7
    %v260 = vsub.s32 2, %v259
    %v261 = vrot.slane %v248, %v260
    %v262 = vlaneseq
    %v263 = vshrl.u32 %v262, 7
    %v264 = vsub.s32 3, %v263
    %v265 = vrot.slane %v248, %v264
    %v270 = vadd.f32 %v244, %v253
    %v271 = vadd.f32 %v245, %v257
    %v272 = vadd.f32 %v246, %v261
    %v273 = vadd.f32 %v247, %v265
    %274 = vst [vmem:[%s3] sm:$0xff] %v270
    %275 = vst [vmem:[%s3 + $0x8] sm:$0xff] %v271
    %276 = vst [vmem:[%s3 + $0x10] sm:$0xff] %v272
    %277 = vst [vmem:[%s3 + $0x18] sm:$0xff] %v273
  $region21: #{_lambda_.8} parent=0 // pred_fallthru
    _
  // Predicated region
  $region22: #{_lambda_.8} parent=0 // pred_check
    _
  $region23: #{_lambda_.8} parent=0 // pred_check_branch
    %279 = sbr.rel (0) target = $region25
  $region24: #{_lambda_.8} parent=0 // pred_region
    _
  $region25: #{_lambda_.8} parent=0 // pred_fallthru
    _
  // Predicated region
  $region26: #{_lambda_.8} parent=0 // pred_check
    _
  $region27: #{_lambda_.8} parent=0 // pred_check_branch
    %281 = sbr.rel (0) target = $region29
  $region28: #{_lambda_.8} parent=0 // pred_region
    _
  $region29: #{_lambda_.8} parent=0 // pred_fallthru
    _

// kernel: _lambda_.6
$region0: #{_lambda_.6}
  #allocation0 [shape = 'u32[]', space=smem, size = 0x4, offset = 0x4, fixed_abs, tag = 'smem constant byte address 0x4 - core index']
  #allocation1 [shape = 'u32[144,128]{1,0:T(1,128)}', space=vmem, size = 0x12000, scoped, tag = 'internal scratch']
  #allocation2 [shape = 'f32[512,128]{1,0:T(8,128)}', space=vmem, size = 0x40000, scoped, tag = 'scratch operand']
  %s0 = inlined_call_operand.vmem [shape: f32[2048,1152], index: 0, kind: input, shape index: {}]
  %s1 = inlined_call_operand.vmem [shape: f32[1152,128], index: 1, kind: input, shape index: {}]
  %s2 = inlined_call_operand.vmem [shape: f32[1,128], index: 2, kind: input, shape index: {}]
  %s3 = inlined_call_operand.vmem [shape: f32[2048,128], index: 3, kind: output, shape index: {}]
  %s4 = sld [smem:[#allocation0]]
  $region76: #{_lambda_.6} parent=0
    _
  %s6 = ssub.s32 1, %s4
  %s7 = scalar_select 0, %s6, %s4
  $region1: #{_lambda_.6} parent=0
    #allocation3 [shape = 'u8[1572864]{0}', space=vmem, size = 0x180000, scoped, tag = 'input window, operand 0']
    loop: start=0, step=1, limit=14
    $region2: #{_lambda_.6} parent=1 // loop_pre_header
      _
    $region3: #{_lambda_.6} parent=1 // loop_header
      %s9 = sphi 0, %s13
      %p10 = scmp.ge.s32.totalorder %s9, 14
      %s16 = sphi 0, %s28
      %s17 = sphi 0, %s24
      %s18 = sphi 0, %s16
      %s19 = sphi 0, %s17
      %s20 = sphi 0, %s18
      %s21 = sphi 0, %s19
      %s33 = sphi 0, %s35
      %s36 = sphi 0, %s33
      %s37 = sphi 0, %s36
      %s53 = sphi 0, %s37
      %s59 = sphi 0, %s61
      %s62 = sphi 0, %s59
      %s63 = sphi 0, %s62
      %s79 = sphi 0, %s63
      %s83 = sphi 0, %s83
      %s85 = sphi 0, %s83
      %s86 = sphi 0, %s85
      %s100 = sphi 0, %s86
      %s106 = sphi 0, %s108
      %s109 = sphi 0, %s106
      %s110 = sphi 0, %s109
      %s126 = sphi 0, %s110
    $region4: #{_lambda_.6} parent=1 // loop_header_branch
      %12 = sbr.rel (%p10) target = $region8
    $region5: #{_lambda_.6} parent=1 // loop_body
      %s14 = ssub.s32 %s9, 1
      %s15 = ssub.s32 %s9, 2
      %s22 = sadd.s32 1, %s17
      %p23 = scmp.ge.s32.totalorder %s22, 3
      %s24 = scalar_select %p23, 0, %s22
      %s25 = sadd.s32 1, %s16
      %s26 = scalar_select %p23, %s25, %s16
      %p27 = scmp.ge.s32.totalorder %s26, 4
      %s28 = scalar_select %p27, 0, %s26
      %s29 = ssub.s32 %s16, %s28
      %s30 = ssub.s32 %s17, %s24
      %s31 = sor.u32 %s29, %s30
      %p32 = scmp.eq.s32.totalorder %s31, 0
      %s34 = sadd.s32 %s33, 1
      %s35 = scalar_select %p32, %s33, %s34
      %p38 = pneg %p32
      %p39 = scmp.eq.s32.totalorder %s9, 11
      %p40 = por %p38, %p39
      %p41 = scmp.ne.s32.totalorder %s33, %s36
      %p42 = scmp.eq.s32.totalorder %s9, 0
      %p43 = por %p41, %p42
      %p44 = scmp.ne.s32.totalorder %s33, %s36
      %p45 = scmp.eq.s32.totalorder %s14, 11
      %p46 = por %p44, %p45
      %p47 = scmp.ne.s32.totalorder %s36, %s37
      %p48 = scmp.eq.s32.totalorder %s14, 0
      %p49 = por %p47, %p48
      %p50 = scmp.ne.s32.totalorder %s36, %s37
      %p51 = scmp.eq.s32.totalorder %s15, 11
      %p52 = por %p50, %p51
      %p54 = scmp.ne.s32.totalorder %s37, %s53
      %p55 = scmp.eq.s32.totalorder %s15, 0
      %p56 = por %p54, %p55
      %s57 = ssub.s32 %s17, %s24
      %p58 = scmp.eq.s32.totalorder %s57, 0
      %s60 = sadd.s32 %s59, 1
      %s61 = scalar_select %p58, %s59, %s60
      %p64 = pneg %p58
      %p65 = scmp.eq.s32.totalorder %s9, 11
      %p66 = por %p64, %p65
      %p67 = scmp.ne.s32.totalorder %s59, %s62
      %p68 = scmp.eq.s32.totalorder %s9, 0
      %p69 = por %p67, %p68
      %p70 = scmp.ne.s32.totalorder %s59, %s62
      %p71 = scmp.eq.s32.totalorder %s14, 11
      %p72 = por %p70, %p71
      %p73 = scmp.ne.s32.totalorder %s62, %s63
      %p74 = scmp.eq.s32.totalorder %s14, 0
      %p75 = por %p73, %p74
      %p76 = scmp.ne.s32.totalorder %s62, %s63
      %p77 = scmp.eq.s32.totalorder %s15, 11
      %p78 = por %p76, %p77
      %p80 = scmp.ne.s32.totalorder %s63, %s79
      %p81 = scmp.eq.s32.totalorder %s15, 0
      %p82 = por %p80, %p81
      %s84 = sadd.s32 %s83, 1
      %p87 = scmp.eq.s32.totalorder %s9, 11
      %p88 = scmp.ne.s32.totalorder %s83, %s85
      %p89 = scmp.eq.s32.totalorder %s9, 0
      %p90 = por %p88, %p89
      %p91 = scmp.ne.s32.totalorder %s83, %s85
      %p92 = scmp.eq.s32.totalorder %s14, 11
      %p93 = por %p91, %p92
      %p94 = scmp.ne.s32.totalorder %s85, %s86
      %p95 = scmp.eq.s32.totalorder %s14, 0
      %p96 = por %p94, %p95
      %p97 = scmp.ne.s32.totalorder %s85, %s86
      %p98 = scmp.eq.s32.totalorder %s15, 11
      %p99 = por %p97, %p98
      %p101 = scmp.ne.s32.totalorder %s86, %s100
      %p102 = scmp.eq.s32.totalorder %s15, 0
      %p103 = por %p101, %p102
      %s104 = ssub.s32 %s16, %s28
      %p105 = scmp.eq.s32.totalorder %s104, 0
      %s107 = sadd.s32 %s106, 1
      %s108 = scalar_select %p105, %s106, %s107
      %p111 = pneg %p105
      %p112 = scmp.eq.s32.totalorder %s9, 11
      %p113 = por %p111, %p112
      %p114 = scmp.ne.s32.totalorder %s106, %s109
      %p115 = scmp.eq.s32.totalorder %s9, 0
      %p116 = por %p114, %p115
      %p117 = scmp.ne.s32.totalorder %s106, %s109
      %p118 = scmp.eq.s32.totalorder %s14, 11
      %p119 = por %p117, %p118
      %p120 = scmp.ne.s32.totalorder %s109, %s110
      %p121 = scmp.eq.s32.totalorder %s14, 0
      %p122 = por %p120, %p121
      %p123 = scmp.ne.s32.totalorder %s109, %s110
      %p124 = scmp.eq.s32.totalorder %s15, 11
      %p125 = por %p123, %p124
      %p127 = scmp.ne.s32.totalorder %s110, %s126
      %p128 = scmp.eq.s32.totalorder %s15, 0
      %p129 = por %p127, %p128
      %p130 = scmp.le.s32.totalorder 1, %s9
      %p131 = scmp.lt.s32.totalorder %s9, 13
      %p132 = pnand %p130, %p131
      %p133 = pneg %p132
      // Predicated region
      $region9: #{_lambda_.6} parent=5 // pred_check
        _
      $region10: #{_lambda_.6} parent=5 // pred_check_branch
        %135 = sbr.rel (%p132) target = $region12
      $region11: #{_lambda_.6} parent=5 // pred_region
        %s136 = ssub.s32 %s9, 1
        // Predicated region
        $region13: #{_lambda_.6} parent=11 // pred_check
          %p137 = pneg %p96
        $region14: #{_lambda_.6} parent=11 // pred_check_branch
          %139 = sbr.rel (%p137) target = $region16
        $region15: #{_lambda_.6} parent=11 // pred_region
          _
        $region16: #{_lambda_.6} parent=11 // pred_fallthru
          _
      $region12: #{_lambda_.6} parent=5 // pred_fallthru
        _
      %p140 = scmp.lt.s32.totalorder %s9, 12
      // Predicated region
      $region17: #{_lambda_.6} parent=5 // pred_check
        %p141 = pneg %p140
      $region18: #{_lambda_.6} parent=5 // pred_check_branch
        %143 = sbr.rel (%p141) target = $region20
      $region19: #{_lambda_.6} parent=5 // pred_region
        // Predicated region
        $region21: #{_lambda_.6} parent=19 // pred_check
          %p144 = pneg %p43
        $region22: #{_lambda_.6} parent=19 // pred_check_branch
          %146 = sbr.rel (%p144) target = $region24
        $region23: #{_lambda_.6} parent=19 // pred_region
          %s147 = sand.u32 %s33, 1
          %s148 = sand.u32 %s33, 1
          %s149 = smul.addr %s148, 1536
          %s150 = scalar_lea.vmem [#allocation3], %s149
          %s151 = smul.u32 64, %s16
          %s152 = smul.u32 3, %s17
          %s153 = smul.addr %s151, 9
          %s154 = sadd.s32 %s152, %s153
          %s155 = smul.addr %s154, 8
          %s156 = scalar_lea.vmem %s0, %s155
          // Predicated region
          $region25: #{_lambda_.6} parent=23 // pred_check
            _
          $region26: #{_lambda_.6} parent=23 // pred_check_branch
            %158 = sbr.rel (0) target = $region28
          $region27: #{_lambda_.6} parent=23 // pred_region
            // Predicated region
            $region29: #{_lambda_.6} parent=27 // pred_check
              _
            $region30: #{_lambda_.6} parent=27 // pred_check_branch
              %160 = sbr.rel (0) target = $region32
            $region31: #{_lambda_.6} parent=27 // pred_region
              loop: start=0, step=1, limit=1
              $region33: #{_lambda_.6} parent=31 // loop_pre_header
                _
              $region34: #{_lambda_.6} parent=31 // loop_header
                %s162 = sphi 0, %s166
                %p163 = scmp.ge.s32.totalorder %s162, 1
                %s167 = sphi %s156, %s156
                %s168 = sphi %s150, %s150
              $region35: #{_lambda_.6} parent=31 // loop_header_branch
                %165 = sbr.rel (%p163) target = $region39
              $region36: #{_lambda_.6} parent=31 // loop_body
                %v169 = vld [vmem:[%s167] sm:$0xff]
                %170 = vst [vmem:[%s168] sm:$0xff] %v169
                %v171 = vld [vmem:[%s167 + $0x8] sm:$0xff]
                %172 = vst [vmem:[%s168 + $0x8] sm:$0xff] %v171
                %v173 = vld [vmem:[%s167 + $0x10] sm:$0xff]
                %174 = vst [vmem:[%s168 + $0x10] sm:$0xff] %v173
                %v175 = vld [vmem:[%s167 + $0x48] sm:$0xff]
                %176 = vst [vmem:[%s168 + $0x18] sm:$0xff] %v175
                %v177 = vld [vmem:[%s167 + $0x50] sm:$0xff]
                %178 = vst [vmem:[%s168 + $0x20] sm:$0xff] %v177
                %v179 = vld [vmem:[%s167 + $0x58] sm:$0xff]
                %180 = vst [vmem:[%s168 + $0x28] sm:$0xff] %v179
                %v181 = vld [vmem:[%s167 + $0x90] sm:$0xff]
                %182 = vst [vmem:[%s168 + $0x30] sm:$0xff] %v181
                %v183 = vld [vmem:[%s167 + $0x98] sm:$0xff]
                %184 = vst [vmem:[%s168 + $0x38] sm:$0xff] %v183
                %v185 = vld [vmem:[%s167 + $0xa0] sm:$0xff]
                %186 = vst [vmem:[%s168 + $0x40] sm:$0xff] %v185
                %v187 = vld [vmem:[%s167 + $0xd8] sm:$0xff]
                %188 = vst [vmem:[%s168 + $0x48] sm:$0xff] %v187
                %v189 = vld [vmem:[%s167 + $0xe0] sm:$0xff]
                %190 = vst [vmem:[%s168 + $0x50] sm:$0xff] %v189
                %v191 = vld [vmem:[%s167 + $0xe8] sm:$0xff]
                %192 = vst [vmem:[%s168 + $0x58] sm:$0xff] %v191
                %v193 = vld [vmem:[%s167 + $0x120] sm:$0xff]
                %194 = vst [vmem:[%s168 + $0x60] sm:$0xff] %v193
                %v195 = vld [vmem:[%s167 + $0x128] sm:$0xff]
                %196 = vst [vmem:[%s168 + $0x68] sm:$0xff] %v195
                %v197 = vld [vmem:[%s167 + $0x130] sm:$0xff]
                %198 = vst [vmem:[%s168 + $0x70] sm:$0xff] %v197
                %v199 = vld [vmem:[%s167 + $0x168] sm:$0xff]
                %200 = vst [vmem:[%s168 + $0x78] sm:$0xff] %v199
                %v201 = vld [vmem:[%s167 + $0x170] sm:$0xff]
                %202 = vst [vmem:[%s168 + $0x80] sm:$0xff] %v201
                %v203 = vld [vmem:[%s167 + $0x178] sm:$0xff]
                %204 = vst [vmem:[%s168 + $0x88] sm:$0xff] %v203
                %v205 = vld [vmem:[%s167 + $0x1b0] sm:$0xff]
                %206 = vst [vmem:[%s168 + $0x90] sm:$0xff] %v205
                %v207 = vld [vmem:[%s167 + $0x1b8] sm:$0xff]
                %208 = vst [vmem:[%s168 + $0x98] sm:$0xff] %v207
                %v209 = vld [vmem:[%s167 + $0x1c0] sm:$0xff]
                %210 = vst [vmem:[%s168 + $0xa0] sm:$0xff] %v209
                %v211 = vld [vmem:[%s167 + $0x1f8] sm:$0xff]
                %212 = vst [vmem:[%s168 + $0xa8] sm:$0xff] %v211
                %v213 = vld [vmem:[%s167 + $0x200] sm:$0xff]
                %214 = vst [vmem:[%s168 + $0xb0] sm:$0xff] %v213
                %v215 = vld [vmem:[%s167 + $0x208] sm:$0xff]
                %216 = vst [vmem:[%s168 + $0xb8] sm:$0xff] %v215
                %v217 = vld [vmem:[%s167 + $0x240] sm:$0xff]
                %218 = vst [vmem:[%s168 + $0xc0] sm:$0xff] %v217
                %v219 = vld [vmem:[%s167 + $0x248] sm:$0xff]
                %220 = vst [vmem:[%s168 + $0xc8] sm:$0xff] %v219
                %v221 = vld [vmem:[%s167 + $0x250] sm:$0xff]
                %222 = vst [vmem:[%s168 + $0xd0] sm:$0xff] %v221
                %v223 = vld [vmem:[%s167 + $0x288] sm:$0xff]
                %224 = vst [vmem:[%s168 + $0xd8] sm:$0xff] %v223
                %v225 = vld [vmem:[%s167 + $0x290] sm:$0xff]
                %226 = vst [vmem:[%s168 + $0xe0] sm:$0xff] %v225
                %v227 = vld [vmem:[%s167 + $0x298] sm:$0xff]
                %228 = vst [vmem:[%s168 + $0xe8] sm:$0xff] %v227
                %v229 = vld [vmem:[%s167 + $0x2d0] sm:$0xff]
                %230 = vst [vmem:[%s168 + $0xf0] sm:$0xff] %v229
                %v231 = vld [vmem:[%s167 + $0x2d8] sm:$0xff]
                %232 = vst [vmem:[%s168 + $0xf8] sm:$0xff] %v231
                %v233 = vld [vmem:[%s167 + $0x2e0] sm:$0xff]
                %234 = vst [vmem:[%s168 + $0x100] sm:$0xff] %v233
                %v235 = vld [vmem:[%s167 + $0x318] sm:$0xff]
                %236 = vst [vmem:[%s168 + $0x108] sm:$0xff] %v235
                %v237 = vld [vmem:[%s167 + $0x320] sm:$0xff]
                %238 = vst [vmem:[%s168 + $0x110] sm:$0xff] %v237
                %v239 = vld [vmem:[%s167 + $0x328] sm:$0xff]
                %240 = vst [vmem:[%s168 + $0x118] sm:$0xff] %v239
                %v241 = vld [vmem:[%s167 + $0x360] sm:$0xff]
                %242 = vst [vmem:[%s168 + $0x120] sm:$0xff] %v241
                %v243 = vld [vmem:[%s167 + $0x368] sm:$0xff]
                %244 = vst [vmem:[%s168 + $0x128] sm:$0xff] %v243
                %v245 = vld [vmem:[%s167 + $0x370] sm:$0xff]
                %246 = vst [vmem:[%s168 + $0x130] sm:$0xff] %v245
                %v247 = vld [vmem:[%s167 + $0x3a8] sm:$0xff]
                %248 = vst [vmem:[%s168 + $0x138] sm:$0xff] %v247
                %v249 = vld [vmem:[%s167 + $0x3b0] sm:$0xff]
                %250 = vst [vmem:[%s168 + $0x140] sm:$0xff] %v249
                %v251 = vld [vmem:[%s167 + $0x3b8] sm:$0xff]
                %252 = vst [vmem:[%s168 + $0x148] sm:$0xff] %v251
                %v253 = vld [vmem:[%s167 + $0x3f0] sm:$0xff]
                %254 = vst [vmem:[%s168 + $0x150] sm:$0xff] %v253
                %v255 = vld [vmem:[%s167 + $0x3f8] sm:$0xff]
                %256 = vst [vmem:[%s168 + $0x158] sm:$0xff] %v255
                %v257 = vld [vmem:[%s167 + $0x400] sm:$0xff]
                %258 = vst [vmem:[%s168 + $0x160] sm:$0xff] %v257
                %v259 = vld [vmem:[%s167 + $0x438] sm:$0xff]
                %260 = vst [vmem:[%s168 + $0x168] sm:$0xff] %v259
                %v261 = vld [vmem:[%s167 + $0x440] sm:$0xff]
                %262 = vst [vmem:[%s168 + $0x170] sm:$0xff] %v261
                %v263 = vld [vmem:[%s167 + $0x448] sm:$0xff]
                %264 = vst [vmem:[%s168 + $0x178] sm:$0xff] %v263
                %v265 = vld [vmem:[%s167 + $0x480] sm:$0xff]
                %266 = vst [vmem:[%s168 + $0x180] sm:$0xff] %v265
                %v267 = vld [vmem:[%s167 + $0x488] sm:$0xff]
                %268 = vst [vmem:[%s168 + $0x188] sm:$0xff] %v267
                %v269 = vld [vmem:[%s167 + $0x490] sm:$0xff]
                %270 = vst [vmem:[%s168 + $0x190] sm:$0xff] %v269
                %v271 = vld [vmem:[%s167 + $0x4c8] sm:$0xff]
                %272 = vst [vmem:[%s168 + $0x198] sm:$0xff] %v271
                %v273 = vld [vmem:[%s167 + $0x4d0] sm:$0xff]
                %274 = vst [vmem:[%s168 + $0x1a0] sm:$0xff] %v273
                %v275 = vld [vmem:[%s167 + $0x4d8] sm:$0xff]
                %276 = vst [vmem:[%s168 + $0x1a8] sm:$0xff] %v275
                %v277 = vld [vmem:[%s167 + $0x510] sm:$0xff]
                %278 = vst [vmem:[%s168 + $0x1b0] sm:$0xff] %v277
                %v279 = vld [vmem:[%s167 + $0x518] sm:$0xff]
                %280 = vst [vmem:[%s168 + $0x1b8] sm:$0xff] %v279
                %v281 = vld [vmem:[%s167 + $0x520] sm:$0xff]
                %282 = vst [vmem:[%s168 + $0x1c0] sm:$0xff] %v281
                %v283 = vld [vmem:[%s167 + $0x558] sm:$0xff]
                %284 = vst [vmem:[%s168 + $0x1c8] sm:$0xff] %v283
                %v285 = vld [vmem:[%s167 + $0x560] sm:$0xff]
                %286 = vst [vmem:[%s168 + $0x1d0] sm:$0xff] %v285
                %v287 = vld [vmem:[%s167 + $0x568] sm:$0xff]
                %288 = vst [vmem:[%s168 + $0x1d8] sm:$0xff] %v287
                %v289 = vld [vmem:[%s167 + $0x5a0] sm:$0xff]
                %290 = vst [vmem:[%s168 + $0x1e0] sm:$0xff] %v289
                %v291 = vld [vmem:[%s167 + $0x5a8] sm:$0xff]
                %292 = vst [vmem:[%s168 + $0x1e8] sm:$0xff] %v291
                %v293 = vld [vmem:[%s167 + $0x5b0] sm:$0xff]
                %294 = vst [vmem:[%s168 + $0x1f0] sm:$0xff] %v293
                %v295 = vld [vmem:[%s167 + $0x5e8] sm:$0xff]
                %296 = vst [vmem:[%s168 + $0x1f8] sm:$0xff] %v295
                %v297 = vld [vmem:[%s167 + $0x5f0] sm:$0xff]
                %298 = vst [vmem:[%s168 + $0x200] sm:$0xff] %v297
                %v299 = vld [vmem:[%s167 + $0x5f8] sm:$0xff]
                %300 = vst [vmem:[%s168 + $0x208] sm:$0xff] %v299
                %v301 = vld [vmem:[%s167 + $0x630] sm:$0xff]
                %302 = vst [vmem:[%s168 + $0x210] sm:$0xff] %v301
                %v303 = vld [vmem:[%s167 + $0x638] sm:$0xff]
                %304 = vst [vmem:[%s168 + $0x218] sm:$0xff] %v303
                %v305 = vld [vmem:[%s167 + $0x640] sm:$0xff]
                %306 = vst [vmem:[%s168 + $0x220] sm:$0xff] %v305
                %v307 = vld [vmem:[%s167 + $0x678] sm:$0xff]
                %308 = vst [vmem:[%s168 + $0x228] sm:$0xff] %v307
                %v309 = vld [vmem:[%s167 + $0x680] sm:$0xff]
                %310 = vst [vmem:[%s168 + $0x230] sm:$0xff] %v309
                %v311 = vld [vmem:[%s167 + $0x688] sm:$0xff]
                %312 = vst [vmem:[%s168 + $0x238] sm:$0xff] %v311
                %v313 = vld [vmem:[%s167 + $0x6c0] sm:$0xff]
                %314 = vst [vmem:[%s168 + $0x240] sm:$0xff] %v313
                %v315 = vld [vmem:[%s167 + $0x6c8] sm:$0xff]
                %316 = vst [vmem:[%s168 + $0x248] sm:$0xff] %v315
                %v317 = vld [vmem:[%s167 + $0x6d0] sm:$0xff]
                %318 = vst [vmem:[%s168 + $0x250] sm:$0xff] %v317
                %v319 = vld [vmem:[%s167 + $0x708] sm:$0xff]
                %320 = vst [vmem:[%s168 + $0x258] sm:$0xff] %v319
                %v321 = vld [vmem:[%s167 + $0x710] sm:$0xff]
                %322 = vst [vmem:[%s168 + $0x260] sm:$0xff] %v321
                %v323 = vld [vmem:[%s167 + $0x718] sm:$0xff]
                %324 = vst [vmem:[%s168 + $0x268] sm:$0xff] %v323
                %v325 = vld [vmem:[%s167 + $0x750] sm:$0xff]
                %326 = vst [vmem:[%s168 + $0x270] sm:$0xff] %v325
                %v327 = vld [vmem:[%s167 + $0x758] sm:$0xff]
                %328 = vst [vmem:[%s168 + $0x278] sm:$0xff] %v327
                %v329 = vld [vmem:[%s167 + $0x760] sm:$0xff]
                %330 = vst [vmem:[%s168 + $0x280] sm:$0xff] %v329
                %v331 = vld [vmem:[%s167 + $0x798] sm:$0xff]
                %332 = vst [vmem:[%s168 + $0x288] sm:$0xff] %v331
                %v333 = vld [vmem:[%s167 + $0x7a0] sm:$0xff]
                %334 = vst [vmem:[%s168 + $0x290] sm:$0xff] %v333
                %v335 = vld [vmem:[%s167 + $0x7a8] sm:$0xff]
                %336 = vst [vmem:[%s168 + $0x298] sm:$0xff] %v335
                %v337 = vld [vmem:[%s167 + $0x7e0] sm:$0xff]
                %338 = vst [vmem:[%s168 + $0x2a0] sm:$0xff] %v337
                %v339 = vld [vmem:[%s167 + $0x7e8] sm:$0xff]
                %340 = vst [vmem:[%s168 + $0x2a8] sm:$0xff] %v339
                %v341 = vld [vmem:[%s167 + $0x7f0] sm:$0xff]
                %342 = vst [vmem:[%s168 + $0x2b0] sm:$0xff] %v341
                %v343 = vld [vmem:[%s167 + $0x828] sm:$0xff]
                %344 = vst [vmem:[%s168 + $0x2b8] sm:$0xff] %v343
                %v345 = vld [vmem:[%s167 + $0x830] sm:$0xff]
                %346 = vst [vmem:[%s168 + $0x2c0] sm:$0xff] %v345
                %v347 = vld [vmem:[%s167 + $0x838] sm:$0xff]
                %348 = vst [vmem:[%s168 + $0x2c8] sm:$0xff] %v347
                %v349 = vld [vmem:[%s167 + $0x870] sm:$0xff]
                %350 = vst [vmem:[%s168 + $0x2d0] sm:$0xff] %v349
                %v351 = vld [vmem:[%s167 + $0x878] sm:$0xff]
                %352 = vst [vmem:[%s168 + $0x2d8] sm:$0xff] %v351
                %v353 = vld [vmem:[%s167 + $0x880] sm:$0xff]
                %354 = vst [vmem:[%s168 + $0x2e0] sm:$0xff] %v353
                %v355 = vld [vmem:[%s167 + $0x8b8] sm:$0xff]
                %356 = vst [vmem:[%s168 + $0x2e8] sm:$0xff] %v355
                %v357 = vld [vmem:[%s167 + $0x8c0] sm:$0xff]
                %358 = vst [vmem:[%s168 + $0x2f0] sm:$0xff] %v357
                %v359 = vld [vmem:[%s167 + $0x8c8] sm:$0xff]
                %360 = vst [vmem:[%s168 + $0x2f8] sm:$0xff] %v359
                %v361 = vld [vmem:[%s167 + $0x900] sm:$0xff]
                %362 = vst [vmem:[%s168 + $0x300] sm:$0xff] %v361
                %v363 = vld [vmem:[%s167 + $0x908] sm:$0xff]
                %364 = vst [vmem:[%s168 + $0x308] sm:$0xff] %v363
                %v365 = vld [vmem:[%s167 + $0x910] sm:$0xff]
                %366 = vst [vmem:[%s168 + $0x310] sm:$0xff] %v365
                %v367 = vld [vmem:[%s167 + $0x948] sm:$0xff]
                %368 = vst [vmem:[%s168 + $0x318] sm:$0xff] %v367
                %v369 = vld [vmem:[%s167 + $0x950] sm:$0xff]
                %370 = vst [vmem:[%s168 + $0x320] sm:$0xff] %v369
                %v371 = vld [vmem:[%s167 + $0x958] sm:$0xff]
                %372 = vst [vmem:[%s168 + $0x328] sm:$0xff] %v371
                %v373 = vld [vmem:[%s167 + $0x990] sm:$0xff]
                %374 = vst [vmem:[%s168 + $0x330] sm:$0xff] %v373
                %v375 = vld [vmem:[%s167 + $0x998] sm:$0xff]
                %376 = vst [vmem:[%s168 + $0x338] sm:$0xff] %v375
                %v377 = vld [vmem:[%s167 + $0x9a0] sm:$0xff]
                %378 = vst [vmem:[%s168 + $0x340] sm:$0xff] %v377
                %v379 = vld [vmem:[%s167 + $0x9d8] sm:$0xff]
                %380 = vst [vmem:[%s168 + $0x348] sm:$0xff] %v379
                %v381 = vld [vmem:[%s167 + $0x9e0] sm:$0xff]
                %382 = vst [vmem:[%s168 + $0x350] sm:$0xff] %v381
                %v383 = vld [vmem:[%s167 + $0x9e8] sm:$0xff]
                %384 = vst [vmem:[%s168 + $0x358] sm:$0xff] %v383
                %v385 = vld [vmem:[%s167 + $0xa20] sm:$0xff]
                %386 = vst [vmem:[%s168 + $0x360] sm:$0xff] %v385
                %v387 = vld [vmem:[%s167 + $0xa28] sm:$0xff]
                %388 = vst [vmem:[%s168 + $0x368] sm:$0xff] %v387
                %v389 = vld [vmem:[%s167 + $0xa30] sm:$0xff]
                %390 = vst [vmem:[%s168 + $0x370] sm:$0xff] %v389
                %v391 = vld [vmem:[%s167 + $0xa68] sm:$0xff]
                %392 = vst [vmem:[%s168 + $0x378] sm:$0xff] %v391
                %v393 = vld [vmem:[%s167 + $0xa70] sm:$0xff]
                %394 = vst [vmem:[%s168 + $0x380] sm:$0xff] %v393
                %v395 = vld [vmem:[%s167 + $0xa78] sm:$0xff]
                %396 = vst [vmem:[%s168 + $0x388] sm:$0xff] %v395
                %v397 = vld [vmem:[%s167 + $0xab0] sm:$0xff]
                %398 = vst [vmem:[%s168 + $0x390] sm:$0xff] %v397
                %v399 = vld [vmem:[%s167 + $0xab8] sm:$0xff]
                %400 = vst [vmem:[%s168 + $0x398] sm:$0xff] %v399
                %v401 = vld [vmem:[%s167 + $0xac0] sm:$0xff]
                %402 = vst [vmem:[%s168 + $0x3a0] sm:$0xff] %v401
                %v403 = vld [vmem:[%s167 + $0xaf8] sm:$0xff]
                %404 = vst [vmem:[%s168 + $0x3a8] sm:$0xff] %v403
                %v405 = vld [vmem:[%s167 + $0xb00] sm:$0xff]
                %406 = vst [vmem:[%s168 + $0x3b0] sm:$0xff] %v405
                %v407 = vld [vmem:[%s167 + $0xb08] sm:$0xff]
                %408 = vst [vmem:[%s168 + $0x3b8] sm:$0xff] %v407
                %v409 = vld [vmem:[%s167 + $0xb40] sm:$0xff]
                %410 = vst [vmem:[%s168 + $0x3c0] sm:$0xff] %v409
                %v411 = vld [vmem:[%s167 + $0xb48] sm:$0xff]
                %412 = vst [vmem:[%s168 + $0x3c8] sm:$0xff] %v411
                %v413 = vld [vmem:[%s167 + $0xb50] sm:$0xff]
                %414 = vst [vmem:[%s168 + $0x3d0] sm:$0xff] %v413
                %v415 = vld [vmem:[%s167 + $0xb88] sm:$0xff]
                %416 = vst [vmem:[%s168 + $0x3d8] sm:$0xff] %v415
                %v417 = vld [vmem:[%s167 + $0xb90] sm:$0xff]
                %418 = vst [vmem:[%s168 + $0x3e0] sm:$0xff] %v417
                %v419 = vld [vmem:[%s167 + $0xb98] sm:$0xff]
                %420 = vst [vmem:[%s168 + $0x3e8] sm:$0xff] %v419
                %v421 = vld [vmem:[%s167 + $0xbd0] sm:$0xff]
                %422 = vst [vmem:[%s168 + $0x3f0] sm:$0xff] %v421
                %v423 = vld [vmem:[%s167 + $0xbd8] sm:$0xff]
                %424 = vst [vmem:[%s168 + $0x3f8] sm:$0xff] %v423
                %v425 = vld [vmem:[%s167 + $0xbe0] sm:$0xff]
                %426 = vst [vmem:[%s168 + $0x400] sm:$0xff] %v425
                %v427 = vld [vmem:[%s167 + $0xc18] sm:$0xff]
                %428 = vst [vmem:[%s168 + $0x408] sm:$0xff] %v427
                %v429 = vld [vmem:[%s167 + $0xc20] sm:$0xff]
                %430 = vst [vmem:[%s168 + $0x410] sm:$0xff] %v429
                %v431 = vld [vmem:[%s167 + $0xc28] sm:$0xff]
                %432 = vst [vmem:[%s168 + $0x418] sm:$0xff] %v431
                %v433 = vld [vmem:[%s167 + $0xc60] sm:$0xff]
                %434 = vst [vmem:[%s168 + $0x420] sm:$0xff] %v433
                %v435 = vld [vmem:[%s167 + $0xc68] sm:$0xff]
                %436 = vst [vmem:[%s168 + $0x428] sm:$0xff] %v435
                %v437 = vld [vmem:[%s167 + $0xc70] sm:$0xff]
                %438 = vst [vmem:[%s168 + $0x430] sm:$0xff] %v437
                %v439 = vld [vmem:[%s167 + $0xca8] sm:$0xff]
                %440 = vst [vmem:[%s168 + $0x438] sm:$0xff] %v439
                %v441 = vld [vmem:[%s167 + $0xcb0] sm:$0xff]
                %442 = vst [vmem:[%s168 + $0x440] sm:$0xff] %v441
                %v443 = vld [vmem:[%s167 + $0xcb8] sm:$0xff]
                %444 = vst [vmem:[%s168 + $0x448] sm:$0xff] %v443
                %v445 = vld [vmem:[%s167 + $0xcf0] sm:$0xff]
                %446 = vst [vmem:[%s168 + $0x450] sm:$0xff] %v445
                %v447 = vld [vmem:[%s167 + $0xcf8] sm:$0xff]
                %448 = vst [vmem:[%s168 + $0x458] sm:$0xff] %v447
                %v449 = vld [vmem:[%s167 + $0xd00] sm:$0xff]
                %450 = vst [vmem:[%s168 + $0x460] sm:$0xff] %v449
                %v451 = vld [vmem:[%s167 + $0xd38] sm:$0xff]
                %452 = vst [vmem:[%s168 + $0x468] sm:$0xff] %v451
                %v453 = vld [vmem:[%s167 + $0xd40] sm:$0xff]
                %454 = vst [vmem:[%s168 + $0x470] sm:$0xff] %v453
                %v455 = vld [vmem:[%s167 + $0xd48] sm:$0xff]
                %456 = vst [vmem:[%s168 + $0x478] sm:$0xff] %v455
                %v457 = vld [vmem:[%s167 + $0xd80] sm:$0xff]
                %458 = vst [vmem:[%s168 + $0x480] sm:$0xff] %v457
                %v459 = vld [vmem:[%s167 + $0xd88] sm:$0xff]
                %460 = vst [vmem:[%s168 + $0x488] sm:$0xff] %v459
                %v461 = vld [vmem:[%s167 + $0xd90] sm:$0xff]
                %462 = vst [vmem:[%s168 + $0x490] sm:$0xff] %v461
                %v463 = vld [vmem:[%s167 + $0xdc8] sm:$0xff]
                %464 = vst [vmem:[%s168 + $0x498] sm:$0xff] %v463
                %v465 = vld [vmem:[%s167 + $0xdd0] sm:$0xff]
                %466 = vst [vmem:[%s168 + $0x4a0] sm:$0xff] %v465
                %v467 = vld [vmem:[%s167 + $0xdd8] sm:$0xff]
                %468 = vst [vmem:[%s168 + $0x4a8] sm:$0xff] %v467
                %v469 = vld [vmem:[%s167 + $0xe10] sm:$0xff]
                %470 = vst [vmem:[%s168 + $0x4b0] sm:$0xff] %v469
                %v471 = vld [vmem:[%s167 + $0xe18] sm:$0xff]
                %472 = vst [vmem:[%s168 + $0x4b8] sm:$0xff] %v471
                %v473 = vld [vmem:[%s167 + $0xe20] sm:$0xff]
                %474 = vst [vmem:[%s168 + $0x4c0] sm:$0xff] %v473
                %v475 = vld [vmem:[%s167 + $0xe58] sm:$0xff]
                %476 = vst [vmem:[%s168 + $0x4c8] sm:$0xff] %v475
                %v477 = vld [vmem:[%s167 + $0xe60] sm:$0xff]
                %478 = vst [vmem:[%s168 + $0x4d0] sm:$0xff] %v477
                %v479 = vld [vmem:[%s167 + $0xe68] sm:$0xff]
                %480 = vst [vmem:[%s168 + $0x4d8] sm:$0xff] %v479
                %v481 = vld [vmem:[%s167 + $0xea0] sm:$0xff]
                %482 = vst [vmem:[%s168 + $0x4e0] sm:$0xff] %v481
                %v483 = vld [vmem:[%s167 + $0xea8] sm:$0xff]
                %484 = vst [vmem:[%s168 + $0x4e8] sm:$0xff] %v483
                %v485 = vld [vmem:[%s167 + $0xeb0] sm:$0xff]
                %486 = vst [vmem:[%s168 + $0x4f0] sm:$0xff] %v485
                %v487 = vld [vmem:[%s167 + $0xee8] sm:$0xff]
                %488 = vst [vmem:[%s168 + $0x4f8] sm:$0xff] %v487
                %v489 = vld [vmem:[%s167 + $0xef0] sm:$0xff]
                %490 = vst [vmem:[%s168 + $0x500] sm:$0xff] %v489
                %v491 = vld [vmem:[%s167 + $0xef8] sm:$0xff]
                %492 = vst [vmem:[%s168 + $0x508] sm:$0xff] %v491
                %v493 = vld [vmem:[%s167 + $0xf30] sm:$0xff]
                %494 = vst [vmem:[%s168 + $0x510] sm:$0xff] %v493
                %v495 = vld [vmem:[%s167 + $0xf38] sm:$0xff]
                %496 = vst [vmem:[%s168 + $0x518] sm:$0xff] %v495
                %v497 = vld [vmem:[%s167 + $0xf40] sm:$0xff]
                %498 = vst [vmem:[%s168 + $0x520] sm:$0xff] %v497
                %v499 = vld [vmem:[%s167 + $0xf78] sm:$0xff]
                %500 = vst [vmem:[%s168 + $0x528] sm:$0xff] %v499
                %v501 = vld [vmem:[%s167 + $0xf80] sm:$0xff]
                %502 = vst [vmem:[%s168 + $0x530] sm:$0xff] %v501
                %v503 = vld [vmem:[%s167 + $0xf88] sm:$0xff]
                %504 = vst [vmem:[%s168 + $0x538] sm:$0xff] %v503
                %v505 = vld [vmem:[%s167 + $0xfc0] sm:$0xff]
                %506 = vst [vmem:[%s168 + $0x540] sm:$0xff] %v505
                %v507 = vld [vmem:[%s167 + $0xfc8] sm:$0xff]
                %508 = vst [vmem:[%s168 + $0x548] sm:$0xff] %v507
                %v509 = vld [vmem:[%s167 + $0xfd0] sm:$0xff]
                %510 = vst [vmem:[%s168 + $0x550] sm:$0xff] %v509
                %v511 = vld [vmem:[%s167 + $0x1008] sm:$0xff]
                %512 = vst [vmem:[%s168 + $0x558] sm:$0xff] %v511
                %v513 = vld [vmem:[%s167 + $0x1010] sm:$0xff]
                %514 = vst [vmem:[%s168 + $0x560] sm:$0xff] %v513
                %v515 = vld [vmem:[%s167 + $0x1018] sm:$0xff]
                %516 = vst [vmem:[%s168 + $0x568] sm:$0xff] %v515
                %v517 = vld [vmem:[%s167 + $0x1050] sm:$0xff]
                %518 = vst [vmem:[%s168 + $0x570] sm:$0xff] %v517
                %v519 = vld [vmem:[%s167 + $0x1058] sm:$0xff]
                %520 = vst [vmem:[%s168 + $0x578] sm:$0xff] %v519
                %v521 = vld [vmem:[%s167 + $0x1060] sm:$0xff]
                %522 = vst [vmem:[%s168 + $0x580] sm:$0xff] %v521
                %v523 = vld [vmem:[%s167 + $0x1098] sm:$0xff]
                %524 = vst [vmem:[%s168 + $0x588] sm:$0xff] %v523
                %v525 = vld [vmem:[%s167 + $0x10a0] sm:$0xff]
                %526 = vst [vmem:[%s168 + $0x590] sm:$0xff] %v525
                %v527 = vld [vmem:[%s167 + $0x10a8] sm:$0xff]
                %528 = vst [vmem:[%s168 + $0x598] sm:$0xff] %v527
                %v529 = vld [vmem:[%s167 + $0x10e0] sm:$0xff]
                %530 = vst [vmem:[%s168 + $0x5a0] sm:$0xff] %v529
                %v531 = vld [vmem:[%s167 + $0x10e8] sm:$0xff]
                %532 = vst [vmem:[%s168 + $0x5a8] sm:$0xff] %v531
                %v533 = vld [vmem:[%s167 + $0x10f0] sm:$0xff]
                %534 = vst [vmem:[%s168 + $0x5b0] sm:$0xff] %v533
                %v535 = vld [vmem:[%s167 + $0x1128] sm:$0xff]
                %536 = vst [vmem:[%s168 + $0x5b8] sm:$0xff] %v535
                %v537 = vld [vmem:[%s167 + $0x1130] sm:$0xff]
                %538 = vst [vmem:[%s168 + $0x5c0] sm:$0xff] %v537
                %v539 = vld [vmem:[%s167 + $0x1138] sm:$0xff]
                %540 = vst [vmem:[%s168 + $0x5c8] sm:$0xff] %v539
                %v541 = vld [vmem:[%s167 + $0x1170] sm:$0xff]
                %542 = vst [vmem:[%s168 + $0x5d0] sm:$0xff] %v541
                %v543 = vld [vmem:[%s167 + $0x1178] sm:$0xff]
                %544 = vst [vmem:[%s168 + $0x5d8] sm:$0xff] %v543
                %v545 = vld [vmem:[%s167 + $0x1180] sm:$0xff]
                %546 = vst [vmem:[%s168 + $0x5e0] sm:$0xff] %v545
                %v547 = vld [vmem:[%s167 + $0x11b8] sm:$0xff]
                %548 = vst [vmem:[%s168 + $0x5e8] sm:$0xff] %v547
                %v549 = vld [vmem:[%s167 + $0x11c0] sm:$0xff]
                %550 = vst [vmem:[%s168 + $0x5f0] sm:$0xff] %v549
                %v551 = vld [vmem:[%s167 + $0x11c8] sm:$0xff]
                %552 = vst [vmem:[%s168 + $0x5f8] sm:$0xff] %v551
              $region37: #{_lambda_.6} parent=31 // loop_footer
                %s166 = sadd.s32 1, %s162
              $region38: #{_lambda_.6} parent=31 // loop_footer_branch
                %161 = sbr.rel target = $region34
              $region39: #{_lambda_.6} parent=31 // loop_exit
                _
            $region32: #{_lambda_.6} parent=27 // pred_fallthru
              _
            // Predicated region
            $region40: #{_lambda_.6} parent=27 // pred_check
              _
            $region41: #{_lambda_.6} parent=27 // pred_check_branch
              %554 = sbr.rel target = $region43
            $region42: #{_lambda_.6} parent=27 // pred_region
              _
            $region43: #{_lambda_.6} parent=27 // pred_fallthru
              _
          $region28: #{_lambda_.6} parent=23 // pred_fallthru
            _
          %555 = vnop
        $region24: #{_lambda_.6} parent=19 // pred_fallthru
          _
        // Predicated region
        $region44: #{_lambda_.6} parent=19 // pred_check
          %p556 = pneg %p69
        $region45: #{_lambda_.6} parent=19 // pred_check_branch
          %558 = sbr.rel (%p556) target = $region47
        $region46: #{_lambda_.6} parent=19 // pred_region
          %s559 = smul.u32 48, %s17
          %p560 = scmp.lt.s32.totalorder %s559, 143
          %s561 = scalar_select %p560, %s559, 143
          %s562 = smul.addr %s561, 8
          %s563 = scalar_lea.vmem %s1, %s562
          %s564 = smul.u32 48, %s17
        $region47: #{_lambda_.6} parent=19 // pred_fallthru
          _
      $region20: #{_lambda_.6} parent=5 // pred_fallthru
        _
      %p565 = scmp.le.s32.totalorder 1, %s9
      %p566 = scmp.lt.s32.totalorder %s9, 13
      %p567 = pnand %p565, %p566
      %p568 = pneg %p567
      // Predicated region
      $region48: #{_lambda_.6} parent=5 // pred_check
        _
      $region49: #{_lambda_.6} parent=5 // pred_check_branch
        %570 = sbr.rel (%p567) target = $region51
      $region50: #{_lambda_.6} parent=5 // pred_region
        %s571 = ssub.s32 %s9, 1
        %s572 = sand.u32 %s36, 1
        %s573 = sand.u32 %s36, 1
        %s574 = smul.addr %s573, 1536
        %s575 = scalar_lea.vmem [#allocation3], %s574
        // Predicated region
        $region52: #{_lambda_.6} parent=50 // pred_check
          %p576 = pneg %p49
        $region53: #{_lambda_.6} parent=50 // pred_check_branch
          %578 = sbr.rel (%p576) target = $region55
        $region54: #{_lambda_.6} parent=50 // pred_region
          _
        $region55: #{_lambda_.6} parent=50 // pred_fallthru
          _
        %s579 = sand.u32 %s36, 1
        %s580 = sand.u32 %s36, 1
        %s581 = smul.addr %s580, 1536
        %s582 = scalar_lea.vmem [#allocation3], %s581
        %p583 = pneg %p49
        %p584 = pneg %p46
        %s585 = smul.u32 48, %s19
        %p586 = scmp.lt.s32.totalorder %s585, 143
        %s587 = scalar_select %p586, %s585, 143
        %s588 = smul.addr %s587, 8
        %s589 = scalar_lea.vmem %s1, %s588
        %p590 = pneg %p75
        %p591 = pneg %p72
        %p592 = pneg %p96
        %p593 = pneg %p93
        %p594 = pneg %p122
        %p595 = pneg %p119
        %s596 = smul.u32 64, %s18
        %p597 = scmp.lt.s32.totalorder %s596, 255
        %s598 = scalar_select %p597, %s596, 255
        %s599 = smul.addr %s598, 8
        %s600 = scalar_lea.vmem %s3, %s599
        %s601 = smul.u32 64, %s18
        %s602 = smul.u32 3, %s19
        %s603 = smul.u32 48, %s19
        %p604 = scmp.lt.s32.totalorder %s603, 143
        %s605 = scalar_select %p604, %s603, 143
        %s606 = smul.addr %s605, 8
        %s607 = scalar_lea.vmem %s1, %s606
        %s608 = smul.u32 48, %s19
        %s609 = smul.u32 64, %s18
        %p610 = scmp.lt.s32.totalorder %s609, 255
        %s611 = scalar_select %p610, %s609, 255
        %s612 = smul.addr %s611, 8
        %s613 = scalar_lea.vmem %s3, %s612
        %s614 = smul.u32 64, %s18
        %p615 = scmp.eq.s32.totalorder %s19, 0
        // Predicated region
        $region56: #{_lambda_.6} parent=50 // pred_check
          %p616 = pneg %p615
        $region57: #{_lambda_.6} parent=50 // pred_check_branch
          %618 = sbr.rel (%p616) target = $region59
        $region58: #{_lambda_.6} parent=50 // pred_region
          %619 = vst [vmem:[#allocation2] sm:$0xff] 0.0
          %620 = vst [vmem:[#allocation2 + $0x8] sm:$0xff] 0.0
          %621 = vst [vmem:[#allocation2 + $0x10] sm:$0xff] 0.0
          %622 = vst [vmem:[#allocation2 + $0x18] sm:$0xff] 0.0
          %623 = vst [vmem:[#allocation2 + $0x20] sm:$0xff] 0.0
          %624 = vst [vmem:[#allocation2 + $0x28] sm:$0xff] 0.0
          %625 = vst [vmem:[#allocation2 + $0x30] sm:$0xff] 0.0
          %626 = vst [vmem:[#allocation2 + $0x38] sm:$0xff] 0.0
          %627 = vst [vmem:[#allocation2 + $0x40] sm:$0xff] 0.0
          %628 = vst [vmem:[#allocation2 + $0x48] sm:$0xff] 0.0
          %629 = vst [vmem:[#allocation2 + $0x50] sm:$0xff] 0.0
          %630 = vst [vmem:[#allocation2 + $0x58] sm:$0xff] 0.0
          %631 = vst [vmem:[#allocation2 + $0x60] sm:$0xff] 0.0
          %632 = vst [vmem:[#allocation2 + $0x68] sm:$0xff] 0.0
          %633 = vst [vmem:[#allocation2 + $0x70] sm:$0xff] 0.0
          %634 = vst [vmem:[#allocation2 + $0x78] sm:$0xff] 0.0
          %635 = vst [vmem:[#allocation2 + $0x80] sm:$0xff] 0.0
          %636 = vst [vmem:[#allocation2 + $0x88] sm:$0xff] 0.0
          %637 = vst [vmem:[#allocation2 + $0x90] sm:$0xff] 0.0
          %638 = vst [vmem:[#allocation2 + $0x98] sm:$0xff] 0.0
          %639 = vst [vmem:[#allocation2 + $0xa0] sm:$0xff] 0.0
          %640 = vst [vmem:[#allocation2 + $0xa8] sm:$0xff] 0.0
          %641 = vst [vmem:[#allocation2 + $0xb0] sm:$0xff] 0.0
          %642 = vst [vmem:[#allocation2 + $0xb8] sm:$0xff] 0.0
          %643 = vst [vmem:[#allocation2 + $0xc0] sm:$0xff] 0.0
          %644 = vst [vmem:[#allocation2 + $0xc8] sm:$0xff] 0.0
          %645 = vst [vmem:[#allocation2 + $0xd0] sm:$0xff] 0.0
          %646 = vst [vmem:[#allocation2 + $0xd8] sm:$0xff] 0.0
          %647 = vst [vmem:[#allocation2 + $0xe0] sm:$0xff] 0.0
          %648 = vst [vmem:[#allocation2 + $0xe8] sm:$0xff] 0.0
          %649 = vst [vmem:[#allocation2 + $0xf0] sm:$0xff] 0.0
          %650 = vst [vmem:[#allocation2 + $0xf8] sm:$0xff] 0.0
          %651 = vst [vmem:[#allocation2 + $0x100] sm:$0xff] 0.0
          %652 = vst [vmem:[#allocation2 + $0x108] sm:$0xff] 0.0
          %653 = vst [vmem:[#allocation2 + $0x110] sm:$0xff] 0.0
          %654 = vst [vmem:[#allocation2 + $0x118] sm:$0xff] 0.0
          %655 = vst [vmem:[#allocation2 + $0x120] sm:$0xff] 0.0
          %656 = vst [vmem:[#allocation2 + $0x128] sm:$0xff] 0.0
          %657 = vst [vmem:[#allocation2 + $0x130] sm:$0xff] 0.0
          %658 = vst [vmem:[#allocation2 + $0x138] sm:$0xff] 0.0
          %659 = vst [vmem:[#allocation2 + $0x140] sm:$0xff] 0.0
          %660 = vst [vmem:[#allocation2 + $0x148] sm:$0xff] 0.0
          %661 = vst [vmem:[#allocation2 + $0x150] sm:$0xff] 0.0
          %662 = vst [vmem:[#allocation2 + $0x158] sm:$0xff] 0.0
          %663 = vst [vmem:[#allocation2 + $0x160] sm:$0xff] 0.0
          %664 = vst [vmem:[#allocation2 + $0x168] sm:$0xff] 0.0
          %665 = vst [vmem:[#allocation2 + $0x170] sm:$0xff] 0.0
          %666 = vst [vmem:[#allocation2 + $0x178] sm:$0xff] 0.0
          %667 = vst [vmem:[#allocation2 + $0x180] sm:$0xff] 0.0
          %668 = vst [vmem:[#allocation2 + $0x188] sm:$0xff] 0.0
          %669 = vst [vmem:[#allocation2 + $0x190] sm:$0xff] 0.0
          %670 = vst [vmem:[#allocation2 + $0x198] sm:$0xff] 0.0
          %671 = vst [vmem:[#allocation2 + $0x1a0] sm:$0xff] 0.0
          %672 = vst [vmem:[#allocation2 + $0x1a8] sm:$0xff] 0.0
          %673 = vst [vmem:[#allocation2 + $0x1b0] sm:$0xff] 0.0
          %674 = vst [vmem:[#allocation2 + $0x1b8] sm:$0xff] 0.0
          %675 = vst [vmem:[#allocation2 + $0x1c0] sm:$0xff] 0.0
          %676 = vst [vmem:[#allocation2 + $0x1c8] sm:$0xff] 0.0
          %677 = vst [vmem:[#allocation2 + $0x1d0] sm:$0xff] 0.0
          %678 = vst [vmem:[#allocation2 + $0x1d8] sm:$0xff] 0.0
          %679 = vst [vmem:[#allocation2 + $0x1e0] sm:$0xff] 0.0
          %680 = vst [vmem:[#allocation2 + $0x1e8] sm:$0xff] 0.0
          %681 = vst [vmem:[#allocation2 + $0x1f0] sm:$0xff] 0.0
          %682 = vst [vmem:[#allocation2 + $0x1f8] sm:$0xff] 0.0
        $region59: #{_lambda_.6} parent=50 // pred_fallthru
          _
        %v683 = vld [vmem:[#allocation2] sm:$0xff]
        %v684 = vld [vmem:[#allocation2 + $0x8] sm:$0xff]
        %v685 = vld [vmem:[#allocation2 + $0x10] sm:$0xff]
        %v686 = vld [vmem:[#allocation2 + $0x18] sm:$0xff]
        %v687 = vld [vmem:[#allocation2 + $0x20] sm:$0xff]
        %v688 = vld [vmem:[#allocation2 + $0x28] sm:$0xff]
        %v689 = vld [vmem:[#allocation2 + $0x30] sm:$0xff]
        %v690 = vld [vmem:[#allocation2 + $0x38] sm:$0xff]
        %v691 = vld [vmem:[#allocation2 + $0x40] sm:$0xff]
        %v692 = vld [vmem:[#allocation2 + $0x48] sm:$0xff]
        %v693 = vld [vmem:[#allocation2 + $0x50] sm:$0xff]
        %v694 = vld [vmem:[#allocation2 + $0x58] sm:$0xff]
        %v695 = vld [vmem:[#allocation2 + $0x60] sm:$0xff]
        %v696 = vld [vmem:[#allocation2 + $0x68] sm:$0xff]
        %v697 = vld [vmem:[#allocation2 + $0x70] sm:$0xff]
        %v698 = vld [vmem:[#allocation2 + $0x78] sm:$0xff]
        %v699 = vld [vmem:[#allocation2 + $0x80] sm:$0xff]
        %v700 = vld [vmem:[#allocation2 + $0x88] sm:$0xff]
        %v701 = vld [vmem:[#allocation2 + $0x90] sm:$0xff]
        %v702 = vld [vmem:[#allocation2 + $0x98] sm:$0xff]
        %v703 = vld [vmem:[#allocation2 + $0xa0] sm:$0xff]
        %v704 = vld [vmem:[#allocation2 + $0xa8] sm:$0xff]
        %v705 = vld [vmem:[#allocation2 + $0xb0] sm:$0xff]
        %v706 = vld [vmem:[#allocation2 + $0xb8] sm:$0xff]
        %v707 = vld [vmem:[#allocation2 + $0xc0] sm:$0xff]
        %v708 = vld [vmem:[#allocation2 + $0xc8] sm:$0xff]
        %v709 = vld [vmem:[#allocation2 + $0xd0] sm:$0xff]
        %v710 = vld [vmem:[#allocation2 + $0xd8] sm:$0xff]
        %v711 = vld [vmem:[#allocation2 + $0xe0] sm:$0xff]
        %v712 = vld [vmem:[#allocation2 + $0xe8] sm:$0xff]
        %v713 = vld [vmem:[#allocation2 + $0xf0] sm:$0xff]
        %v714 = vld [vmem:[#allocation2 + $0xf8] sm:$0xff]
        %v715 = vld [vmem:[#allocation2 + $0x100] sm:$0xff]
        %v716 = vld [vmem:[#allocation2 + $0x108] sm:$0xff]
        %v717 = vld [vmem:[#allocation2 + $0x110] sm:$0xff]
        %v718 = vld [vmem:[#allocation2 + $0x118] sm:$0xff]
        %v719 = vld [vmem:[#allocation2 + $0x120] sm:$0xff]
        %v720 = vld [vmem:[#allocation2 + $0x128] sm:$0xff]
        %v721 = vld [vmem:[#allocation2 + $0x130] sm:$0xff]
        %v722 = vld [vmem:[#allocation2 + $0x138] sm:$0xff]
        %v723 = vld [vmem:[#allocation2 + $0x140] sm:$0xff]
        %v724 = vld [vmem:[#allocation2 + $0x148] sm:$0xff]
        %v725 = vld [vmem:[#allocation2 + $0x150] sm:$0xff]
        %v726 = vld [vmem:[#allocation2 + $0x158] sm:$0xff]
        %v727 = vld [vmem:[#allocation2 + $0x160] sm:$0xff]
        %v728 = vld [vmem:[#allocation2 + $0x168] sm:$0xff]
        %v729 = vld [vmem:[#allocation2 + $0x170] sm:$0xff]
        %v730 = vld [vmem:[#allocation2 + $0x178] sm:$0xff]
        %v731 = vld [vmem:[#allocation2 + $0x180] sm:$0xff]
        %v732 = vld [vmem:[#allocation2 + $0x188] sm:$0xff]
        %v733 = vld [vmem:[#allocation2 + $0x190] sm:$0xff]
        %v734 = vld [vmem:[#allocation2 + $0x198] sm:$0xff]
        %v735 = vld [vmem:[#allocation2 + $0x1a0] sm:$0xff]
        %v736 = vld [vmem:[#allocation2 + $0x1a8] sm:$0xff]
        %v737 = vld [vmem:[#allocation2 + $0x1b0] sm:$0xff]
        %v738 = vld [vmem:[#allocation2 + $0x1b8] sm:$0xff]
        %v739 = vld [vmem:[#allocation2 + $0x1c0] sm:$0xff]
        %v740 = vld [vmem:[#allocation2 + $0x1c8] sm:$0xff]
        %v741 = vld [vmem:[#allocation2 + $0x1d0] sm:$0xff]
        %v742 = vld [vmem:[#allocation2 + $0x1d8] sm:$0xff]
        %v743 = vld [vmem:[#allocation2 + $0x1e0] sm:$0xff]
        %v744 = vld [vmem:[#allocation2 + $0x1e8] sm:$0xff]
        %v745 = vld [vmem:[#allocation2 + $0x1f0] sm:$0xff]
        %v746 = vld [vmem:[#allocation2 + $0x1f8] sm:$0xff]
        %v747 = vld [vmem:[%s575] sm:$0xff]
        %v748 = vld [vmem:[%s575 + $0x8] sm:$0xff]
        %v749 = vld [vmem:[%s575 + $0x10] sm:$0xff]
        %v750 = vld [vmem:[%s575 + $0x18] sm:$0xff]
        %v751 = vld [vmem:[%s575 + $0x20] sm:$0xff]
        %v752 = vld [vmem:[%s575 + $0x28] sm:$0xff]
        %v753 = vld [vmem:[%s575 + $0x30] sm:$0xff]
        %v754 = vld [vmem:[%s575 + $0x38] sm:$0xff]
        %v755 = vld [vmem:[%s575 + $0x40] sm:$0xff]
        %v756 = vld [vmem:[%s575 + $0x48] sm:$0xff]
        %v757 = vld [vmem:[%s575 + $0x50] sm:$0xff]
        %v758 = vld [vmem:[%s575 + $0x58] sm:$0xff]
        %v759 = vld [vmem:[%s575 + $0x60] sm:$0xff]
        %v760 = vld [vmem:[%s575 + $0x68] sm:$0xff]
        %v761 = vld [vmem:[%s575 + $0x70] sm:$0xff]
        %v762 = vld [vmem:[%s575 + $0x78] sm:$0xff]
        %v763 = vld [vmem:[%s575 + $0x80] sm:$0xff]
        %v764 = vld [vmem:[%s575 + $0x88] sm:$0xff]
        %v765 = vld [vmem:[%s575 + $0x90] sm:$0xff]
        %v766 = vld [vmem:[%s575 + $0x98] sm:$0xff]
        %v767 = vld [vmem:[%s575 + $0xa0] sm:$0xff]
        %v768 = vld [vmem:[%s575 + $0xa8] sm:$0xff]
        %v769 = vld [vmem:[%s575 + $0xb0] sm:$0xff]
        %v770 = vld [vmem:[%s575 + $0xb8] sm:$0xff]
        %v771 = vld [vmem:[%s575 + $0xc0] sm:$0xff]
        %v772 = vld [vmem:[%s575 + $0xc8] sm:$0xff]
        %v773 = vld [vmem:[%s575 + $0xd0] sm:$0xff]
        %v774 = vld [vmem:[%s575 + $0xd8] sm:$0xff]
        %v775 = vld [vmem:[%s575 + $0xe0] sm:$0xff]
        %v776 = vld [vmem:[%s575 + $0xe8] sm:$0xff]
        %v777 = vld [vmem:[%s575 + $0xf0] sm:$0xff]
        %v778 = vld [vmem:[%s575 + $0xf8] sm:$0xff]
        %v779 = vld [vmem:[%s575 + $0x100] sm:$0xff]
        %v780 = vld [vmem:[%s575 + $0x108] sm:$0xff]
        %v781 = vld [vmem:[%s575 + $0x110] sm:$0xff]
        %v782 = vld [vmem:[%s575 + $0x118] sm:$0xff]
        %v783 = vld [vmem:[%s575 + $0x120] sm:$0xff]
        %v784 = vld [vmem:[%s575 + $0x128] sm:$0xff]
        %v785 = vld [vmem:[%s575 + $0x130] sm:$0xff]
        %v786 = vld [vmem:[%s575 + $0x138] sm:$0xff]
        %v787 = vld [vmem:[%s575 + $0x140] sm:$0xff]
        %v788 = vld [vmem:[%s575 + $0x148] sm:$0xff]
        %v789 = vld [vmem:[%s575 + $0x150] sm:$0xff]
        %v790 = vld [vmem:[%s575 + $0x158] sm:$0xff]
        %v791 = vld [vmem:[%s575 + $0x160] sm:$0xff]
        %v792 = vld [vmem:[%s575 + $0x168] sm:$0xff]
        %v793 = vld [vmem:[%s575 + $0x170] sm:$0xff]
        %v794 = vld [vmem:[%s575 + $0x178] sm:$0xff]
        %v795 = vld [vmem:[%s575 + $0x180] sm:$0xff]
        %v796 = vld [vmem:[%s575 + $0x188] sm:$0xff]
        %v797 = vld [vmem:[%s575 + $0x190] sm:$0xff]
        %v798 = vld [vmem:[%s575 + $0x198] sm:$0xff]
        %v799 = vld [vmem:[%s575 + $0x1a0] sm:$0xff]
        %v800 = vld [vmem:[%s575 + $0x1a8] sm:$0xff]
        %v801 = vld [vmem:[%s575 + $0x1b0] sm:$0xff]
        %v802 = vld [vmem:[%s575 + $0x1b8] sm:$0xff]
        %v803 = vld [vmem:[%s575 + $0x1c0] sm:$0xff]
        %v804 = vld [vmem:[%s575 + $0x1c8] sm:$0xff]
        %v805 = vld [vmem:[%s575 + $0x1d0] sm:$0xff]
        %v806 = vld [vmem:[%s575 + $0x1d8] sm:$0xff]
        %v807 = vld [vmem:[%s575 + $0x1e0] sm:$0xff]
        %v808 = vld [vmem:[%s575 + $0x1e8] sm:$0xff]
        %v809 = vld [vmem:[%s575 + $0x1f0] sm:$0xff]
        %v810 = vld [vmem:[%s575 + $0x1f8] sm:$0xff]
        %v811 = vld [vmem:[%s575 + $0x200] sm:$0xff]
        %v812 = vld [vmem:[%s575 + $0x208] sm:$0xff]
        %v813 = vld [vmem:[%s575 + $0x210] sm:$0xff]
        %v814 = vld [vmem:[%s575 + $0x218] sm:$0xff]
        %v815 = vld [vmem:[%s575 + $0x220] sm:$0xff]
        %v816 = vld [vmem:[%s575 + $0x228] sm:$0xff]
        %v817 = vld [vmem:[%s575 + $0x230] sm:$0xff]
        %v818 = vld [vmem:[%s575 + $0x238] sm:$0xff]
        %v819 = vld [vmem:[%s575 + $0x240] sm:$0xff]
        %v820 = vld [vmem:[%s575 + $0x248] sm:$0xff]
        %v821 = vld [vmem:[%s575 + $0x250] sm:$0xff]
        %v822 = vld [vmem:[%s575 + $0x258] sm:$0xff]
        %v823 = vld [vmem:[%s575 + $0x260] sm:$0xff]
        %v824 = vld [vmem:[%s575 + $0x268] sm:$0xff]
        %v825 = vld [vmem:[%s575 + $0x270] sm:$0xff]
        %v826 = vld [vmem:[%s575 + $0x278] sm:$0xff]
        %v827 = vld [vmem:[%s575 + $0x280] sm:$0xff]
        %v828 = vld [vmem:[%s575 + $0x288] sm:$0xff]
        %v829 = vld [vmem:[%s575 + $0x290] sm:$0xff]
        %v830 = vld [vmem:[%s575 + $0x298] sm:$0xff]
        %v831 = vld [vmem:[%s575 + $0x2a0] sm:$0xff]
        %v832 = vld [vmem:[%s575 + $0x2a8] sm:$0xff]
        %v833 = vld [vmem:[%s575 + $0x2b0] sm:$0xff]
        %v834 = vld [vmem:[%s575 + $0x2b8] sm:$0xff]
        %v835 = vld [vmem:[%s575 + $0x2c0] sm:$0xff]
        %v836 = vld [vmem:[%s575 + $0x2c8] sm:$0xff]
        %v837 = vld [vmem:[%s575 + $0x2d0] sm:$0xff]
        %v838 = vld [vmem:[%s575 + $0x2d8] sm:$0xff]
        %v839 = vld [vmem:[%s575 + $0x2e0] sm:$0xff]
        %v840 = vld [vmem:[%s575 + $0x2e8] sm:$0xff]
        %v841 = vld [vmem:[%s575 + $0x2f0] sm:$0xff]
        %v842 = vld [vmem:[%s575 + $0x2f8] sm:$0xff]
        %v843 = vld [vmem:[%s575 + $0x300] sm:$0xff]
        %v844 = vld [vmem:[%s575 + $0x308] sm:$0xff]
        %v845 = vld [vmem:[%s575 + $0x310] sm:$0xff]
        %v846 = vld [vmem:[%s575 + $0x318] sm:$0xff]
        %v847 = vld [vmem:[%s575 + $0x320] sm:$0xff]
        %v848 = vld [vmem:[%s575 + $0x328] sm:$0xff]
        %v849 = vld [vmem:[%s575 + $0x330] sm:$0xff]
        %v850 = vld [vmem:[%s575 + $0x338] sm:$0xff]
        %v851 = vld [vmem:[%s575 + $0x340] sm:$0xff]
        %v852 = vld [vmem:[%s575 + $0x348] sm:$0xff]
        %v853 = vld [vmem:[%s575 + $0x350] sm:$0xff]
        %v854 = vld [vmem:[%s575 + $0x358] sm:$0xff]
        %v855 = vld [vmem:[%s575 + $0x360] sm:$0xff]
        %v856 = vld [vmem:[%s575 + $0x368] sm:$0xff]
        %v857 = vld [vmem:[%s575 + $0x370] sm:$0xff]
        %v858 = vld [vmem:[%s575 + $0x378] sm:$0xff]
        %v859 = vld [vmem:[%s575 + $0x380] sm:$0xff]
        %v860 = vld [vmem:[%s575 + $0x388] sm:$0xff]
        %v861 = vld [vmem:[%s575 + $0x390] sm:$0xff]
        %v862 = vld [vmem:[%s575 + $0x398] sm:$0xff]
        %v863 = vld [vmem:[%s575 + $0x3a0] sm:$0xff]
        %v864 = vld [vmem:[%s575 + $0x3a8] sm:$0xff]
        %v865 = vld [vmem:[%s575 + $0x3b0] sm:$0xff]
        %v866 = vld [vmem:[%s575 + $0x3b8] sm:$0xff]
        %v867 = vld [vmem:[%s575 + $0x3c0] sm:$0xff]
        %v868 = vld [vmem:[%s575 + $0x3c8] sm:$0xff]
        %v869 = vld [vmem:[%s575 + $0x3d0] sm:$0xff]
        %v870 = vld [vmem:[%s575 + $0x3d8] sm:$0xff]
        %v871 = vld [vmem:[%s575 + $0x3e0] sm:$0xff]
        %v872 = vld [vmem:[%s575 + $0x3e8] sm:$0xff]
        %v873 = vld [vmem:[%s575 + $0x3f0] sm:$0xff]
        %v874 = vld [vmem:[%s575 + $0x3f8] sm:$0xff]
        %v875 = vld [vmem:[%s575 + $0x400] sm:$0xff]
        %v876 = vld [vmem:[%s575 + $0x408] sm:$0xff]
        %v877 = vld [vmem:[%s575 + $0x410] sm:$0xff]
        %v878 = vld [vmem:[%s575 + $0x418] sm:$0xff]
        %v879 = vld [vmem:[%s575 + $0x420] sm:$0xff]
        %v880 = vld [vmem:[%s575 + $0x428] sm:$0xff]
        %v881 = vld [vmem:[%s575 + $0x430] sm:$0xff]
        %v882 = vld [vmem:[%s575 + $0x438] sm:$0xff]
        %v883 = vld [vmem:[%s575 + $0x440] sm:$0xff]
        %v884 = vld [vmem:[%s575 + $0x448] sm:$0xff]
        %v885 = vld [vmem:[%s575 + $0x450] sm:$0xff]
        %v886 = vld [vmem:[%s575 + $0x458] sm:$0xff]
        %v887 = vld [vmem:[%s575 + $0x460] sm:$0xff]
        %v888 = vld [vmem:[%s575 + $0x468] sm:$0xff]
        %v889 = vld [vmem:[%s575 + $0x470] sm:$0xff]
        %v890 = vld [vmem:[%s575 + $0x478] sm:$0xff]
        %v891 = vld [vmem:[%s575 + $0x480] sm:$0xff]
        %v892 = vld [vmem:[%s575 + $0x488] sm:$0xff]
        %v893 = vld [vmem:[%s575 + $0x490] sm:$0xff]
        %v894 = vld [vmem:[%s575 + $0x498] sm:$0xff]
        %v895 = vld [vmem:[%s575 + $0x4a0] sm:$0xff]
        %v896 = vld [vmem:[%s575 + $0x4a8] sm:$0xff]
        %v897 = vld [vmem:[%s575 + $0x4b0] sm:$0xff]
        %v898 = vld [vmem:[%s575 + $0x4b8] sm:$0xff]
        %v899 = vld [vmem:[%s575 + $0x4c0] sm:$0xff]
        %v900 = vld [vmem:[%s575 + $0x4c8] sm:$0xff]
        %v901 = vld [vmem:[%s575 + $0x4d0] sm:$0xff]
        %v902 = vld [vmem:[%s575 + $0x4d8] sm:$0xff]
        %v903 = vld [vmem:[%s575 + $0x4e0] sm:$0xff]
        %v904 = vld [vmem:[%s575 + $0x4e8] sm:$0xff]
        %v905 = vld [vmem:[%s575 + $0x4f0] sm:$0xff]
        %v906 = vld [vmem:[%s575 + $0x4f8] sm:$0xff]
        %v907 = vld [vmem:[%s575 + $0x500] sm:$0xff]
        %v908 = vld [vmem:[%s575 + $0x508] sm:$0xff]
        %v909 = vld [vmem:[%s575 + $0x510] sm:$0xff]
        %v910 = vld [vmem:[%s575 + $0x518] sm:$0xff]
        %v911 = vld [vmem:[%s575 + $0x520] sm:$0xff]
        %v912 = vld [vmem:[%s575 + $0x528] sm:$0xff]
        %v913 = vld [vmem:[%s575 + $0x530] sm:$0xff]
        %v914 = vld [vmem:[%s575 + $0x538] sm:$0xff]
        %v915 = vld [vmem:[%s575 + $0x540] sm:$0xff]
        %v916 = vld [vmem:[%s575 + $0x548] sm:$0xff]
        %v917 = vld [vmem:[%s575 + $0x550] sm:$0xff]
        %v918 = vld [vmem:[%s575 + $0x558] sm:$0xff]
        %v919 = vld [vmem:[%s575 + $0x560] sm:$0xff]
        %v920 = vld [vmem:[%s575 + $0x568] sm:$0xff]
        %v921 = vld [vmem:[%s575 + $0x570] sm:$0xff]
        %v922 = vld [vmem:[%s575 + $0x578] sm:$0xff]
        %v923 = vld [vmem:[%s575 + $0x580] sm:$0xff]
        %v924 = vld [vmem:[%s575 + $0x588] sm:$0xff]
        %v925 = vld [vmem:[%s575 + $0x590] sm:$0xff]
        %v926 = vld [vmem:[%s575 + $0x598] sm:$0xff]
        %v927 = vld [vmem:[%s575 + $0x5a0] sm:$0xff]
        %v928 = vld [vmem:[%s575 + $0x5a8] sm:$0xff]
        %v929 = vld [vmem:[%s575 + $0x5b0] sm:$0xff]
        %v930 = vld [vmem:[%s575 + $0x5b8] sm:$0xff]
        %v931 = vld [vmem:[%s575 + $0x5c0] sm:$0xff]
        %v932 = vld [vmem:[%s575 + $0x5c8] sm:$0xff]
        %v933 = vld [vmem:[%s575 + $0x5d0] sm:$0xff]
        %v934 = vld [vmem:[%s575 + $0x5d8] sm:$0xff]
        %v935 = vld [vmem:[%s575 + $0x5e0] sm:$0xff]
        %v936 = vld [vmem:[%s575 + $0x5e8] sm:$0xff]
        %v937 = vld [vmem:[%s575 + $0x5f0] sm:$0xff]
        %v938 = vld [vmem:[%s575 + $0x5f8] sm:$0xff]
        %v939 = vld [vmem:[%s607] sm:$0xff]
        %v940 = vld [vmem:[%s607 + $0x8] sm:$0xff]
        %v941 = vld [vmem:[%s607 + $0x10] sm:$0xff]
        %v942 = vld [vmem:[%s607 + $0x18] sm:$0xff]
        %v943 = vld [vmem:[%s607 + $0x20] sm:$0xff]
        %v944 = vld [vmem:[%s607 + $0x28] sm:$0xff]
        %v945 = vld [vmem:[%s607 + $0x30] sm:$0xff]
        %v946 = vld [vmem:[%s607 + $0x38] sm:$0xff]
        %v947 = vld [vmem:[%s607 + $0x40] sm:$0xff]
        %v948 = vld [vmem:[%s607 + $0x48] sm:$0xff]
        %v949 = vld [vmem:[%s607 + $0x50] sm:$0xff]
        %v950 = vld [vmem:[%s607 + $0x58] sm:$0xff]
        %v951 = vld [vmem:[%s607 + $0x60] sm:$0xff]
        %v952 = vld [vmem:[%s607 + $0x68] sm:$0xff]
        %v953 = vld [vmem:[%s607 + $0x70] sm:$0xff]
        %v954 = vld [vmem:[%s607 + $0x78] sm:$0xff]
        %v955 = vld [vmem:[%s607 + $0x80] sm:$0xff]
        %v956 = vld [vmem:[%s607 + $0x88] sm:$0xff]
        %v957 = vld [vmem:[%s607 + $0x90] sm:$0xff]
        %v958 = vld [vmem:[%s607 + $0x98] sm:$0xff]
        %v959 = vld [vmem:[%s607 + $0xa0] sm:$0xff]
        %v960 = vld [vmem:[%s607 + $0xa8] sm:$0xff]
        %v961 = vld [vmem:[%s607 + $0xb0] sm:$0xff]
        %v962 = vld [vmem:[%s607 + $0xb8] sm:$0xff]
        %v963 = vld [vmem:[%s607 + $0xc0] sm:$0xff]
        %v964 = vld [vmem:[%s607 + $0xc8] sm:$0xff]
        %v965 = vld [vmem:[%s607 + $0xd0] sm:$0xff]
        %v966 = vld [vmem:[%s607 + $0xd8] sm:$0xff]
        %v967 = vld [vmem:[%s607 + $0xe0] sm:$0xff]
        %v968 = vld [vmem:[%s607 + $0xe8] sm:$0xff]
        %v969 = vld [vmem:[%s607 + $0xf0] sm:$0xff]
        %v970 = vld [vmem:[%s607 + $0xf8] sm:$0xff]
        %v971 = vld [vmem:[%s607 + $0x100] sm:$0xff]
        %v972 = vld [vmem:[%s607 + $0x108] sm:$0xff]
        %v973 = vld [vmem:[%s607 + $0x110] sm:$0xff]
        %v974 = vld [vmem:[%s607 + $0x118] sm:$0xff]
        %v975 = vld [vmem:[%s607 + $0x120] sm:$0xff]
        %v976 = vld [vmem:[%s607 + $0x128] sm:$0xff]
        %v977 = vld [vmem:[%s607 + $0x130] sm:$0xff]
        %v978 = vld [vmem:[%s607 + $0x138] sm:$0xff]
        %v979 = vld [vmem:[%s607 + $0x140] sm:$0xff]
        %v980 = vld [vmem:[%s607 + $0x148] sm:$0xff]
        %v981 = vld [vmem:[%s607 + $0x150] sm:$0xff]
        %v982 = vld [vmem:[%s607 + $0x158] sm:$0xff]
        %v983 = vld [vmem:[%s607 + $0x160] sm:$0xff]
        %v984 = vld [vmem:[%s607 + $0x168] sm:$0xff]
        %v985 = vld [vmem:[%s607 + $0x170] sm:$0xff]
        %v986 = vld [vmem:[%s607 + $0x178] sm:$0xff]
        %987 = vmatprep.subr.mxu0 0.0
        %988 = vmatpush1.msra.mxu0 %v939
        %989 = vmatprep.subr.mxu0 0.0
        %990 = vmatpush1.msra.mxu0 %v940
        %991 = vmatprep.subr.mxu0 0.0
        %992 = vmatpush1.msra.mxu0 %v941
        %993 = vmatprep.subr.mxu0 0.0
        %994 = vmatpush1.msra.mxu0 %v942
        %995 = vmatprep.subr.mxu0 0.0
        %996 = vmatpush1.msra.mxu0 %v943
        %997 = vmatprep.subr.mxu0 0.0
        %998 = vmatpush1.msra.mxu0 %v944
        %999 = vmatprep.subr.mxu0 0.0
        %1000 = vmatpush1.msra.mxu0 %v945
        %1001 = vmatprep.subr.mxu0 0.0
        %1002 = vmatpush1.msra.mxu0 %v946
        %1003 = vmatprep.subr.mxu0 0.0
        %1004 = vmatpush1.msra.mxu0 %v947
        %1005 = vmatprep.subr.mxu0 0.0
        %1006 = vmatpush1.msra.mxu0 %v948
        %1007 = vmatprep.subr.mxu0 0.0
        %1008 = vmatpush1.msra.mxu0 %v949
        %1009 = vmatprep.subr.mxu0 0.0
        %1010 = vmatpush1.msra.mxu0 %v950
        %1011 = vmatprep.subr.mxu0 0.0
        %1012 = vmatpush1.msra.mxu0 %v951
        %1013 = vmatprep.subr.mxu0 0.0
        %1014 = vmatpush1.msra.mxu0 %v952
        %1015 = vmatprep.subr.mxu0 0.0
        %1016 = vmatpush1.msra.mxu0 %v953
        %1017 = vmatprep.subr.mxu0 0.0
        %1018 = vmatpush1.msra.mxu0 %v954
        %1019 = vmatprep.subr.mxu0 0.0
        %1020 = vmatpush1.msra.mxu0 %v955
        %1021 = vmatprep.subr.mxu0 0.0
        %1022 = vmatpush1.msra.mxu0 %v956
        %1023 = vmatprep.subr.mxu0 0.0
        %1024 = vmatpush1.msra.mxu0 %v957
        %1025 = vmatprep.subr.mxu0 0.0
        %1026 = vmatpush1.msra.mxu0 %v958
        %1027 = vmatprep.subr.mxu0 0.0
        %1028 = vmatpush1.msra.mxu0 %v959
        %1029 = vmatprep.subr.mxu0 0.0
        %1030 = vmatpush1.msra.mxu0 %v960
        %1031 = vmatprep.subr.mxu0 0.0
        %1032 = vmatpush1.msra.mxu0 %v961
        %1033 = vmatprep.subr.mxu0 0.0
        %1034 = vmatpush1.msra.mxu0 %v962
        %1035 = vmatprep.subr.mxu0 0.0
        %1036 = vmatpush1.msra.mxu0 %v963
        %1037 = vmatprep.subr.mxu0 0.0
        %1038 = vmatpush1.msra.mxu0 %v964
        %1039 = vmatprep.subr.mxu0 0.0
        %1040 = vmatpush1.msra.mxu0 %v965
        %1041 = vmatprep.subr.mxu0 0.0
        %1042 = vmatpush1.msra.mxu0 %v966
        %1043 = vmatprep.subr.mxu0 0.0
        %1044 = vmatpush1.msra.mxu0 %v967
        %1045 = vmatprep.subr.mxu0 0.0
        %1046 = vmatpush1.msra.mxu0 %v968
        %1047 = vmatprep.subr.mxu0 0.0
        %1048 = vmatpush1.msra.mxu0 %v969
        %1049 = vmatprep.subr.mxu0 0.0
        %1050 = vmatpush1.msra.mxu0 %v970
        %1051 = vmatprep.mubr.f32.mxu0 %v748
        %1052 = vmatmul.mubr.f32.gmra.mrb[0].mxu0 %v747
        %v1053 = vpop.f32.mrb[0].mxu0
        %v1054 = vadd.f32 0.0, %v1053
        %v1055 = vpop.f32.mrb[0].mxu0
        %1056 = vmatprep.mubr.f32.mxu0 %v751
        %1057 = vmatmul.mubr.f32.gmra.mrb[0].mxu0 %v750
        %v1058 = vpop.f32.mrb[0].mxu0
        %v1059 = vadd.f32 0.0, %v1058
        %v1060 = vpop.f32.mrb[0].mxu0
        %1061 = vmatprep.mubr.f32.mxu0 %v754
        %1062 = vmatmul.mubr.f32.gmra.mrb[0].mxu0 %v753
        %v1063 = vpop.f32.mrb[0].mxu0
        %v1064 = vadd.f32 0.0, %v1063
        %v1065 = vpop.f32.mrb[0].mxu0
        %1066 = vmatprep.mubr.f32.mxu0 %v757
        %1067 = vmatmul.mubr.f32.gmra.mrb[0].mxu0 %v756
        %v1068 = vpop.f32.mrb[0].mxu0
        %v1069 = vadd.f32 0.0, %v1068
        %v1070 = vpop.f32.mrb[0].mxu0
        %1071 = vmatprep.mubr.f32.mxu0 %v760
        %1072 = vmatmul.mubr.f32.gmra.mrb[0].mxu0 %v759
        %v1073 = vpop.f32.mrb[0].mxu0
        %v1074 = vadd.f32 0.0, %v1073
        %v1075 = vpop.f32.mrb[0].mxu0
        %1076 = vmatprep.mubr.f32.mxu0 %v763
        %1077 = vmatmul.mubr.f32.gmra.mrb[0].mxu0 %v762
        %v1078 = vpop.f32.mrb[0].mxu0
        %v1079 = vadd.f32 0.0, %v1078
        %v1080 = vpop.f32.mrb[0].mxu0
        %1081 = vmatprep.mubr.f32.mxu0 %v766
        %1082 = vmatmul.mubr.f32.gmra.mrb[0].mxu0 %v765
        %v1083 = vpop.f32.mrb[0].mxu0
        %v1084 = vadd.f32 0.0, %v1083
        %v1085 = vpop.f32.mrb[0].mxu0
        %1086 = vmatprep.mubr.f32.mxu0 %v769
        %1087 = vmatmul.mubr.f32.gmra.mrb[0].mxu0 %v768
        %v1088 = vpop.f32.mrb[0].mxu0
        %v1089 = vadd.f32 0.0, %v1088
        %v1090 = vpop.f32.mrb[0].mxu0
        %1091 = vmatprep.mubr.f32.mxu0 %v772
        %1092 = vmatmul.mubr.f32.gmra.mrb[0].mxu0 %v771
        %v1093 = vpop.f32.mrb[0].mxu0
        %v1094 = vadd.f32 0.0, %v1093
        %v1095 = vpop.f32.mrb[0].mxu0
        %1096 = vmatprep.mubr.f32.mxu0 %v775
        %1097 = vmatmul.mubr.f32.gmra.mrb[0].mxu0 %v774
        %v1098 = vpop.f32.mrb[0].mxu0
        %v1099 = vadd.f32 0.0, %v1098
        %v1100 = vpop.f32.mrb[0].mxu0
        %1101 = vmatprep.mubr.f32.mxu0 %v778
        %1102 = vmatmul.mubr.f32.gmra.mrb[0].mxu0 %v777
        %v1103 = vpop.f32.mrb[0].mxu0
        %v1104 = vadd.f32 0.0, %v1103
        %v1105 = vpop.f32.mrb[0].mxu0
        %1106 = vmatprep.mubr.f32.mxu0 %v781
        %1107 = vmatmul.mubr.f32.gmra.mrb[0].mxu0 %v780
        %v1108 = vpop.f32.mrb[0].mxu0
        %v1109 = vadd.f32 0.0, %v1108
        %v1110 = vpop.f32.mrb[0].mxu0
        %1111 = vmatprep.mubr.f32.mxu0 %v784
        %1112 = vmatmul.mubr.f32.gmra.mrb[0].mxu0 %v783
        %v1113 = vpop.f32.mrb[0].mxu0
        %v1114 = vadd.f32 0.0, %v1113
        %v1115 = vpop.f32.mrb[0].mxu0
        %1116 = vmatprep.mubr.f32.mxu0 %v787
        %1117 = vmatmul.mubr.f32.gmra.mrb[0].mxu0 %v786
        %v1118 = vpop.f32.mrb[0].mxu0
        %v1119 = vadd.f32 0.0, %v1118
        %v1120 = vpop.f32.mrb[0].mxu0
        %1121 = vmatprep.mubr.f32.mxu0 %v790
        %1122 = vmatmul.mubr.f32.gmra.mrb[0].mxu0 %v789
        %v1123 = vpop.f32.mrb[0].mxu0
        %v1124 = vadd.f32 0.0, %v1123
        %v1125 = vpop.f32.mrb[0].mxu0
        %1126 = vmatprep.mubr.f32.mxu0 %v793
        %1127 = vmatmul.mubr.f32.gmra.mrb[0].mxu0 %v792
        %v1128 = vpop.f32.mrb[0].mxu0
        %v1129 = vadd.f32 0.0, %v1128
        %v1130 = vpop.f32.mrb[0].mxu0
        %1131 = vmatprep.mubr.f32.mxu0 %v796
        %1132 = vmatmul.mubr.f32.gmra.mrb[0].mxu0 %v795
        %v1133 = vpop.f32.mrb[0].mxu0
        %v1134 = vadd.f32 0.0, %v1133
        %v1135 = vpop.f32.mrb[0].mxu0
        %1136 = vmatprep.mubr.f32.mxu0 %v799
        %1137 = vmatmul.mubr.f32.gmra.mrb[0].mxu0 %v798
        %v1138 = vpop.f32.mrb[0].mxu0
        %v1139 = vadd.f32 0.0, %v1138
        %v1140 = vpop.f32.mrb[0].mxu0
        %1141 = vmatprep.mubr.f32.mxu0 %v802
        %1142 = vmatmul.mubr.f32.gmra.mrb[0].mxu0 %v801
        %v1143 = vpop.f32.mrb[0].mxu0
        %v1144 = vadd.f32 0.0, %v1143
        %v1145 = vpop.f32.mrb[0].mxu0
        %1146 = vmatprep.mubr.f32.mxu0 %v805
        %1147 = vmatmul.mubr.f32.gmra.mrb[0].mxu0 %v804
        %v1148 = vpop.f32.mrb[0].mxu0
        %v1149 = vadd.f32 0.0, %v1148
        %v1150 = vpop.f32.mrb[0].mxu0
        %1151 = vmatprep.mubr.f32.mxu0 %v808
        %1152 = vmatmul.mubr.f32.gmra.mrb[0].mxu0 %v807
        %v1153 = vpop.f32.mrb[0].mxu0
        %v1154 = vadd.f32 0.0, %v1153
        %v1155 = vpop.f32.mrb[0].mxu0
        %1156 = vmatprep.mubr.f32.mxu0 %v811
        %1157 = vmatmul.mubr.f32.gmra.mrb[0].mxu0 %v810
        %v1158 = vpop.f32.mrb[0].mxu0
        %v1159 = vadd.f32 0.0, %v1158
        %v1160 = vpop.f32.mrb[0].mxu0
        %1161 = vmatprep.mubr.f32.mxu0 %v814
        %1162 = vmatmul.mubr.f32.gmra.mrb[0].mxu0 %v813
        %v1163 = vpop.f32.mrb[0].mxu0
        %v1164 = vadd.f32 0.0, %v1163
        %v1165 = vpop.f32.mrb[0].mxu0
        %1166 = vmatprep.mubr.f32.mxu0 %v817
        %1167 = vmatmul.mubr.f32.gmra.mrb[0].mxu0 %v816
        %v1168 = vpop.f32.mrb[0].mxu0
        %v1169 = vadd.f32 0.0, %v1168
        %v1170 = vpop.f32.mrb[0].mxu0
        %1171 = vmatprep.mubr.f32.mxu0 %v820
        %1172 = vmatmul.mubr.f32.gmra.mrb[0].mxu0 %v819
        %v1173 = vpop.f32.mrb[0].mxu0
        %v1174 = vadd.f32 0.0, %v1173
        %v1175 = vpop.f32.mrb[0].mxu0
        %1176 = vmatprep.mubr.f32.mxu0 %v823
        %1177 = vmatmul.mubr.f32.gmra.mrb[0].mxu0 %v822
        %v1178 = vpop.f32.mrb[0].mxu0
        %v1179 = vadd.f32 0.0, %v1178
        %v1180 = vpop.f32.mrb[0].mxu0
        %1181 = vmatprep.mubr.f32.mxu0 %v826
        %1182 = vmatmul.mubr.f32.gmra.mrb[0].mxu0 %v825
        %v1183 = vpop.f32.mrb[0].mxu0
        %v1184 = vadd.f32 0.0, %v1183
        %v1185 = vpop.f32.mrb[0].mxu0
        %1186 = vmatprep.mubr.f32.mxu0 %v829
        %1187 = vmatmul.mubr.f32.gmra.mrb[0].mxu0 %v828
        %v1188 = vpop.f32.mrb[0].mxu0
        %v1189 = vadd.f32 0.0, %v1188
        %v1190 = vpop.f32.mrb[0].mxu0
        %1191 = vmatprep.mubr.f32.mxu0 %v832
        %1192 = vmatmul.mubr.f32.gmra.mrb[0].mxu0 %v831
        %v1193 = vpop.f32.mrb[0].mxu0
        %v1194 = vadd.f32 0.0, %v1193
        %v1195 = vpop.f32.mrb[0].mxu0
        %1196 = vmatprep.mubr.f32.mxu0 %v835
        %1197 = vmatmul.mubr.f32.gmra.mrb[0].mxu0 %v834
        %v1198 = vpop.f32.mrb[0].mxu0
        %v1199 = vadd.f32 0.0, %v1198
        %v1200 = vpop.f32.mrb[0].mxu0
        %1201 = vmatprep.mubr.f32.mxu0 %v838
        %1202 = vmatmul.mubr.f32.gmra.mrb[0].mxu0 %v837
        %v1203 = vpop.f32.mrb[0].mxu0
        %v1204 = vadd.f32 0.0, %v1203
        %v1205 = vpop.f32.mrb[0].mxu0
        %1206 = vmatprep.mubr.f32.mxu0 %v841
        %1207 = vmatmul.mubr.f32.gmra.mrb[0].mxu0 %v840
        %v1208 = vpop.f32.mrb[0].mxu0
        %v1209 = vadd.f32 0.0, %v1208
        %v1210 = vpop.f32.mrb[0].mxu0
        %1211 = vmatprep.mubr.f32.mxu0 %v844
        %1212 = vmatmul.mubr.f32.gmra.mrb[0].mxu0 %v843
        %v1213 = vpop.f32.mrb[0].mxu0
        %v1214 = vadd.f32 0.0, %v1213
        %v1215 = vpop.f32.mrb[0].mxu0
        %1216 = vmatprep.mubr.f32.mxu0 %v847
        %1217 = vmatmul.mubr.f32.gmra.mrb[0].mxu0 %v846
        %v1218 = vpop.f32.mrb[0].mxu0
        %v1219 = vadd.f32 0.0, %v1218
        %v1220 = vpop.f32.mrb[0].mxu0
        %1221 = vmatprep.mubr.f32.mxu0 %v850
        %1222 = vmatmul.mubr.f32.gmra.mrb[0].mxu0 %v849
        %v1223 = vpop.f32.mrb[0].mxu0
        %v1224 = vadd.f32 0.0, %v1223
        %v1225 = vpop.f32.mrb[0].mxu0
        %1226 = vmatprep.mubr.f32.mxu0 %v853
        %1227 = vmatmul.mubr.f32.gmra.mrb[0].mxu0 %v852
        %v1228 = vpop.f32.mrb[0].mxu0
        %v1229 = vadd.f32 0.0, %v1228
        %v1230 = vpop.f32.mrb[0].mxu0
        %1231 = vmatprep.mubr.f32.mxu0 %v856
        %1232 = vmatmul.mubr.f32.gmra.mrb[0].mxu0 %v855
        %v1233 = vpop.f32.mrb[0].mxu0
        %v1234 = vadd.f32 0.0, %v1233
        %v1235 = vpop.f32.mrb[0].mxu0
        %1236 = vmatprep.mubr.f32.mxu0 %v859
        %1237 = vmatmul.mubr.f32.gmra.mrb[0].mxu0 %v858
        %v1238 = vpop.f32.mrb[0].mxu0
        %v1239 = vadd.f32 0.0, %v1238
        %v1240 = vpop.f32.mrb[0].mxu0
        %1241 = vmatprep.mubr.f32.mxu0 %v862
        %1242 = vmatmul.mubr.f32.gmra.mrb[0].mxu0 %v861
        %v1243 = vpop.f32.mrb[0].mxu0
        %v1244 = vadd.f32 0.0, %v1243
        %v1245 = vpop.f32.mrb[0].mxu0
        %1246 = vmatprep.mubr.f32.mxu0 %v865
        %1247 = vmatmul.mubr.f32.gmra.mrb[0].mxu0 %v864
        %v1248 = vpop.f32.mrb[0].mxu0
        %v1249 = vadd.f32 0.0, %v1248
        %v1250 = vpop.f32.mrb[0].mxu0
        %1251 = vmatprep.mubr.f32.mxu0 %v868
        %1252 = vmatmul.mubr.f32.gmra.mrb[0].mxu0 %v867
        %v1253 = vpop.f32.mrb[0].mxu0
        %v1254 = vadd.f32 0.0, %v1253
        %v1255 = vpop.f32.mrb[0].mxu0
        %1256 = vmatprep.mubr.f32.mxu0 %v871
        %1257 = vmatmul.mubr.f32.gmra.mrb[0].mxu0 %v870
        %v1258 = vpop.f32.mrb[0].mxu0
        %v1259 = vadd.f32 0.0, %v1258
        %v1260 = vpop.f32.mrb[0].mxu0
        %1261 = vmatprep.mubr.f32.mxu0 %v874
        %1262 = vmatmul.mubr.f32.gmra.mrb[0].mxu0 %v873
        %v1263 = vpop.f32.mrb[0].mxu0
        %v1264 = vadd.f32 0.0, %v1263
        %v1265 = vpop.f32.mrb[0].mxu0
        %1266 = vmatprep.mubr.f32.mxu0 %v877
        %1267 = vmatmul.mubr.f32.gmra.mrb[0].mxu0 %v876
        %v1268 = vpop.f32.mrb[0].mxu0
        %v1269 = vadd.f32 0.0, %v1268
        %v1270 = vpop.f32.mrb[0].mxu0
        %1271 = vmatprep.mubr.f32.mxu0 %v880
        %1272 = vmatmul.mubr.f32.gmra.mrb[0].mxu0 %v879
        %v1273 = vpop.f32.mrb[0].mxu0
        %v1274 = vadd.f32 0.0, %v1273
        %v1275 = vpop.f32.mrb[0].mxu0
        %1276 = vmatprep.mubr.f32.mxu0 %v883
        %1277 = vmatmul.mubr.f32.gmra.mrb[0].mxu0 %v882
        %v1278 = vpop.f32.mrb[0].mxu0
        %v1279 = vadd.f32 0.0, %v1278
        %v1280 = vpop.f32.mrb[0].mxu0
        %1281 = vmatprep.mubr.f32.mxu0 %v886
        %1282 = vmatmul.mubr.f32.gmra.mrb[0].mxu0 %v885
        %v1283 = vpop.f32.mrb[0].mxu0
        %v1284 = vadd.f32 0.0, %v1283
        %v1285 = vpop.f32.mrb[0].mxu0
        %1286 = vmatprep.mubr.f32.mxu0 %v889
        %1287 = vmatmul.mubr.f32.gmra.mrb[0].mxu0 %v888
        %v1288 = vpop.f32.mrb[0].mxu0
        %v1289 = vadd.f32 0.0, %v1288
        %v1290 = vpop.f32.mrb[0].mxu0
        %1291 = vmatprep.mubr.f32.mxu0 %v892
        %1292 = vmatmul.mubr.f32.gmra.mrb[0].mxu0 %v891
        %v1293 = vpop.f32.mrb[0].mxu0
        %v1294 = vadd.f32 0.0, %v1293
        %v1295 = vpop.f32.mrb[0].mxu0
        %1296 = vmatprep.mubr.f32.mxu0 %v895
        %1297 = vmatmul.mubr.f32.gmra.mrb[0].mxu0 %v894
        %v1298 = vpop.f32.mrb[0].mxu0
        %v1299 = vadd.f32 0.0, %v1298
        %v1300 = vpop.f32.mrb[0].mxu0
        %1301 = vmatprep.mubr.f32.mxu0 %v898
        %1302 = vmatmul.mubr.f32.gmra.mrb[0].mxu0 %v897
        %v1303 = vpop.f32.mrb[0].mxu0
        %v1304 = vadd.f32 0.0, %v1303
        %v1305 = vpop.f32.mrb[0].mxu0
        %1306 = vmatprep.mubr.f32.mxu0 %v901
        %1307 = vmatmul.mubr.f32.gmra.mrb[0].mxu0 %v900
        %v1308 = vpop.f32.mrb[0].mxu0
        %v1309 = vadd.f32 0.0, %v1308
        %v1310 = vpop.f32.mrb[0].mxu0
        %1311 = vmatprep.mubr.f32.mxu0 %v904
        %1312 = vmatmul.mubr.f32.gmra.mrb[0].mxu0 %v903
        %v1313 = vpop.f32.mrb[0].mxu0
        %v1314 = vadd.f32 0.0, %v1313
        %v1315 = vpop.f32.mrb[0].mxu0
        %1316 = vmatprep.mubr.f32.mxu0 %v907
        %1317 = vmatmul.mubr.f32.gmra.mrb[0].mxu0 %v906
        %v1318 = vpop.f32.mrb[0].mxu0
        %v1319 = vadd.f32 0.0, %v1318
        %v1320 = vpop.f32.mrb[0].mxu0
        %1321 = vmatprep.mubr.f32.mxu0 %v910
        %1322 = vmatmul.mubr.f32.gmra.mrb[0].mxu0 %v909
        %v1323 = vpop.f32.mrb[0].mxu0
        %v1324 = vadd.f32 0.0, %v1323
        %v1325 = vpop.f32.mrb[0].mxu0
        %1326 = vmatprep.mubr.f32.mxu0 %v913
        %1327 = vmatmul.mubr.f32.gmra.mrb[0].mxu0 %v912
        %v1328 = vpop.f32.mrb[0].mxu0
        %v1329 = vadd.f32 0.0, %v1328
        %v1330 = vpop.f32.mrb[0].mxu0
        %1331 = vmatprep.mubr.f32.mxu0 %v916
        %1332 = vmatmul.mubr.f32.gmra.mrb[0].mxu0 %v915
        %v1333 = vpop.f32.mrb[0].mxu0
        %v1334 = vadd.f32 0.0, %v1333
        %v1335 = vpop.f32.mrb[0].mxu0
        %1336 = vmatprep.mubr.f32.mxu0 %v919
        %1337 = vmatmul.mubr.f32.gmra.mrb[0].mxu0 %v918
        %v1338 = vpop.f32.mrb[0].mxu0
        %v1339 = vadd.f32 0.0, %v1338
        %v1340 = vpop.f32.mrb[0].mxu0
        %1341 = vmatprep.mubr.f32.mxu0 %v922
        %1342 = vmatmul.mubr.f32.gmra.mrb[0].mxu0 %v921
        %v1343 = vpop.f32.mrb[0].mxu0
        %v1344 = vadd.f32 0.0, %v1343
        %v1345 = vpop.f32.mrb[0].mxu0
        %1346 = vmatprep.mubr.f32.mxu0 %v925
        %1347 = vmatmul.mubr.f32.gmra.mrb[0].mxu0 %v924
        %v1348 = vpop.f32.mrb[0].mxu0
        %v1349 = vadd.f32 0.0, %v1348
        %v1350 = vpop.f32.mrb[0].mxu0
        %1351 = vmatprep.mubr.f32.mxu0 %v928
        %1352 = vmatmul.mubr.f32.gmra.mrb[0].mxu0 %v927
        %v1353 = vpop.f32.mrb[0].mxu0
        %v1354 = vadd.f32 0.0, %v1353
        %v1355 = vpop.f32.mrb[0].mxu0
        %1356 = vmatprep.mubr.f32.mxu0 %v931
        %1357 = vmatmul.mubr.f32.gmra.mrb[0].mxu0 %v930
        %v1358 = vpop.f32.mrb[0].mxu0
        %v1359 = vadd.f32 0.0, %v1358
        %v1360 = vpop.f32.mrb[0].mxu0
        %1361 = vmatprep.mubr.f32.mxu0 %v934
        %1362 = vmatmul.mubr.f32.gmra.mrb[0].mxu0 %v933
        %v1363 = vpop.f32.mrb[0].mxu0
        %v1364 = vadd.f32 0.0, %v1363
        %v1365 = vpop.f32.mrb[0].mxu0
        %1366 = vmatprep.mubr.f32.mxu0 %v937
        %1367 = vmatmul.mubr.f32.gmra.mrb[0].mxu0 %v936
        %v1368 = vpop.f32.mrb[0].mxu0
        %v1369 = vadd.f32 0.0, %v1368
        %v1370 = vpop.f32.mrb[0].mxu0
        %1371 = vdwg.mxu0
        %1372 = vmatprep.subr.mxu0 0.0
        %1373 = vmatpush1.msra.mxu0 %v971
        %1374 = vmatprep.subr.mxu0 0.0
        %1375 = vmatpush1.msra.mxu0 %v972
        %1376 = vmatprep.subr.mxu0 0.0
        %1377 = vmatpush1.msra.mxu0 %v973
        %1378 = vmatprep.subr.mxu0 0.0
        %1379 = vmatpush1.msra.mxu0 %v974
        %1380 = vmatprep.subr.mxu0 0.0
        %1381 = vmatpush1.msra.mxu0 %v975
        %1382 = vmatprep.subr.mxu0 0.0
        %1383 = vmatpush1.msra.mxu0 %v976
        %1384 = vmatprep.subr.mxu0 0.0
        %1385 = vmatpush1.msra.mxu0 %v977
        %1386 = vmatprep.subr.mxu0 0.0
        %1387 = vmatpush1.msra.mxu0 %v978
        %1388 = vmatprep.subr.mxu0 0.0
        %1389 = vmatpush1.msra.mxu0 %v979
        %1390 = vmatprep.subr.mxu0 0.0
        %1391 = vmatpush1.msra.mxu0 %v980
        %1392 = vmatprep.subr.mxu0 0.0
        %1393 = vmatpush1.msra.mxu0 %v981
        %1394 = vmatprep.subr.mxu0 0.0
        %1395 = vmatpush1.msra.mxu0 %v982
        %1396 = vmatprep.subr.mxu0 0.0
        %1397 = vmatpush1.msra.mxu0 %v983
        %1398 = vmatprep.subr.mxu0 0.0
        %1399 = vmatpush1.msra.mxu0 %v984
        %1400 = vmatprep.subr.mxu0 0.0
        %1401 = vmatpush1.msra.mxu0 %v985
        %1402 = vmatprep.subr.mxu0 0.0
        %1403 = vmatpush1.msra.mxu0 %v986
        %1404 = vmatprep.subr.mxu0 0.0
        %1405 = vmatpush1.msra.mxu0 0.0
        %1406 = vmatprep.subr.mxu0 0.0
        %1407 = vmatpush1.msra.mxu0 0.0
        %1408 = vmatprep.subr.mxu0 0.0
        %1409 = vmatpush1.msra.mxu0 0.0
        %1410 = vmatprep.subr.mxu0 0.0
        %1411 = vmatpush1.msra.mxu0 0.0
        %1412 = vmatprep.subr.mxu0 0.0
        %1413 = vmatpush1.msra.mxu0 0.0
        %1414 = vmatprep.subr.mxu0 0.0
        %1415 = vmatpush1.msra.mxu0 0.0
        %1416 = vmatprep.subr.mxu0 0.0
        %1417 = vmatpush1.msra.mxu0 0.0
        %1418 = vmatprep.subr.mxu0 0.0
        %1419 = vmatpush1.msra.mxu0 0.0
        %1420 = vmatprep.subr.mxu0 0.0
        %1421 = vmatpush1.msra.mxu0 0.0
        %1422 = vmatprep.subr.mxu0 0.0
        %1423 = vmatpush1.msra.mxu0 0.0
        %1424 = vmatprep.subr.mxu0 0.0
        %1425 = vmatpush1.msra.mxu0 0.0
        %1426 = vmatprep.subr.mxu0 0.0
        %1427 = vmatpush1.msra.mxu0 0.0
        %1428 = vmatprep.subr.mxu0 0.0
        %1429 = vmatpush1.msra.mxu0 0.0
        %1430 = vmatprep.subr.mxu0 0.0
        %1431 = vmatpush1.msra.mxu0 0.0
        %1432 = vmatprep.subr.mxu0 0.0
        %1433 = vmatpush1.msra.mxu0 0.0
        %1434 = vmatprep.subr.mxu0 0.0
        %1435 = vmatpush1.msra.mxu0 0.0
        %1436 = vmatprep.mubr.f32.mxu0 0.0
        %1437 = vmatmul.mubr.f32.gmra.mrb[0].mxu0 %v749
        %v1438 = vpop.f32.mrb[0].mxu0
        %v1439 = vadd.f32 %v1054, %v1438
        %v1440 = vpop.f32.mrb[0].mxu0
        %1441 = vmatprep.mubr.f32.mxu0 0.0
        %1442 = vmatmul.mubr.f32.gmra.mrb[0].mxu0 %v752
        %v1443 = vpop.f32.mrb[0].mxu0
        %v1444 = vadd.f32 %v1059, %v1443
        %v1445 = vpop.f32.mrb[0].mxu0
        %1446 = vmatprep.mubr.f32.mxu0 0.0
        %1447 = vmatmul.mubr.f32.gmra.mrb[0].mxu0 %v755
        %v1448 = vpop.f32.mrb[0].mxu0
        %v1449 = vadd.f32 %v1064, %v1448
        %v1450 = vpop.f32.mrb[0].mxu0
        %1451 = vmatprep.mubr.f32.mxu0 0.0
        %1452 = vmatmul.mubr.f32.gmra.mrb[0].mxu0 %v758
        %v1453 = vpop.f32.mrb[0].mxu0
        %v1454 = vadd.f32 %v1069, %v1453
        %v1455 = vpop.f32.mrb[0].mxu0
        %1456 = vmatprep.mubr.f32.mxu0 0.0
        %1457 = vmatmul.mubr.f32.gmra.mrb[0].mxu0 %v761
        %v1458 = vpop.f32.mrb[0].mxu0
        %v1459 = vadd.f32 %v1074, %v1458
        %v1460 = vpop.f32.mrb[0].mxu0
        %1461 = vmatprep.mubr.f32.mxu0 0.0
        %1462 = vmatmul.mubr.f32.gmra.mrb[0].mxu0 %v764
        %v1463 = vpop.f32.mrb[0].mxu0
        %v1464 = vadd.f32 %v1079, %v1463
        %v1465 = vpop.f32.mrb[0].mxu0
        %1466 = vmatprep.mubr.f32.mxu0 0.0
        %1467 = vmatmul.mubr.f32.gmra.mrb[0].mxu0 %v767
        %v1468 = vpop.f32.mrb[0].mxu0
        %v1469 = vadd.f32 %v1084, %v1468
        %v1470 = vpop.f32.mrb[0].mxu0
        %1471 = vmatprep.mubr.f32.mxu0 0.0
        %1472 = vmatmul.mubr.f32.gmra.mrb[0].mxu0 %v770
        %v1473 = vpop.f32.mrb[0].mxu0
        %v1474 = vadd.f32 %v1089, %v1473
        %v1475 = vpop.f32.mrb[0].mxu0
        %1476 = vmatprep.mubr.f32.mxu0 0.0
        %1477 = vmatmul.mubr.f32.gmra.mrb[0].mxu0 %v773
        %v1478 = vpop.f32.mrb[0].mxu0
        %v1479 = vadd.f32 %v1094, %v1478
        %v1480 = vpop.f32.mrb[0].mxu0
        %1481 = vmatprep.mubr.f32.mxu0 0.0
        %1482 = vmatmul.mubr.f32.gmra.mrb[0].mxu0 %v776
        %v1483 = vpop.f32.mrb[0].mxu0
        %v1484 = vadd.f32 %v1099, %v1483
        %v1485 = vpop.f32.mrb[0].mxu0
        %1486 = vmatprep.mubr.f32.mxu0 0.0
        %1487 = vmatmul.mubr.f32.gmra.mrb[0].mxu0 %v779
        %v1488 = vpop.f32.mrb[0].mxu0
        %v1489 = vadd.f32 %v1104, %v1488
        %v1490 = vpop.f32.mrb[0].mxu0
        %1491 = vmatprep.mubr.f32.mxu0 0.0
        %1492 = vmatmul.mubr.f32.gmra.mrb[0].mxu0 %v782
        %v1493 = vpop.f32.mrb[0].mxu0
        %v1494 = vadd.f32 %v1109, %v1493
        %v1495 = vpop.f32.mrb[0].mxu0
        %1496 = vmatprep.mubr.f32.mxu0 0.0
        %1497 = vmatmul.mubr.f32.gmra.mrb[0].mxu0 %v785
        %v1498 = vpop.f32.mrb[0].mxu0
        %v1499 = vadd.f32 %v1114, %v1498
        %v1500 = vpop.f32.mrb[0].mxu0
        %1501 = vmatprep.mubr.f32.mxu0 0.0
        %1502 = vmatmul.mubr.f32.gmra.mrb[0].mxu0 %v788
        %v1503 = vpop.f32.mrb[0].mxu0
        %v1504 = vadd.f32 %v1119, %v1503
        %v1505 = vpop.f32.mrb[0].mxu0
        %1506 = vmatprep.mubr.f32.mxu0 0.0
        %1507 = vmatmul.mubr.f32.gmra.mrb[0].mxu0 %v791
        %v1508 = vpop.f32.mrb[0].mxu0
        %v1509 = vadd.f32 %v1124, %v1508
        %v1510 = vpop.f32.mrb[0].mxu0
        %1511 = vmatprep.mubr.f32.mxu0 0.0
        %1512 = vmatmul.mubr.f32.gmra.mrb[0].mxu0 %v794
        %v1513 = vpop.f32.mrb[0].mxu0
        %v1514 = vadd.f32 %v1129, %v1513
        %v1515 = vpop.f32.mrb[0].mxu0
        %1516 = vmatprep.mubr.f32.mxu0 0.0
        %1517 = vmatmul.mubr.f32.gmra.mrb[0].mxu0 %v797
        %v1518 = vpop.f32.mrb[0].mxu0
        %v1519 = vadd.f32 %v1134, %v1518
        %v1520 = vpop.f32.mrb[0].mxu0
        %1521 = vmatprep.mubr.f32.mxu0 0.0
        %1522 = vmatmul.mubr.f32.gmra.mrb[0].mxu0 %v800
        %v1523 = vpop.f32.mrb[0].mxu0
        %v1524 = vadd.f32 %v1139, %v1523
        %v1525 = vpop.f32.mrb[0].mxu0
        %1526 = vmatprep.mubr.f32.mxu0 0.0
        %1527 = vmatmul.mubr.f32.gmra.mrb[0].mxu0 %v803
        %v1528 = vpop.f32.mrb[0].mxu0
        %v1529 = vadd.f32 %v1144, %v1528
        %v1530 = vpop.f32.mrb[0].mxu0
        %1531 = vmatprep.mubr.f32.mxu0 0.0
        %1532 = vmatmul.mubr.f32.gmra.mrb[0].mxu0 %v806
        %v1533 = vpop.f32.mrb[0].mxu0
        %v1534 = vadd.f32 %v1149, %v1533
        %v1535 = vpop.f32.mrb[0].mxu0
        %1536 = vmatprep.mubr.f32.mxu0 0.0
        %1537 = vmatmul.mubr.f32.gmra.mrb[0].mxu0 %v809
        %v1538 = vpop.f32.mrb[0].mxu0
        %v1539 = vadd.f32 %v1154, %v1538
        %v1540 = vpop.f32.mrb[0].mxu0
        %1541 = vmatprep.mubr.f32.mxu0 0.0
        %1542 = vmatmul.mubr.f32.gmra.mrb[0].mxu0 %v812
        %v1543 = vpop.f32.mrb[0].mxu0
        %v1544 = vadd.f32 %v1159, %v1543
        %v1545 = vpop.f32.mrb[0].mxu0
        %1546 = vmatprep.mubr.f32.mxu0 0.0
        %1547 = vmatmul.mubr.f32.gmra.mrb[0].mxu0 %v815
        %v1548 = vpop.f32.mrb[0].mxu0
        %v1549 = vadd.f32 %v1164, %v1548
        %v1550 = vpop.f32.mrb[0].mxu0
        %1551 = vmatprep.mubr.f32.mxu0 0.0
        %1552 = vmatmul.mubr.f32.gmra.mrb[0].mxu0 %v818
        %v1553 = vpop.f32.mrb[0].mxu0
        %v1554 = vadd.f32 %v1169, %v1553
        %v1555 = vpop.f32.mrb[0].mxu0
        %1556 = vmatprep.mubr.f32.mxu0 0.0
        %1557 = vmatmul.mubr.f32.gmra.mrb[0].mxu0 %v821
        %v1558 = vpop.f32.mrb[0].mxu0
        %v1559 = vadd.f32 %v1174, %v1558
        %v1560 = vpop.f32.mrb[0].mxu0
        %1561 = vmatprep.mubr.f32.mxu0 0.0
        %1562 = vmatmul.mubr.f32.gmra.mrb[0].mxu0 %v824
        %v1563 = vpop.f32.mrb[0].mxu0
        %v1564 = vadd.f32 %v1179, %v1563
        %v1565 = vpop.f32.mrb[0].mxu0
        %1566 = vmatprep.mubr.f32.mxu0 0.0
        %1567 = vmatmul.mubr.f32.gmra.mrb[0].mxu0 %v827
        %v1568 = vpop.f32.mrb[0].mxu0
        %v1569 = vadd.f32 %v1184, %v1568
        %v1570 = vpop.f32.mrb[0].mxu0
        %1571 = vmatprep.mubr.f32.mxu0 0.0
        %1572 = vmatmul.mubr.f32.gmra.mrb[0].mxu0 %v830
        %v1573 = vpop.f32.mrb[0].mxu0
        %v1574 = vadd.f32 %v1189, %v1573
        %v1575 = vpop.f32.mrb[0].mxu0
        %1576 = vmatprep.mubr.f32.mxu0 0.0
        %1577 = vmatmul.mubr.f32.gmra.mrb[0].mxu0 %v833
        %v1578 = vpop.f32.mrb[0].mxu0
        %v1579 = vadd.f32 %v1194, %v1578
        %v1580 = vpop.f32.mrb[0].mxu0
        %1581 = vmatprep.mubr.f32.mxu0 0.0
        %1582 = vmatmul.mubr.f32.gmra.mrb[0].mxu0 %v836
        %v1583 = vpop.f32.mrb[0].mxu0
        %v1584 = vadd.f32 %v1199, %v1583
        %v1585 = vpop.f32.mrb[0].mxu0
        %1586 = vmatprep.mubr.f32.mxu0 0.0
        %1587 = vmatmul.mubr.f32.gmra.mrb[0].mxu0 %v839
        %v1588 = vpop.f32.mrb[0].mxu0
        %v1589 = vadd.f32 %v1204, %v1588
        %v1590 = vpop.f32.mrb[0].mxu0
        %1591 = vmatprep.mubr.f32.mxu0 0.0
        %1592 = vmatmul.mubr.f32.gmra.mrb[0].mxu0 %v842
        %v1593 = vpop.f32.mrb[0].mxu0
        %v1594 = vadd.f32 %v1209, %v1593
        %v1595 = vpop.f32.mrb[0].mxu0
        %1596 = vmatprep.mubr.f32.mxu0 0.0
        %1597 = vmatmul.mubr.f32.gmra.mrb[0].mxu0 %v845
        %v1598 = vpop.f32.mrb[0].mxu0
        %v1599 = vadd.f32 %v1214, %v1598
        %v1600 = vpop.f32.mrb[0].mxu0
        %1601 = vmatprep.mubr.f32.mxu0 0.0
        %1602 = vmatmul.mubr.f32.gmra.mrb[0].mxu0 %v848
        %v1603 = vpop.f32.mrb[0].mxu0
        %v1604 = vadd.f32 %v1219, %v1603
        %v1605 = vpop.f32.mrb[0].mxu0
        %1606 = vmatprep.mubr.f32.mxu0 0.0
        %1607 = vmatmul.mubr.f32.gmra.mrb[0].mxu0 %v851
        %v1608 = vpop.f32.mrb[0].mxu0
        %v1609 = vadd.f32 %v1224, %v1608
        %v1610 = vpop.f32.mrb[0].mxu0
        %1611 = vmatprep.mubr.f32.mxu0 0.0
        %1612 = vmatmul.mubr.f32.gmra.mrb[0].mxu0 %v854
        %v1613 = vpop.f32.mrb[0].mxu0
        %v1614 = vadd.f32 %v1229, %v1613
        %v1615 = vpop.f32.mrb[0].mxu0
        %1616 = vmatprep.mubr.f32.mxu0 0.0
        %1617 = vmatmul.mubr.f32.gmra.mrb[0].mxu0 %v857
        %v1618 = vpop.f32.mrb[0].mxu0
        %v1619 = vadd.f32 %v1234, %v1618
        %v1620 = vpop.f32.mrb[0].mxu0
        %1621 = vmatprep.mubr.f32.mxu0 0.0
        %1622 = vmatmul.mubr.f32.gmra.mrb[0].mxu0 %v860
        %v1623 = vpop.f32.mrb[0].mxu0
        %v1624 = vadd.f32 %v1239, %v1623
        %v1625 = vpop.f32.mrb[0].mxu0
        %1626 = vmatprep.mubr.f32.mxu0 0.0
        %1627 = vmatmul.mubr.f32.gmra.mrb[0].mxu0 %v863
        %v1628 = vpop.f32.mrb[0].mxu0
        %v1629 = vadd.f32 %v1244, %v1628
        %v1630 = vpop.f32.mrb[0].mxu0
        %1631 = vmatprep.mubr.f32.mxu0 0.0
        %1632 = vmatmul.mubr.f32.gmra.mrb[0].mxu0 %v866
        %v1633 = vpop.f32.mrb[0].mxu0
        %v1634 = vadd.f32 %v1249, %v1633
        %v1635 = vpop.f32.mrb[0].mxu0
        %1636 = vmatprep.mubr.f32.mxu0 0.0
        %1637 = vmatmul.mubr.f32.gmra.mrb[0].mxu0 %v869
        %v1638 = vpop.f32.mrb[0].mxu0
        %v1639 = vadd.f32 %v1254, %v1638
        %v1640 = vpop.f32.mrb[0].mxu0
        %1641 = vmatprep.mubr.f32.mxu0 0.0
        %1642 = vmatmul.mubr.f32.gmra.mrb[0].mxu0 %v872
        %v1643 = vpop.f32.mrb[0].mxu0
        %v1644 = vadd.f32 %v1259, %v1643
        %v1645 = vpop.f32.mrb[0].mxu0
        %1646 = vmatprep.mubr.f32.mxu0 0.0
        %1647 = vmatmul.mubr.f32.gmra.mrb[0].mxu0 %v875
        %v1648 = vpop.f32.mrb[0].mxu0
        %v1649 = vadd.f32 %v1264, %v1648
        %v1650 = vpop.f32.mrb[0].mxu0
        %1651 = vmatprep.mubr.f32.mxu0 0.0
        %1652 = vmatmul.mubr.f32.gmra.mrb[0].mxu0 %v878
        %v1653 = vpop.f32.mrb[0].mxu0
        %v1654 = vadd.f32 %v1269, %v1653
        %v1655 = vpop.f32.mrb[0].mxu0
        %1656 = vmatprep.mubr.f32.mxu0 0.0
        %1657 = vmatmul.mubr.f32.gmra.mrb[0].mxu0 %v881
        %v1658 = vpop.f32.mrb[0].mxu0
        %v1659 = vadd.f32 %v1274, %v1658
        %v1660 = vpop.f32.mrb[0].mxu0
        %1661 = vmatprep.mubr.f32.mxu0 0.0
        %1662 = vmatmul.mubr.f32.gmra.mrb[0].mxu0 %v884
        %v1663 = vpop.f32.mrb[0].mxu0
        %v1664 = vadd.f32 %v1279, %v1663
        %v1665 = vpop.f32.mrb[0].mxu0
        %1666 = vmatprep.mubr.f32.mxu0 0.0
        %1667 = vmatmul.mubr.f32.gmra.mrb[0].mxu0 %v887
        %v1668 = vpop.f32.mrb[0].mxu0
        %v1669 = vadd.f32 %v1284, %v1668
        %v1670 = vpop.f32.mrb[0].mxu0
        %1671 = vmatprep.mubr.f32.mxu0 0.0
        %1672 = vmatmul.mubr.f32.gmra.mrb[0].mxu0 %v890
        %v1673 = vpop.f32.mrb[0].mxu0
        %v1674 = vadd.f32 %v1289, %v1673
        %v1675 = vpop.f32.mrb[0].mxu0
        %1676 = vmatprep.mubr.f32.mxu0 0.0
        %1677 = vmatmul.mubr.f32.gmra.mrb[0].mxu0 %v893
        %v1678 = vpop.f32.mrb[0].mxu0
        %v1679 = vadd.f32 %v1294, %v1678
        %v1680 = vpop.f32.mrb[0].mxu0
        %1681 = vmatprep.mubr.f32.mxu0 0.0
        %1682 = vmatmul.mubr.f32.gmra.mrb[0].mxu0 %v896
        %v1683 = vpop.f32.mrb[0].mxu0
        %v1684 = vadd.f32 %v1299, %v1683
        %v1685 = vpop.f32.mrb[0].mxu0
        %1686 = vmatprep.mubr.f32.mxu0 0.0
        %1687 = vmatmul.mubr.f32.gmra.mrb[0].mxu0 %v899
        %v1688 = vpop.f32.mrb[0].mxu0
        %v1689 = vadd.f32 %v1304, %v1688
        %v1690 = vpop.f32.mrb[0].mxu0
        %1691 = vmatprep.mubr.f32.mxu0 0.0
        %1692 = vmatmul.mubr.f32.gmra.mrb[0].mxu0 %v902
        %v1693 = vpop.f32.mrb[0].mxu0
        %v1694 = vadd.f32 %v1309, %v1693
        %v1695 = vpop.f32.mrb[0].mxu0
        %1696 = vmatprep.mubr.f32.mxu0 0.0
        %1697 = vmatmul.mubr.f32.gmra.mrb[0].mxu0 %v905
        %v1698 = vpop.f32.mrb[0].mxu0
        %v1699 = vadd.f32 %v1314, %v1698
        %v1700 = vpop.f32.mrb[0].mxu0
        %1701 = vmatprep.mubr.f32.mxu0 0.0
        %1702 = vmatmul.mubr.f32.gmra.mrb[0].mxu0 %v908
        %v1703 = vpop.f32.mrb[0].mxu0
        %v1704 = vadd.f32 %v1319, %v1703
        %v1705 = vpop.f32.mrb[0].mxu0
        %1706 = vmatprep.mubr.f32.mxu0 0.0
        %1707 = vmatmul.mubr.f32.gmra.mrb[0].mxu0 %v911
        %v1708 = vpop.f32.mrb[0].mxu0
        %v1709 = vadd.f32 %v1324, %v1708
        %v1710 = vpop.f32.mrb[0].mxu0
        %1711 = vmatprep.mubr.f32.mxu0 0.0
        %1712 = vmatmul.mubr.f32.gmra.mrb[0].mxu0 %v914
        %v1713 = vpop.f32.mrb[0].mxu0
        %v1714 = vadd.f32 %v1329, %v1713
        %v1715 = vpop.f32.mrb[0].mxu0
        %1716 = vmatprep.mubr.f32.mxu0 0.0
        %1717 = vmatmul.mubr.f32.gmra.mrb[0].mxu0 %v917
        %v1718 = vpop.f32.mrb[0].mxu0
        %v1719 = vadd.f32 %v1334, %v1718
        %v1720 = vpop.f32.mrb[0].mxu0
        %1721 = vmatprep.mubr.f32.mxu0 0.0
        %1722 = vmatmul.mubr.f32.gmra.mrb[0].mxu0 %v920
        %v1723 = vpop.f32.mrb[0].mxu0
        %v1724 = vadd.f32 %v1339, %v1723
        %v1725 = vpop.f32.mrb[0].mxu0
        %1726 = vmatprep.mubr.f32.mxu0 0.0
        %1727 = vmatmul.mubr.f32.gmra.mrb[0].mxu0 %v923
        %v1728 = vpop.f32.mrb[0].mxu0
        %v1729 = vadd.f32 %v1344, %v1728
        %v1730 = vpop.f32.mrb[0].mxu0
        %1731 = vmatprep.mubr.f32.mxu0 0.0
        %1732 = vmatmul.mubr.f32.gmra.mrb[0].mxu0 %v926
        %v1733 = vpop.f32.mrb[0].mxu0
        %v1734 = vadd.f32 %v1349, %v1733
        %v1735 = vpop.f32.mrb[0].mxu0
        %1736 = vmatprep.mubr.f32.mxu0 0.0
        %1737 = vmatmul.mubr.f32.gmra.mrb[0].mxu0 %v929
        %v1738 = vpop.f32.mrb[0].mxu0
        %v1739 = vadd.f32 %v1354, %v1738
        %v1740 = vpop.f32.mrb[0].mxu0
        %1741 = vmatprep.mubr.f32.mxu0 0.0
        %1742 = vmatmul.mubr.f32.gmra.mrb[0].mxu0 %v932
        %v1743 = vpop.f32.mrb[0].mxu0
        %v1744 = vadd.f32 %v1359, %v1743
        %v1745 = vpop.f32.mrb[0].mxu0
        %1746 = vmatprep.mubr.f32.mxu0 0.0
        %1747 = vmatmul.mubr.f32.gmra.mrb[0].mxu0 %v935
        %v1748 = vpop.f32.mrb[0].mxu0
        %v1749 = vadd.f32 %v1364, %v1748
        %v1750 = vpop.f32.mrb[0].mxu0
        %1751 = vmatprep.mubr.f32.mxu0 0.0
        %1752 = vmatmul.mubr.f32.gmra.mrb[0].mxu0 %v938
        %v1753 = vpop.f32.mrb[0].mxu0
        %v1754 = vadd.f32 %v1369, %v1753
        %v1755 = vpop.f32.mrb[0].mxu0
        %1756 = vdwg.mxu0
        %v1757 = vadd.f32 %v683, %v1439
        %v1758 = vadd.f32 %v684, %v1444
        %v1759 = vadd.f32 %v685, %v1449
        %v1760 = vadd.f32 %v686, %v1454
        %v1761 = vadd.f32 %v687, %v1459
        %v1762 = vadd.f32 %v688, %v1464
        %v1763 = vadd.f32 %v689, %v1469
        %v1764 = vadd.f32 %v690, %v1474
        %v1765 = vadd.f32 %v691, %v1479
        %v1766 = vadd.f32 %v692, %v1484
        %v1767 = vadd.f32 %v693, %v1489
        %v1768 = vadd.f32 %v694, %v1494
        %v1769 = vadd.f32 %v695, %v1499
        %v1770 = vadd.f32 %v696, %v1504
        %v1771 = vadd.f32 %v697, %v1509
        %v1772 = vadd.f32 %v698, %v1514
        %v1773 = vadd.f32 %v699, %v1519
        %v1774 = vadd.f32 %v700, %v1524
        %v1775 = vadd.f32 %v701, %v1529
        %v1776 = vadd.f32 %v702, %v1534
        %v1777 = vadd.f32 %v703, %v1539
        %v1778 = vadd.f32 %v704, %v1544
        %v1779 = vadd.f32 %v705, %v1549
        %v1780 = vadd.f32 %v706, %v1554
        %v1781 = vadd.f32 %v707, %v1559
        %v1782 = vadd.f32 %v708, %v1564
        %v1783 = vadd.f32 %v709, %v1569
        %v1784 = vadd.f32 %v710, %v1574
        %v1785 = vadd.f32 %v711, %v1579
        %v1786 = vadd.f32 %v712, %v1584
        %v1787 = vadd.f32 %v713, %v1589
        %v1788 = vadd.f32 %v714, %v1594
        %v1789 = vadd.f32 %v715, %v1599
        %v1790 = vadd.f32 %v716, %v1604
        %v1791 = vadd.f32 %v717, %v1609
        %v1792 = vadd.f32 %v718, %v1614
        %v1793 = vadd.f32 %v719, %v1619
        %v1794 = vadd.f32 %v720, %v1624
        %v1795 = vadd.f32 %v721, %v1629
        %v1796 = vadd.f32 %v722, %v1634
        %v1797 = vadd.f32 %v723, %v1639
        %v1798 = vadd.f32 %v724, %v1644
        %v1799 = vadd.f32 %v725, %v1649
        %v1800 = vadd.f32 %v726, %v1654
        %v1801 = vadd.f32 %v727, %v1659
        %v1802 = vadd.f32 %v728, %v1664
        %v1803 = vadd.f32 %v729, %v1669
        %v1804 = vadd.f32 %v730, %v1674
        %v1805 = vadd.f32 %v731, %v1679
        %v1806 = vadd.f32 %v732, %v1684
        %v1807 = vadd.f32 %v733, %v1689
        %v1808 = vadd.f32 %v734, %v1694
        %v1809 = vadd.f32 %v735, %v1699
        %v1810 = vadd.f32 %v736, %v1704
        %v1811 = vadd.f32 %v737, %v1709
        %v1812 = vadd.f32 %v738, %v1714
        %v1813 = vadd.f32 %v739, %v1719
        %v1814 = vadd.f32 %v740, %v1724
        %v1815 = vadd.f32 %v741, %v1729
        %v1816 = vadd.f32 %v742, %v1734
        %v1817 = vadd.f32 %v743, %v1739
        %v1818 = vadd.f32 %v744, %v1744
        %v1819 = vadd.f32 %v745, %v1749
        %v1820 = vadd.f32 %v746, %v1754
        %1821 = vst [vmem:[#allocation2] sm:$0xff] %v1757
        %1822 = vst [vmem:[#allocation2 + $0x8] sm:$0xff] %v1758
        %1823 = vst [vmem:[#allocation2 + $0x10] sm:$0xff] %v1759
        %1824 = vst [vmem:[#allocation2 + $0x18] sm:$0xff] %v1760
        %1825 = vst [vmem:[#allocation2 + $0x20] sm:$0xff] %v1761
        %1826 = vst [vmem:[#allocation2 + $0x28] sm:$0xff] %v1762
        %1827 = vst [vmem:[#allocation2 + $0x30] sm:$0xff] %v1763
        %1828 = vst [vmem:[#allocation2 + $0x38] sm:$0xff] %v1764
        %1829 = vst [vmem:[#allocation2 + $0x40] sm:$0xff] %v1765
        %1830 = vst [vmem:[#allocation2 + $0x48] sm:$0xff] %v1766
        %1831 = vst [vmem:[#allocation2 + $0x50] sm:$0xff] %v1767
        %1832 = vst [vmem:[#allocation2 + $0x58] sm:$0xff] %v1768
        %1833 = vst [vmem:[#allocation2 + $0x60] sm:$0xff] %v1769
        %1834 = vst [vmem:[#allocation2 + $0x68] sm:$0xff] %v1770
        %1835 = vst [vmem:[#allocation2 + $0x70] sm:$0xff] %v1771
        %1836 = vst [vmem:[#allocation2 + $0x78] sm:$0xff] %v1772
        %1837 = vst [vmem:[#allocation2 + $0x80] sm:$0xff] %v1773
        %1838 = vst [vmem:[#allocation2 + $0x88] sm:$0xff] %v1774
        %1839 = vst [vmem:[#allocation2 + $0x90] sm:$0xff] %v1775
        %1840 = vst [vmem:[#allocation2 + $0x98] sm:$0xff] %v1776
        %1841 = vst [vmem:[#allocation2 + $0xa0] sm:$0xff] %v1777
        %1842 = vst [vmem:[#allocation2 + $0xa8] sm:$0xff] %v1778
        %1843 = vst [vmem:[#allocation2 + $0xb0] sm:$0xff] %v1779
        %1844 = vst [vmem:[#allocation2 + $0xb8] sm:$0xff] %v1780
        %1845 = vst [vmem:[#allocation2 + $0xc0] sm:$0xff] %v1781
        %1846 = vst [vmem:[#allocation2 + $0xc8] sm:$0xff] %v1782
        %1847 = vst [vmem:[#allocation2 + $0xd0] sm:$0xff] %v1783
        %1848 = vst [vmem:[#allocation2 + $0xd8] sm:$0xff] %v1784
        %1849 = vst [vmem:[#allocation2 + $0xe0] sm:$0xff] %v1785
        %1850 = vst [vmem:[#allocation2 + $0xe8] sm:$0xff] %v1786
        %1851 = vst [vmem:[#allocation2 + $0xf0] sm:$0xff] %v1787
        %1852 = vst [vmem:[#allocation2 + $0xf8] sm:$0xff] %v1788
        %1853 = vst [vmem:[#allocation2 + $0x100] sm:$0xff] %v1789
        %1854 = vst [vmem:[#allocation2 + $0x108] sm:$0xff] %v1790
        %1855 = vst [vmem:[#allocation2 + $0x110] sm:$0xff] %v1791
        %1856 = vst [vmem:[#allocation2 + $0x118] sm:$0xff] %v1792
        %1857 = vst [vmem:[#allocation2 + $0x120] sm:$0xff] %v1793
        %1858 = vst [vmem:[#allocation2 + $0x128] sm:$0xff] %v1794
        %1859 = vst [vmem:[#allocation2 + $0x130] sm:$0xff] %v1795
        %1860 = vst [vmem:[#allocation2 + $0x138] sm:$0xff] %v1796
        %1861 = vst [vmem:[#allocation2 + $0x140] sm:$0xff] %v1797
        %1862 = vst [vmem:[#allocation2 + $0x148] sm:$0xff] %v1798
        %1863 = vst [vmem:[#allocation2 + $0x150] sm:$0xff] %v1799
        %1864 = vst [vmem:[#allocation2 + $0x158] sm:$0xff] %v1800
        %1865 = vst [vmem:[#allocation2 + $0x160] sm:$0xff] %v1801
        %1866 = vst [vmem:[#allocation2 + $0x168] sm:$0xff] %v1802
        %1867 = vst [vmem:[#allocation2 + $0x170] sm:$0xff] %v1803
        %1868 = vst [vmem:[#allocation2 + $0x178] sm:$0xff] %v1804
        %1869 = vst [vmem:[#allocation2 + $0x180] sm:$0xff] %v1805
        %1870 = vst [vmem:[#allocation2 + $0x188] sm:$0xff] %v1806
        %1871 = vst [vmem:[#allocation2 + $0x190] sm:$0xff] %v1807
        %1872 = vst [vmem:[#allocation2 + $0x198] sm:$0xff] %v1808
        %1873 = vst [vmem:[#allocation2 + $0x1a0] sm:$0xff] %v1809
        %1874 = vst [vmem:[#allocation2 + $0x1a8] sm:$0xff] %v1810
        %1875 = vst [vmem:[#allocation2 + $0x1b0] sm:$0xff] %v1811
        %1876 = vst [vmem:[#allocation2 + $0x1b8] sm:$0xff] %v1812
        %1877 = vst [vmem:[#allocation2 + $0x1c0] sm:$0xff] %v1813
        %1878 = vst [vmem:[#allocation2 + $0x1c8] sm:$0xff] %v1814
        %1879 = vst [vmem:[#allocation2 + $0x1d0] sm:$0xff] %v1815
        %1880 = vst [vmem:[#allocation2 + $0x1d8] sm:$0xff] %v1816
        %1881 = vst [vmem:[#allocation2 + $0x1e0] sm:$0xff] %v1817
        %1882 = vst [vmem:[#allocation2 + $0x1e8] sm:$0xff] %v1818
        %1883 = vst [vmem:[#allocation2 + $0x1f0] sm:$0xff] %v1819
        %1884 = vst [vmem:[#allocation2 + $0x1f8] sm:$0xff] %v1820
        %p1885 = scmp.eq.s32.totalorder %s19, 2
        // Predicated region
        $region60: #{_lambda_.6} parent=50 // pred_check
          %p1886 = pneg %p1885
        $region61: #{_lambda_.6} parent=50 // pred_check_branch
          %1888 = sbr.rel (%p1886) target = $region63
        $region62: #{_lambda_.6} parent=50 // pred_region
          %v1889 = vld [vmem:[#allocation2] sm:$0xff]
          %v1890 = vld [vmem:[#allocation2 + $0x8] sm:$0xff]
          %v1891 = vld [vmem:[#allocation2 + $0x10] sm:$0xff]
          %v1892 = vld [vmem:[#allocation2 + $0x18] sm:$0xff]
          %v1893 = vld [vmem:[#allocation2 + $0x20] sm:$0xff]
          %v1894 = vld [vmem:[#allocation2 + $0x28] sm:$0xff]
          %v1895 = vld [vmem:[#allocation2 + $0x30] sm:$0xff]
          %v1896 = vld [vmem:[#allocation2 + $0x38] sm:$0xff]
          %v1897 = vld [vmem:[#allocation2 + $0x40] sm:$0xff]
          %v1898 = vld [vmem:[#allocation2 + $0x48] sm:$0xff]
          %v1899 = vld [vmem:[#allocation2 + $0x50] sm:$0xff]
          %v1900 = vld [vmem:[#allocation2 + $0x58] sm:$0xff]
          %v1901 = vld [vmem:[#allocation2 + $0x60] sm:$0xff]
          %v1902 = vld [vmem:[#allocation2 + $0x68] sm:$0xff]
          %v1903 = vld [vmem:[#allocation2 + $0x70] sm:$0xff]
          %v1904 = vld [vmem:[#allocation2 + $0x78] sm:$0xff]
          %v1905 = vld [vmem:[#allocation2 + $0x80] sm:$0xff]
          %v1906 = vld [vmem:[#allocation2 + $0x88] sm:$0xff]
          %v1907 = vld [vmem:[#allocation2 + $0x90] sm:$0xff]
          %v1908 = vld [vmem:[#allocation2 + $0x98] sm:$0xff]
          %v1909 = vld [vmem:[#allocation2 + $0xa0] sm:$0xff]
          %v1910 = vld [vmem:[#allocation2 + $0xa8] sm:$0xff]
          %v1911 = vld [vmem:[#allocation2 + $0xb0] sm:$0xff]
          %v1912 = vld [vmem:[#allocation2 + $0xb8] sm:$0xff]
          %v1913 = vld [vmem:[#allocation2 + $0xc0] sm:$0xff]
          %v1914 = vld [vmem:[#allocation2 + $0xc8] sm:$0xff]
          %v1915 = vld [vmem:[#allocation2 + $0xd0] sm:$0xff]
          %v1916 = vld [vmem:[#allocation2 + $0xd8] sm:$0xff]
          %v1917 = vld [vmem:[#allocation2 + $0xe0] sm:$0xff]
          %v1918 = vld [vmem:[#allocation2 + $0xe8] sm:$0xff]
          %v1919 = vld [vmem:[#allocation2 + $0xf0] sm:$0xff]
          %v1920 = vld [vmem:[#allocation2 + $0xf8] sm:$0xff]
          %v1921 = vld [vmem:[#allocation2 + $0x100] sm:$0xff]
          %v1922 = vld [vmem:[#allocation2 + $0x108] sm:$0xff]
          %v1923 = vld [vmem:[#allocation2 + $0x110] sm:$0xff]
          %v1924 = vld [vmem:[#allocation2 + $0x118] sm:$0xff]
          %v1925 = vld [vmem:[#allocation2 + $0x120] sm:$0xff]
          %v1926 = vld [vmem:[#allocation2 + $0x128] sm:$0xff]
          %v1927 = vld [vmem:[#allocation2 + $0x130] sm:$0xff]
          %v1928 = vld [vmem:[#allocation2 + $0x138] sm:$0xff]
          %v1929 = vld [vmem:[#allocation2 + $0x140] sm:$0xff]
          %v1930 = vld [vmem:[#allocation2 + $0x148] sm:$0xff]
          %v1931 = vld [vmem:[#allocation2 + $0x150] sm:$0xff]
          %v1932 = vld [vmem:[#allocation2 + $0x158] sm:$0xff]
          %v1933 = vld [vmem:[#allocation2 + $0x160] sm:$0xff]
          %v1934 = vld [vmem:[#allocation2 + $0x168] sm:$0xff]
          %v1935 = vld [vmem:[#allocation2 + $0x170] sm:$0xff]
          %v1936 = vld [vmem:[#allocation2 + $0x178] sm:$0xff]
          %v1937 = vld [vmem:[#allocation2 + $0x180] sm:$0xff]
          %v1938 = vld [vmem:[#allocation2 + $0x188] sm:$0xff]
          %v1939 = vld [vmem:[#allocation2 + $0x190] sm:$0xff]
          %v1940 = vld [vmem:[#allocation2 + $0x198] sm:$0xff]
          %v1941 = vld [vmem:[#allocation2 + $0x1a0] sm:$0xff]
          %v1942 = vld [vmem:[#allocation2 + $0x1a8] sm:$0xff]
          %v1943 = vld [vmem:[#allocation2 + $0x1b0] sm:$0xff]
          %v1944 = vld [vmem:[#allocation2 + $0x1b8] sm:$0xff]
          %v1945 = vld [vmem:[#allocation2 + $0x1c0] sm:$0xff]
          %v1946 = vld [vmem:[#allocation2 + $0x1c8] sm:$0xff]
          %v1947 = vld [vmem:[#allocation2 + $0x1d0] sm:$0xff]
          %v1948 = vld [vmem:[#allocation2 + $0x1d8] sm:$0xff]
          %v1949 = vld [vmem:[#allocation2 + $0x1e0] sm:$0xff]
          %v1950 = vld [vmem:[#allocation2 + $0x1e8] sm:$0xff]
          %v1951 = vld [vmem:[#allocation2 + $0x1f0] sm:$0xff]
          %v1952 = vld [vmem:[#allocation2 + $0x1f8] sm:$0xff]
          %v1953 = vld [vmem:[%s2] sm:$0x1]
          %v1955 = vlaneseq
          %v1956 = vshrl.u32 %v1955, 7
          %v1957 = vsub.s32 0, %v1956
          %v1958 = vrot.slane %v1953, %v1957
          %v1960 = vadd.f32 %v1889, %v1958
          %v1961 = vadd.f32 %v1890, %v1958
          %v1962 = vadd.f32 %v1891, %v1958
          %v1963 = vadd.f32 %v1892, %v1958
          %v1964 = vadd.f32 %v1893, %v1958
          %v1965 = vadd.f32 %v1894, %v1958
          %v1966 = vadd.f32 %v1895, %v1958
          %v1967 = vadd.f32 %v1896, %v1958
          %v1968 = vadd.f32 %v1897, %v1958
          %v1969 = vadd.f32 %v1898, %v1958
          %v1970 = vadd.f32 %v1899, %v1958
          %v1971 = vadd.f32 %v1900, %v1958
          %v1972 = vadd.f32 %v1901, %v1958
          %v1973 = vadd.f32 %v1902, %v1958
          %v1974 = vadd.f32 %v1903, %v1958
          %v1975 = vadd.f32 %v1904, %v1958
          %v1976 = vadd.f32 %v1905, %v1958
          %v1977 = vadd.f32 %v1906, %v1958
          %v1978 = vadd.f32 %v1907, %v1958
          %v1979 = vadd.f32 %v1908, %v1958
          %v1980 = vadd.f32 %v1909, %v1958
          %v1981 = vadd.f32 %v1910, %v1958
          %v1982 = vadd.f32 %v1911, %v1958
          %v1983 = vadd.f32 %v1912, %v1958
          %v1984 = vadd.f32 %v1913, %v1958
          %v1985 = vadd.f32 %v1914, %v1958
          %v1986 = vadd.f32 %v1915, %v1958
          %v1987 = vadd.f32 %v1916, %v1958
          %v1988 = vadd.f32 %v1917, %v1958
          %v1989 = vadd.f32 %v1918, %v1958
          %v1990 = vadd.f32 %v1919, %v1958
          %v1991 = vadd.f32 %v1920, %v1958
          %v1992 = vadd.f32 %v1921, %v1958
          %v1993 = vadd.f32 %v1922, %v1958
          %v1994 = vadd.f32 %v1923, %v1958
          %v1995 = vadd.f32 %v1924, %v1958
          %v1996 = vadd.f32 %v1925, %v1958
          %v1997 = vadd.f32 %v1926, %v1958
          %v1998 = vadd.f32 %v1927, %v1958
          %v1999 = vadd.f32 %v1928, %v1958
          %v2000 = vadd.f32 %v1929, %v1958
          %v2001 = vadd.f32 %v1930, %v1958
          %v2002 = vadd.f32 %v1931, %v1958
          %v2003 = vadd.f32 %v1932, %v1958
          %v2004 = vadd.f32 %v1933, %v1958
          %v2005 = vadd.f32 %v1934, %v1958
          %v2006 = vadd.f32 %v1935, %v1958
          %v2007 = vadd.f32 %v1936, %v1958
          %v2008 = vadd.f32 %v1937, %v1958
          %v2009 = vadd.f32 %v1938, %v1958
          %v2010 = vadd.f32 %v1939, %v1958
          %v2011 = vadd.f32 %v1940, %v1958
          %v2012 = vadd.f32 %v1941, %v1958
          %v2013 = vadd.f32 %v1942, %v1958
          %v2014 = vadd.f32 %v1943, %v1958
          %v2015 = vadd.f32 %v1944, %v1958
          %v2016 = vadd.f32 %v1945, %v1958
          %v2017 = vadd.f32 %v1946, %v1958
          %v2018 = vadd.f32 %v1947, %v1958
          %v2019 = vadd.f32 %v1948, %v1958
          %v2020 = vadd.f32 %v1949, %v1958
          %v2021 = vadd.f32 %v1950, %v1958
          %v2022 = vadd.f32 %v1951, %v1958
          %v2023 = vadd.f32 %v1952, %v1958
          %v2024 = vmax.f32 %v1960, 0.0
          %v2025 = vmax.f32 %v1961, 0.0
          %v2026 = vmax.f32 %v1962, 0.0
          %v2027 = vmax.f32 %v1963, 0.0
          %v2028 = vmax.f32 %v1964, 0.0
          %v2029 = vmax.f32 %v1965, 0.0
          %v2030 = vmax.f32 %v1966, 0.0
          %v2031 = vmax.f32 %v1967, 0.0
          %v2032 = vmax.f32 %v1968, 0.0
          %v2033 = vmax.f32 %v1969, 0.0
          %v2034 = vmax.f32 %v1970, 0.0
          %v2035 = vmax.f32 %v1971, 0.0
          %v2036 = vmax.f32 %v1972, 0.0
          %v2037 = vmax.f32 %v1973, 0.0
          %v2038 = vmax.f32 %v1974, 0.0
          %v2039 = vmax.f32 %v1975, 0.0
          %v2040 = vmax.f32 %v1976, 0.0
          %v2041 = vmax.f32 %v1977, 0.0
          %v2042 = vmax.f32 %v1978, 0.0
          %v2043 = vmax.f32 %v1979, 0.0
          %v2044 = vmax.f32 %v1980, 0.0
          %v2045 = vmax.f32 %v1981, 0.0
          %v2046 = vmax.f32 %v1982, 0.0
          %v2047 = vmax.f32 %v1983, 0.0
          %v2048 = vmax.f32 %v1984, 0.0
          %v2049 = vmax.f32 %v1985, 0.0
          %v2050 = vmax.f32 %v1986, 0.0
          %v2051 = vmax.f32 %v1987, 0.0
          %v2052 = vmax.f32 %v1988, 0.0
          %v2053 = vmax.f32 %v1989, 0.0
          %v2054 = vmax.f32 %v1990, 0.0
          %v2055 = vmax.f32 %v1991, 0.0
          %v2056 = vmax.f32 %v1992, 0.0
          %v2057 = vmax.f32 %v1993, 0.0
          %v2058 = vmax.f32 %v1994, 0.0
          %v2059 = vmax.f32 %v1995, 0.0
          %v2060 = vmax.f32 %v1996, 0.0
          %v2061 = vmax.f32 %v1997, 0.0
          %v2062 = vmax.f32 %v1998, 0.0
          %v2063 = vmax.f32 %v1999, 0.0
          %v2064 = vmax.f32 %v2000, 0.0
          %v2065 = vmax.f32 %v2001, 0.0
          %v2066 = vmax.f32 %v2002, 0.0
          %v2067 = vmax.f32 %v2003, 0.0
          %v2068 = vmax.f32 %v2004, 0.0
          %v2069 = vmax.f32 %v2005, 0.0
          %v2070 = vmax.f32 %v2006, 0.0
          %v2071 = vmax.f32 %v2007, 0.0
          %v2072 = vmax.f32 %v2008, 0.0
          %v2073 = vmax.f32 %v2009, 0.0
          %v2074 = vmax.f32 %v2010, 0.0
          %v2075 = vmax.f32 %v2011, 0.0
          %v2076 = vmax.f32 %v2012, 0.0
          %v2077 = vmax.f32 %v2013, 0.0
          %v2078 = vmax.f32 %v2014, 0.0
          %v2079 = vmax.f32 %v2015, 0.0
          %v2080 = vmax.f32 %v2016, 0.0
          %v2081 = vmax.f32 %v2017, 0.0
          %v2082 = vmax.f32 %v2018, 0.0
          %v2083 = vmax.f32 %v2019, 0.0
          %v2084 = vmax.f32 %v2020, 0.0
          %v2085 = vmax.f32 %v2021, 0.0
          %v2086 = vmax.f32 %v2022, 0.0
          %v2087 = vmax.f32 %v2023, 0.0
          %2088 = vst [vmem:[%s613] sm:$0xff] %v2024
          %2089 = vst [vmem:[%s613 + $0x8] sm:$0xff] %v2025
          %2090 = vst [vmem:[%s613 + $0x10] sm:$0xff] %v2026
          %2091 = vst [vmem:[%s613 + $0x18] sm:$0xff] %v2027
          %2092 = vst [vmem:[%s613 + $0x20] sm:$0xff] %v2028
          %2093 = vst [vmem:[%s613 + $0x28] sm:$0xff] %v2029
          %2094 = vst [vmem:[%s613 + $0x30] sm:$0xff] %v2030
          %2095 = vst [vmem:[%s613 + $0x38] sm:$0xff] %v2031
          %2096 = vst [vmem:[%s613 + $0x40] sm:$0xff] %v2032
          %2097 = vst [vmem:[%s613 + $0x48] sm:$0xff] %v2033
          %2098 = vst [vmem:[%s613 + $0x50] sm:$0xff] %v2034
          %2099 = vst [vmem:[%s613 + $0x58] sm:$0xff] %v2035
          %2100 = vst [vmem:[%s613 + $0x60] sm:$0xff] %v2036
          %2101 = vst [vmem:[%s613 + $0x68] sm:$0xff] %v2037
          %2102 = vst [vmem:[%s613 + $0x70] sm:$0xff] %v2038
          %2103 = vst [vmem:[%s613 + $0x78] sm:$0xff] %v2039
          %2104 = vst [vmem:[%s613 + $0x80] sm:$0xff] %v2040
          %2105 = vst [vmem:[%s613 + $0x88] sm:$0xff] %v2041
          %2106 = vst [vmem:[%s613 + $0x90] sm:$0xff] %v2042
          %2107 = vst [vmem:[%s613 + $0x98] sm:$0xff] %v2043
          %2108 = vst [vmem:[%s613 + $0xa0] sm:$0xff] %v2044
          %2109 = vst [vmem:[%s613 + $0xa8] sm:$0xff] %v2045
          %2110 = vst [vmem:[%s613 + $0xb0] sm:$0xff] %v2046
          %2111 = vst [vmem:[%s613 + $0xb8] sm:$0xff] %v2047
          %2112 = vst [vmem:[%s613 + $0xc0] sm:$0xff] %v2048
          %2113 = vst [vmem:[%s613 + $0xc8] sm:$0xff] %v2049
          %2114 = vst [vmem:[%s613 + $0xd0] sm:$0xff] %v2050
          %2115 = vst [vmem:[%s613 + $0xd8] sm:$0xff] %v2051
          %2116 = vst [vmem:[%s613 + $0xe0] sm:$0xff] %v2052
          %2117 = vst [vmem:[%s613 + $0xe8] sm:$0xff] %v2053
          %2118 = vst [vmem:[%s613 + $0xf0] sm:$0xff] %v2054
          %2119 = vst [vmem:[%s613 + $0xf8] sm:$0xff] %v2055
          %2120 = vst [vmem:[%s613 + $0x100] sm:$0xff] %v2056
          %2121 = vst [vmem:[%s613 + $0x108] sm:$0xff] %v2057
          %2122 = vst [vmem:[%s613 + $0x110] sm:$0xff] %v2058
          %2123 = vst [vmem:[%s613 + $0x118] sm:$0xff] %v2059
          %2124 = vst [vmem:[%s613 + $0x120] sm:$0xff] %v2060
          %2125 = vst [vmem:[%s613 + $0x128] sm:$0xff] %v2061
          %2126 = vst [vmem:[%s613 + $0x130] sm:$0xff] %v2062
          %2127 = vst [vmem:[%s613 + $0x138] sm:$0xff] %v2063
          %2128 = vst [vmem:[%s613 + $0x140] sm:$0xff] %v2064
          %2129 = vst [vmem:[%s613 + $0x148] sm:$0xff] %v2065
          %2130 = vst [vmem:[%s613 + $0x150] sm:$0xff] %v2066
          %2131 = vst [vmem:[%s613 + $0x158] sm:$0xff] %v2067
          %2132 = vst [vmem:[%s613 + $0x160] sm:$0xff] %v2068
          %2133 = vst [vmem:[%s613 + $0x168] sm:$0xff] %v2069
          %2134 = vst [vmem:[%s613 + $0x170] sm:$0xff] %v2070
          %2135 = vst [vmem:[%s613 + $0x178] sm:$0xff] %v2071
          %2136 = vst [vmem:[%s613 + $0x180] sm:$0xff] %v2072
          %2137 = vst [vmem:[%s613 + $0x188] sm:$0xff] %v2073
          %2138 = vst [vmem:[%s613 + $0x190] sm:$0xff] %v2074
          %2139 = vst [vmem:[%s613 + $0x198] sm:$0xff] %v2075
          %2140 = vst [vmem:[%s613 + $0x1a0] sm:$0xff] %v2076
          %2141 = vst [vmem:[%s613 + $0x1a8] sm:$0xff] %v2077
          %2142 = vst [vmem:[%s613 + $0x1b0] sm:$0xff] %v2078
          %2143 = vst [vmem:[%s613 + $0x1b8] sm:$0xff] %v2079
          %2144 = vst [vmem:[%s613 + $0x1c0] sm:$0xff] %v2080
          %2145 = vst [vmem:[%s613 + $0x1c8] sm:$0xff] %v2081
          %2146 = vst [vmem:[%s613 + $0x1d0] sm:$0xff] %v2082
          %2147 = vst [vmem:[%s613 + $0x1d8] sm:$0xff] %v2083
          %2148 = vst [vmem:[%s613 + $0x1e0] sm:$0xff] %v2084
          %2149 = vst [vmem:[%s613 + $0x1e8] sm:$0xff] %v2085
          %2150 = vst [vmem:[%s613 + $0x1f0] sm:$0xff] %v2086
          %2151 = vst [vmem:[%s613 + $0x1f8] sm:$0xff] %v2087
        $region63: #{_lambda_.6} parent=50 // pred_fallthru
          _
        %s2152 = smul.u32 64, %s18
        %p2153 = scmp.lt.s32.totalorder %s2152, 255
        %s2154 = scalar_select %p2153, %s2152, 255
        %s2155 = smul.addr %s2154, 8
        %s2156 = scalar_lea.vmem %s3, %s2155
        // Predicated region
        $region64: #{_lambda_.6} parent=50 // pred_check
          %p2157 = pneg %p119
        $region65: #{_lambda_.6} parent=50 // pred_check_branch
          %2159 = sbr.rel (%p2157) target = $region67
        $region66: #{_lambda_.6} parent=50 // pred_region
          %s2160 = smul.u32 64, %s18
        $region67: #{_lambda_.6} parent=50 // pred_fallthru
          _
      $region51: #{_lambda_.6} parent=5 // pred_fallthru
        _
      %p2161 = scmp.le.s32.totalorder 2, %s9
      // Predicated region
      $region68: #{_lambda_.6} parent=5 // pred_check
        %p2162 = pneg %p2161
      $region69: #{_lambda_.6} parent=5 // pred_check_branch
        %2164 = sbr.rel (%p2162) target = $region71
      $region70: #{_lambda_.6} parent=5 // pred_region
        %s2165 = ssub.s32 %s9, 2
        // Predicated region
        $region72: #{_lambda_.6} parent=70 // pred_check
          %p2166 = pneg %p125
        $region73: #{_lambda_.6} parent=70 // pred_check_branch
          %2168 = sbr.rel (%p2166) target = $region75
        $region74: #{_lambda_.6} parent=70 // pred_region
          %s2169 = smul.u32 64, %s20
          %p2170 = scmp.lt.s32.totalorder %s2169, 255
          %s2171 = scalar_select %p2170, %s2169, 255
          %s2172 = smul.addr %s2171, 8
          %s2173 = scalar_lea.vmem %s3, %s2172
        $region75: #{_lambda_.6} parent=70 // pred_fallthru
          _
      $region71: #{_lambda_.6} parent=5 // pred_fallthru
        _
    $region6: #{_lambda_.6} parent=1 // loop_footer
      %s13 = sadd.s32 1, %s9
    $region7: #{_lambda_.6} parent=1 // loop_footer_branch
      %8 = sbr.rel target = $region3
    $region8: #{_lambda_.6} parent=1 // loop_exit
      _

// kernel: _lambda_.7
$region0: #{_lambda_.7}
  #allocation0 [shape = 'u32[]', space=smem, size = 0x4, offset = 0x4, fixed_abs, tag = 'smem constant byte address 0x4 - core index']
  #allocation1 [shape = 'u32[144,128]{1,0:T(1,128)}', space=vmem, size = 0x12000, scoped, tag = 'internal scratch']
  %s0 = inlined_call_operand.vmem [shape: f32[2048,1152], index: 0, kind: input, shape index: {}]
  %s1 = inlined_call_operand.vmem [shape: f32[1152,128], index: 1, kind: input, shape index: {}]
  %s2 = inlined_call_operand.vmem [shape: f32[1,128], index: 2, kind: input, shape index: {}]
  %s3 = inlined_call_operand.vmem [shape: f32[2048,128], index: 3, kind: input, shape index: {}]
  %s4 = inlined_call_operand.vmem [shape: f32[4,2,128], index: 4, kind: output, shape index: {}]
  %s5 = sld [smem:[#allocation0]]
  $region49: #{_lambda_.7} parent=0
    _
  %s7 = ssub.s32 1, %s5
  %s8 = scalar_select 0, %s7, %s5
  loop: start=0, step=1, limit=6
  $region2: #{_lambda_.7} parent=0 // loop_pre_header
    _
  $region3: #{_lambda_.7} parent=0 // loop_header
    %s10 = sphi 0, %s14
    %p11 = scmp.ge.s32.totalorder %s10, 6
    %s20 = sphi 0, %s22
    %s23 = sphi 0, %s20
    %s24 = sphi 0, %s23
    %s40 = sphi 0, %s24
    %s44 = sphi 0, %s44
    %s46 = sphi 0, %s44
    %s47 = sphi 0, %s46
    %s61 = sphi 0, %s47
    %s65 = sphi 0, %s65
    %s67 = sphi 0, %s65
    %s68 = sphi 0, %s67
    %s82 = sphi 0, %s68
    %s88 = sphi 0, %s90
    %s91 = sphi 0, %s88
    %s92 = sphi 0, %s91
    %s108 = sphi 0, %s92
    %s114 = sphi 0, %s116
    %s117 = sphi 0, %s114
    %s118 = sphi 0, %s117
    %s134 = sphi 0, %s118
  $region4: #{_lambda_.7} parent=0 // loop_header_branch
    %13 = sbr.rel (%p11) target = $region8
  $region5: #{_lambda_.7} parent=0 // loop_body
    %s15 = ssub.s32 %s10, 1
    %s16 = ssub.s32 %s10, 2
    %s17 = sadd.s32 %s10, 1
    %s18 = ssub.s32 %s10, %s17
    %p19 = scmp.eq.s32.totalorder %s18, 0
    %s21 = sadd.s32 %s20, 1
    %s22 = scalar_select %p19, %s20, %s21
    %p25 = pneg %p19
    %p26 = scmp.eq.s32.totalorder %s10, 3
    %p27 = por %p25, %p26
    %p28 = scmp.ne.s32.totalorder %s20, %s23
    %p29 = scmp.eq.s32.totalorder %s10, 0
    %p30 = por %p28, %p29
    %p31 = scmp.ne.s32.totalorder %s20, %s23
    %p32 = scmp.eq.s32.totalorder %s15, 3
    %p33 = por %p31, %p32
    %p34 = scmp.ne.s32.totalorder %s23, %s24
    %p35 = scmp.eq.s32.totalorder %s15, 0
    %p36 = por %p34, %p35
    %p37 = scmp.ne.s32.totalorder %s23, %s24
    %p38 = scmp.eq.s32.totalorder %s16, 3
    %p39 = por %p37, %p38
    %p41 = scmp.ne.s32.totalorder %s24, %s40
    %p42 = scmp.eq.s32.totalorder %s16, 0
    %p43 = por %p41, %p42
    %s45 = sadd.s32 %s44, 1
    %p48 = scmp.eq.s32.totalorder %s10, 3
    %p49 = scmp.ne.s32.totalorder %s44, %s46
    %p50 = scmp.eq.s32.totalorder %s10, 0
    %p51 = por %p49, %p50
    %p52 = scmp.ne.s32.totalorder %s44, %s46
    %p53 = scmp.eq.s32.totalorder %s15, 3
    %p54 = por %p52, %p53
    %p55 = scmp.ne.s32.totalorder %s46, %s47
    %p56 = scmp.eq.s32.totalorder %s15, 0
    %p57 = por %p55, %p56
    %p58 = scmp.ne.s32.totalorder %s46, %s47
    %p59 = scmp.eq.s32.totalorder %s16, 3
    %p60 = por %p58, %p59
    %p62 = scmp.ne.s32.totalorder %s47, %s61
    %p63 = scmp.eq.s32.totalorder %s16, 0
    %p64 = por %p62, %p63
    %s66 = sadd.s32 %s65, 1
    %p69 = scmp.eq.s32.totalorder %s10, 3
    %p70 = scmp.ne.s32.totalorder %s65, %s67
    %p71 = scmp.eq.s32.totalorder %s10, 0
    %p72 = por %p70, %p71
    %p73 = scmp.ne.s32.totalorder %s65, %s67
    %p74 = scmp.eq.s32.totalorder %s15, 3
    %p75 = por %p73, %p74
    %p76 = scmp.ne.s32.totalorder %s67, %s68
    %p77 = scmp.eq.s32.totalorder %s15, 0
    %p78 = por %p76, %p77
    %p79 = scmp.ne.s32.totalorder %s67, %s68
    %p80 = scmp.eq.s32.totalorder %s16, 3
    %p81 = por %p79, %p80
    %p83 = scmp.ne.s32.totalorder %s68, %s82
    %p84 = scmp.eq.s32.totalorder %s16, 0
    %p85 = por %p83, %p84
    %s86 = ssub.s32 %s10, %s17
    %p87 = scmp.eq.s32.totalorder %s86, 0
    %s89 = sadd.s32 %s88, 1
    %s90 = scalar_select %p87, %s88, %s89
    %p93 = pneg %p87
    %p94 = scmp.eq.s32.totalorder %s10, 3
    %p95 = por %p93, %p94
    %p96 = scmp.ne.s32.totalorder %s88, %s91
    %p97 = scmp.eq.s32.totalorder %s10, 0
    %p98 = por %p96, %p97
    %p99 = scmp.ne.s32.totalorder %s88, %s91
    %p100 = scmp.eq.s32.totalorder %s15, 3
    %p101 = por %p99, %p100
    %p102 = scmp.ne.s32.totalorder %s91, %s92
    %p103 = scmp.eq.s32.totalorder %s15, 0
    %p104 = por %p102, %p103
    %p105 = scmp.ne.s32.totalorder %s91, %s92
    %p106 = scmp.eq.s32.totalorder %s16, 3
    %p107 = por %p105, %p106
    %p109 = scmp.ne.s32.totalorder %s92, %s108
    %p110 = scmp.eq.s32.totalorder %s16, 0
    %p111 = por %p109, %p110
    %s112 = ssub.s32 %s10, %s17
    %p113 = scmp.eq.s32.totalorder %s112, 0
    %s115 = sadd.s32 %s114, 1
    %s116 = scalar_select %p113, %s114, %s115
    %p119 = pneg %p113
    %p120 = scmp.eq.s32.totalorder %s10, 3
    %p121 = por %p119, %p120
    %p122 = scmp.ne.s32.totalorder %s114, %s117
    %p123 = scmp.eq.s32.totalorder %s10, 0
    %p124 = por %p122, %p123
    %p125 = scmp.ne.s32.totalorder %s114, %s117
    %p126 = scmp.eq.s32.totalorder %s15, 3
    %p127 = por %p125, %p126
    %p128 = scmp.ne.s32.totalorder %s117, %s118
    %p129 = scmp.eq.s32.totalorder %s15, 0
    %p130 = por %p128, %p129
    %p131 = scmp.ne.s32.totalorder %s117, %s118
    %p132 = scmp.eq.s32.totalorder %s16, 3
    %p133 = por %p131, %p132
    %p135 = scmp.ne.s32.totalorder %s118, %s134
    %p136 = scmp.eq.s32.totalorder %s16, 0
    %p137 = por %p135, %p136
    %p138 = scmp.le.s32.totalorder 1, %s10
    %p139 = scmp.lt.s32.totalorder %s10, 5
    %p140 = pnand %p138, %p139
    %p141 = pneg %p140
    // Predicated region
    $region9: #{_lambda_.7} parent=5 // pred_check
      _
    $region10: #{_lambda_.7} parent=5 // pred_check_branch
      %143 = sbr.rel (%p140) target = $region12
    $region11: #{_lambda_.7} parent=5 // pred_region
      %s144 = ssub.s32 %s10, 1
      // Predicated region
      $region13: #{_lambda_.7} parent=11 // pred_check
        %p145 = pneg %p57
      $region14: #{_lambda_.7} parent=11 // pred_check_branch
        %147 = sbr.rel (%p145) target = $region16
      $region15: #{_lambda_.7} parent=11 // pred_region
        _
      $region16: #{_lambda_.7} parent=11 // pred_fallthru
        _
      // Predicated region
      $region17: #{_lambda_.7} parent=11 // pred_check
        %p148 = pneg %p78
      $region18: #{_lambda_.7} parent=11 // pred_check_branch
        %150 = sbr.rel (%p148) target = $region20
      $region19: #{_lambda_.7} parent=11 // pred_region
        _
      $region20: #{_lambda_.7} parent=11 // pred_fallthru
        _
    $region12: #{_lambda_.7} parent=5 // pred_fallthru
      _
    %p151 = scmp.lt.s32.totalorder %s10, 4
    // Predicated region
    $region21: #{_lambda_.7} parent=5 // pred_check
      %p152 = pneg %p151
    $region22: #{_lambda_.7} parent=5 // pred_check_branch
      %154 = sbr.rel (%p152) target = $region24
    $region23: #{_lambda_.7} parent=5 // pred_region
      // Predicated region
      $region25: #{_lambda_.7} parent=23 // pred_check
        %p155 = pneg %p30
      $region26: #{_lambda_.7} parent=23 // pred_check_branch
        %157 = sbr.rel (%p155) target = $region28
      $region27: #{_lambda_.7} parent=23 // pred_region
        %s158 = smul.u32 64, %s10
        %p159 = scmp.lt.s32.totalorder %s158, 255
        %s160 = scalar_select %p159, %s158, 255
        %s161 = smul.addr %s160, 9
        %s162 = smul.addr %s161, 8
        %s163 = scalar_lea.vmem %s0, %s162
        %s164 = smul.u32 64, %s10
      $region28: #{_lambda_.7} parent=23 // pred_fallthru
        _
      // Predicated region
      $region29: #{_lambda_.7} parent=23 // pred_check
        %p165 = pneg %p98
      $region30: #{_lambda_.7} parent=23 // pred_check_branch
        %167 = sbr.rel (%p165) target = $region32
      $region31: #{_lambda_.7} parent=23 // pred_region
        %s168 = smul.u32 64, %s10
        %p169 = scmp.lt.s32.totalorder %s168, 255
        %s170 = scalar_select %p169, %s168, 255
        %s171 = smul.addr %s170, 8
        %s172 = scalar_lea.vmem %s3, %s171
        %s173 = smul.u32 64, %s10
      $region32: #{_lambda_.7} parent=23 // pred_fallthru
        _
    $region24: #{_lambda_.7} parent=5 // pred_fallthru
      _
    %p174 = scmp.le.s32.totalorder 1, %s10
    %p175 = scmp.lt.s32.totalorder %s10, 5
    %p176 = pnand %p174, %p175
    %p177 = pneg %p176
    // Predicated region
    $region33: #{_lambda_.7} parent=5 // pred_check
      _
    $region34: #{_lambda_.7} parent=5 // pred_check_branch
      %179 = sbr.rel (%p176) target = $region36
    $region35: #{_lambda_.7} parent=5 // pred_region
      %s180 = ssub.s32 %s10, 1
      %s181 = smul.u32 64, %s15
      %p182 = scmp.lt.s32.totalorder %s181, 255
      %s183 = scalar_select %p182, %s181, 255
      %s184 = smul.addr %s183, 9
      %s185 = smul.addr %s184, 8
      %s186 = scalar_lea.vmem %s0, %s185
      %p187 = pneg %p36
      %p188 = pneg %p33
      %p189 = pneg %p57
      %p190 = pneg %p54
      %p191 = pneg %p78
      %p192 = pneg %p75
      %s193 = smul.u32 64, %s15
      %p194 = scmp.lt.s32.totalorder %s193, 255
      %s195 = scalar_select %p194, %s193, 255
      %s196 = smul.addr %s195, 8
      %s197 = scalar_lea.vmem %s3, %s196
      %p198 = pneg %p104
      %p199 = pneg %p101
      %p200 = pneg %p130
      %p201 = pneg %p127
      %p202 = scmp.lt.s32.totalorder %s15, 3
      %s203 = scalar_select %p202, %s15, 3
      %s204 = smul.addr %s203, 2
      %s205 = scalar_lea.vmem %s4, %s204
      %s206 = smul.u32 64, %s15
      %p207 = scmp.lt.s32.totalorder %s206, 255
      %s208 = scalar_select %p207, %s206, 255
      %s209 = smul.addr %s208, 9
      %s210 = smul.addr %s209, 8
      %s211 = scalar_lea.vmem %s0, %s210
      %s212 = smul.u32 64, %s15
      %s213 = smul.u32 64, %s15
      %p214 = scmp.lt.s32.totalorder %s213, 255
      %s215 = scalar_select %p214, %s213, 255
      %s216 = smul.addr %s215, 8
      %s217 = scalar_lea.vmem %s3, %s216
      %s218 = smul.u32 64, %s15
      %p219 = scmp.lt.s32.totalorder %s15, 3
      %s220 = scalar_select %p219, %s15, 3
      %s221 = smul.addr %s220, 2
      %s222 = scalar_lea.vmem %s4, %s221
      %v223 = vld [vmem:[%s211] sm:$0xff]
      %v224 = vld [vmem:[%s211 + $0x8] sm:$0xff]
      %v225 = vld [vmem:[%s211 + $0x10] sm:$0xff]
      %v226 = vld [vmem:[%s211 + $0x18] sm:$0xff]
      %v227 = vld [vmem:[%s211 + $0x20] sm:$0xff]
      %v228 = vld [vmem:[%s211 + $0x28] sm:$0xff]
      %v229 = vld [vmem:[%s211 + $0x30] sm:$0xff]
      %v230 = vld [vmem:[%s211 + $0x38] sm:$0xff]
      %v231 = vld [vmem:[%s211 + $0x40] sm:$0xff]
      %v232 = vld [vmem:[%s211 + $0x48] sm:$0xff]
      %v233 = vld [vmem:[%s211 + $0x50] sm:$0xff]
      %v234 = vld [vmem:[%s211 + $0x58] sm:$0xff]
      %v235 = vld [vmem:[%s211 + $0x60] sm:$0xff]
      %v236 = vld [vmem:[%s211 + $0x68] sm:$0xff]
      %v237 = vld [vmem:[%s211 + $0x70] sm:$0xff]
      %v238 = vld [vmem:[%s211 + $0x78] sm:$0xff]
      %v239 = vld [vmem:[%s211 + $0x80] sm:$0xff]
      %v240 = vld [vmem:[%s211 + $0x88] sm:$0xff]
      %v241 = vld [vmem:[%s211 + $0x90] sm:$0xff]
      %v242 = vld [vmem:[%s211 + $0x98] sm:$0xff]
      %v243 = vld [vmem:[%s211 + $0xa0] sm:$0xff]
      %v244 = vld [vmem:[%s211 + $0xa8] sm:$0xff]
      %v245 = vld [vmem:[%s211 + $0xb0] sm:$0xff]
      %v246 = vld [vmem:[%s211 + $0xb8] sm:$0xff]
      %v247 = vld [vmem:[%s211 + $0xc0] sm:$0xff]
      %v248 = vld [vmem:[%s211 + $0xc8] sm:$0xff]
      %v249 = vld [vmem:[%s211 + $0xd0] sm:$0xff]
      %v250 = vld [vmem:[%s211 + $0xd8] sm:$0xff]
      %v251 = vld [vmem:[%s211 + $0xe0] sm:$0xff]
      %v252 = vld [vmem:[%s211 + $0xe8] sm:$0xff]
      %v253 = vld [vmem:[%s211 + $0xf0] sm:$0xff]
      %v254 = vld [vmem:[%s211 + $0xf8] sm:$0xff]
      %v255 = vld [vmem:[%s211 + $0x100] sm:$0xff]
      %v256 = vld [vmem:[%s211 + $0x108] sm:$0xff]
      %v257 = vld [vmem:[%s211 + $0x110] sm:$0xff]
      %v258 = vld [vmem:[%s211 + $0x118] sm:$0xff]
      %v259 = vld [vmem:[%s211 + $0x120] sm:$0xff]
      %v260 = vld [vmem:[%s211 + $0x128] sm:$0xff]
      %v261 = vld [vmem:[%s211 + $0x130] sm:$0xff]
      %v262 = vld [vmem:[%s211 + $0x138] sm:$0xff]
      %v263 = vld [vmem:[%s211 + $0x140] sm:$0xff]
      %v264 = vld [vmem:[%s211 + $0x148] sm:$0xff]
      %v265 = vld [vmem:[%s211 + $0x150] sm:$0xff]
      %v266 = vld [vmem:[%s211 + $0x158] sm:$0xff]
      %v267 = vld [vmem:[%s211 + $0x160] sm:$0xff]
      %v268 = vld [vmem:[%s211 + $0x168] sm:$0xff]
      %v269 = vld [vmem:[%s211 + $0x170] sm:$0xff]
      %v270 = vld [vmem:[%s211 + $0x178] sm:$0xff]
      %v271 = vld [vmem:[%s211 + $0x180] sm:$0xff]
      %v272 = vld [vmem:[%s211 + $0x188] sm:$0xff]
      %v273 = vld [vmem:[%s211 + $0x190] sm:$0xff]
      %v274 = vld [vmem:[%s211 + $0x198] sm:$0xff]
      %v275 = vld [vmem:[%s211 + $0x1a0] sm:$0xff]
      %v276 = vld [vmem:[%s211 + $0x1a8] sm:$0xff]
      %v277 = vld [vmem:[%s211 + $0x1b0] sm:$0xff]
      %v278 = vld [vmem:[%s211 + $0x1b8] sm:$0xff]
      %v279 = vld [vmem:[%s211 + $0x1c0] sm:$0xff]
      %v280 = vld [vmem:[%s211 + $0x1c8] sm:$0xff]
      %v281 = vld [vmem:[%s211 + $0x1d0] sm:$0xff]
      %v282 = vld [vmem:[%s211 + $0x1d8] sm:$0xff]
      %v283 = vld [vmem:[%s211 + $0x1e0] sm:$0xff]
      %v284 = vld [vmem:[%s211 + $0x1e8] sm:$0xff]
      %v285 = vld [vmem:[%s211 + $0x1f0] sm:$0xff]
      %v286 = vld [vmem:[%s211 + $0x1f8] sm:$0xff]
      %v287 = vld [vmem:[%s211 + $0x200] sm:$0xff]
      %v288 = vld [vmem:[%s211 + $0x208] sm:$0xff]
      %v289 = vld [vmem:[%s211 + $0x210] sm:$0xff]
      %v290 = vld [vmem:[%s211 + $0x218] sm:$0xff]
      %v291 = vld [vmem:[%s211 + $0x220] sm:$0xff]
      %v292 = vld [vmem:[%s211 + $0x228] sm:$0xff]
      %v293 = vld [vmem:[%s211 + $0x230] sm:$0xff]
      %v294 = vld [vmem:[%s211 + $0x238] sm:$0xff]
      %v295 = vld [vmem:[%s211 + $0x240] sm:$0xff]
      %v296 = vld [vmem:[%s211 + $0x248] sm:$0xff]
      %v297 = vld [vmem:[%s211 + $0x250] sm:$0xff]
      %v298 = vld [vmem:[%s211 + $0x258] sm:$0xff]
      %v299 = vld [vmem:[%s211 + $0x260] sm:$0xff]
      %v300 = vld [vmem:[%s211 + $0x268] sm:$0xff]
      %v301 = vld [vmem:[%s211 + $0x270] sm:$0xff]
      %v302 = vld [vmem:[%s211 + $0x278] sm:$0xff]
      %v303 = vld [vmem:[%s211 + $0x280] sm:$0xff]
      %v304 = vld [vmem:[%s211 + $0x288] sm:$0xff]
      %v305 = vld [vmem:[%s211 + $0x290] sm:$0xff]
      %v306 = vld [vmem:[%s211 + $0x298] sm:$0xff]
      %v307 = vld [vmem:[%s211 + $0x2a0] sm:$0xff]
      %v308 = vld [vmem:[%s211 + $0x2a8] sm:$0xff]
      %v309 = vld [vmem:[%s211 + $0x2b0] sm:$0xff]
      %v310 = vld [vmem:[%s211 + $0x2b8] sm:$0xff]
      %v311 = vld [vmem:[%s211 + $0x2c0] sm:$0xff]
      %v312 = vld [vmem:[%s211 + $0x2c8] sm:$0xff]
      %v313 = vld [vmem:[%s211 + $0x2d0] sm:$0xff]
      %v314 = vld [vmem:[%s211 + $0x2d8] sm:$0xff]
      %v315 = vld [vmem:[%s211 + $0x2e0] sm:$0xff]
      %v316 = vld [vmem:[%s211 + $0x2e8] sm:$0xff]
      %v317 = vld [vmem:[%s211 + $0x2f0] sm:$0xff]
      %v318 = vld [vmem:[%s211 + $0x2f8] sm:$0xff]
      %v319 = vld [vmem:[%s211 + $0x300] sm:$0xff]
      %v320 = vld [vmem:[%s211 + $0x308] sm:$0xff]
      %v321 = vld [vmem:[%s211 + $0x310] sm:$0xff]
      %v322 = vld [vmem:[%s211 + $0x318] sm:$0xff]
      %v323 = vld [vmem:[%s211 + $0x320] sm:$0xff]
      %v324 = vld [vmem:[%s211 + $0x328] sm:$0xff]
      %v325 = vld [vmem:[%s211 + $0x330] sm:$0xff]
      %v326 = vld [vmem:[%s211 + $0x338] sm:$0xff]
      %v327 = vld [vmem:[%s211 + $0x340] sm:$0xff]
      %v328 = vld [vmem:[%s211 + $0x348] sm:$0xff]
      %v329 = vld [vmem:[%s211 + $0x350] sm:$0xff]
      %v330 = vld [vmem:[%s211 + $0x358] sm:$0xff]
      %v331 = vld [vmem:[%s211 + $0x360] sm:$0xff]
      %v332 = vld [vmem:[%s211 + $0x368] sm:$0xff]
      %v333 = vld [vmem:[%s211 + $0x370] sm:$0xff]
      %v334 = vld [vmem:[%s211 + $0x378] sm:$0xff]
      %v335 = vld [vmem:[%s211 + $0x380] sm:$0xff]
      %v336 = vld [vmem:[%s211 + $0x388] sm:$0xff]
      %v337 = vld [vmem:[%s211 + $0x390] sm:$0xff]
      %v338 = vld [vmem:[%s211 + $0x398] sm:$0xff]
      %v339 = vld [vmem:[%s211 + $0x3a0] sm:$0xff]
      %v340 = vld [vmem:[%s211 + $0x3a8] sm:$0xff]
      %v341 = vld [vmem:[%s211 + $0x3b0] sm:$0xff]
      %v342 = vld [vmem:[%s211 + $0x3b8] sm:$0xff]
      %v343 = vld [vmem:[%s211 + $0x3c0] sm:$0xff]
      %v344 = vld [vmem:[%s211 + $0x3c8] sm:$0xff]
      %v345 = vld [vmem:[%s211 + $0x3d0] sm:$0xff]
      %v346 = vld [vmem:[%s211 + $0x3d8] sm:$0xff]
      %v347 = vld [vmem:[%s211 + $0x3e0] sm:$0xff]
      %v348 = vld [vmem:[%s211 + $0x3e8] sm:$0xff]
      %v349 = vld [vmem:[%s211 + $0x3f0] sm:$0xff]
      %v350 = vld [vmem:[%s211 + $0x3f8] sm:$0xff]
      %v351 = vld [vmem:[%s211 + $0x400] sm:$0xff]
      %v352 = vld [vmem:[%s211 + $0x408] sm:$0xff]
      %v353 = vld [vmem:[%s211 + $0x410] sm:$0xff]
      %v354 = vld [vmem:[%s211 + $0x418] sm:$0xff]
      %v355 = vld [vmem:[%s211 + $0x420] sm:$0xff]
      %v356 = vld [vmem:[%s211 + $0x428] sm:$0xff]
      %v357 = vld [vmem:[%s211 + $0x430] sm:$0xff]
      %v358 = vld [vmem:[%s211 + $0x438] sm:$0xff]
      %v359 = vld [vmem:[%s211 + $0x440] sm:$0xff]
      %v360 = vld [vmem:[%s211 + $0x448] sm:$0xff]
      %v361 = vld [vmem:[%s211 + $0x450] sm:$0xff]
      %v362 = vld [vmem:[%s211 + $0x458] sm:$0xff]
      %v363 = vld [vmem:[%s211 + $0x460] sm:$0xff]
      %v364 = vld [vmem:[%s211 + $0x468] sm:$0xff]
      %v365 = vld [vmem:[%s211 + $0x470] sm:$0xff]
      %v366 = vld [vmem:[%s211 + $0x478] sm:$0xff]
      %v367 = vld [vmem:[%s211 + $0x480] sm:$0xff]
      %v368 = vld [vmem:[%s211 + $0x488] sm:$0xff]
      %v369 = vld [vmem:[%s211 + $0x490] sm:$0xff]
      %v370 = vld [vmem:[%s211 + $0x498] sm:$0xff]
      %v371 = vld [vmem:[%s211 + $0x4a0] sm:$0xff]
      %v372 = vld [vmem:[%s211 + $0x4a8] sm:$0xff]
      %v373 = vld [vmem:[%s211 + $0x4b0] sm:$0xff]
      %v374 = vld [vmem:[%s211 + $0x4b8] sm:$0xff]
      %v375 = vld [vmem:[%s211 + $0x4c0] sm:$0xff]
      %v376 = vld [vmem:[%s211 + $0x4c8] sm:$0xff]
      %v377 = vld [vmem:[%s211 + $0x4d0] sm:$0xff]
      %v378 = vld [vmem:[%s211 + $0x4d8] sm:$0xff]
      %v379 = vld [vmem:[%s211 + $0x4e0] sm:$0xff]
      %v380 = vld [vmem:[%s211 + $0x4e8] sm:$0xff]
      %v381 = vld [vmem:[%s211 + $0x4f0] sm:$0xff]
      %v382 = vld [vmem:[%s211 + $0x4f8] sm:$0xff]
      %v383 = vld [vmem:[%s211 + $0x500] sm:$0xff]
      %v384 = vld [vmem:[%s211 + $0x508] sm:$0xff]
      %v385 = vld [vmem:[%s211 + $0x510] sm:$0xff]
      %v386 = vld [vmem:[%s211 + $0x518] sm:$0xff]
      %v387 = vld [vmem:[%s211 + $0x520] sm:$0xff]
      %v388 = vld [vmem:[%s211 + $0x528] sm:$0xff]
      %v389 = vld [vmem:[%s211 + $0x530] sm:$0xff]
      %v390 = vld [vmem:[%s211 + $0x538] sm:$0xff]
      %v391 = vld [vmem:[%s211 + $0x540] sm:$0xff]
      %v392 = vld [vmem:[%s211 + $0x548] sm:$0xff]
      %v393 = vld [vmem:[%s211 + $0x550] sm:$0xff]
      %v394 = vld [vmem:[%s211 + $0x558] sm:$0xff]
      %v395 = vld [vmem:[%s211 + $0x560] sm:$0xff]
      %v396 = vld [vmem:[%s211 + $0x568] sm:$0xff]
      %v397 = vld [vmem:[%s211 + $0x570] sm:$0xff]
      %v398 = vld [vmem:[%s211 + $0x578] sm:$0xff]
      %v399 = vld [vmem:[%s211 + $0x580] sm:$0xff]
      %v400 = vld [vmem:[%s211 + $0x588] sm:$0xff]
      %v401 = vld [vmem:[%s211 + $0x590] sm:$0xff]
      %v402 = vld [vmem:[%s211 + $0x598] sm:$0xff]
      %v403 = vld [vmem:[%s211 + $0x5a0] sm:$0xff]
      %v404 = vld [vmem:[%s211 + $0x5a8] sm:$0xff]
      %v405 = vld [vmem:[%s211 + $0x5b0] sm:$0xff]
      %v406 = vld [vmem:[%s211 + $0x5b8] sm:$0xff]
      %v407 = vld [vmem:[%s211 + $0x5c0] sm:$0xff]
      %v408 = vld [vmem:[%s211 + $0x5c8] sm:$0xff]
      %v409 = vld [vmem:[%s211 + $0x5d0] sm:$0xff]
      %v410 = vld [vmem:[%s211 + $0x5d8] sm:$0xff]
      %v411 = vld [vmem:[%s211 + $0x5e0] sm:$0xff]
      %v412 = vld [vmem:[%s211 + $0x5e8] sm:$0xff]
      %v413 = vld [vmem:[%s211 + $0x5f0] sm:$0xff]
      %v414 = vld [vmem:[%s211 + $0x5f8] sm:$0xff]
      %v415 = vld [vmem:[%s211 + $0x600] sm:$0xff]
      %v416 = vld [vmem:[%s211 + $0x608] sm:$0xff]
      %v417 = vld [vmem:[%s211 + $0x610] sm:$0xff]
      %v418 = vld [vmem:[%s211 + $0x618] sm:$0xff]
      %v419 = vld [vmem:[%s211 + $0x620] sm:$0xff]
      %v420 = vld [vmem:[%s211 + $0x628] sm:$0xff]
      %v421 = vld [vmem:[%s211 + $0x630] sm:$0xff]
      %v422 = vld [vmem:[%s211 + $0x638] sm:$0xff]
      %v423 = vld [vmem:[%s211 + $0x640] sm:$0xff]
      %v424 = vld [vmem:[%s211 + $0x648] sm:$0xff]
      %v425 = vld [vmem:[%s211 + $0x650] sm:$0xff]
      %v426 = vld [vmem:[%s211 + $0x658] sm:$0xff]
      %v427 = vld [vmem:[%s211 + $0x660] sm:$0xff]
      %v428 = vld [vmem:[%s211 + $0x668] sm:$0xff]
      %v429 = vld [vmem:[%s211 + $0x670] sm:$0xff]
      %v430 = vld [vmem:[%s211 + $0x678] sm:$0xff]
      %v431 = vld [vmem:[%s211 + $0x680] sm:$0xff]
      %v432 = vld [vmem:[%s211 + $0x688] sm:$0xff]
      %v433 = vld [vmem:[%s211 + $0x690] sm:$0xff]
      %v434 = vld [vmem:[%s211 + $0x698] sm:$0xff]
      %v435 = vld [vmem:[%s211 + $0x6a0] sm:$0xff]
      %v436 = vld [vmem:[%s211 + $0x6a8] sm:$0xff]
      %v437 = vld [vmem:[%s211 + $0x6b0] sm:$0xff]
      %v438 = vld [vmem:[%s211 + $0x6b8] sm:$0xff]
      %v439 = vld [vmem:[%s211 + $0x6c0] sm:$0xff]
      %v440 = vld [vmem:[%s211 + $0x6c8] sm:$0xff]
      %v441 = vld [vmem:[%s211 + $0x6d0] sm:$0xff]
      %v442 = vld [vmem:[%s211 + $0x6d8] sm:$0xff]
      %v443 = vld [vmem:[%s211 + $0x6e0] sm:$0xff]
      %v444 = vld [vmem:[%s211 + $0x6e8] sm:$0xff]
      %v445 = vld [vmem:[%s211 + $0x6f0] sm:$0xff]
      %v446 = vld [vmem:[%s211 + $0x6f8] sm:$0xff]
      %v447 = vld [vmem:[%s211 + $0x700] sm:$0xff]
      %v448 = vld [vmem:[%s211 + $0x708] sm:$0xff]
      %v449 = vld [vmem:[%s211 + $0x710] sm:$0xff]
      %v450 = vld [vmem:[%s211 + $0x718] sm:$0xff]
      %v451 = vld [vmem:[%s211 + $0x720] sm:$0xff]
      %v452 = vld [vmem:[%s211 + $0x728] sm:$0xff]
      %v453 = vld [vmem:[%s211 + $0x730] sm:$0xff]
      %v454 = vld [vmem:[%s211 + $0x738] sm:$0xff]
      %v455 = vld [vmem:[%s211 + $0x740] sm:$0xff]
      %v456 = vld [vmem:[%s211 + $0x748] sm:$0xff]
      %v457 = vld [vmem:[%s211 + $0x750] sm:$0xff]
      %v458 = vld [vmem:[%s211 + $0x758] sm:$0xff]
      %v459 = vld [vmem:[%s211 + $0x760] sm:$0xff]
      %v460 = vld [vmem:[%s211 + $0x768] sm:$0xff]
      %v461 = vld [vmem:[%s211 + $0x770] sm:$0xff]
      %v462 = vld [vmem:[%s211 + $0x778] sm:$0xff]
      %v463 = vld [vmem:[%s211 + $0x780] sm:$0xff]
      %v464 = vld [vmem:[%s211 + $0x788] sm:$0xff]
      %v465 = vld [vmem:[%s211 + $0x790] sm:$0xff]
      %v466 = vld [vmem:[%s211 + $0x798] sm:$0xff]
      %v467 = vld [vmem:[%s211 + $0x7a0] sm:$0xff]
      %v468 = vld [vmem:[%s211 + $0x7a8] sm:$0xff]
      %v469 = vld [vmem:[%s211 + $0x7b0] sm:$0xff]
      %v470 = vld [vmem:[%s211 + $0x7b8] sm:$0xff]
      %v471 = vld [vmem:[%s211 + $0x7c0] sm:$0xff]
      %v472 = vld [vmem:[%s211 + $0x7c8] sm:$0xff]
      %v473 = vld [vmem:[%s211 + $0x7d0] sm:$0xff]
      %v474 = vld [vmem:[%s211 + $0x7d8] sm:$0xff]
      %v475 = vld [vmem:[%s211 + $0x7e0] sm:$0xff]
      %v476 = vld [vmem:[%s211 + $0x7e8] sm:$0xff]
      %v477 = vld [vmem:[%s211 + $0x7f0] sm:$0xff]
      %v478 = vld [vmem:[%s211 + $0x7f8] sm:$0xff]
      %v479 = vld [vmem:[%s211 + $0x800] sm:$0xff]
      %v480 = vld [vmem:[%s211 + $0x808] sm:$0xff]
      %v481 = vld [vmem:[%s211 + $0x810] sm:$0xff]
      %v482 = vld [vmem:[%s211 + $0x818] sm:$0xff]
      %v483 = vld [vmem:[%s211 + $0x820] sm:$0xff]
      %v484 = vld [vmem:[%s211 + $0x828] sm:$0xff]
      %v485 = vld [vmem:[%s211 + $0x830] sm:$0xff]
      %v486 = vld [vmem:[%s211 + $0x838] sm:$0xff]
      %v487 = vld [vmem:[%s211 + $0x840] sm:$0xff]
      %v488 = vld [vmem:[%s211 + $0x848] sm:$0xff]
      %v489 = vld [vmem:[%s211 + $0x850] sm:$0xff]
      %v490 = vld [vmem:[%s211 + $0x858] sm:$0xff]
      %v491 = vld [vmem:[%s211 + $0x860] sm:$0xff]
      %v492 = vld [vmem:[%s211 + $0x868] sm:$0xff]
      %v493 = vld [vmem:[%s211 + $0x870] sm:$0xff]
      %v494 = vld [vmem:[%s211 + $0x878] sm:$0xff]
      %v495 = vld [vmem:[%s211 + $0x880] sm:$0xff]
      %v496 = vld [vmem:[%s211 + $0x888] sm:$0xff]
      %v497 = vld [vmem:[%s211 + $0x890] sm:$0xff]
      %v498 = vld [vmem:[%s211 + $0x898] sm:$0xff]
      %v499 = vld [vmem:[%s211 + $0x8a0] sm:$0xff]
      %v500 = vld [vmem:[%s211 + $0x8a8] sm:$0xff]
      %v501 = vld [vmem:[%s211 + $0x8b0] sm:$0xff]
      %v502 = vld [vmem:[%s211 + $0x8b8] sm:$0xff]
      %v503 = vld [vmem:[%s211 + $0x8c0] sm:$0xff]
      %v504 = vld [vmem:[%s211 + $0x8c8] sm:$0xff]
      %v505 = vld [vmem:[%s211 + $0x8d0] sm:$0xff]
      %v506 = vld [vmem:[%s211 + $0x8d8] sm:$0xff]
      %v507 = vld [vmem:[%s211 + $0x8e0] sm:$0xff]
      %v508 = vld [vmem:[%s211 + $0x8e8] sm:$0xff]
      %v509 = vld [vmem:[%s211 + $0x8f0] sm:$0xff]
      %v510 = vld [vmem:[%s211 + $0x8f8] sm:$0xff]
      %v511 = vld [vmem:[%s211 + $0x900] sm:$0xff]
      %v512 = vld [vmem:[%s211 + $0x908] sm:$0xff]
      %v513 = vld [vmem:[%s211 + $0x910] sm:$0xff]
      %v514 = vld [vmem:[%s211 + $0x918] sm:$0xff]
      %v515 = vld [vmem:[%s211 + $0x920] sm:$0xff]
      %v516 = vld [vmem:[%s211 + $0x928] sm:$0xff]
      %v517 = vld [vmem:[%s211 + $0x930] sm:$0xff]
      %v518 = vld [vmem:[%s211 + $0x938] sm:$0xff]
      %v519 = vld [vmem:[%s211 + $0x940] sm:$0xff]
      %v520 = vld [vmem:[%s211 + $0x948] sm:$0xff]
      %v521 = vld [vmem:[%s211 + $0x950] sm:$0xff]
      %v522 = vld [vmem:[%s211 + $0x958] sm:$0xff]
      %v523 = vld [vmem:[%s211 + $0x960] sm:$0xff]
      %v524 = vld [vmem:[%s211 + $0x968] sm:$0xff]
      %v525 = vld [vmem:[%s211 + $0x970] sm:$0xff]
      %v526 = vld [vmem:[%s211 + $0x978] sm:$0xff]
      %v527 = vld [vmem:[%s211 + $0x980] sm:$0xff]
      %v528 = vld [vmem:[%s211 + $0x988] sm:$0xff]
      %v529 = vld [vmem:[%s211 + $0x990] sm:$0xff]
      %v530 = vld [vmem:[%s211 + $0x998] sm:$0xff]
      %v531 = vld [vmem:[%s211 + $0x9a0] sm:$0xff]
      %v532 = vld [vmem:[%s211 + $0x9a8] sm:$0xff]
      %v533 = vld [vmem:[%s211 + $0x9b0] sm:$0xff]
      %v534 = vld [vmem:[%s211 + $0x9b8] sm:$0xff]
      %v535 = vld [vmem:[%s211 + $0x9c0] sm:$0xff]
      %v536 = vld [vmem:[%s211 + $0x9c8] sm:$0xff]
      %v537 = vld [vmem:[%s211 + $0x9d0] sm:$0xff]
      %v538 = vld [vmem:[%s211 + $0x9d8] sm:$0xff]
      %v539 = vld [vmem:[%s211 + $0x9e0] sm:$0xff]
      %v540 = vld [vmem:[%s211 + $0x9e8] sm:$0xff]
      %v541 = vld [vmem:[%s211 + $0x9f0] sm:$0xff]
      %v542 = vld [vmem:[%s211 + $0x9f8] sm:$0xff]
      %v543 = vld [vmem:[%s211 + $0xa00] sm:$0xff]
      %v544 = vld [vmem:[%s211 + $0xa08] sm:$0xff]
      %v545 = vld [vmem:[%s211 + $0xa10] sm:$0xff]
      %v546 = vld [vmem:[%s211 + $0xa18] sm:$0xff]
      %v547 = vld [vmem:[%s211 + $0xa20] sm:$0xff]
      %v548 = vld [vmem:[%s211 + $0xa28] sm:$0xff]
      %v549 = vld [vmem:[%s211 + $0xa30] sm:$0xff]
      %v550 = vld [vmem:[%s211 + $0xa38] sm:$0xff]
      %v551 = vld [vmem:[%s211 + $0xa40] sm:$0xff]
      %v552 = vld [vmem:[%s211 + $0xa48] sm:$0xff]
      %v553 = vld [vmem:[%s211 + $0xa50] sm:$0xff]
      %v554 = vld [vmem:[%s211 + $0xa58] sm:$0xff]
      %v555 = vld [vmem:[%s211 + $0xa60] sm:$0xff]
      %v556 = vld [vmem:[%s211 + $0xa68] sm:$0xff]
      %v557 = vld [vmem:[%s211 + $0xa70] sm:$0xff]
      %v558 = vld [vmem:[%s211 + $0xa78] sm:$0xff]
      %v559 = vld [vmem:[%s211 + $0xa80] sm:$0xff]
      %v560 = vld [vmem:[%s211 + $0xa88] sm:$0xff]
      %v561 = vld [vmem:[%s211 + $0xa90] sm:$0xff]
      %v562 = vld [vmem:[%s211 + $0xa98] sm:$0xff]
      %v563 = vld [vmem:[%s211 + $0xaa0] sm:$0xff]
      %v564 = vld [vmem:[%s211 + $0xaa8] sm:$0xff]
      %v565 = vld [vmem:[%s211 + $0xab0] sm:$0xff]
      %v566 = vld [vmem:[%s211 + $0xab8] sm:$0xff]
      %v567 = vld [vmem:[%s211 + $0xac0] sm:$0xff]
      %v568 = vld [vmem:[%s211 + $0xac8] sm:$0xff]
      %v569 = vld [vmem:[%s211 + $0xad0] sm:$0xff]
      %v570 = vld [vmem:[%s211 + $0xad8] sm:$0xff]
      %v571 = vld [vmem:[%s211 + $0xae0] sm:$0xff]
      %v572 = vld [vmem:[%s211 + $0xae8] sm:$0xff]
      %v573 = vld [vmem:[%s211 + $0xaf0] sm:$0xff]
      %v574 = vld [vmem:[%s211 + $0xaf8] sm:$0xff]
      %v575 = vld [vmem:[%s211 + $0xb00] sm:$0xff]
      %v576 = vld [vmem:[%s211 + $0xb08] sm:$0xff]
      %v577 = vld [vmem:[%s211 + $0xb10] sm:$0xff]
      %v578 = vld [vmem:[%s211 + $0xb18] sm:$0xff]
      %v579 = vld [vmem:[%s211 + $0xb20] sm:$0xff]
      %v580 = vld [vmem:[%s211 + $0xb28] sm:$0xff]
      %v581 = vld [vmem:[%s211 + $0xb30] sm:$0xff]
      %v582 = vld [vmem:[%s211 + $0xb38] sm:$0xff]
      %v583 = vld [vmem:[%s211 + $0xb40] sm:$0xff]
      %v584 = vld [vmem:[%s211 + $0xb48] sm:$0xff]
      %v585 = vld [vmem:[%s211 + $0xb50] sm:$0xff]
      %v586 = vld [vmem:[%s211 + $0xb58] sm:$0xff]
      %v587 = vld [vmem:[%s211 + $0xb60] sm:$0xff]
      %v588 = vld [vmem:[%s211 + $0xb68] sm:$0xff]
      %v589 = vld [vmem:[%s211 + $0xb70] sm:$0xff]
      %v590 = vld [vmem:[%s211 + $0xb78] sm:$0xff]
      %v591 = vld [vmem:[%s211 + $0xb80] sm:$0xff]
      %v592 = vld [vmem:[%s211 + $0xb88] sm:$0xff]
      %v593 = vld [vmem:[%s211 + $0xb90] sm:$0xff]
      %v594 = vld [vmem:[%s211 + $0xb98] sm:$0xff]
      %v595 = vld [vmem:[%s211 + $0xba0] sm:$0xff]
      %v596 = vld [vmem:[%s211 + $0xba8] sm:$0xff]
      %v597 = vld [vmem:[%s211 + $0xbb0] sm:$0xff]
      %v598 = vld [vmem:[%s211 + $0xbb8] sm:$0xff]
      %v599 = vld [vmem:[%s211 + $0xbc0] sm:$0xff]
      %v600 = vld [vmem:[%s211 + $0xbc8] sm:$0xff]
      %v601 = vld [vmem:[%s211 + $0xbd0] sm:$0xff]
      %v602 = vld [vmem:[%s211 + $0xbd8] sm:$0xff]
      %v603 = vld [vmem:[%s211 + $0xbe0] sm:$0xff]
      %v604 = vld [vmem:[%s211 + $0xbe8] sm:$0xff]
      %v605 = vld [vmem:[%s211 + $0xbf0] sm:$0xff]
      %v606 = vld [vmem:[%s211 + $0xbf8] sm:$0xff]
      %v607 = vld [vmem:[%s211 + $0xc00] sm:$0xff]
      %v608 = vld [vmem:[%s211 + $0xc08] sm:$0xff]
      %v609 = vld [vmem:[%s211 + $0xc10] sm:$0xff]
      %v610 = vld [vmem:[%s211 + $0xc18] sm:$0xff]
      %v611 = vld [vmem:[%s211 + $0xc20] sm:$0xff]
      %v612 = vld [vmem:[%s211 + $0xc28] sm:$0xff]
      %v613 = vld [vmem:[%s211 + $0xc30] sm:$0xff]
      %v614 = vld [vmem:[%s211 + $0xc38] sm:$0xff]
      %v615 = vld [vmem:[%s211 + $0xc40] sm:$0xff]
      %v616 = vld [vmem:[%s211 + $0xc48] sm:$0xff]
      %v617 = vld [vmem:[%s211 + $0xc50] sm:$0xff]
      %v618 = vld [vmem:[%s211 + $0xc58] sm:$0xff]
      %v619 = vld [vmem:[%s211 + $0xc60] sm:$0xff]
      %v620 = vld [vmem:[%s211 + $0xc68] sm:$0xff]
      %v621 = vld [vmem:[%s211 + $0xc70] sm:$0xff]
      %v622 = vld [vmem:[%s211 + $0xc78] sm:$0xff]
      %v623 = vld [vmem:[%s211 + $0xc80] sm:$0xff]
      %v624 = vld [vmem:[%s211 + $0xc88] sm:$0xff]
      %v625 = vld [vmem:[%s211 + $0xc90] sm:$0xff]
      %v626 = vld [vmem:[%s211 + $0xc98] sm:$0xff]
      %v627 = vld [vmem:[%s211 + $0xca0] sm:$0xff]
      %v628 = vld [vmem:[%s211 + $0xca8] sm:$0xff]
      %v629 = vld [vmem:[%s211 + $0xcb0] sm:$0xff]
      %v630 = vld [vmem:[%s211 + $0xcb8] sm:$0xff]
      %v631 = vld [vmem:[%s211 + $0xcc0] sm:$0xff]
      %v632 = vld [vmem:[%s211 + $0xcc8] sm:$0xff]
      %v633 = vld [vmem:[%s211 + $0xcd0] sm:$0xff]
      %v634 = vld [vmem:[%s211 + $0xcd8] sm:$0xff]
      %v635 = vld [vmem:[%s211 + $0xce0] sm:$0xff]
      %v636 = vld [vmem:[%s211 + $0xce8] sm:$0xff]
      %v637 = vld [vmem:[%s211 + $0xcf0] sm:$0xff]
      %v638 = vld [vmem:[%s211 + $0xcf8] sm:$0xff]
      %v639 = vld [vmem:[%s211 + $0xd00] sm:$0xff]
      %v640 = vld [vmem:[%s211 + $0xd08] sm:$0xff]
      %v641 = vld [vmem:[%s211 + $0xd10] sm:$0xff]
      %v642 = vld [vmem:[%s211 + $0xd18] sm:$0xff]
      %v643 = vld [vmem:[%s211 + $0xd20] sm:$0xff]
      %v644 = vld [vmem:[%s211 + $0xd28] sm:$0xff]
      %v645 = vld [vmem:[%s211 + $0xd30] sm:$0xff]
      %v646 = vld [vmem:[%s211 + $0xd38] sm:$0xff]
      %v647 = vld [vmem:[%s211 + $0xd40] sm:$0xff]
      %v648 = vld [vmem:[%s211 + $0xd48] sm:$0xff]
      %v649 = vld [vmem:[%s211 + $0xd50] sm:$0xff]
      %v650 = vld [vmem:[%s211 + $0xd58] sm:$0xff]
      %v651 = vld [vmem:[%s211 + $0xd60] sm:$0xff]
      %v652 = vld [vmem:[%s211 + $0xd68] sm:$0xff]
      %v653 = vld [vmem:[%s211 + $0xd70] sm:$0xff]
      %v654 = vld [vmem:[%s211 + $0xd78] sm:$0xff]
      %v655 = vld [vmem:[%s211 + $0xd80] sm:$0xff]
      %v656 = vld [vmem:[%s211 + $0xd88] sm:$0xff]
      %v657 = vld [vmem:[%s211 + $0xd90] sm:$0xff]
      %v658 = vld [vmem:[%s211 + $0xd98] sm:$0xff]
      %v659 = vld [vmem:[%s211 + $0xda0] sm:$0xff]
      %v660 = vld [vmem:[%s211 + $0xda8] sm:$0xff]
      %v661 = vld [vmem:[%s211 + $0xdb0] sm:$0xff]
      %v662 = vld [vmem:[%s211 + $0xdb8] sm:$0xff]
      %v663 = vld [vmem:[%s211 + $0xdc0] sm:$0xff]
      %v664 = vld [vmem:[%s211 + $0xdc8] sm:$0xff]
      %v665 = vld [vmem:[%s211 + $0xdd0] sm:$0xff]
      %v666 = vld [vmem:[%s211 + $0xdd8] sm:$0xff]
      %v667 = vld [vmem:[%s211 + $0xde0] sm:$0xff]
      %v668 = vld [vmem:[%s211 + $0xde8] sm:$0xff]
      %v669 = vld [vmem:[%s211 + $0xdf0] sm:$0xff]
      %v670 = vld [vmem:[%s211 + $0xdf8] sm:$0xff]
      %v671 = vld [vmem:[%s211 + $0xe00] sm:$0xff]
      %v672 = vld [vmem:[%s211 + $0xe08] sm:$0xff]
      %v673 = vld [vmem:[%s211 + $0xe10] sm:$0xff]
      %v674 = vld [vmem:[%s211 + $0xe18] sm:$0xff]
      %v675 = vld [vmem:[%s211 + $0xe20] sm:$0xff]
      %v676 = vld [vmem:[%s211 + $0xe28] sm:$0xff]
      %v677 = vld [vmem:[%s211 + $0xe30] sm:$0xff]
      %v678 = vld [vmem:[%s211 + $0xe38] sm:$0xff]
      %v679 = vld [vmem:[%s211 + $0xe40] sm:$0xff]
      %v680 = vld [vmem:[%s211 + $0xe48] sm:$0xff]
      %v681 = vld [vmem:[%s211 + $0xe50] sm:$0xff]
      %v682 = vld [vmem:[%s211 + $0xe58] sm:$0xff]
      %v683 = vld [vmem:[%s211 + $0xe60] sm:$0xff]
      %v684 = vld [vmem:[%s211 + $0xe68] sm:$0xff]
      %v685 = vld [vmem:[%s211 + $0xe70] sm:$0xff]
      %v686 = vld [vmem:[%s211 + $0xe78] sm:$0xff]
      %v687 = vld [vmem:[%s211 + $0xe80] sm:$0xff]
      %v688 = vld [vmem:[%s211 + $0xe88] sm:$0xff]
      %v689 = vld [vmem:[%s211 + $0xe90] sm:$0xff]
      %v690 = vld [vmem:[%s211 + $0xe98] sm:$0xff]
      %v691 = vld [vmem:[%s211 + $0xea0] sm:$0xff]
      %v692 = vld [vmem:[%s211 + $0xea8] sm:$0xff]
      %v693 = vld [vmem:[%s211 + $0xeb0] sm:$0xff]
      %v694 = vld [vmem:[%s211 + $0xeb8] sm:$0xff]
      %v695 = vld [vmem:[%s211 + $0xec0] sm:$0xff]
      %v696 = vld [vmem:[%s211 + $0xec8] sm:$0xff]
      %v697 = vld [vmem:[%s211 + $0xed0] sm:$0xff]
      %v698 = vld [vmem:[%s211 + $0xed8] sm:$0xff]
      %v699 = vld [vmem:[%s211 + $0xee0] sm:$0xff]
      %v700 = vld [vmem:[%s211 + $0xee8] sm:$0xff]
      %v701 = vld [vmem:[%s211 + $0xef0] sm:$0xff]
      %v702 = vld [vmem:[%s211 + $0xef8] sm:$0xff]
      %v703 = vld [vmem:[%s211 + $0xf00] sm:$0xff]
      %v704 = vld [vmem:[%s211 + $0xf08] sm:$0xff]
      %v705 = vld [vmem:[%s211 + $0xf10] sm:$0xff]
      %v706 = vld [vmem:[%s211 + $0xf18] sm:$0xff]
      %v707 = vld [vmem:[%s211 + $0xf20] sm:$0xff]
      %v708 = vld [vmem:[%s211 + $0xf28] sm:$0xff]
      %v709 = vld [vmem:[%s211 + $0xf30] sm:$0xff]
      %v710 = vld [vmem:[%s211 + $0xf38] sm:$0xff]
      %v711 = vld [vmem:[%s211 + $0xf40] sm:$0xff]
      %v712 = vld [vmem:[%s211 + $0xf48] sm:$0xff]
      %v713 = vld [vmem:[%s211 + $0xf50] sm:$0xff]
      %v714 = vld [vmem:[%s211 + $0xf58] sm:$0xff]
      %v715 = vld [vmem:[%s211 + $0xf60] sm:$0xff]
      %v716 = vld [vmem:[%s211 + $0xf68] sm:$0xff]
      %v717 = vld [vmem:[%s211 + $0xf70] sm:$0xff]
      %v718 = vld [vmem:[%s211 + $0xf78] sm:$0xff]
      %v719 = vld [vmem:[%s211 + $0xf80] sm:$0xff]
      %v720 = vld [vmem:[%s211 + $0xf88] sm:$0xff]
      %v721 = vld [vmem:[%s211 + $0xf90] sm:$0xff]
      %v722 = vld [vmem:[%s211 + $0xf98] sm:$0xff]
      %v723 = vld [vmem:[%s211 + $0xfa0] sm:$0xff]
      %v724 = vld [vmem:[%s211 + $0xfa8] sm:$0xff]
      %v725 = vld [vmem:[%s211 + $0xfb0] sm:$0xff]
      %v726 = vld [vmem:[%s211 + $0xfb8] sm:$0xff]
      %v727 = vld [vmem:[%s211 + $0xfc0] sm:$0xff]
      %v728 = vld [vmem:[%s211 + $0xfc8] sm:$0xff]
      %v729 = vld [vmem:[%s211 + $0xfd0] sm:$0xff]
      %v730 = vld [vmem:[%s211 + $0xfd8] sm:$0xff]
      %v731 = vld [vmem:[%s211 + $0xfe0] sm:$0xff]
      %v732 = vld [vmem:[%s211 + $0xfe8] sm:$0xff]
      %v733 = vld [vmem:[%s211 + $0xff0] sm:$0xff]
      %v734 = vld [vmem:[%s211 + $0xff8] sm:$0xff]
      %v735 = vld [vmem:[%s211 + $0x1000] sm:$0xff]
      %v736 = vld [vmem:[%s211 + $0x1008] sm:$0xff]
      %v737 = vld [vmem:[%s211 + $0x1010] sm:$0xff]
      %v738 = vld [vmem:[%s211 + $0x1018] sm:$0xff]
      %v739 = vld [vmem:[%s211 + $0x1020] sm:$0xff]
      %v740 = vld [vmem:[%s211 + $0x1028] sm:$0xff]
      %v741 = vld [vmem:[%s211 + $0x1030] sm:$0xff]
      %v742 = vld [vmem:[%s211 + $0x1038] sm:$0xff]
      %v743 = vld [vmem:[%s211 + $0x1040] sm:$0xff]
      %v744 = vld [vmem:[%s211 + $0x1048] sm:$0xff]
      %v745 = vld [vmem:[%s211 + $0x1050] sm:$0xff]
      %v746 = vld [vmem:[%s211 + $0x1058] sm:$0xff]
      %v747 = vld [vmem:[%s211 + $0x1060] sm:$0xff]
      %v748 = vld [vmem:[%s211 + $0x1068] sm:$0xff]
      %v749 = vld [vmem:[%s211 + $0x1070] sm:$0xff]
      %v750 = vld [vmem:[%s211 + $0x1078] sm:$0xff]
      %v751 = vld [vmem:[%s211 + $0x1080] sm:$0xff]
      %v752 = vld [vmem:[%s211 + $0x1088] sm:$0xff]
      %v753 = vld [vmem:[%s211 + $0x1090] sm:$0xff]
      %v754 = vld [vmem:[%s211 + $0x1098] sm:$0xff]
      %v755 = vld [vmem:[%s211 + $0x10a0] sm:$0xff]
      %v756 = vld [vmem:[%s211 + $0x10a8] sm:$0xff]
      %v757 = vld [vmem:[%s211 + $0x10b0] sm:$0xff]
      %v758 = vld [vmem:[%s211 + $0x10b8] sm:$0xff]
      %v759 = vld [vmem:[%s211 + $0x10c0] sm:$0xff]
      %v760 = vld [vmem:[%s211 + $0x10c8] sm:$0xff]
      %v761 = vld [vmem:[%s211 + $0x10d0] sm:$0xff]
      %v762 = vld [vmem:[%s211 + $0x10d8] sm:$0xff]
      %v763 = vld [vmem:[%s211 + $0x10e0] sm:$0xff]
      %v764 = vld [vmem:[%s211 + $0x10e8] sm:$0xff]
      %v765 = vld [vmem:[%s211 + $0x10f0] sm:$0xff]
      %v766 = vld [vmem:[%s211 + $0x10f8] sm:$0xff]
      %v767 = vld [vmem:[%s211 + $0x1100] sm:$0xff]
      %v768 = vld [vmem:[%s211 + $0x1108] sm:$0xff]
      %v769 = vld [vmem:[%s211 + $0x1110] sm:$0xff]
      %v770 = vld [vmem:[%s211 + $0x1118] sm:$0xff]
      %v771 = vld [vmem:[%s211 + $0x1120] sm:$0xff]
      %v772 = vld [vmem:[%s211 + $0x1128] sm:$0xff]
      %v773 = vld [vmem:[%s211 + $0x1130] sm:$0xff]
      %v774 = vld [vmem:[%s211 + $0x1138] sm:$0xff]
      %v775 = vld [vmem:[%s211 + $0x1140] sm:$0xff]
      %v776 = vld [vmem:[%s211 + $0x1148] sm:$0xff]
      %v777 = vld [vmem:[%s211 + $0x1150] sm:$0xff]
      %v778 = vld [vmem:[%s211 + $0x1158] sm:$0xff]
      %v779 = vld [vmem:[%s211 + $0x1160] sm:$0xff]
      %v780 = vld [vmem:[%s211 + $0x1168] sm:$0xff]
      %v781 = vld [vmem:[%s211 + $0x1170] sm:$0xff]
      %v782 = vld [vmem:[%s211 + $0x1178] sm:$0xff]
      %v783 = vld [vmem:[%s211 + $0x1180] sm:$0xff]
      %v784 = vld [vmem:[%s211 + $0x1188] sm:$0xff]
      %v785 = vld [vmem:[%s211 + $0x1190] sm:$0xff]
      %v786 = vld [vmem:[%s211 + $0x1198] sm:$0xff]
      %v787 = vld [vmem:[%s211 + $0x11a0] sm:$0xff]
      %v788 = vld [vmem:[%s211 + $0x11a8] sm:$0xff]
      %v789 = vld [vmem:[%s211 + $0x11b0] sm:$0xff]
      %v790 = vld [vmem:[%s211 + $0x11b8] sm:$0xff]
      %v791 = vld [vmem:[%s211 + $0x11c0] sm:$0xff]
      %v792 = vld [vmem:[%s211 + $0x11c8] sm:$0xff]
      %v793 = vld [vmem:[%s211 + $0x11d0] sm:$0xff]
      %v794 = vld [vmem:[%s211 + $0x11d8] sm:$0xff]
      %v795 = vld [vmem:[%s211 + $0x11e0] sm:$0xff]
      %v796 = vld [vmem:[%s211 + $0x11e8] sm:$0xff]
      %v797 = vld [vmem:[%s211 + $0x11f0] sm:$0xff]
      %v798 = vld [vmem:[%s211 + $0x11f8] sm:$0xff]
      %v799 = vld [vmem:[%s1] sm:$0xff]
      %v800 = vld [vmem:[%s1 + $0x8] sm:$0xff]
      %v801 = vld [vmem:[%s1 + $0x10] sm:$0xff]
      %v802 = vld [vmem:[%s1 + $0x18] sm:$0xff]
      %v803 = vld [vmem:[%s1 + $0x20] sm:$0xff]
      %v804 = vld [vmem:[%s1 + $0x28] sm:$0xff]
      %v805 = vld [vmem:[%s1 + $0x30] sm:$0xff]
      %v806 = vld [vmem:[%s1 + $0x38] sm:$0xff]
      %v807 = vld [vmem:[%s1 + $0x40] sm:$0xff]
      %v808 = vld [vmem:[%s1 + $0x48] sm:$0xff]
      %v809 = vld [vmem:[%s1 + $0x50] sm:$0xff]
      %v810 = vld [vmem:[%s1 + $0x58] sm:$0xff]
      %v811 = vld [vmem:[%s1 + $0x60] sm:$0xff]
      %v812 = vld [vmem:[%s1 + $0x68] sm:$0xff]
      %v813 = vld [vmem:[%s1 + $0x70] sm:$0xff]
      %v814 = vld [vmem:[%s1 + $0x78] sm:$0xff]
      %v815 = vld [vmem:[%s1 + $0x80] sm:$0xff]
      %v816 = vld [vmem:[%s1 + $0x88] sm:$0xff]
      %v817 = vld [vmem:[%s1 + $0x90] sm:$0xff]
      %v818 = vld [vmem:[%s1 + $0x98] sm:$0xff]
      %v819 = vld [vmem:[%s1 + $0xa0] sm:$0xff]
      %v820 = vld [vmem:[%s1 + $0xa8] sm:$0xff]
      %v821 = vld [vmem:[%s1 + $0xb0] sm:$0xff]
      %v822 = vld [vmem:[%s1 + $0xb8] sm:$0xff]
      %v823 = vld [vmem:[%s1 + $0xc0] sm:$0xff]
      %v824 = vld [vmem:[%s1 + $0xc8] sm:$0xff]
      %v825 = vld [vmem:[%s1 + $0xd0] sm:$0xff]
      %v826 = vld [vmem:[%s1 + $0xd8] sm:$0xff]
      %v827 = vld [vmem:[%s1 + $0xe0] sm:$0xff]
      %v828 = vld [vmem:[%s1 + $0xe8] sm:$0xff]
      %v829 = vld [vmem:[%s1 + $0xf0] sm:$0xff]
      %v830 = vld [vmem:[%s1 + $0xf8] sm:$0xff]
      %v831 = vld [vmem:[%s1 + $0x100] sm:$0xff]
      %v832 = vld [vmem:[%s1 + $0x108] sm:$0xff]
      %v833 = vld [vmem:[%s1 + $0x110] sm:$0xff]
      %v834 = vld [vmem:[%s1 + $0x118] sm:$0xff]
      %v835 = vld [vmem:[%s1 + $0x120] sm:$0xff]
      %v836 = vld [vmem:[%s1 + $0x128] sm:$0xff]
      %v837 = vld [vmem:[%s1 + $0x130] sm:$0xff]
      %v838 = vld [vmem:[%s1 + $0x138] sm:$0xff]
      %v839 = vld [vmem:[%s1 + $0x140] sm:$0xff]
      %v840 = vld [vmem:[%s1 + $0x148] sm:$0xff]
      %v841 = vld [vmem:[%s1 + $0x150] sm:$0xff]
      %v842 = vld [vmem:[%s1 + $0x158] sm:$0xff]
      %v843 = vld [vmem:[%s1 + $0x160] sm:$0xff]
      %v844 = vld [vmem:[%s1 + $0x168] sm:$0xff]
      %v845 = vld [vmem:[%s1 + $0x170] sm:$0xff]
      %v846 = vld [vmem:[%s1 + $0x178] sm:$0xff]
      %v847 = vld [vmem:[%s1 + $0x180] sm:$0xff]
      %v848 = vld [vmem:[%s1 + $0x188] sm:$0xff]
      %v849 = vld [vmem:[%s1 + $0x190] sm:$0xff]
      %v850 = vld [vmem:[%s1 + $0x198] sm:$0xff]
      %v851 = vld [vmem:[%s1 + $0x1a0] sm:$0xff]
      %v852 = vld [vmem:[%s1 + $0x1a8] sm:$0xff]
      %v853 = vld [vmem:[%s1 + $0x1b0] sm:$0xff]
      %v854 = vld [vmem:[%s1 + $0x1b8] sm:$0xff]
      %v855 = vld [vmem:[%s1 + $0x1c0] sm:$0xff]
      %v856 = vld [vmem:[%s1 + $0x1c8] sm:$0xff]
      %v857 = vld [vmem:[%s1 + $0x1d0] sm:$0xff]
      %v858 = vld [vmem:[%s1 + $0x1d8] sm:$0xff]
      %v859 = vld [vmem:[%s1 + $0x1e0] sm:$0xff]
      %v860 = vld [vmem:[%s1 + $0x1e8] sm:$0xff]
      %v861 = vld [vmem:[%s1 + $0x1f0] sm:$0xff]
      %v862 = vld [vmem:[%s1 + $0x1f8] sm:$0xff]
      %v863 = vld [vmem:[%s1 + $0x200] sm:$0xff]
      %v864 = vld [vmem:[%s1 + $0x208] sm:$0xff]
      %v865 = vld [vmem:[%s1 + $0x210] sm:$0xff]
      %v866 = vld [vmem:[%s1 + $0x218] sm:$0xff]
      %v867 = vld [vmem:[%s1 + $0x220] sm:$0xff]
      %v868 = vld [vmem:[%s1 + $0x228] sm:$0xff]
      %v869 = vld [vmem:[%s1 + $0x230] sm:$0xff]
      %v870 = vld [vmem:[%s1 + $0x238] sm:$0xff]
      %v871 = vld [vmem:[%s1 + $0x240] sm:$0xff]
      %v872 = vld [vmem:[%s1 + $0x248] sm:$0xff]
      %v873 = vld [vmem:[%s1 + $0x250] sm:$0xff]
      %v874 = vld [vmem:[%s1 + $0x258] sm:$0xff]
      %v875 = vld [vmem:[%s1 + $0x260] sm:$0xff]
      %v876 = vld [vmem:[%s1 + $0x268] sm:$0xff]
      %v877 = vld [vmem:[%s1 + $0x270] sm:$0xff]
      %v878 = vld [vmem:[%s1 + $0x278] sm:$0xff]
      %v879 = vld [vmem:[%s1 + $0x280] sm:$0xff]
      %v880 = vld [vmem:[%s1 + $0x288] sm:$0xff]
      %v881 = vld [vmem:[%s1 + $0x290] sm:$0xff]
      %v882 = vld [vmem:[%s1 + $0x298] sm:$0xff]
      %v883 = vld [vmem:[%s1 + $0x2a0] sm:$0xff]
      %v884 = vld [vmem:[%s1 + $0x2a8] sm:$0xff]
      %v885 = vld [vmem:[%s1 + $0x2b0] sm:$0xff]
      %v886 = vld [vmem:[%s1 + $0x2b8] sm:$0xff]
      %v887 = vld [vmem:[%s1 + $0x2c0] sm:$0xff]
      %v888 = vld [vmem:[%s1 + $0x2c8] sm:$0xff]
      %v889 = vld [vmem:[%s1 + $0x2d0] sm:$0xff]
      %v890 = vld [vmem:[%s1 + $0x2d8] sm:$0xff]
      %v891 = vld [vmem:[%s1 + $0x2e0] sm:$0xff]
      %v892 = vld [vmem:[%s1 + $0x2e8] sm:$0xff]
      %v893 = vld [vmem:[%s1 + $0x2f0] sm:$0xff]
      %v894 = vld [vmem:[%s1 + $0x2f8] sm:$0xff]
      %v895 = vld [vmem:[%s1 + $0x300] sm:$0xff]
      %v896 = vld [vmem:[%s1 + $0x308] sm:$0xff]
      %v897 = vld [vmem:[%s1 + $0x310] sm:$0xff]
      %v898 = vld [vmem:[%s1 + $0x318] sm:$0xff]
      %v899 = vld [vmem:[%s1 + $0x320] sm:$0xff]
      %v900 = vld [vmem:[%s1 + $0x328] sm:$0xff]
      %v901 = vld [vmem:[%s1 + $0x330] sm:$0xff]
      %v902 = vld [vmem:[%s1 + $0x338] sm:$0xff]
      %v903 = vld [vmem:[%s1 + $0x340] sm:$0xff]
      %v904 = vld [vmem:[%s1 + $0x348] sm:$0xff]
      %v905 = vld [vmem:[%s1 + $0x350] sm:$0xff]
      %v906 = vld [vmem:[%s1 + $0x358] sm:$0xff]
      %v907 = vld [vmem:[%s1 + $0x360] sm:$0xff]
      %v908 = vld [vmem:[%s1 + $0x368] sm:$0xff]
      %v909 = vld [vmem:[%s1 + $0x370] sm:$0xff]
      %v910 = vld [vmem:[%s1 + $0x378] sm:$0xff]
      %v911 = vld [vmem:[%s1 + $0x380] sm:$0xff]
      %v912 = vld [vmem:[%s1 + $0x388] sm:$0xff]
      %v913 = vld [vmem:[%s1 + $0x390] sm:$0xff]
      %v914 = vld [vmem:[%s1 + $0x398] sm:$0xff]
      %v915 = vld [vmem:[%s1 + $0x3a0] sm:$0xff]
      %v916 = vld [vmem:[%s1 + $0x3a8] sm:$0xff]
      %v917 = vld [vmem:[%s1 + $0x3b0] sm:$0xff]
      %v918 = vld [vmem:[%s1 + $0x3b8] sm:$0xff]
      %v919 = vld [vmem:[%s1 + $0x3c0] sm:$0xff]
      %v920 = vld [vmem:[%s1 + $0x3c8] sm:$0xff]
      %v921 = vld [vmem:[%s1 + $0x3d0] sm:$0xff]
      %v922 = vld [vmem:[%s1 + $0x3d8] sm:$0xff]
      %v923 = vld [vmem:[%s1 + $0x3e0] sm:$0xff]
      %v924 = vld [vmem:[%s1 + $0x3e8] sm:$0xff]
      %v925 = vld [vmem:[%s1 + $0x3f0] sm:$0xff]
      %v926 = vld [vmem:[%s1 + $0x3f8] sm:$0xff]
      %v927 = vld [vmem:[%s1 + $0x400] sm:$0xff]
      %v928 = vld [vmem:[%s1 + $0x408] sm:$0xff]
      %v929 = vld [vmem:[%s1 + $0x410] sm:$0xff]
      %v930 = vld [vmem:[%s1 + $0x418] sm:$0xff]
      %v931 = vld [vmem:[%s1 + $0x420] sm:$0xff]
      %v932 = vld [vmem:[%s1 + $0x428] sm:$0xff]
      %v933 = vld [vmem:[%s1 + $0x430] sm:$0xff]
      %v934 = vld [vmem:[%s1 + $0x438] sm:$0xff]
      %v935 = vld [vmem:[%s1 + $0x440] sm:$0xff]
      %v936 = vld [vmem:[%s1 + $0x448] sm:$0xff]
      %v937 = vld [vmem:[%s1 + $0x450] sm:$0xff]
      %v938 = vld [vmem:[%s1 + $0x458] sm:$0xff]
      %v939 = vld [vmem:[%s1 + $0x460] sm:$0xff]
      %v940 = vld [vmem:[%s1 + $0x468] sm:$0xff]
      %v941 = vld [vmem:[%s1 + $0x470] sm:$0xff]
      %v942 = vld [vmem:[%s1 + $0x478] sm:$0xff]
      %v943 = vld [vmem:[%s2] sm:$0x1]
      %v945 = vlaneseq
      %v946 = vshrl.u32 %v945, 7
      %v947 = vsub.s32 0, %v946
      %v948 = vrot.slane %v943, %v947
      %950 = vmatprep.subr.mxu0 0.0
      %951 = vmatpush1.msra.mxu0 %v799
      %952 = vmatprep.subr.mxu0 0.0
      %953 = vmatpush1.msra.mxu0 %v800
      %954 = vmatprep.subr.mxu0 0.0
      %955 = vmatpush1.msra.mxu0 %v801
      %956 = vmatprep.subr.mxu0 0.0
      %957 = vmatpush1.msra.mxu0 %v802
      %958 = vmatprep.subr.mxu0 0.0
      %959 = vmatpush1.msra.mxu0 %v803
      %960 = vmatprep.subr.mxu0 0.0
      %961 = vmatpush1.msra.mxu0 %v804
      %962 = vmatprep.subr.mxu0 0.0
      %963 = vmatpush1.msra.mxu0 %v805
      %964 = vmatprep.subr.mxu0 0.0
      %965 = vmatpush1.msra.mxu0 %v806
      %966 = vmatprep.subr.mxu0 0.0
      %967 = vmatpush1.msra.mxu0 %v807
      %968 = vmatprep.subr.mxu0 0.0
      %969 = vmatpush1.msra.mxu0 %v808
      %970 = vmatprep.subr.mxu0 0.0
      %971 = vmatpush1.msra.mxu0 %v809
      %972 = vmatprep.subr.mxu0 0.0
      %973 = vmatpush1.msra.mxu0 %v810
      %974 = vmatprep.subr.mxu0 0.0
      %975 = vmatpush1.msra.mxu0 %v811
      %976 = vmatprep.subr.mxu0 0.0
      %977 = vmatpush1.msra.mxu0 %v812
      %978 = vmatprep.subr.mxu0 0.0
      %979 = vmatpush1.msra.mxu0 %v813
      %980 = vmatprep.subr.mxu0 0.0
      %981 = vmatpush1.msra.mxu0 %v814
      %982 = vmatprep.subr.mxu0 0.0
      %983 = vmatpush1.msra.mxu0 %v815
      %984 = vmatprep.subr.mxu0 0.0
      %985 = vmatpush1.msra.mxu0 %v816
      %986 = vmatprep.subr.mxu0 0.0
      %987 = vmatpush1.msra.mxu0 %v817
      %988 = vmatprep.subr.mxu0 0.0
      %989 = vmatpush1.msra.mxu0 %v818
      %990 = vmatprep.subr.mxu0 0.0
      %991 = vmatpush1.msra.mxu0 %v819
      %992 = vmatprep.subr.mxu0 0.0
      %993 = vmatpush1.msra.mxu0 %v820
      %994 = vmatprep.subr.mxu0 0.0
      %995 = vmatpush1.msra.mxu0 %v821
      %996 = vmatprep.subr.mxu0 0.0
      %997 = vmatpush1.msra.mxu0 %v822
      %998 = vmatprep.subr.mxu0 0.0
      %999 = vmatpush1.msra.mxu0 %v823
      %1000 = vmatprep.subr.mxu0 0.0
      %1001 = vmatpush1.msra.mxu0 %v824
      %1002 = vmatprep.subr.mxu0 0.0
      %1003 = vmatpush1.msra.mxu0 %v825
      %1004 = vmatprep.subr.mxu0 0.0
      %1005 = vmatpush1.msra.mxu0 %v826
      %1006 = vmatprep.subr.mxu0 0.0
      %1007 = vmatpush1.msra.mxu0 %v827
      %1008 = vmatprep.subr.mxu0 0.0
      %1009 = vmatpush1.msra.mxu0 %v828
      %1010 = vmatprep.subr.mxu0 0.0
      %1011 = vmatpush1.msra.mxu0 %v829
      %1012 = vmatprep.subr.mxu0 0.0
      %1013 = vmatpush1.msra.mxu0 %v830
      %1014 = vmatprep.mubr.f32.mxu0 %v224
      %1015 = vmatmul.mubr.f32.gmra.mrb[0].mxu0 %v223
      %v1016 = vpop.f32.mrb[0].mxu0
      %v1017 = vadd.f32 %v948, %v1016
      %v1018 = vpop.f32.mrb[0].mxu0
      %1019 = vmatprep.mubr.f32.mxu0 %v233
      %1020 = vmatmul.mubr.f32.gmra.mrb[0].mxu0 %v232
      %v1021 = vpop.f32.mrb[0].mxu0
      %v1022 = vadd.f32 %v948, %v1021
      %v1023 = vpop.f32.mrb[0].mxu0
      %1024 = vmatprep.mubr.f32.mxu0 %v242
      %1025 = vmatmul.mubr.f32.gmra.mrb[0].mxu0 %v241
      %v1026 = vpop.f32.mrb[0].mxu0
      %v1027 = vadd.f32 %v948, %v1026
      %v1028 = vpop.f32.mrb[0].mxu0
      %1029 = vmatprep.mubr.f32.mxu0 %v251
      %1030 = vmatmul.mubr.f32.gmra.mrb[0].mxu0 %v250
      %v1031 = vpop.f32.mrb[0].mxu0
      %v1032 = vadd.f32 %v948, %v1031
      %v1033 = vpop.f32.mrb[0].mxu0
      %1034 = vmatprep.mubr.f32.mxu0 %v260
      %1035 = vmatmul.mubr.f32.gmra.mrb[0].mxu0 %v259
      %v1036 = vpop.f32.mrb[0].mxu0
      %v1037 = vadd.f32 %v948, %v1036
      %v1038 = vpop.f32.mrb[0].mxu0
      %1039 = vmatprep.mubr.f32.mxu0 %v269
      %1040 = vmatmul.mubr.f32.gmra.mrb[0].mxu0 %v268
      %v1041 = vpop.f32.mrb[0].mxu0
      %v1042 = vadd.f32 %v948, %v1041
      %v1043 = vpop.f32.mrb[0].mxu0
      %1044 = vmatprep.mubr.f32.mxu0 %v278
      %1045 = vmatmul.mubr.f32.gmra.mrb[0].mxu0 %v277
      %v1046 = vpop.f32.mrb[0].mxu0
      %v1047 = vadd.f32 %v948, %v1046
      %v1048 = vpop.f32.mrb[0].mxu0
      %1049 = vmatprep.mubr.f32.mxu0 %v287
      %1050 = vmatmul.mubr.f32.gmra.mrb[0].mxu0 %v286
      %v1051 = vpop.f32.mrb[0].mxu0
      %v1052 = vadd.f32 %v948, %v1051
      %v1053 = vpop.f32.mrb[0].mxu0
      %1054 = vmatprep.mubr.f32.mxu0 %v296
      %1055 = vmatmul.mubr.f32.gmra.mrb[0].mxu0 %v295
      %v1056 = vpop.f32.mrb[0].mxu0
      %v1057 = vadd.f32 %v948, %v1056
      %v1058 = vpop.f32.mrb[0].mxu0
      %1059 = vmatprep.mubr.f32.mxu0 %v305
      %1060 = vmatmul.mubr.f32.gmra.mrb[0].mxu0 %v304
      %v1061 = vpop.f32.mrb[0].mxu0
      %v1062 = vadd.f32 %v948, %v1061
      %v1063 = vpop.f32.mrb[0].mxu0
      %1064 = vmatprep.mubr.f32.mxu0 %v314
      %1065 = vmatmul.mubr.f32.gmra.mrb[0].mxu0 %v313
      %v1066 = vpop.f32.mrb[0].mxu0
      %v1067 = vadd.f32 %v948, %v1066
      %v1068 = vpop.f32.mrb[0].mxu0
      %1069 = vmatprep.mubr.f32.mxu0 %v323
      %1070 = vmatmul.mubr.f32.gmra.mrb[0].mxu0 %v322
      %v1071 = vpop.f32.mrb[0].mxu0
      %v1072 = vadd.f32 %v948, %v1071
      %v1073 = vpop.f32.mrb[0].mxu0
      %1074 = vmatprep.mubr.f32.mxu0 %v332
      %1075 = vmatmul.mubr.f32.gmra.mrb[0].mxu0 %v331
      %v1076 = vpop.f32.mrb[0].mxu0
      %v1077 = vadd.f32 %v948, %v1076
      %v1078 = vpop.f32.mrb[0].mxu0
      %1079 = vmatprep.mubr.f32.mxu0 %v341
      %1080 = vmatmul.mubr.f32.gmra.mrb[0].mxu0 %v340
      %v1081 = vpop.f32.mrb[0].mxu0
      %v1082 = vadd.f32 %v948, %v1081
      %v1083 = vpop.f32.mrb[0].mxu0
      %1084 = vmatprep.mubr.f32.mxu0 %v350
      %1085 = vmatmul.mubr.f32.gmra.mrb[0].mxu0 %v349
      %v1086 = vpop.f32.mrb[0].mxu0
      %v1087 = vadd.f32 %v948, %v1086
      %v1088 = vpop.f32.mrb[0].mxu0
      %1089 = vmatprep.mubr.f32.mxu0 %v359
      %1090 = vmatmul.mubr.f32.gmra.mrb[0].mxu0 %v358
      %v1091 = vpop.f32.mrb[0].mxu0
      %v1092 = vadd.f32 %v948, %v1091
      %v1093 = vpop.f32.mrb[0].mxu0
      %1094 = vmatprep.mubr.f32.mxu0 %v368
      %1095 = vmatmul.mubr.f32.gmra.mrb[0].mxu0 %v367
      %v1096 = vpop.f32.mrb[0].mxu0
      %v1097 = vadd.f32 %v948, %v1096
      %v1098 = vpop.f32.mrb[0].mxu0
      %1099 = vmatprep.mubr.f32.mxu0 %v377
      %1100 = vmatmul.mubr.f32.gmra.mrb[0].mxu0 %v376
      %v1101 = vpop.f32.mrb[0].mxu0
      %v1102 = vadd.f32 %v948, %v1101
      %v1103 = vpop.f32.mrb[0].mxu0
      %1104 = vmatprep.mubr.f32.mxu0 %v386
      %1105 = vmatmul.mubr.f32.gmra.mrb[0].mxu0 %v385
      %v1106 = vpop.f32.mrb[0].mxu0
      %v1107 = vadd.f32 %v948, %v1106
      %v1108 = vpop.f32.mrb[0].mxu0
      %1109 = vmatprep.mubr.f32.mxu0 %v395
      %1110 = vmatmul.mubr.f32.gmra.mrb[0].mxu0 %v394
      %v1111 = vpop.f32.mrb[0].mxu0
      %v1112 = vadd.f32 %v948, %v1111
      %v1113 = vpop.f32.mrb[0].mxu0
      %1114 = vmatprep.mubr.f32.mxu0 %v404
      %1115 = vmatmul.mubr.f32.gmra.mrb[0].mxu0 %v403
      %v1116 = vpop.f32.mrb[0].mxu0
      %v1117 = vadd.f32 %v948, %v1116
      %v1118 = vpop.f32.mrb[0].mxu0
      %1119 = vmatprep.mubr.f32.mxu0 %v413
      %1120 = vmatmul.mubr.f32.gmra.mrb[0].mxu0 %v412
      %v1121 = vpop.f32.mrb[0].mxu0
      %v1122 = vadd.f32 %v948, %v1121
      %v1123 = vpop.f32.mrb[0].mxu0
      %1124 = vmatprep.mubr.f32.mxu0 %v422
      %1125 = vmatmul.mubr.f32.gmra.mrb[0].mxu0 %v421
      %v1126 = vpop.f32.mrb[0].mxu0
      %v1127 = vadd.f32 %v948, %v1126
      %v1128 = vpop.f32.mrb[0].mxu0
      %1129 = vmatprep.mubr.f32.mxu0 %v431
      %1130 = vmatmul.mubr.f32.gmra.mrb[0].mxu0 %v430
      %v1131 = vpop.f32.mrb[0].mxu0
      %v1132 = vadd.f32 %v948, %v1131
      %v1133 = vpop.f32.mrb[0].mxu0
      %1134 = vmatprep.mubr.f32.mxu0 %v440
      %1135 = vmatmul.mubr.f32.gmra.mrb[0].mxu0 %v439
      %v1136 = vpop.f32.mrb[0].mxu0
      %v1137 = vadd.f32 %v948, %v1136
      %v1138 = vpop.f32.mrb[0].mxu0
      %1139 = vmatprep.mubr.f32.mxu0 %v449
      %1140 = vmatmul.mubr.f32.gmra.mrb[0].mxu0 %v448
      %v1141 = vpop.f32.mrb[0].mxu0
      %v1142 = vadd.f32 %v948, %v1141
      %v1143 = vpop.f32.mrb[0].mxu0
      %1144 = vmatprep.mubr.f32.mxu0 %v458
      %1145 = vmatmul.mubr.f32.gmra.mrb[0].mxu0 %v457
      %v1146 = vpop.f32.mrb[0].mxu0
      %v1147 = vadd.f32 %v948, %v1146
      %v1148 = vpop.f32.mrb[0].mxu0
      %1149 = vmatprep.mubr.f32.mxu0 %v467
      %1150 = vmatmul.mubr.f32.gmra.mrb[0].mxu0 %v466
      %v1151 = vpop.f32.mrb[0].mxu0
      %v1152 = vadd.f32 %v948, %v1151
      %v1153 = vpop.f32.mrb[0].mxu0
      %1154 = vmatprep.mubr.f32.mxu0 %v476
      %1155 = vmatmul.mubr.f32.gmra.mrb[0].mxu0 %v475
      %v1156 = vpop.f32.mrb[0].mxu0
      %v1157 = vadd.f32 %v948, %v1156
      %v1158 = vpop.f32.mrb[0].mxu0
      %1159 = vmatprep.mubr.f32.mxu0 %v485
      %1160 = vmatmul.mubr.f32.gmra.mrb[0].mxu0 %v484
      %v1161 = vpop.f32.mrb[0].mxu0
      %v1162 = vadd.f32 %v948, %v1161
      %v1163 = vpop.f32.mrb[0].mxu0
      %1164 = vmatprep.mubr.f32.mxu0 %v494
      %1165 = vmatmul.mubr.f32.gmra.mrb[0].mxu0 %v493
      %v1166 = vpop.f32.mrb[0].mxu0
      %v1167 = vadd.f32 %v948, %v1166
      %v1168 = vpop.f32.mrb[0].mxu0
      %1169 = vmatprep.mubr.f32.mxu0 %v503
      %1170 = vmatmul.mubr.f32.gmra.mrb[0].mxu0 %v502
      %v1171 = vpop.f32.mrb[0].mxu0
      %v1172 = vadd.f32 %v948, %v1171
      %v1173 = vpop.f32.mrb[0].mxu0
      %1174 = vmatprep.mubr.f32.mxu0 %v512
      %1175 = vmatmul.mubr.f32.gmra.mrb[0].mxu0 %v511
      %v1176 = vpop.f32.mrb[0].mxu0
      %v1177 = vadd.f32 %v948, %v1176
      %v1178 = vpop.f32.mrb[0].mxu0
      %1179 = vmatprep.mubr.f32.mxu0 %v521
      %1180 = vmatmul.mubr.f32.gmra.mrb[0].mxu0 %v520
      %v1181 = vpop.f32.mrb[0].mxu0
      %v1182 = vadd.f32 %v948, %v1181
      %v1183 = vpop.f32.mrb[0].mxu0
      %1184 = vmatprep.mubr.f32.mxu0 %v530
      %1185 = vmatmul.mubr.f32.gmra.mrb[0].mxu0 %v529
      %v1186 = vpop.f32.mrb[0].mxu0
      %v1187 = vadd.f32 %v948, %v1186
      %v1188 = vpop.f32.mrb[0].mxu0
      %1189 = vmatprep.mubr.f32.mxu0 %v539
      %1190 = vmatmul.mubr.f32.gmra.mrb[0].mxu0 %v538
      %v1191 = vpop.f32.mrb[0].mxu0
      %v1192 = vadd.f32 %v948, %v1191
      %v1193 = vpop.f32.mrb[0].mxu0
      %1194 = vmatprep.mubr.f32.mxu0 %v548
      %1195 = vmatmul.mubr.f32.gmra.mrb[0].mxu0 %v547
      %v1196 = vpop.f32.mrb[0].mxu0
      %v1197 = vadd.f32 %v948, %v1196
      %v1198 = vpop.f32.mrb[0].mxu0
      %1199 = vmatprep.mubr.f32.mxu0 %v557
      %1200 = vmatmul.mubr.f32.gmra.mrb[0].mxu0 %v556
      %v1201 = vpop.f32.mrb[0].mxu0
      %v1202 = vadd.f32 %v948, %v1201
      %v1203 = vpop.f32.mrb[0].mxu0
      %1204 = vmatprep.mubr.f32.mxu0 %v566
      %1205 = vmatmul.mubr.f32.gmra.mrb[0].mxu0 %v565
      %v1206 = vpop.f32.mrb[0].mxu0
      %v1207 = vadd.f32 %v948, %v1206
      %v1208 = vpop.f32.mrb[0].mxu0
      %1209 = vmatprep.mubr.f32.mxu0 %v575
      %1210 = vmatmul.mubr.f32.gmra.mrb[0].mxu0 %v574
      %v1211 = vpop.f32.mrb[0].mxu0
      %v1212 = vadd.f32 %v948, %v1211
      %v1213 = vpop.f32.mrb[0].mxu0
      %1214 = vmatprep.mubr.f32.mxu0 %v584
      %1215 = vmatmul.mubr.f32.gmra.mrb[0].mxu0 %v583
      %v1216 = vpop.f32.mrb[0].mxu0
      %v1217 = vadd.f32 %v948, %v1216
      %v1218 = vpop.f32.mrb[0].mxu0
      %1219 = vmatprep.mubr.f32.mxu0 %v593
      %1220 = vmatmul.mubr.f32.gmra.mrb[0].mxu0 %v592
      %v1221 = vpop.f32.mrb[0].mxu0
      %v1222 = vadd.f32 %v948, %v1221
      %v1223 = vpop.f32.mrb[0].mxu0
      %1224 = vmatprep.mubr.f32.mxu0 %v602
      %1225 = vmatmul.mubr.f32.gmra.mrb[0].mxu0 %v601
      %v1226 = vpop.f32.mrb[0].mxu0
      %v1227 = vadd.f32 %v948, %v1226
      %v1228 = vpop.f32.mrb[0].mxu0
      %1229 = vmatprep.mubr.f32.mxu0 %v611
      %1230 = vmatmul.mubr.f32.gmra.mrb[0].mxu0 %v610
      %v1231 = vpop.f32.mrb[0].mxu0
      %v1232 = vadd.f32 %v948, %v1231
      %v1233 = vpop.f32.mrb[0].mxu0
      %1234 = vmatprep.mubr.f32.mxu0 %v620
      %1235 = vmatmul.mubr.f32.gmra.mrb[0].mxu0 %v619
      %v1236 = vpop.f32.mrb[0].mxu0
      %v1237 = vadd.f32 %v948, %v1236
      %v1238 = vpop.f32.mrb[0].mxu0
      %1239 = vmatprep.mubr.f32.mxu0 %v629
      %1240 = vmatmul.mubr.f32.gmra.mrb[0].mxu0 %v628
      %v1241 = vpop.f32.mrb[0].mxu0
      %v1242 = vadd.f32 %v948, %v1241
      %v1243 = vpop.f32.mrb[0].mxu0
      %1244 = vmatprep.mubr.f32.mxu0 %v638
      %1245 = vmatmul.mubr.f32.gmra.mrb[0].mxu0 %v637
      %v1246 = vpop.f32.mrb[0].mxu0
      %v1247 = vadd.f32 %v948, %v1246
      %v1248 = vpop.f32.mrb[0].mxu0
      %1249 = vmatprep.mubr.f32.mxu0 %v647
      %1250 = vmatmul.mubr.f32.gmra.mrb[0].mxu0 %v646
      %v1251 = vpop.f32.mrb[0].mxu0
      %v1252 = vadd.f32 %v948, %v1251
      %v1253 = vpop.f32.mrb[0].mxu0
      %1254 = vmatprep.mubr.f32.mxu0 %v656
      %1255 = vmatmul.mubr.f32.gmra.mrb[0].mxu0 %v655
      %v1256 = vpop.f32.mrb[0].mxu0
      %v1257 = vadd.f32 %v948, %v1256
      %v1258 = vpop.f32.mrb[0].mxu0
      %1259 = vmatprep.mubr.f32.mxu0 %v665
      %1260 = vmatmul.mubr.f32.gmra.mrb[0].mxu0 %v664
      %v1261 = vpop.f32.mrb[0].mxu0
      %v1262 = vadd.f32 %v948, %v1261
      %v1263 = vpop.f32.mrb[0].mxu0
      %1264 = vmatprep.mubr.f32.mxu0 %v674
      %1265 = vmatmul.mubr.f32.gmra.mrb[0].mxu0 %v673
      %v1266 = vpop.f32.mrb[0].mxu0
      %v1267 = vadd.f32 %v948, %v1266
      %v1268 = vpop.f32.mrb[0].mxu0
      %1269 = vmatprep.mubr.f32.mxu0 %v683
      %1270 = vmatmul.mubr.f32.gmra.mrb[0].mxu0 %v682
      %v1271 = vpop.f32.mrb[0].mxu0
      %v1272 = vadd.f32 %v948, %v1271
      %v1273 = vpop.f32.mrb[0].mxu0
      %1274 = vmatprep.mubr.f32.mxu0 %v692
      %1275 = vmatmul.mubr.f32.gmra.mrb[0].mxu0 %v691
      %v1276 = vpop.f32.mrb[0].mxu0
      %v1277 = vadd.f32 %v948, %v1276
      %v1278 = vpop.f32.mrb[0].mxu0
      %1279 = vmatprep.mubr.f32.mxu0 %v701
      %1280 = vmatmul.mubr.f32.gmra.mrb[0].mxu0 %v700
      %v1281 = vpop.f32.mrb[0].mxu0
      %v1282 = vadd.f32 %v948, %v1281
      %v1283 = vpop.f32.mrb[0].mxu0
      %1284 = vmatprep.mubr.f32.mxu0 %v710
      %1285 = vmatmul.mubr.f32.gmra.mrb[0].mxu0 %v709
      %v1286 = vpop.f32.mrb[0].mxu0
      %v1287 = vadd.f32 %v948, %v1286
      %v1288 = vpop.f32.mrb[0].mxu0
      %1289 = vmatprep.mubr.f32.mxu0 %v719
      %1290 = vmatmul.mubr.f32.gmra.mrb[0].mxu0 %v718
      %v1291 = vpop.f32.mrb[0].mxu0
      %v1292 = vadd.f32 %v948, %v1291
      %v1293 = vpop.f32.mrb[0].mxu0
      %1294 = vmatprep.mubr.f32.mxu0 %v728
      %1295 = vmatmul.mubr.f32.gmra.mrb[0].mxu0 %v727
      %v1296 = vpop.f32.mrb[0].mxu0
      %v1297 = vadd.f32 %v948, %v1296
      %v1298 = vpop.f32.mrb[0].mxu0
      %1299 = vmatprep.mubr.f32.mxu0 %v737
      %1300 = vmatmul.mubr.f32.gmra.mrb[0].mxu0 %v736
      %v1301 = vpop.f32.mrb[0].mxu0
      %v1302 = vadd.f32 %v948, %v1301
      %v1303 = vpop.f32.mrb[0].mxu0
      %1304 = vmatprep.mubr.f32.mxu0 %v746
      %1305 = vmatmul.mubr.f32.gmra.mrb[0].mxu0 %v745
      %v1306 = vpop.f32.mrb[0].mxu0
      %v1307 = vadd.f32 %v948, %v1306
      %v1308 = vpop.f32.mrb[0].mxu0
      %1309 = vmatprep.mubr.f32.mxu0 %v755
      %1310 = vmatmul.mubr.f32.gmra.mrb[0].mxu0 %v754
      %v1311 = vpop.f32.mrb[0].mxu0
      %v1312 = vadd.f32 %v948, %v1311
      %v1313 = vpop.f32.mrb[0].mxu0
      %1314 = vmatprep.mubr.f32.mxu0 %v764
      %1315 = vmatmul.mubr.f32.gmra.mrb[0].mxu0 %v763
      %v1316 = vpop.f32.mrb[0].mxu0
      %v1317 = vadd.f32 %v948, %v1316
      %v1318 = vpop.f32.mrb[0].mxu0
      %1319 = vmatprep.mubr.f32.mxu0 %v773
      %1320 = vmatmul.mubr.f32.gmra.mrb[0].mxu0 %v772
      %v1321 = vpop.f32.mrb[0].mxu0
      %v1322 = vadd.f32 %v948, %v1321
      %v1323 = vpop.f32.mrb[0].mxu0
      %1324 = vmatprep.mubr.f32.mxu0 %v782
      %1325 = vmatmul.mubr.f32.gmra.mrb[0].mxu0 %v781
      %v1326 = vpop.f32.mrb[0].mxu0
      %v1327 = vadd.f32 %v948, %v1326
      %v1328 = vpop.f32.mrb[0].mxu0
      %1329 = vmatprep.mubr.f32.mxu0 %v791
      %1330 = vmatmul.mubr.f32.gmra.mrb[0].mxu0 %v790
      %v1331 = vpop.f32.mrb[0].mxu0
      %v1332 = vadd.f32 %v948, %v1331
      %v1333 = vpop.f32.mrb[0].mxu0
      %1334 = vdwg.mxu0
      %1335 = vmatprep.subr.mxu0 0.0
      %1336 = vmatpush1.msra.mxu0 %v831
      %1337 = vmatprep.subr.mxu0 0.0
      %1338 = vmatpush1.msra.mxu0 %v832
      %1339 = vmatprep.subr.mxu0 0.0
      %1340 = vmatpush1.msra.mxu0 %v833
      %1341 = vmatprep.subr.mxu0 0.0
      %1342 = vmatpush1.msra.mxu0 %v834
      %1343 = vmatprep.subr.mxu0 0.0
      %1344 = vmatpush1.msra.mxu0 %v835
      %1345 = vmatprep.subr.mxu0 0.0
      %1346 = vmatpush1.msra.mxu0 %v836
      %1347 = vmatprep.subr.mxu0 0.0
      %1348 = vmatpush1.msra.mxu0 %v837
      %1349 = vmatprep.subr.mxu0 0.0
      %1350 = vmatpush1.msra.mxu0 %v838
      %1351 = vmatprep.subr.mxu0 0.0
      %1352 = vmatpush1.msra.mxu0 %v839
      %1353 = vmatprep.subr.mxu0 0.0
      %1354 = vmatpush1.msra.mxu0 %v840
      %1355 = vmatprep.subr.mxu0 0.0
      %1356 = vmatpush1.msra.mxu0 %v841
      %1357 = vmatprep.subr.mxu0 0.0
      %1358 = vmatpush1.msra.mxu0 %v842
      %1359 = vmatprep.subr.mxu0 0.0
      %1360 = vmatpush1.msra.mxu0 %v843
      %1361 = vmatprep.subr.mxu0 0.0
      %1362 = vmatpush1.msra.mxu0 %v844
      %1363 = vmatprep.subr.mxu0 0.0
      %1364 = vmatpush1.msra.mxu0 %v845
      %1365 = vmatprep.subr.mxu0 0.0
      %1366 = vmatpush1.msra.mxu0 %v846
      %1367 = vmatprep.subr.mxu0 0.0
      %1368 = vmatpush1.msra.mxu0 %v847
      %1369 = vmatprep.subr.mxu0 0.0
      %1370 = vmatpush1.msra.mxu0 %v848
      %1371 = vmatprep.subr.mxu0 0.0
      %1372 = vmatpush1.msra.mxu0 %v849
      %1373 = vmatprep.subr.mxu0 0.0
      %1374 = vmatpush1.msra.mxu0 %v850
      %1375 = vmatprep.subr.mxu0 0.0
      %1376 = vmatpush1.msra.mxu0 %v851
      %1377 = vmatprep.subr.mxu0 0.0
      %1378 = vmatpush1.msra.mxu0 %v852
      %1379 = vmatprep.subr.mxu0 0.0
      %1380 = vmatpush1.msra.mxu0 %v853
      %1381 = vmatprep.subr.mxu0 0.0
      %1382 = vmatpush1.msra.mxu0 %v854
      %1383 = vmatprep.subr.mxu0 0.0
      %1384 = vmatpush1.msra.mxu0 %v855
      %1385 = vmatprep.subr.mxu0 0.0
      %1386 = vmatpush1.msra.mxu0 %v856
      %1387 = vmatprep.subr.mxu0 0.0
      %1388 = vmatpush1.msra.mxu0 %v857
      %1389 = vmatprep.subr.mxu0 0.0
      %1390 = vmatpush1.msra.mxu0 %v858
      %1391 = vmatprep.subr.mxu0 0.0
      %1392 = vmatpush1.msra.mxu0 %v859
      %1393 = vmatprep.subr.mxu0 0.0
      %1394 = vmatpush1.msra.mxu0 %v860
      %1395 = vmatprep.subr.mxu0 0.0
      %1396 = vmatpush1.msra.mxu0 %v861
      %1397 = vmatprep.subr.mxu0 0.0
      %1398 = vmatpush1.msra.mxu0 %v862
      %1399 = vmatprep.mubr.f32.mxu0 %v226
      %1400 = vmatmul.mubr.f32.gmra.mrb[0].mxu0 %v225
      %v1401 = vpop.f32.mrb[0].mxu0
      %v1402 = vadd.f32 %v1017, %v1401
      %v1403 = vpop.f32.mrb[0].mxu0
      %1404 = vmatprep.mubr.f32.mxu0 %v235
      %1405 = vmatmul.mubr.f32.gmra.mrb[0].mxu0 %v234
      %v1406 = vpop.f32.mrb[0].mxu0
      %v1407 = vadd.f32 %v1022, %v1406
      %v1408 = vpop.f32.mrb[0].mxu0
      %1409 = vmatprep.mubr.f32.mxu0 %v244
      %1410 = vmatmul.mubr.f32.gmra.mrb[0].mxu0 %v243
      %v1411 = vpop.f32.mrb[0].mxu0
      %v1412 = vadd.f32 %v1027, %v1411
      %v1413 = vpop.f32.mrb[0].mxu0
      %1414 = vmatprep.mubr.f32.mxu0 %v253
      %1415 = vmatmul.mubr.f32.gmra.mrb[0].mxu0 %v252
      %v1416 = vpop.f32.mrb[0].mxu0
      %v1417 = vadd.f32 %v1032, %v1416
      %v1418 = vpop.f32.mrb[0].mxu0
      %1419 = vmatprep.mubr.f32.mxu0 %v262
      %1420 = vmatmul.mubr.f32.gmra.mrb[0].mxu0 %v261
      %v1421 = vpop.f32.mrb[0].mxu0
      %v1422 = vadd.f32 %v1037, %v1421
      %v1423 = vpop.f32.mrb[0].mxu0
      %1424 = vmatprep.mubr.f32.mxu0 %v271
      %1425 = vmatmul.mubr.f32.gmra.mrb[0].mxu0 %v270
      %v1426 = vpop.f32.mrb[0].mxu0
      %v1427 = vadd.f32 %v1042, %v1426
      %v1428 = vpop.f32.mrb[0].mxu0
      %1429 = vmatprep.mubr.f32.mxu0 %v280
      %1430 = vmatmul.mubr.f32.gmra.mrb[0].mxu0 %v279
      %v1431 = vpop.f32.mrb[0].mxu0
      %v1432 = vadd.f32 %v1047, %v1431
      %v1433 = vpop.f32.mrb[0].mxu0
      %1434 = vmatprep.mubr.f32.mxu0 %v289
      %1435 = vmatmul.mubr.f32.gmra.mrb[0].mxu0 %v288
      %v1436 = vpop.f32.mrb[0].mxu0
      %v1437 = vadd.f32 %v1052, %v1436
      %v1438 = vpop.f32.mrb[0].mxu0
      %1439 = vmatprep.mubr.f32.mxu0 %v298
      %1440 = vmatmul.mubr.f32.gmra.mrb[0].mxu0 %v297
      %v1441 = vpop.f32.mrb[0].mxu0
      %v1442 = vadd.f32 %v1057, %v1441
      %v1443 = vpop.f32.mrb[0].mxu0
      %1444 = vmatprep.mubr.f32.mxu0 %v307
      %1445 = vmatmul.mubr.f32.gmra.mrb[0].mxu0 %v306
      %v1446 = vpop.f32.mrb[0].mxu0
      %v1447 = vadd.f32 %v1062, %v1446
      %v1448 = vpop.f32.mrb[0].mxu0
      %1449 = vmatprep.mubr.f32.mxu0 %v316
      %1450 = vmatmul.mubr.f32.gmra.mrb[0].mxu0 %v315
      %v1451 = vpop.f32.mrb[0].mxu0
      %v1452 = vadd.f32 %v1067, %v1451
      %v1453 = vpop.f32.mrb[0].mxu0
      %1454 = vmatprep.mubr.f32.mxu0 %v325
      %1455 = vmatmul.mubr.f32.gmra.mrb[0].mxu0 %v324
      %v1456 = vpop.f32.mrb[0].mxu0
      %v1457 = vadd.f32 %v1072, %v1456
      %v1458 = vpop.f32.mrb[0].mxu0
      %1459 = vmatprep.mubr.f32.mxu0 %v334
      %1460 = vmatmul.mubr.f32.gmra.mrb[0].mxu0 %v333
      %v1461 = vpop.f32.mrb[0].mxu0
      %v1462 = vadd.f32 %v1077, %v1461
      %v1463 = vpop.f32.mrb[0].mxu0
      %1464 = vmatprep.mubr.f32.mxu0 %v343
      %1465 = vmatmul.mubr.f32.gmra.mrb[0].mxu0 %v342
      %v1466 = vpop.f32.mrb[0].mxu0
      %v1467 = vadd.f32 %v1082, %v1466
      %v1468 = vpop.f32.mrb[0].mxu0
      %1469 = vmatprep.mubr.f32.mxu0 %v352
      %1470 = vmatmul.mubr.f32.gmra.mrb[0].mxu0 %v351
      %v1471 = vpop.f32.mrb[0].mxu0
      %v1472 = vadd.f32 %v1087, %v1471
      %v1473 = vpop.f32.mrb[0].mxu0
      %1474 = vmatprep.mubr.f32.mxu0 %v361
      %1475 = vmatmul.mubr.f32.gmra.mrb[0].mxu0 %v360
      %v1476 = vpop.f32.mrb[0].mxu0
      %v1477 = vadd.f32 %v1092, %v1476
      %v1478 = vpop.f32.mrb[0].mxu0
      %1479 = vmatprep.mubr.f32.mxu0 %v370
      %1480 = vmatmul.mubr.f32.gmra.mrb[0].mxu0 %v369
      %v1481 = vpop.f32.mrb[0].mxu0
      %v1482 = vadd.f32 %v1097, %v1481
      %v1483 = vpop.f32.mrb[0].mxu0
      %1484 = vmatprep.mubr.f32.mxu0 %v379
      %1485 = vmatmul.mubr.f32.gmra.mrb[0].mxu0 %v378
      %v1486 = vpop.f32.mrb[0].mxu0
      %v1487 = vadd.f32 %v1102, %v1486
      %v1488 = vpop.f32.mrb[0].mxu0
      %1489 = vmatprep.mubr.f32.mxu0 %v388
      %1490 = vmatmul.mubr.f32.gmra.mrb[0].mxu0 %v387
      %v1491 = vpop.f32.mrb[0].mxu0
      %v1492 = vadd.f32 %v1107, %v1491
      %v1493 = vpop.f32.mrb[0].mxu0
      %1494 = vmatprep.mubr.f32.mxu0 %v397
      %1495 = vmatmul.mubr.f32.gmra.mrb[0].mxu0 %v396
      %v1496 = vpop.f32.mrb[0].mxu0
      %v1497 = vadd.f32 %v1112, %v1496
      %v1498 = vpop.f32.mrb[0].mxu0
      %1499 = vmatprep.mubr.f32.mxu0 %v406
      %1500 = vmatmul.mubr.f32.gmra.mrb[0].mxu0 %v405
      %v1501 = vpop.f32.mrb[0].mxu0
      %v1502 = vadd.f32 %v1117, %v1501
      %v1503 = vpop.f32.mrb[0].mxu0
      %1504 = vmatprep.mubr.f32.mxu0 %v415
      %1505 = vmatmul.mubr.f32.gmra.mrb[0].mxu0 %v414
      %v1506 = vpop.f32.mrb[0].mxu0
      %v1507 = vadd.f32 %v1122, %v1506
      %v1508 = vpop.f32.mrb[0].mxu0
      %1509 = vmatprep.mubr.f32.mxu0 %v424
      %1510 = vmatmul.mubr.f32.gmra.mrb[0].mxu0 %v423
      %v1511 = vpop.f32.mrb[0].mxu0
      %v1512 = vadd.f32 %v1127, %v1511
      %v1513 = vpop.f32.mrb[0].mxu0
      %1514 = vmatprep.mubr.f32.mxu0 %v433
      %1515 = vmatmul.mubr.f32.gmra.mrb[0].mxu0 %v432
      %v1516 = vpop.f32.mrb[0].mxu0
      %v1517 = vadd.f32 %v1132, %v1516
      %v1518 = vpop.f32.mrb[0].mxu0
      %1519 = vmatprep.mubr.f32.mxu0 %v442
      %1520 = vmatmul.mubr.f32.gmra.mrb[0].mxu0 %v441
      %v1521 = vpop.f32.mrb[0].mxu0
      %v1522 = vadd.f32 %v1137, %v1521
      %v1523 = vpop.f32.mrb[0].mxu0
      %1524 = vmatprep.mubr.f32.mxu0 %v451
      %1525 = vmatmul.mubr.f32.gmra.mrb[0].mxu0 %v450
      %v1526 = vpop.f32.mrb[0].mxu0
      %v1527 = vadd.f32 %v1142, %v1526
      %v1528 = vpop.f32.mrb[0].mxu0
      %1529 = vmatprep.mubr.f32.mxu0 %v460
      %1530 = vmatmul.mubr.f32.gmra.mrb[0].mxu0 %v459
      %v1531 = vpop.f32.mrb[0].mxu0
      %v1532 = vadd.f32 %v1147, %v1531
      %v1533 = vpop.f32.mrb[0].mxu0
      %1534 = vmatprep.mubr.f32.mxu0 %v469
      %1535 = vmatmul.mubr.f32.gmra.mrb[0].mxu0 %v468
      %v1536 = vpop.f32.mrb[0].mxu0
      %v1537 = vadd.f32 %v1152, %v1536
      %v1538 = vpop.f32.mrb[0].mxu0
      %1539 = vmatprep.mubr.f32.mxu0 %v478
      %1540 = vmatmul.mubr.f32.gmra.mrb[0].mxu0 %v477
      %v1541 = vpop.f32.mrb[0].mxu0
      %v1542 = vadd.f32 %v1157, %v1541
      %v1543 = vpop.f32.mrb[0].mxu0
      %1544 = vmatprep.mubr.f32.mxu0 %v487
      %1545 = vmatmul.mubr.f32.gmra.mrb[0].mxu0 %v486
      %v1546 = vpop.f32.mrb[0].mxu0
      %v1547 = vadd.f32 %v1162, %v1546
      %v1548 = vpop.f32.mrb[0].mxu0
      %1549 = vmatprep.mubr.f32.mxu0 %v496
      %1550 = vmatmul.mubr.f32.gmra.mrb[0].mxu0 %v495
      %v1551 = vpop.f32.mrb[0].mxu0
      %v1552 = vadd.f32 %v1167, %v1551
      %v1553 = vpop.f32.mrb[0].mxu0
      %1554 = vmatprep.mubr.f32.mxu0 %v505
      %1555 = vmatmul.mubr.f32.gmra.mrb[0].mxu0 %v504
      %v1556 = vpop.f32.mrb[0].mxu0
      %v1557 = vadd.f32 %v1172, %v1556
      %v1558 = vpop.f32.mrb[0].mxu0
      %1559 = vmatprep.mubr.f32.mxu0 %v514
      %1560 = vmatmul.mubr.f32.gmra.mrb[0].mxu0 %v513
      %v1561 = vpop.f32.mrb[0].mxu0
      %v1562 = vadd.f32 %v1177, %v1561
      %v1563 = vpop.f32.mrb[0].mxu0
      %1564 = vmatprep.mubr.f32.mxu0 %v523
      %1565 = vmatmul.mubr.f32.gmra.mrb[0].mxu0 %v522
      %v1566 = vpop.f32.mrb[0].mxu0
      %v1567 = vadd.f32 %v1182, %v1566
      %v1568 = vpop.f32.mrb[0].mxu0
      %1569 = vmatprep.mubr.f32.mxu0 %v532
      %1570 = vmatmul.mubr.f32.gmra.mrb[0].mxu0 %v531
      %v1571 = vpop.f32.mrb[0].mxu0
      %v1572 = vadd.f32 %v1187, %v1571
      %v1573 = vpop.f32.mrb[0].mxu0
      %1574 = vmatprep.mubr.f32.mxu0 %v541
      %1575 = vmatmul.mubr.f32.gmra.mrb[0].mxu0 %v540
      %v1576 = vpop.f32.mrb[0].mxu0
      %v1577 = vadd.f32 %v1192, %v1576
      %v1578 = vpop.f32.mrb[0].mxu0
      %1579 = vmatprep.mubr.f32.mxu0 %v550
      %1580 = vmatmul.mubr.f32.gmra.mrb[0].mxu0 %v549
      %v1581 = vpop.f32.mrb[0].mxu0
      %v1582 = vadd.f32 %v1197, %v1581
      %v1583 = vpop.f32.mrb[0].mxu0
      %1584 = vmatprep.mubr.f32.mxu0 %v559
      %1585 = vmatmul.mubr.f32.gmra.mrb[0].mxu0 %v558
      %v1586 = vpop.f32.mrb[0].mxu0
      %v1587 = vadd.f32 %v1202, %v1586
      %v1588 = vpop.f32.mrb[0].mxu0
      %1589 = vmatprep.mubr.f32.mxu0 %v568
      %1590 = vmatmul.mubr.f32.gmra.mrb[0].mxu0 %v567
      %v1591 = vpop.f32.mrb[0].mxu0
      %v1592 = vadd.f32 %v1207, %v1591
      %v1593 = vpop.f32.mrb[0].mxu0
      %1594 = vmatprep.mubr.f32.mxu0 %v577
      %1595 = vmatmul.mubr.f32.gmra.mrb[0].mxu0 %v576
      %v1596 = vpop.f32.mrb[0].mxu0
      %v1597 = vadd.f32 %v1212, %v1596
      %v1598 = vpop.f32.mrb[0].mxu0
      %1599 = vmatprep.mubr.f32.mxu0 %v586
      %1600 = vmatmul.mubr.f32.gmra.mrb[0].mxu0 %v585
      %v1601 = vpop.f32.mrb[0].mxu0
      %v1602 = vadd.f32 %v1217, %v1601
      %v1603 = vpop.f32.mrb[0].mxu0
      %1604 = vmatprep.mubr.f32.mxu0 %v595
      %1605 = vmatmul.mubr.f32.gmra.mrb[0].mxu0 %v594
      %v1606 = vpop.f32.mrb[0].mxu0
      %v1607 = vadd.f32 %v1222, %v1606
      %v1608 = vpop.f32.mrb[0].mxu0
      %1609 = vmatprep.mubr.f32.mxu0 %v604
      %1610 = vmatmul.mubr.f32.gmra.mrb[0].mxu0 %v603
      %v1611 = vpop.f32.mrb[0].mxu0
      %v1612 = vadd.f32 %v1227, %v1611
      %v1613 = vpop.f32.mrb[0].mxu0
      %1614 = vmatprep.mubr.f32.mxu0 %v613
      %1615 = vmatmul.mubr.f32.gmra.mrb[0].mxu0 %v612
      %v1616 = vpop.f32.mrb[0].mxu0
      %v1617 = vadd.f32 %v1232, %v1616
      %v1618 = vpop.f32.mrb[0].mxu0
      %1619 = vmatprep.mubr.f32.mxu0 %v622
      %1620 = vmatmul.mubr.f32.gmra.mrb[0].mxu0 %v621
      %v1621 = vpop.f32.mrb[0].mxu0
      %v1622 = vadd.f32 %v1237, %v1621
      %v1623 = vpop.f32.mrb[0].mxu0
      %1624 = vmatprep.mubr.f32.mxu0 %v631
      %1625 = vmatmul.mubr.f32.gmra.mrb[0].mxu0 %v630
      %v1626 = vpop.f32.mrb[0].mxu0
      %v1627 = vadd.f32 %v1242, %v1626
      %v1628 = vpop.f32.mrb[0].mxu0
      %1629 = vmatprep.mubr.f32.mxu0 %v640
      %1630 = vmatmul.mubr.f32.gmra.mrb[0].mxu0 %v639
      %v1631 = vpop.f32.mrb[0].mxu0
      %v1632 = vadd.f32 %v1247, %v1631
      %v1633 = vpop.f32.mrb[0].mxu0
      %1634 = vmatprep.mubr.f32.mxu0 %v649
      %1635 = vmatmul.mubr.f32.gmra.mrb[0].mxu0 %v648
      %v1636 = vpop.f32.mrb[0].mxu0
      %v1637 = vadd.f32 %v1252, %v1636
      %v1638 = vpop.f32.mrb[0].mxu0
      %1639 = vmatprep.mubr.f32.mxu0 %v658
      %1640 = vmatmul.mubr.f32.gmra.mrb[0].mxu0 %v657
      %v1641 = vpop.f32.mrb[0].mxu0
      %v1642 = vadd.f32 %v1257, %v1641
      %v1643 = vpop.f32.mrb[0].mxu0
      %1644 = vmatprep.mubr.f32.mxu0 %v667
      %1645 = vmatmul.mubr.f32.gmra.mrb[0].mxu0 %v666
      %v1646 = vpop.f32.mrb[0].mxu0
      %v1647 = vadd.f32 %v1262, %v1646
      %v1648 = vpop.f32.mrb[0].mxu0
      %1649 = vmatprep.mubr.f32.mxu0 %v676
      %1650 = vmatmul.mubr.f32.gmra.mrb[0].mxu0 %v675
      %v1651 = vpop.f32.mrb[0].mxu0
      %v1652 = vadd.f32 %v1267, %v1651
      %v1653 = vpop.f32.mrb[0].mxu0
      %1654 = vmatprep.mubr.f32.mxu0 %v685
      %1655 = vmatmul.mubr.f32.gmra.mrb[0].mxu0 %v684
      %v1656 = vpop.f32.mrb[0].mxu0
      %v1657 = vadd.f32 %v1272, %v1656
      %v1658 = vpop.f32.mrb[0].mxu0
      %1659 = vmatprep.mubr.f32.mxu0 %v694
      %1660 = vmatmul.mubr.f32.gmra.mrb[0].mxu0 %v693
      %v1661 = vpop.f32.mrb[0].mxu0
      %v1662 = vadd.f32 %v1277, %v1661
      %v1663 = vpop.f32.mrb[0].mxu0
      %1664 = vmatprep.mubr.f32.mxu0 %v703
      %1665 = vmatmul.mubr.f32.gmra.mrb[0].mxu0 %v702
      %v1666 = vpop.f32.mrb[0].mxu0
      %v1667 = vadd.f32 %v1282, %v1666
      %v1668 = vpop.f32.mrb[0].mxu0
      %1669 = vmatprep.mubr.f32.mxu0 %v712
      %1670 = vmatmul.mubr.f32.gmra.mrb[0].mxu0 %v711
      %v1671 = vpop.f32.mrb[0].mxu0
      %v1672 = vadd.f32 %v1287, %v1671
      %v1673 = vpop.f32.mrb[0].mxu0
      %1674 = vmatprep.mubr.f32.mxu0 %v721
      %1675 = vmatmul.mubr.f32.gmra.mrb[0].mxu0 %v720
      %v1676 = vpop.f32.mrb[0].mxu0
      %v1677 = vadd.f32 %v1292, %v1676
      %v1678 = vpop.f32.mrb[0].mxu0
      %1679 = vmatprep.mubr.f32.mxu0 %v730
      %1680 = vmatmul.mubr.f32.gmra.mrb[0].mxu0 %v729
      %v1681 = vpop.f32.mrb[0].mxu0
      %v1682 = vadd.f32 %v1297, %v1681
      %v1683 = vpop.f32.mrb[0].mxu0
      %1684 = vmatprep.mubr.f32.mxu0 %v739
      %1685 = vmatmul.mubr.f32.gmra.mrb[0].mxu0 %v738
      %v1686 = vpop.f32.mrb[0].mxu0
      %v1687 = vadd.f32 %v1302, %v1686
      %v1688 = vpop.f32.mrb[0].mxu0
      %1689 = vmatprep.mubr.f32.mxu0 %v748
      %1690 = vmatmul.mubr.f32.gmra.mrb[0].mxu0 %v747
      %v1691 = vpop.f32.mrb[0].mxu0
      %v1692 = vadd.f32 %v1307, %v1691
      %v1693 = vpop.f32.mrb[0].mxu0
      %1694 = vmatprep.mubr.f32.mxu0 %v757
      %1695 = vmatmul.mubr.f32.gmra.mrb[0].mxu0 %v756
      %v1696 = vpop.f32.mrb[0].mxu0
      %v1697 = vadd.f32 %v1312, %v1696
      %v1698 = vpop.f32.mrb[0].mxu0
      %1699 = vmatprep.mubr.f32.mxu0 %v766
      %1700 = vmatmul.mubr.f32.gmra.mrb[0].mxu0 %v765
      %v1701 = vpop.f32.mrb[0].mxu0
      %v1702 = vadd.f32 %v1317, %v1701
      %v1703 = vpop.f32.mrb[0].mxu0
      %1704 = vmatprep.mubr.f32.mxu0 %v775
      %1705 = vmatmul.mubr.f32.gmra.mrb[0].mxu0 %v774
      %v1706 = vpop.f32.mrb[0].mxu0
      %v1707 = vadd.f32 %v1322, %v1706
      %v1708 = vpop.f32.mrb[0].mxu0
      %1709 = vmatprep.mubr.f32.mxu0 %v784
      %1710 = vmatmul.mubr.f32.gmra.mrb[0].mxu0 %v783
      %v1711 = vpop.f32.mrb[0].mxu0
      %v1712 = vadd.f32 %v1327, %v1711
      %v1713 = vpop.f32.mrb[0].mxu0
      %1714 = vmatprep.mubr.f32.mxu0 %v793
      %1715 = vmatmul.mubr.f32.gmra.mrb[0].mxu0 %v792
      %v1716 = vpop.f32.mrb[0].mxu0
      %v1717 = vadd.f32 %v1332, %v1716
      %v1718 = vpop.f32.mrb[0].mxu0
      %1719 = vdwg.mxu0
      %1720 = vmatprep.subr.mxu0 0.0
      %1721 = vmatpush1.msra.mxu0 %v863
      %1722 = vmatprep.subr.mxu0 0.0
      %1723 = vmatpush1.msra.mxu0 %v864
      %1724 = vmatprep.subr.mxu0 0.0
      %1725 = vmatpush1.msra.mxu0 %v865
      %1726 = vmatprep.subr.mxu0 0.0
      %1727 = vmatpush1.msra.mxu0 %v866
      %1728 = vmatprep.subr.mxu0 0.0
      %1729 = vmatpush1.msra.mxu0 %v867
      %1730 = vmatprep.subr.mxu0 0.0
      %1731 = vmatpush1.msra.mxu0 %v868
      %1732 = vmatprep.subr.mxu0 0.0
      %1733 = vmatpush1.msra.mxu0 %v869
      %1734 = vmatprep.subr.mxu0 0.0
      %1735 = vmatpush1.msra.mxu0 %v870
      %1736 = vmatprep.subr.mxu0 0.0
      %1737 = vmatpush1.msra.mxu0 %v871
      %1738 = vmatprep.subr.mxu0 0.0
      %1739 = vmatpush1.msra.mxu0 %v872
      %1740 = vmatprep.subr.mxu0 0.0
      %1741 = vmatpush1.msra.mxu0 %v873
      %1742 = vmatprep.subr.mxu0 0.0
      %1743 = vmatpush1.msra.mxu0 %v874
      %1744 = vmatprep.subr.mxu0 0.0
      %1745 = vmatpush1.msra.mxu0 %v875
      %1746 = vmatprep.subr.mxu0 0.0
      %1747 = vmatpush1.msra.mxu0 %v876
      %1748 = vmatprep.subr.mxu0 0.0
      %1749 = vmatpush1.msra.mxu0 %v877
      %1750 = vmatprep.subr.mxu0 0.0
      %1751 = vmatpush1.msra.mxu0 %v878
      %1752 = vmatprep.subr.mxu0 0.0
      %1753 = vmatpush1.msra.mxu0 %v879
      %1754 = vmatprep.subr.mxu0 0.0
      %1755 = vmatpush1.msra.mxu0 %v880
      %1756 = vmatprep.subr.mxu0 0.0
      %1757 = vmatpush1.msra.mxu0 %v881
      %1758 = vmatprep.subr.mxu0 0.0
      %1759 = vmatpush1.msra.mxu0 %v882
      %1760 = vmatprep.subr.mxu0 0.0
      %1761 = vmatpush1.msra.mxu0 %v883
      %1762 = vmatprep.subr.mxu0 0.0
      %1763 = vmatpush1.msra.mxu0 %v884
      %1764 = vmatprep.subr.mxu0 0.0
      %1765 = vmatpush1.msra.mxu0 %v885
      %1766 = vmatprep.subr.mxu0 0.0
      %1767 = vmatpush1.msra.mxu0 %v886
      %1768 = vmatprep.subr.mxu0 0.0
      %1769 = vmatpush1.msra.mxu0 %v887
      %1770 = vmatprep.subr.mxu0 0.0
      %1771 = vmatpush1.msra.mxu0 %v888
      %1772 = vmatprep.subr.mxu0 0.0
      %1773 = vmatpush1.msra.mxu0 %v889
      %1774 = vmatprep.subr.mxu0 0.0
      %1775 = vmatpush1.msra.mxu0 %v890
      %1776 = vmatprep.subr.mxu0 0.0
      %1777 = vmatpush1.msra.mxu0 %v891
      %1778 = vmatprep.subr.mxu0 0.0
      %1779 = vmatpush1.msra.mxu0 %v892
      %1780 = vmatprep.subr.mxu0 0.0
      %1781 = vmatpush1.msra.mxu0 %v893
      %1782 = vmatprep.subr.mxu0 0.0
      %1783 = vmatpush1.msra.mxu0 %v894
      %1784 = vmatprep.mubr.f32.mxu0 %v228
      %1785 = vmatmul.mubr.f32.gmra.mrb[0].mxu0 %v227
      %v1786 = vpop.f32.mrb[0].mxu0
      %v1787 = vadd.f32 %v1402, %v1786
      %v1788 = vpop.f32.mrb[0].mxu0
      %1789 = vmatprep.mubr.f32.mxu0 %v237
      %1790 = vmatmul.mubr.f32.gmra.mrb[0].mxu0 %v236
      %v1791 = vpop.f32.mrb[0].mxu0
      %v1792 = vadd.f32 %v1407, %v1791
      %v1793 = vpop.f32.mrb[0].mxu0
      %1794 = vmatprep.mubr.f32.mxu0 %v246
      %1795 = vmatmul.mubr.f32.gmra.mrb[0].mxu0 %v245
      %v1796 = vpop.f32.mrb[0].mxu0
      %v1797 = vadd.f32 %v1412, %v1796
      %v1798 = vpop.f32.mrb[0].mxu0
      %1799 = vmatprep.mubr.f32.mxu0 %v255
      %1800 = vmatmul.mubr.f32.gmra.mrb[0].mxu0 %v254
      %v1801 = vpop.f32.mrb[0].mxu0
      %v1802 = vadd.f32 %v1417, %v1801
      %v1803 = vpop.f32.mrb[0].mxu0
      %1804 = vmatprep.mubr.f32.mxu0 %v264
      %1805 = vmatmul.mubr.f32.gmra.mrb[0].mxu0 %v263
      %v1806 = vpop.f32.mrb[0].mxu0
      %v1807 = vadd.f32 %v1422, %v1806
      %v1808 = vpop.f32.mrb[0].mxu0
      %1809 = vmatprep.mubr.f32.mxu0 %v273
      %1810 = vmatmul.mubr.f32.gmra.mrb[0].mxu0 %v272
      %v1811 = vpop.f32.mrb[0].mxu0
      %v1812 = vadd.f32 %v1427, %v1811
      %v1813 = vpop.f32.mrb[0].mxu0
      %1814 = vmatprep.mubr.f32.mxu0 %v282
      %1815 = vmatmul.mubr.f32.gmra.mrb[0].mxu0 %v281
      %v1816 = vpop.f32.mrb[0].mxu0
      %v1817 = vadd.f32 %v1432, %v1816
      %v1818 = vpop.f32.mrb[0].mxu0
      %1819 = vmatprep.mubr.f32.mxu0 %v291
      %1820 = vmatmul.mubr.f32.gmra.mrb[0].mxu0 %v290
      %v1821 = vpop.f32.mrb[0].mxu0
      %v1822 = vadd.f32 %v1437, %v1821
      %v1823 = vpop.f32.mrb[0].mxu0
      %1824 = vmatprep.mubr.f32.mxu0 %v300
      %1825 = vmatmul.mubr.f32.gmra.mrb[0].mxu0 %v299
      %v1826 = vpop.f32.mrb[0].mxu0
      %v1827 = vadd.f32 %v1442, %v1826
      %v1828 = vpop.f32.mrb[0].mxu0
      %1829 = vmatprep.mubr.f32.mxu0 %v309
      %1830 = vmatmul.mubr.f32.gmra.mrb[0].mxu0 %v308
      %v1831 = vpop.f32.mrb[0].mxu0
      %v1832 = vadd.f32 %v1447, %v1831
      %v1833 = vpop.f32.mrb[0].mxu0
      %1834 = vmatprep.mubr.f32.mxu0 %v318
      %1835 = vmatmul.mubr.f32.gmra.mrb[0].mxu0 %v317
      %v1836 = vpop.f32.mrb[0].mxu0
      %v1837 = vadd.f32 %v1452, %v1836
      %v1838 = vpop.f32.mrb[0].mxu0
      %1839 = vmatprep.mubr.f32.mxu0 %v327
      %1840 = vmatmul.mubr.f32.gmra.mrb[0].mxu0 %v326
      %v1841 = vpop.f32.mrb[0].mxu0
      %v1842 = vadd.f32 %v1457, %v1841
      %v1843 = vpop.f32.mrb[0].mxu0
      %1844 = vmatprep.mubr.f32.mxu0 %v336
      %1845 = vmatmul.mubr.f32.gmra.mrb[0].mxu0 %v335
      %v1846 = vpop.f32.mrb[0].mxu0
      %v1847 = vadd.f32 %v1462, %v1846
      %v1848 = vpop.f32.mrb[0].mxu0
      %1849 = vmatprep.mubr.f32.mxu0 %v345
      %1850 = vmatmul.mubr.f32.gmra.mrb[0].mxu0 %v344
      %v1851 = vpop.f32.mrb[0].mxu0
      %v1852 = vadd.f32 %v1467, %v1851
      %v1853 = vpop.f32.mrb[0].mxu0
      %1854 = vmatprep.mubr.f32.mxu0 %v354
      %1855 = vmatmul.mubr.f32.gmra.mrb[0].mxu0 %v353
      %v1856 = vpop.f32.mrb[0].mxu0
      %v1857 = vadd.f32 %v1472, %v1856
      %v1858 = vpop.f32.mrb[0].mxu0
      %1859 = vmatprep.mubr.f32.mxu0 %v363
      %1860 = vmatmul.mubr.f32.gmra.mrb[0].mxu0 %v362
      %v1861 = vpop.f32.mrb[0].mxu0
      %v1862 = vadd.f32 %v1477, %v1861
      %v1863 = vpop.f32.mrb[0].mxu0
      %1864 = vmatprep.mubr.f32.mxu0 %v372
      %1865 = vmatmul.mubr.f32.gmra.mrb[0].mxu0 %v371
      %v1866 = vpop.f32.mrb[0].mxu0
      %v1867 = vadd.f32 %v1482, %v1866
      %v1868 = vpop.f32.mrb[0].mxu0
      %1869 = vmatprep.mubr.f32.mxu0 %v381
      %1870 = vmatmul.mubr.f32.gmra.mrb[0].mxu0 %v380
      %v1871 = vpop.f32.mrb[0].mxu0
      %v1872 = vadd.f32 %v1487, %v1871
      %v1873 = vpop.f32.mrb[0].mxu0
      %1874 = vmatprep.mubr.f32.mxu0 %v390
      %1875 = vmatmul.mubr.f32.gmra.mrb[0].mxu0 %v389
      %v1876 = vpop.f32.mrb[0].mxu0
      %v1877 = vadd.f32 %v1492, %v1876
      %v1878 = vpop.f32.mrb[0].mxu0
      %1879 = vmatprep.mubr.f32.mxu0 %v399
      %1880 = vmatmul.mubr.f32.gmra.mrb[0].mxu0 %v398
      %v1881 = vpop.f32.mrb[0].mxu0
      %v1882 = vadd.f32 %v1497, %v1881
      %v1883 = vpop.f32.mrb[0].mxu0
      %1884 = vmatprep.mubr.f32.mxu0 %v408
      %1885 = vmatmul.mubr.f32.gmra.mrb[0].mxu0 %v407
      %v1886 = vpop.f32.mrb[0].mxu0
      %v1887 = vadd.f32 %v1502, %v1886
      %v1888 = vpop.f32.mrb[0].mxu0
      %1889 = vmatprep.mubr.f32.mxu0 %v417
      %1890 = vmatmul.mubr.f32.gmra.mrb[0].mxu0 %v416
      %v1891 = vpop.f32.mrb[0].mxu0
      %v1892 = vadd.f32 %v1507, %v1891
      %v1893 = vpop.f32.mrb[0].mxu0
      %1894 = vmatprep.mubr.f32.mxu0 %v426
      %1895 = vmatmul.mubr.f32.gmra.mrb[0].mxu0 %v425
      %v1896 = vpop.f32.mrb[0].mxu0
      %v1897 = vadd.f32 %v1512, %v1896
      %v1898 = vpop.f32.mrb[0].mxu0
      %1899 = vmatprep.mubr.f32.mxu0 %v435
      %1900 = vmatmul.mubr.f32.gmra.mrb[0].mxu0 %v434
      %v1901 = vpop.f32.mrb[0].mxu0
      %v1902 = vadd.f32 %v1517, %v1901
      %v1903 = vpop.f32.mrb[0].mxu0
      %1904 = vmatprep.mubr.f32.mxu0 %v444
      %1905 = vmatmul.mubr.f32.gmra.mrb[0].mxu0 %v443
      %v1906 = vpop.f32.mrb[0].mxu0
      %v1907 = vadd.f32 %v1522, %v1906
      %v1908 = vpop.f32.mrb[0].mxu0
      %1909 = vmatprep.mubr.f32.mxu0 %v453
      %1910 = vmatmul.mubr.f32.gmra.mrb[0].mxu0 %v452
      %v1911 = vpop.f32.mrb[0].mxu0
      %v1912 = vadd.f32 %v1527, %v1911
      %v1913 = vpop.f32.mrb[0].mxu0
      %1914 = vmatprep.mubr.f32.mxu0 %v462
      %1915 = vmatmul.mubr.f32.gmra.mrb[0].mxu0 %v461
      %v1916 = vpop.f32.mrb[0].mxu0
      %v1917 = vadd.f32 %v1532, %v1916
      %v1918 = vpop.f32.mrb[0].mxu0
      %1919 = vmatprep.mubr.f32.mxu0 %v471
      %1920 = vmatmul.mubr.f32.gmra.mrb[0].mxu0 %v470
      %v1921 = vpop.f32.mrb[0].mxu0
      %v1922 = vadd.f32 %v1537, %v1921
      %v1923 = vpop.f32.mrb[0].mxu0
      %1924 = vmatprep.mubr.f32.mxu0 %v480
      %1925 = vmatmul.mubr.f32.gmra.mrb[0].mxu0 %v479
      %v1926 = vpop.f32.mrb[0].mxu0
      %v1927 = vadd.f32 %v1542, %v1926
      %v1928 = vpop.f32.mrb[0].mxu0
      %1929 = vmatprep.mubr.f32.mxu0 %v489
      %1930 = vmatmul.mubr.f32.gmra.mrb[0].mxu0 %v488
      %v1931 = vpop.f32.mrb[0].mxu0
      %v1932 = vadd.f32 %v1547, %v1931
      %v1933 = vpop.f32.mrb[0].mxu0
      %1934 = vmatprep.mubr.f32.mxu0 %v498
      %1935 = vmatmul.mubr.f32.gmra.mrb[0].mxu0 %v497
      %v1936 = vpop.f32.mrb[0].mxu0
      %v1937 = vadd.f32 %v1552, %v1936
      %v1938 = vpop.f32.mrb[0].mxu0
      %1939 = vmatprep.mubr.f32.mxu0 %v507
      %1940 = vmatmul.mubr.f32.gmra.mrb[0].mxu0 %v506
      %v1941 = vpop.f32.mrb[0].mxu0
      %v1942 = vadd.f32 %v1557, %v1941
      %v1943 = vpop.f32.mrb[0].mxu0
      %1944 = vmatprep.mubr.f32.mxu0 %v516
      %1945 = vmatmul.mubr.f32.gmra.mrb[0].mxu0 %v515
      %v1946 = vpop.f32.mrb[0].mxu0
      %v1947 = vadd.f32 %v1562, %v1946
      %v1948 = vpop.f32.mrb[0].mxu0
      %1949 = vmatprep.mubr.f32.mxu0 %v525
      %1950 = vmatmul.mubr.f32.gmra.mrb[0].mxu0 %v524
      %v1951 = vpop.f32.mrb[0].mxu0
      %v1952 = vadd.f32 %v1567, %v1951
      %v1953 = vpop.f32.mrb[0].mxu0
      %1954 = vmatprep.mubr.f32.mxu0 %v534
      %1955 = vmatmul.mubr.f32.gmra.mrb[0].mxu0 %v533
      %v1956 = vpop.f32.mrb[0].mxu0
      %v1957 = vadd.f32 %v1572, %v1956
      %v1958 = vpop.f32.mrb[0].mxu0
      %1959 = vmatprep.mubr.f32.mxu0 %v543
      %1960 = vmatmul.mubr.f32.gmra.mrb[0].mxu0 %v542
      %v1961 = vpop.f32.mrb[0].mxu0
      %v1962 = vadd.f32 %v1577, %v1961
      %v1963 = vpop.f32.mrb[0].mxu0
      %1964 = vmatprep.mubr.f32.mxu0 %v552
      %1965 = vmatmul.mubr.f32.gmra.mrb[0].mxu0 %v551
      %v1966 = vpop.f32.mrb[0].mxu0
      %v1967 = vadd.f32 %v1582, %v1966
      %v1968 = vpop.f32.mrb[0].mxu0
      %1969 = vmatprep.mubr.f32.mxu0 %v561
      %1970 = vmatmul.mubr.f32.gmra.mrb[0].mxu0 %v560
      %v1971 = vpop.f32.mrb[0].mxu0
      %v1972 = vadd.f32 %v1587, %v1971
      %v1973 = vpop.f32.mrb[0].mxu0
      %1974 = vmatprep.mubr.f32.mxu0 %v570
      %1975 = vmatmul.mubr.f32.gmra.mrb[0].mxu0 %v569
      %v1976 = vpop.f32.mrb[0].mxu0
      %v1977 = vadd.f32 %v1592, %v1976
      %v1978 = vpop.f32.mrb[0].mxu0
      %1979 = vmatprep.mubr.f32.mxu0 %v579
      %1980 = vmatmul.mubr.f32.gmra.mrb[0].mxu0 %v578
      %v1981 = vpop.f32.mrb[0].mxu0
      %v1982 = vadd.f32 %v1597, %v1981
      %v1983 = vpop.f32.mrb[0].mxu0
      %1984 = vmatprep.mubr.f32.mxu0 %v588
      %1985 = vmatmul.mubr.f32.gmra.mrb[0].mxu0 %v587
      %v1986 = vpop.f32.mrb[0].mxu0
      %v1987 = vadd.f32 %v1602, %v1986
      %v1988 = vpop.f32.mrb[0].mxu0
      %1989 = vmatprep.mubr.f32.mxu0 %v597
      %1990 = vmatmul.mubr.f32.gmra.mrb[0].mxu0 %v596
      %v1991 = vpop.f32.mrb[0].mxu0
      %v1992 = vadd.f32 %v1607, %v1991
      %v1993 = vpop.f32.mrb[0].mxu0
      %1994 = vmatprep.mubr.f32.mxu0 %v606
      %1995 = vmatmul.mubr.f32.gmra.mrb[0].mxu0 %v605
      %v1996 = vpop.f32.mrb[0].mxu0
      %v1997 = vadd.f32 %v1612, %v1996
      %v1998 = vpop.f32.mrb[0].mxu0
      %1999 = vmatprep.mubr.f32.mxu0 %v615
      %2000 = vmatmul.mubr.f32.gmra.mrb[0].mxu0 %v614
      %v2001 = vpop.f32.mrb[0].mxu0
      %v2002 = vadd.f32 %v1617, %v2001
      %v2003 = vpop.f32.mrb[0].mxu0
      %2004 = vmatprep.mubr.f32.mxu0 %v624
      %2005 = vmatmul.mubr.f32.gmra.mrb[0].mxu0 %v623
      %v2006 = vpop.f32.mrb[0].mxu0
      %v2007 = vadd.f32 %v1622, %v2006
      %v2008 = vpop.f32.mrb[0].mxu0
      %2009 = vmatprep.mubr.f32.mxu0 %v633
      %2010 = vmatmul.mubr.f32.gmra.mrb[0].mxu0 %v632
      %v2011 = vpop.f32.mrb[0].mxu0
      %v2012 = vadd.f32 %v1627, %v2011
      %v2013 = vpop.f32.mrb[0].mxu0
      %2014 = vmatprep.mubr.f32.mxu0 %v642
      %2015 = vmatmul.mubr.f32.gmra.mrb[0].mxu0 %v641
      %v2016 = vpop.f32.mrb[0].mxu0
      %v2017 = vadd.f32 %v1632, %v2016
      %v2018 = vpop.f32.mrb[0].mxu0
      %2019 = vmatprep.mubr.f32.mxu0 %v651
      %2020 = vmatmul.mubr.f32.gmra.mrb[0].mxu0 %v650
      %v2021 = vpop.f32.mrb[0].mxu0
      %v2022 = vadd.f32 %v1637, %v2021
      %v2023 = vpop.f32.mrb[0].mxu0
      %2024 = vmatprep.mubr.f32.mxu0 %v660
      %2025 = vmatmul.mubr.f32.gmra.mrb[0].mxu0 %v659
      %v2026 = vpop.f32.mrb[0].mxu0
      %v2027 = vadd.f32 %v1642, %v2026
      %v2028 = vpop.f32.mrb[0].mxu0
      %2029 = vmatprep.mubr.f32.mxu0 %v669
      %2030 = vmatmul.mubr.f32.gmra.mrb[0].mxu0 %v668
      %v2031 = vpop.f32.mrb[0].mxu0
      %v2032 = vadd.f32 %v1647, %v2031
      %v2033 = vpop.f32.mrb[0].mxu0
      %2034 = vmatprep.mubr.f32.mxu0 %v678
      %2035 = vmatmul.mubr.f32.gmra.mrb[0].mxu0 %v677
      %v2036 = vpop.f32.mrb[0].mxu0
      %v2037 = vadd.f32 %v1652, %v2036
      %v2038 = vpop.f32.mrb[0].mxu0
      %2039 = vmatprep.mubr.f32.mxu0 %v687
      %2040 = vmatmul.mubr.f32.gmra.mrb[0].mxu0 %v686
      %v2041 = vpop.f32.mrb[0].mxu0
      %v2042 = vadd.f32 %v1657, %v2041
      %v2043 = vpop.f32.mrb[0].mxu0
      %2044 = vmatprep.mubr.f32.mxu0 %v696
      %2045 = vmatmul.mubr.f32.gmra.mrb[0].mxu0 %v695
      %v2046 = vpop.f32.mrb[0].mxu0
      %v2047 = vadd.f32 %v1662, %v2046
      %v2048 = vpop.f32.mrb[0].mxu0
      %2049 = vmatprep.mubr.f32.mxu0 %v705
      %2050 = vmatmul.mubr.f32.gmra.mrb[0].mxu0 %v704
      %v2051 = vpop.f32.mrb[0].mxu0
      %v2052 = vadd.f32 %v1667, %v2051
      %v2053 = vpop.f32.mrb[0].mxu0
      %2054 = vmatprep.mubr.f32.mxu0 %v714
      %2055 = vmatmul.mubr.f32.gmra.mrb[0].mxu0 %v713
      %v2056 = vpop.f32.mrb[0].mxu0
      %v2057 = vadd.f32 %v1672, %v2056
      %v2058 = vpop.f32.mrb[0].mxu0
      %2059 = vmatprep.mubr.f32.mxu0 %v723
      %2060 = vmatmul.mubr.f32.gmra.mrb[0].mxu0 %v722
      %v2061 = vpop.f32.mrb[0].mxu0
      %v2062 = vadd.f32 %v1677, %v2061
      %v2063 = vpop.f32.mrb[0].mxu0
      %2064 = vmatprep.mubr.f32.mxu0 %v732
      %2065 = vmatmul.mubr.f32.gmra.mrb[0].mxu0 %v731
      %v2066 = vpop.f32.mrb[0].mxu0
      %v2067 = vadd.f32 %v1682, %v2066
      %v2068 = vpop.f32.mrb[0].mxu0
      %2069 = vmatprep.mubr.f32.mxu0 %v741
      %2070 = vmatmul.mubr.f32.gmra.mrb[0].mxu0 %v740
      %v2071 = vpop.f32.mrb[0].mxu0
      %v2072 = vadd.f32 %v1687, %v2071
      %v2073 = vpop.f32.mrb[0].mxu0
      %2074 = vmatprep.mubr.f32.mxu0 %v750
      %2075 = vmatmul.mubr.f32.gmra.mrb[0].mxu0 %v749
      %v2076 = vpop.f32.mrb[0].mxu0
      %v2077 = vadd.f32 %v1692, %v2076
      %v2078 = vpop.f32.mrb[0].mxu0
      %2079 = vmatprep.mubr.f32.mxu0 %v759
      %2080 = vmatmul.mubr.f32.gmra.mrb[0].mxu0 %v758
      %v2081 = vpop.f32.mrb[0].mxu0
      %v2082 = vadd.f32 %v1697, %v2081
      %v2083 = vpop.f32.mrb[0].mxu0
      %2084 = vmatprep.mubr.f32.mxu0 %v768
      %2085 = vmatmul.mubr.f32.gmra.mrb[0].mxu0 %v767
      %v2086 = vpop.f32.mrb[0].mxu0
      %v2087 = vadd.f32 %v1702, %v2086
      %v2088 = vpop.f32.mrb[0].mxu0
      %2089 = vmatprep.mubr.f32.mxu0 %v777
      %2090 = vmatmul.mubr.f32.gmra.mrb[0].mxu0 %v776
      %v2091 = vpop.f32.mrb[0].mxu0
      %v2092 = vadd.f32 %v1707, %v2091
      %v2093 = vpop.f32.mrb[0].mxu0
      %2094 = vmatprep.mubr.f32.mxu0 %v786
      %2095 = vmatmul.mubr.f32.gmra.mrb[0].mxu0 %v785
      %v2096 = vpop.f32.mrb[0].mxu0
      %v2097 = vadd.f32 %v1712, %v2096
      %v2098 = vpop.f32.mrb[0].mxu0
      %2099 = vmatprep.mubr.f32.mxu0 %v795
      %2100 = vmatmul.mubr.f32.gmra.mrb[0].mxu0 %v794
      %v2101 = vpop.f32.mrb[0].mxu0
      %v2102 = vadd.f32 %v1717, %v2101
      %v2103 = vpop.f32.mrb[0].mxu0
      %2104 = vdwg.mxu0
      %2105 = vmatprep.subr.mxu0 0.0
      %2106 = vmatpush1.msra.mxu0 %v895
      %2107 = vmatprep.subr.mxu0 0.0
      %2108 = vmatpush1.msra.mxu0 %v896
      %2109 = vmatprep.subr.mxu0 0.0
      %2110 = vmatpush1.msra.mxu0 %v897
      %2111 = vmatprep.subr.mxu0 0.0
      %2112 = vmatpush1.msra.mxu0 %v898
      %2113 = vmatprep.subr.mxu0 0.0
      %2114 = vmatpush1.msra.mxu0 %v899
      %2115 = vmatprep.subr.mxu0 0.0
      %2116 = vmatpush1.msra.mxu0 %v900
      %2117 = vmatprep.subr.mxu0 0.0
      %2118 = vmatpush1.msra.mxu0 %v901
      %2119 = vmatprep.subr.mxu0 0.0
      %2120 = vmatpush1.msra.mxu0 %v902
      %2121 = vmatprep.subr.mxu0 0.0
      %2122 = vmatpush1.msra.mxu0 %v903
      %2123 = vmatprep.subr.mxu0 0.0
      %2124 = vmatpush1.msra.mxu0 %v904
      %2125 = vmatprep.subr.mxu0 0.0
      %2126 = vmatpush1.msra.mxu0 %v905
      %2127 = vmatprep.subr.mxu0 0.0
      %2128 = vmatpush1.msra.mxu0 %v906
      %2129 = vmatprep.subr.mxu0 0.0
      %2130 = vmatpush1.msra.mxu0 %v907
      %2131 = vmatprep.subr.mxu0 0.0
      %2132 = vmatpush1.msra.mxu0 %v908
      %2133 = vmatprep.subr.mxu0 0.0
      %2134 = vmatpush1.msra.mxu0 %v909
      %2135 = vmatprep.subr.mxu0 0.0
      %2136 = vmatpush1.msra.mxu0 %v910
      %2137 = vmatprep.subr.mxu0 0.0
      %2138 = vmatpush1.msra.mxu0 %v911
      %2139 = vmatprep.subr.mxu0 0.0
      %2140 = vmatpush1.msra.mxu0 %v912
      %2141 = vmatprep.subr.mxu0 0.0
      %2142 = vmatpush1.msra.mxu0 %v913
      %2143 = vmatprep.subr.mxu0 0.0
      %2144 = vmatpush1.msra.mxu0 %v914
      %2145 = vmatprep.subr.mxu0 0.0
      %2146 = vmatpush1.msra.mxu0 %v915
      %2147 = vmatprep.subr.mxu0 0.0
      %2148 = vmatpush1.msra.mxu0 %v916
      %2149 = vmatprep.subr.mxu0 0.0
      %2150 = vmatpush1.msra.mxu0 %v917
      %2151 = vmatprep.subr.mxu0 0.0
      %2152 = vmatpush1.msra.mxu0 %v918
      %2153 = vmatprep.subr.mxu0 0.0
      %2154 = vmatpush1.msra.mxu0 %v919
      %2155 = vmatprep.subr.mxu0 0.0
      %2156 = vmatpush1.msra.mxu0 %v920
      %2157 = vmatprep.subr.mxu0 0.0
      %2158 = vmatpush1.msra.mxu0 %v921
      %2159 = vmatprep.subr.mxu0 0.0
      %2160 = vmatpush1.msra.mxu0 %v922
      %2161 = vmatprep.subr.mxu0 0.0
      %2162 = vmatpush1.msra.mxu0 %v923
      %2163 = vmatprep.subr.mxu0 0.0
      %2164 = vmatpush1.msra.mxu0 %v924
      %2165 = vmatprep.subr.mxu0 0.0
      %2166 = vmatpush1.msra.mxu0 %v925
      %2167 = vmatprep.subr.mxu0 0.0
      %2168 = vmatpush1.msra.mxu0 %v926
      %2169 = vmatprep.mubr.f32.mxu0 %v230
      %2170 = vmatmul.mubr.f32.gmra.mrb[0].mxu0 %v229
      %v2171 = vpop.f32.mrb[0].mxu0
      %v2172 = vadd.f32 %v1787, %v2171
      %v2173 = vpop.f32.mrb[0].mxu0
      %2174 = vmatprep.mubr.f32.mxu0 %v239
      %2175 = vmatmul.mubr.f32.gmra.mrb[0].mxu0 %v238
      %v2176 = vpop.f32.mrb[0].mxu0
      %v2177 = vadd.f32 %v1792, %v2176
      %v2178 = vpop.f32.mrb[0].mxu0
      %2179 = vmatprep.mubr.f32.mxu0 %v248
      %2180 = vmatmul.mubr.f32.gmra.mrb[0].mxu0 %v247
      %v2181 = vpop.f32.mrb[0].mxu0
      %v2182 = vadd.f32 %v1797, %v2181
      %v2183 = vpop.f32.mrb[0].mxu0
      %2184 = vmatprep.mubr.f32.mxu0 %v257
      %2185 = vmatmul.mubr.f32.gmra.mrb[0].mxu0 %v256
      %v2186 = vpop.f32.mrb[0].mxu0
      %v2187 = vadd.f32 %v1802, %v2186
      %v2188 = vpop.f32.mrb[0].mxu0
      %2189 = vmatprep.mubr.f32.mxu0 %v266
      %2190 = vmatmul.mubr.f32.gmra.mrb[0].mxu0 %v265
      %v2191 = vpop.f32.mrb[0].mxu0
      %v2192 = vadd.f32 %v1807, %v2191
      %v2193 = vpop.f32.mrb[0].mxu0
      %2194 = vmatprep.mubr.f32.mxu0 %v275
      %2195 = vmatmul.mubr.f32.gmra.mrb[0].mxu0 %v274
      %v2196 = vpop.f32.mrb[0].mxu0
      %v2197 = vadd.f32 %v1812, %v2196
      %v2198 = vpop.f32.mrb[0].mxu0
      %2199 = vmatprep.mubr.f32.mxu0 %v284
      %2200 = vmatmul.mubr.f32.gmra.mrb[0].mxu0 %v283
      %v2201 = vpop.f32.mrb[0].mxu0
      %v2202 = vadd.f32 %v1817, %v2201
      %v2203 = vpop.f32.mrb[0].mxu0
      %2204 = vmatprep.mubr.f32.mxu0 %v293
      %2205 = vmatmul.mubr.f32.gmra.mrb[0].mxu0 %v292
      %v2206 = vpop.f32.mrb[0].mxu0
      %v2207 = vadd.f32 %v1822, %v2206
      %v2208 = vpop.f32.mrb[0].mxu0
      %2209 = vmatprep.mubr.f32.mxu0 %v302
      %2210 = vmatmul.mubr.f32.gmra.mrb[0].mxu0 %v301
      %v2211 = vpop.f32.mrb[0].mxu0
      %v2212 = vadd.f32 %v1827, %v2211
      %v2213 = vpop.f32.mrb[0].mxu0
      %2214 = vmatprep.mubr.f32.mxu0 %v311
      %2215 = vmatmul.mubr.f32.gmra.mrb[0].mxu0 %v310
      %v2216 = vpop.f32.mrb[0].mxu0
      %v2217 = vadd.f32 %v1832, %v2216
      %v2218 = vpop.f32.mrb[0].mxu0
      %2219 = vmatprep.mubr.f32.mxu0 %v320
      %2220 = vmatmul.mubr.f32.gmra.mrb[0].mxu0 %v319
      %v2221 = vpop.f32.mrb[0].mxu0
      %v2222 = vadd.f32 %v1837, %v2221
      %v2223 = vpop.f32.mrb[0].mxu0
      %2224 = vmatprep.mubr.f32.mxu0 %v329
      %2225 = vmatmul.mubr.f32.gmra.mrb[0].mxu0 %v328
      %v2226 = vpop.f32.mrb[0].mxu0
      %v2227 = vadd.f32 %v1842, %v2226
      %v2228 = vpop.f32.mrb[0].mxu0
      %2229 = vmatprep.mubr.f32.mxu0 %v338
      %2230 = vmatmul.mubr.f32.gmra.mrb[0].mxu0 %v337
      %v2231 = vpop.f32.mrb[0].mxu0
      %v2232 = vadd.f32 %v1847, %v2231
      %v2233 = vpop.f32.mrb[0].mxu0
      %2234 = vmatprep.mubr.f32.mxu0 %v347
      %2235 = vmatmul.mubr.f32.gmra.mrb[0].mxu0 %v346
      %v2236 = vpop.f32.mrb[0].mxu0
      %v2237 = vadd.f32 %v1852, %v2236
      %v2238 = vpop.f32.mrb[0].mxu0
      %2239 = vmatprep.mubr.f32.mxu0 %v356
      %2240 = vmatmul.mubr.f32.gmra.mrb[0].mxu0 %v355
      %v2241 = vpop.f32.mrb[0].mxu0
      %v2242 = vadd.f32 %v1857, %v2241
      %v2243 = vpop.f32.mrb[0].mxu0
      %2244 = vmatprep.mubr.f32.mxu0 %v365
      %2245 = vmatmul.mubr.f32.gmra.mrb[0].mxu0 %v364
      %v2246 = vpop.f32.mrb[0].mxu0
      %v2247 = vadd.f32 %v1862, %v2246
      %v2248 = vpop.f32.mrb[0].mxu0
      %2249 = vmatprep.mubr.f32.mxu0 %v374
      %2250 = vmatmul.mubr.f32.gmra.mrb[0].mxu0 %v373
      %v2251 = vpop.f32.mrb[0].mxu0
      %v2252 = vadd.f32 %v1867, %v2251
      %v2253 = vpop.f32.mrb[0].mxu0
      %2254 = vmatprep.mubr.f32.mxu0 %v383
      %2255 = vmatmul.mubr.f32.gmra.mrb[0].mxu0 %v382
      %v2256 = vpop.f32.mrb[0].mxu0
      %v2257 = vadd.f32 %v1872, %v2256
      %v2258 = vpop.f32.mrb[0].mxu0
      %2259 = vmatprep.mubr.f32.mxu0 %v392
      %2260 = vmatmul.mubr.f32.gmra.mrb[0].mxu0 %v391
      %v2261 = vpop.f32.mrb[0].mxu0
      %v2262 = vadd.f32 %v1877, %v2261
      %v2263 = vpop.f32.mrb[0].mxu0
      %2264 = vmatprep.mubr.f32.mxu0 %v401
      %2265 = vmatmul.mubr.f32.gmra.mrb[0].mxu0 %v400
      %v2266 = vpop.f32.mrb[0].mxu0
      %v2267 = vadd.f32 %v1882, %v2266
      %v2268 = vpop.f32.mrb[0].mxu0
      %2269 = vmatprep.mubr.f32.mxu0 %v410
      %2270 = vmatmul.mubr.f32.gmra.mrb[0].mxu0 %v409
      %v2271 = vpop.f32.mrb[0].mxu0
      %v2272 = vadd.f32 %v1887, %v2271
      %v2273 = vpop.f32.mrb[0].mxu0
      %2274 = vmatprep.mubr.f32.mxu0 %v419
      %2275 = vmatmul.mubr.f32.gmra.mrb[0].mxu0 %v418
      %v2276 = vpop.f32.mrb[0].mxu0
      %v2277 = vadd.f32 %v1892, %v2276
      %v2278 = vpop.f32.mrb[0].mxu0
      %2279 = vmatprep.mubr.f32.mxu0 %v428
      %2280 = vmatmul.mubr.f32.gmra.mrb[0].mxu0 %v427
      %v2281 = vpop.f32.mrb[0].mxu0
      %v2282 = vadd.f32 %v1897, %v2281
      %v2283 = vpop.f32.mrb[0].mxu0
      %2284 = vmatprep.mubr.f32.mxu0 %v437
      %2285 = vmatmul.mubr.f32.gmra.mrb[0].mxu0 %v436
      %v2286 = vpop.f32.mrb[0].mxu0
      %v2287 = vadd.f32 %v1902, %v2286
      %v2288 = vpop.f32.mrb[0].mxu0
      %2289 = vmatprep.mubr.f32.mxu0 %v446
      %2290 = vmatmul.mubr.f32.gmra.mrb[0].mxu0 %v445
      %v2291 = vpop.f32.mrb[0].mxu0
      %v2292 = vadd.f32 %v1907, %v2291
      %v2293 = vpop.f32.mrb[0].mxu0
      %2294 = vmatprep.mubr.f32.mxu0 %v455
      %2295 = vmatmul.mubr.f32.gmra.mrb[0].mxu0 %v454
      %v2296 = vpop.f32.mrb[0].mxu0
      %v2297 = vadd.f32 %v1912, %v2296
      %v2298 = vpop.f32.mrb[0].mxu0
      %2299 = vmatprep.mubr.f32.mxu0 %v464
      %2300 = vmatmul.mubr.f32.gmra.mrb[0].mxu0 %v463
      %v2301 = vpop.f32.mrb[0].mxu0
      %v2302 = vadd.f32 %v1917, %v2301
      %v2303 = vpop.f32.mrb[0].mxu0
      %2304 = vmatprep.mubr.f32.mxu0 %v473
      %2305 = vmatmul.mubr.f32.gmra.mrb[0].mxu0 %v472
      %v2306 = vpop.f32.mrb[0].mxu0
      %v2307 = vadd.f32 %v1922, %v2306
      %v2308 = vpop.f32.mrb[0].mxu0
      %2309 = vmatprep.mubr.f32.mxu0 %v482
      %2310 = vmatmul.mubr.f32.gmra.mrb[0].mxu0 %v481
      %v2311 = vpop.f32.mrb[0].mxu0
      %v2312 = vadd.f32 %v1927, %v2311
      %v2313 = vpop.f32.mrb[0].mxu0
      %2314 = vmatprep.mubr.f32.mxu0 %v491
      %2315 = vmatmul.mubr.f32.gmra.mrb[0].mxu0 %v490
      %v2316 = vpop.f32.mrb[0].mxu0
      %v2317 = vadd.f32 %v1932, %v2316
      %v2318 = vpop.f32.mrb[0].mxu0
      %2319 = vmatprep.mubr.f32.mxu0 %v500
      %2320 = vmatmul.mubr.f32.gmra.mrb[0].mxu0 %v499
      %v2321 = vpop.f32.mrb[0].mxu0
      %v2322 = vadd.f32 %v1937, %v2321
      %v2323 = vpop.f32.mrb[0].mxu0
      %2324 = vmatprep.mubr.f32.mxu0 %v509
      %2325 = vmatmul.mubr.f32.gmra.mrb[0].mxu0 %v508
      %v2326 = vpop.f32.mrb[0].mxu0
      %v2327 = vadd.f32 %v1942, %v2326
      %v2328 = vpop.f32.mrb[0].mxu0
      %2329 = vmatprep.mubr.f32.mxu0 %v518
      %2330 = vmatmul.mubr.f32.gmra.mrb[0].mxu0 %v517
      %v2331 = vpop.f32.mrb[0].mxu0
      %v2332 = vadd.f32 %v1947, %v2331
      %v2333 = vpop.f32.mrb[0].mxu0
      %2334 = vmatprep.mubr.f32.mxu0 %v527
      %2335 = vmatmul.mubr.f32.gmra.mrb[0].mxu0 %v526
      %v2336 = vpop.f32.mrb[0].mxu0
      %v2337 = vadd.f32 %v1952, %v2336
      %v2338 = vpop.f32.mrb[0].mxu0
      %2339 = vmatprep.mubr.f32.mxu0 %v536
      %2340 = vmatmul.mubr.f32.gmra.mrb[0].mxu0 %v535
      %v2341 = vpop.f32.mrb[0].mxu0
      %v2342 = vadd.f32 %v1957, %v2341
      %v2343 = vpop.f32.mrb[0].mxu0
      %2344 = vmatprep.mubr.f32.mxu0 %v545
      %2345 = vmatmul.mubr.f32.gmra.mrb[0].mxu0 %v544
      %v2346 = vpop.f32.mrb[0].mxu0
      %v2347 = vadd.f32 %v1962, %v2346
      %v2348 = vpop.f32.mrb[0].mxu0
      %2349 = vmatprep.mubr.f32.mxu0 %v554
      %2350 = vmatmul.mubr.f32.gmra.mrb[0].mxu0 %v553
      %v2351 = vpop.f32.mrb[0].mxu0
      %v2352 = vadd.f32 %v1967, %v2351
      %v2353 = vpop.f32.mrb[0].mxu0
      %2354 = vmatprep.mubr.f32.mxu0 %v563
      %2355 = vmatmul.mubr.f32.gmra.mrb[0].mxu0 %v562
      %v2356 = vpop.f32.mrb[0].mxu0
      %v2357 = vadd.f32 %v1972, %v2356
      %v2358 = vpop.f32.mrb[0].mxu0
      %2359 = vmatprep.mubr.f32.mxu0 %v572
      %2360 = vmatmul.mubr.f32.gmra.mrb[0].mxu0 %v571
      %v2361 = vpop.f32.mrb[0].mxu0
      %v2362 = vadd.f32 %v1977, %v2361
      %v2363 = vpop.f32.mrb[0].mxu0
      %2364 = vmatprep.mubr.f32.mxu0 %v581
      %2365 = vmatmul.mubr.f32.gmra.mrb[0].mxu0 %v580
      %v2366 = vpop.f32.mrb[0].mxu0
      %v2367 = vadd.f32 %v1982, %v2366
      %v2368 = vpop.f32.mrb[0].mxu0
      %2369 = vmatprep.mubr.f32.mxu0 %v590
      %2370 = vmatmul.mubr.f32.gmra.mrb[0].mxu0 %v589
      %v2371 = vpop.f32.mrb[0].mxu0
      %v2372 = vadd.f32 %v1987, %v2371
      %v2373 = vpop.f32.mrb[0].mxu0
      %2374 = vmatprep.mubr.f32.mxu0 %v599
      %2375 = vmatmul.mubr.f32.gmra.mrb[0].mxu0 %v598
      %v2376 = vpop.f32.mrb[0].mxu0
      %v2377 = vadd.f32 %v1992, %v2376
      %v2378 = vpop.f32.mrb[0].mxu0
      %2379 = vmatprep.mubr.f32.mxu0 %v608
      %2380 = vmatmul.mubr.f32.gmra.mrb[0].mxu0 %v607
      %v2381 = vpop.f32.mrb[0].mxu0
      %v2382 = vadd.f32 %v1997, %v2381
      %v2383 = vpop.f32.mrb[0].mxu0
      %2384 = vmatprep.mubr.f32.mxu0 %v617
      %2385 = vmatmul.mubr.f32.gmra.mrb[0].mxu0 %v616
      %v2386 = vpop.f32.mrb[0].mxu0
      %v2387 = vadd.f32 %v2002, %v2386
      %v2388 = vpop.f32.mrb[0].mxu0
      %2389 = vmatprep.mubr.f32.mxu0 %v626
      %2390 = vmatmul.mubr.f32.gmra.mrb[0].mxu0 %v625
      %v2391 = vpop.f32.mrb[0].mxu0
      %v2392 = vadd.f32 %v2007, %v2391
      %v2393 = vpop.f32.mrb[0].mxu0
      %2394 = vmatprep.mubr.f32.mxu0 %v635
      %2395 = vmatmul.mubr.f32.gmra.mrb[0].mxu0 %v634
      %v2396 = vpop.f32.mrb[0].mxu0
      %v2397 = vadd.f32 %v2012, %v2396
      %v2398 = vpop.f32.mrb[0].mxu0
      %2399 = vmatprep.mubr.f32.mxu0 %v644
      %2400 = vmatmul.mubr.f32.gmra.mrb[0].mxu0 %v643
      %v2401 = vpop.f32.mrb[0].mxu0
      %v2402 = vadd.f32 %v2017, %v2401
      %v2403 = vpop.f32.mrb[0].mxu0
      %2404 = vmatprep.mubr.f32.mxu0 %v653
      %2405 = vmatmul.mubr.f32.gmra.mrb[0].mxu0 %v652
      %v2406 = vpop.f32.mrb[0].mxu0
      %v2407 = vadd.f32 %v2022, %v2406
      %v2408 = vpop.f32.mrb[0].mxu0
      %2409 = vmatprep.mubr.f32.mxu0 %v662
      %2410 = vmatmul.mubr.f32.gmra.mrb[0].mxu0 %v661
      %v2411 = vpop.f32.mrb[0].mxu0
      %v2412 = vadd.f32 %v2027, %v2411
      %v2413 = vpop.f32.mrb[0].mxu0
      %2414 = vmatprep.mubr.f32.mxu0 %v671
      %2415 = vmatmul.mubr.f32.gmra.mrb[0].mxu0 %v670
      %v2416 = vpop.f32.mrb[0].mxu0
      %v2417 = vadd.f32 %v2032, %v2416
      %v2418 = vpop.f32.mrb[0].mxu0
      %2419 = vmatprep.mubr.f32.mxu0 %v680
      %2420 = vmatmul.mubr.f32.gmra.mrb[0].mxu0 %v679
      %v2421 = vpop.f32.mrb[0].mxu0
      %v2422 = vadd.f32 %v2037, %v2421
      %v2423 = vpop.f32.mrb[0].mxu0
      %2424 = vmatprep.mubr.f32.mxu0 %v689
      %2425 = vmatmul.mubr.f32.gmra.mrb[0].mxu0 %v688
      %v2426 = vpop.f32.mrb[0].mxu0
      %v2427 = vadd.f32 %v2042, %v2426
      %v2428 = vpop.f32.mrb[0].mxu0
      %2429 = vmatprep.mubr.f32.mxu0 %v698
      %2430 = vmatmul.mubr.f32.gmra.mrb[0].mxu0 %v697
      %v2431 = vpop.f32.mrb[0].mxu0
      %v2432 = vadd.f32 %v2047, %v2431
      %v2433 = vpop.f32.mrb[0].mxu0
      %2434 = vmatprep.mubr.f32.mxu0 %v707
      %2435 = vmatmul.mubr.f32.gmra.mrb[0].mxu0 %v706
      %v2436 = vpop.f32.mrb[0].mxu0
      %v2437 = vadd.f32 %v2052, %v2436
      %v2438 = vpop.f32.mrb[0].mxu0
      %2439 = vmatprep.mubr.f32.mxu0 %v716
      %2440 = vmatmul.mubr.f32.gmra.mrb[0].mxu0 %v715
      %v2441 = vpop.f32.mrb[0].mxu0
      %v2442 = vadd.f32 %v2057, %v2441
      %v2443 = vpop.f32.mrb[0].mxu0
      %2444 = vmatprep.mubr.f32.mxu0 %v725
      %2445 = vmatmul.mubr.f32.gmra.mrb[0].mxu0 %v724
      %v2446 = vpop.f32.mrb[0].mxu0
      %v2447 = vadd.f32 %v2062, %v2446
      %v2448 = vpop.f32.mrb[0].mxu0
      %2449 = vmatprep.mubr.f32.mxu0 %v734
      %2450 = vmatmul.mubr.f32.gmra.mrb[0].mxu0 %v733
      %v2451 = vpop.f32.mrb[0].mxu0
      %v2452 = vadd.f32 %v2067, %v2451
      %v2453 = vpop.f32.mrb[0].mxu0
      %2454 = vmatprep.mubr.f32.mxu0 %v743
      %2455 = vmatmul.mubr.f32.gmra.mrb[0].mxu0 %v742
      %v2456 = vpop.f32.mrb[0].mxu0
      %v2457 = vadd.f32 %v2072, %v2456
      %v2458 = vpop.f32.mrb[0].mxu0
      %2459 = vmatprep.mubr.f32.mxu0 %v752
      %2460 = vmatmul.mubr.f32.gmra.mrb[0].mxu0 %v751
      %v2461 = vpop.f32.mrb[0].mxu0
      %v2462 = vadd.f32 %v2077, %v2461
      %v2463 = vpop.f32.mrb[0].mxu0
      %2464 = vmatprep.mubr.f32.mxu0 %v761
      %2465 = vmatmul.mubr.f32.gmra.mrb[0].mxu0 %v760
      %v2466 = vpop.f32.mrb[0].mxu0
      %v2467 = vadd.f32 %v2082, %v2466
      %v2468 = vpop.f32.mrb[0].mxu0
      %2469 = vmatprep.mubr.f32.mxu0 %v770
      %2470 = vmatmul.mubr.f32.gmra.mrb[0].mxu0 %v769
      %v2471 = vpop.f32.mrb[0].mxu0
      %v2472 = vadd.f32 %v2087, %v2471
      %v2473 = vpop.f32.mrb[0].mxu0
      %2474 = vmatprep.mubr.f32.mxu0 %v779
      %2475 = vmatmul.mubr.f32.gmra.mrb[0].mxu0 %v778
      %v2476 = vpop.f32.mrb[0].mxu0
      %v2477 = vadd.f32 %v2092, %v2476
      %v2478 = vpop.f32.mrb[0].mxu0
      %2479 = vmatprep.mubr.f32.mxu0 %v788
      %2480 = vmatmul.mubr.f32.gmra.mrb[0].mxu0 %v787
      %v2481 = vpop.f32.mrb[0].mxu0
      %v2482 = vadd.f32 %v2097, %v2481
      %v2483 = vpop.f32.mrb[0].mxu0
      %2484 = vmatprep.mubr.f32.mxu0 %v797
      %2485 = vmatmul.mubr.f32.gmra.mrb[0].mxu0 %v796
      %v2486 = vpop.f32.mrb[0].mxu0
      %v2487 = vadd.f32 %v2102, %v2486
      %v2488 = vpop.f32.mrb[0].mxu0
      %2489 = vdwg.mxu0
      %2490 = vmatprep.subr.mxu0 0.0
      %2491 = vmatpush1.msra.mxu0 %v927
      %2492 = vmatprep.subr.mxu0 0.0
      %2493 = vmatpush1.msra.mxu0 %v928
      %2494 = vmatprep.subr.mxu0 0.0
      %2495 = vmatpush1.msra.mxu0 %v929
      %2496 = vmatprep.subr.mxu0 0.0
      %2497 = vmatpush1.msra.mxu0 %v930
      %2498 = vmatprep.subr.mxu0 0.0
      %2499 = vmatpush1.msra.mxu0 %v931
      %2500 = vmatprep.subr.mxu0 0.0
      %2501 = vmatpush1.msra.mxu0 %v932
      %2502 = vmatprep.subr.mxu0 0.0
      %2503 = vmatpush1.msra.mxu0 %v933
      %2504 = vmatprep.subr.mxu0 0.0
      %2505 = vmatpush1.msra.mxu0 %v934
      %2506 = vmatprep.subr.mxu0 0.0
      %2507 = vmatpush1.msra.mxu0 %v935
      %2508 = vmatprep.subr.mxu0 0.0
      %2509 = vmatpush1.msra.mxu0 %v936
      %2510 = vmatprep.subr.mxu0 0.0
      %2511 = vmatpush1.msra.mxu0 %v937
      %2512 = vmatprep.subr.mxu0 0.0
      %2513 = vmatpush1.msra.mxu0 %v938
      %2514 = vmatprep.subr.mxu0 0.0
      %2515 = vmatpush1.msra.mxu0 %v939
      %2516 = vmatprep.subr.mxu0 0.0
      %2517 = vmatpush1.msra.mxu0 %v940
      %2518 = vmatprep.subr.mxu0 0.0
      %2519 = vmatpush1.msra.mxu0 %v941
      %2520 = vmatprep.subr.mxu0 0.0
      %2521 = vmatpush1.msra.mxu0 %v942
      %2522 = vmatprep.subr.mxu0 0.0
      %2523 = vmatpush1.msra.mxu0 0.0
      %2524 = vmatprep.subr.mxu0 0.0
      %2525 = vmatpush1.msra.mxu0 0.0
      %2526 = vmatprep.subr.mxu0 0.0
      %2527 = vmatpush1.msra.mxu0 0.0
      %2528 = vmatprep.subr.mxu0 0.0
      %2529 = vmatpush1.msra.mxu0 0.0
      %2530 = vmatprep.subr.mxu0 0.0
      %2531 = vmatpush1.msra.mxu0 0.0
      %2532 = vmatprep.subr.mxu0 0.0
      %2533 = vmatpush1.msra.mxu0 0.0
      %2534 = vmatprep.subr.mxu0 0.0
      %2535 = vmatpush1.msra.mxu0 0.0
      %2536 = vmatprep.subr.mxu0 0.0
      %2537 = vmatpush1.msra.mxu0 0.0
      %2538 = vmatprep.subr.mxu0 0.0
      %2539 = vmatpush1.msra.mxu0 0.0
      %2540 = vmatprep.subr.mxu0 0.0
      %2541 = vmatpush1.msra.mxu0 0.0
      %2542 = vmatprep.subr.mxu0 0.0
      %2543 = vmatpush1.msra.mxu0 0.0
      %2544 = vmatprep.subr.mxu0 0.0
      %2545 = vmatpush1.msra.mxu0 0.0
      %2546 = vmatprep.subr.mxu0 0.0
      %2547 = vmatpush1.msra.mxu0 0.0
      %2548 = vmatprep.subr.mxu0 0.0
      %2549 = vmatpush1.msra.mxu0 0.0
      %2550 = vmatprep.subr.mxu0 0.0
      %2551 = vmatpush1.msra.mxu0 0.0
      %2552 = vmatprep.subr.mxu0 0.0
      %2553 = vmatpush1.msra.mxu0 0.0
      %2554 = vmatprep.mubr.f32.mxu0 0.0
      %2555 = vmatmul.mubr.f32.gmra.mrb[0].mxu0 %v231
      %v2556 = vpop.f32.mrb[0].mxu0
      %v2557 = vadd.f32 %v2172, %v2556
      %v2558 = vpop.f32.mrb[0].mxu0
      %2559 = vmatprep.mubr.f32.mxu0 0.0
      %2560 = vmatmul.mubr.f32.gmra.mrb[0].mxu0 %v240
      %v2561 = vpop.f32.mrb[0].mxu0
      %v2562 = vadd.f32 %v2177, %v2561
      %v2563 = vpop.f32.mrb[0].mxu0
      %2564 = vmatprep.mubr.f32.mxu0 0.0
      %2565 = vmatmul.mubr.f32.gmra.mrb[0].mxu0 %v249
      %v2566 = vpop.f32.mrb[0].mxu0
      %v2567 = vadd.f32 %v2182, %v2566
      %v2568 = vpop.f32.mrb[0].mxu0
      %2569 = vmatprep.mubr.f32.mxu0 0.0
      %2570 = vmatmul.mubr.f32.gmra.mrb[0].mxu0 %v258
      %v2571 = vpop.f32.mrb[0].mxu0
      %v2572 = vadd.f32 %v2187, %v2571
      %v2573 = vpop.f32.mrb[0].mxu0
      %2574 = vmatprep.mubr.f32.mxu0 0.0
      %2575 = vmatmul.mubr.f32.gmra.mrb[0].mxu0 %v267
      %v2576 = vpop.f32.mrb[0].mxu0
      %v2577 = vadd.f32 %v2192, %v2576
      %v2578 = vpop.f32.mrb[0].mxu0
      %2579 = vmatprep.mubr.f32.mxu0 0.0
      %2580 = vmatmul.mubr.f32.gmra.mrb[0].mxu0 %v276
      %v2581 = vpop.f32.mrb[0].mxu0
      %v2582 = vadd.f32 %v2197, %v2581
      %v2583 = vpop.f32.mrb[0].mxu0
      %2584 = vmatprep.mubr.f32.mxu0 0.0
      %2585 = vmatmul.mubr.f32.gmra.mrb[0].mxu0 %v285
      %v2586 = vpop.f32.mrb[0].mxu0
      %v2587 = vadd.f32 %v2202, %v2586
      %v2588 = vpop.f32.mrb[0].mxu0
      %2589 = vmatprep.mubr.f32.mxu0 0.0
      %2590 = vmatmul.mubr.f32.gmra.mrb[0].mxu0 %v294
      %v2591 = vpop.f32.mrb[0].mxu0
      %v2592 = vadd.f32 %v2207, %v2591
      %v2593 = vpop.f32.mrb[0].mxu0
      %2594 = vmatprep.mubr.f32.mxu0 0.0
      %2595 = vmatmul.mubr.f32.gmra.mrb[0].mxu0 %v303
      %v2596 = vpop.f32.mrb[0].mxu0
      %v2597 = vadd.f32 %v2212, %v2596
      %v2598 = vpop.f32.mrb[0].mxu0
      %2599 = vmatprep.mubr.f32.mxu0 0.0
      %2600 = vmatmul.mubr.f32.gmra.mrb[0].mxu0 %v312
      %v2601 = vpop.f32.mrb[0].mxu0
      %v2602 = vadd.f32 %v2217, %v2601
      %v2603 = vpop.f32.mrb[0].mxu0
      %2604 = vmatprep.mubr.f32.mxu0 0.0
      %2605 = vmatmul.mubr.f32.gmra.mrb[0].mxu0 %v321
      %v2606 = vpop.f32.mrb[0].mxu0
      %v2607 = vadd.f32 %v2222, %v2606
      %v2608 = vpop.f32.mrb[0].mxu0
      %2609 = vmatprep.mubr.f32.mxu0 0.0
      %2610 = vmatmul.mubr.f32.gmra.mrb[0].mxu0 %v330
      %v2611 = vpop.f32.mrb[0].mxu0
      %v2612 = vadd.f32 %v2227, %v2611
      %v2613 = vpop.f32.mrb[0].mxu0
      %2614 = vmatprep.mubr.f32.mxu0 0.0
      %2615 = vmatmul.mubr.f32.gmra.mrb[0].mxu0 %v339
      %v2616 = vpop.f32.mrb[0].mxu0
      %v2617 = vadd.f32 %v2232, %v2616
      %v2618 = vpop.f32.mrb[0].mxu0
      %2619 = vmatprep.mubr.f32.mxu0 0.0
      %2620 = vmatmul.mubr.f32.gmra.mrb[0].mxu0 %v348
      %v2621 = vpop.f32.mrb[0].mxu0
      %v2622 = vadd.f32 %v2237, %v2621
      %v2623 = vpop.f32.mrb[0].mxu0
      %2624 = vmatprep.mubr.f32.mxu0 0.0
      %2625 = vmatmul.mubr.f32.gmra.mrb[0].mxu0 %v357
      %v2626 = vpop.f32.mrb[0].mxu0
      %v2627 = vadd.f32 %v2242, %v2626
      %v2628 = vpop.f32.mrb[0].mxu0
      %2629 = vmatprep.mubr.f32.mxu0 0.0
      %2630 = vmatmul.mubr.f32.gmra.mrb[0].mxu0 %v366
      %v2631 = vpop.f32.mrb[0].mxu0
      %v2632 = vadd.f32 %v2247, %v2631
      %v2633 = vpop.f32.mrb[0].mxu0
      %2634 = vmatprep.mubr.f32.mxu0 0.0
      %2635 = vmatmul.mubr.f32.gmra.mrb[0].mxu0 %v375
      %v2636 = vpop.f32.mrb[0].mxu0
      %v2637 = vadd.f32 %v2252, %v2636
      %v2638 = vpop.f32.mrb[0].mxu0
      %2639 = vmatprep.mubr.f32.mxu0 0.0
      %2640 = vmatmul.mubr.f32.gmra.mrb[0].mxu0 %v384
      %v2641 = vpop.f32.mrb[0].mxu0
      %v2642 = vadd.f32 %v2257, %v2641
      %v2643 = vpop.f32.mrb[0].mxu0
      %2644 = vmatprep.mubr.f32.mxu0 0.0
      %2645 = vmatmul.mubr.f32.gmra.mrb[0].mxu0 %v393
      %v2646 = vpop.f32.mrb[0].mxu0
      %v2647 = vadd.f32 %v2262, %v2646
      %v2648 = vpop.f32.mrb[0].mxu0
      %2649 = vmatprep.mubr.f32.mxu0 0.0
      %2650 = vmatmul.mubr.f32.gmra.mrb[0].mxu0 %v402
      %v2651 = vpop.f32.mrb[0].mxu0
      %v2652 = vadd.f32 %v2267, %v2651
      %v2653 = vpop.f32.mrb[0].mxu0
      %2654 = vmatprep.mubr.f32.mxu0 0.0
      %2655 = vmatmul.mubr.f32.gmra.mrb[0].mxu0 %v411
      %v2656 = vpop.f32.mrb[0].mxu0
      %v2657 = vadd.f32 %v2272, %v2656
      %v2658 = vpop.f32.mrb[0].mxu0
      %2659 = vmatprep.mubr.f32.mxu0 0.0
      %2660 = vmatmul.mubr.f32.gmra.mrb[0].mxu0 %v420
      %v2661 = vpop.f32.mrb[0].mxu0
      %v2662 = vadd.f32 %v2277, %v2661
      %v2663 = vpop.f32.mrb[0].mxu0
      %2664 = vmatprep.mubr.f32.mxu0 0.0
      %2665 = vmatmul.mubr.f32.gmra.mrb[0].mxu0 %v429
      %v2666 = vpop.f32.mrb[0].mxu0
      %v2667 = vadd.f32 %v2282, %v2666
      %v2668 = vpop.f32.mrb[0].mxu0
      %2669 = vmatprep.mubr.f32.mxu0 0.0
      %2670 = vmatmul.mubr.f32.gmra.mrb[0].mxu0 %v438
      %v2671 = vpop.f32.mrb[0].mxu0
      %v2672 = vadd.f32 %v2287, %v2671
      %v2673 = vpop.f32.mrb[0].mxu0
      %2674 = vmatprep.mubr.f32.mxu0 0.0
      %2675 = vmatmul.mubr.f32.gmra.mrb[0].mxu0 %v447
      %v2676 = vpop.f32.mrb[0].mxu0
      %v2677 = vadd.f32 %v2292, %v2676
      %v2678 = vpop.f32.mrb[0].mxu0
      %2679 = vmatprep.mubr.f32.mxu0 0.0
      %2680 = vmatmul.mubr.f32.gmra.mrb[0].mxu0 %v456
      %v2681 = vpop.f32.mrb[0].mxu0
      %v2682 = vadd.f32 %v2297, %v2681
      %v2683 = vpop.f32.mrb[0].mxu0
      %2684 = vmatprep.mubr.f32.mxu0 0.0
      %2685 = vmatmul.mubr.f32.gmra.mrb[0].mxu0 %v465
      %v2686 = vpop.f32.mrb[0].mxu0
      %v2687 = vadd.f32 %v2302, %v2686
      %v2688 = vpop.f32.mrb[0].mxu0
      %2689 = vmatprep.mubr.f32.mxu0 0.0
      %2690 = vmatmul.mubr.f32.gmra.mrb[0].mxu0 %v474
      %v2691 = vpop.f32.mrb[0].mxu0
      %v2692 = vadd.f32 %v2307, %v2691
      %v2693 = vpop.f32.mrb[0].mxu0
      %2694 = vmatprep.mubr.f32.mxu0 0.0
      %2695 = vmatmul.mubr.f32.gmra.mrb[0].mxu0 %v483
      %v2696 = vpop.f32.mrb[0].mxu0
      %v2697 = vadd.f32 %v2312, %v2696
      %v2698 = vpop.f32.mrb[0].mxu0
      %2699 = vmatprep.mubr.f32.mxu0 0.0
      %2700 = vmatmul.mubr.f32.gmra.mrb[0].mxu0 %v492
      %v2701 = vpop.f32.mrb[0].mxu0
      %v2702 = vadd.f32 %v2317, %v2701
      %v2703 = vpop.f32.mrb[0].mxu0
      %2704 = vmatprep.mubr.f32.mxu0 0.0
      %2705 = vmatmul.mubr.f32.gmra.mrb[0].mxu0 %v501
      %v2706 = vpop.f32.mrb[0].mxu0
      %v2707 = vadd.f32 %v2322, %v2706
      %v2708 = vpop.f32.mrb[0].mxu0
      %2709 = vmatprep.mubr.f32.mxu0 0.0
      %2710 = vmatmul.mubr.f32.gmra.mrb[0].mxu0 %v510
      %v2711 = vpop.f32.mrb[0].mxu0
      %v2712 = vadd.f32 %v2327, %v2711
      %v2713 = vpop.f32.mrb[0].mxu0
      %2714 = vmatprep.mubr.f32.mxu0 0.0
      %2715 = vmatmul.mubr.f32.gmra.mrb[0].mxu0 %v519
      %v2716 = vpop.f32.mrb[0].mxu0
      %v2717 = vadd.f32 %v2332, %v2716
      %v2718 = vpop.f32.mrb[0].mxu0
      %2719 = vmatprep.mubr.f32.mxu0 0.0
      %2720 = vmatmul.mubr.f32.gmra.mrb[0].mxu0 %v528
      %v2721 = vpop.f32.mrb[0].mxu0
      %v2722 = vadd.f32 %v2337, %v2721
      %v2723 = vpop.f32.mrb[0].mxu0
      %2724 = vmatprep.mubr.f32.mxu0 0.0
      %2725 = vmatmul.mubr.f32.gmra.mrb[0].mxu0 %v537
      %v2726 = vpop.f32.mrb[0].mxu0
      %v2727 = vadd.f32 %v2342, %v2726
      %v2728 = vpop.f32.mrb[0].mxu0
      %2729 = vmatprep.mubr.f32.mxu0 0.0
      %2730 = vmatmul.mubr.f32.gmra.mrb[0].mxu0 %v546
      %v2731 = vpop.f32.mrb[0].mxu0
      %v2732 = vadd.f32 %v2347, %v2731
      %v2733 = vpop.f32.mrb[0].mxu0
      %2734 = vmatprep.mubr.f32.mxu0 0.0
      %2735 = vmatmul.mubr.f32.gmra.mrb[0].mxu0 %v555
      %v2736 = vpop.f32.mrb[0].mxu0
      %v2737 = vadd.f32 %v2352, %v2736
      %v2738 = vpop.f32.mrb[0].mxu0
      %2739 = vmatprep.mubr.f32.mxu0 0.0
      %2740 = vmatmul.mubr.f32.gmra.mrb[0].mxu0 %v564
      %v2741 = vpop.f32.mrb[0].mxu0
      %v2742 = vadd.f32 %v2357, %v2741
      %v2743 = vpop.f32.mrb[0].mxu0
      %2744 = vmatprep.mubr.f32.mxu0 0.0
      %2745 = vmatmul.mubr.f32.gmra.mrb[0].mxu0 %v573
      %v2746 = vpop.f32.mrb[0].mxu0
      %v2747 = vadd.f32 %v2362, %v2746
      %v2748 = vpop.f32.mrb[0].mxu0
      %2749 = vmatprep.mubr.f32.mxu0 0.0
      %2750 = vmatmul.mubr.f32.gmra.mrb[0].mxu0 %v582
      %v2751 = vpop.f32.mrb[0].mxu0
      %v2752 = vadd.f32 %v2367, %v2751
      %v2753 = vpop.f32.mrb[0].mxu0
      %2754 = vmatprep.mubr.f32.mxu0 0.0
      %2755 = vmatmul.mubr.f32.gmra.mrb[0].mxu0 %v591
      %v2756 = vpop.f32.mrb[0].mxu0
      %v2757 = vadd.f32 %v2372, %v2756
      %v2758 = vpop.f32.mrb[0].mxu0
      %2759 = vmatprep.mubr.f32.mxu0 0.0
      %2760 = vmatmul.mubr.f32.gmra.mrb[0].mxu0 %v600
      %v2761 = vpop.f32.mrb[0].mxu0
      %v2762 = vadd.f32 %v2377, %v2761
      %v2763 = vpop.f32.mrb[0].mxu0
      %2764 = vmatprep.mubr.f32.mxu0 0.0
      %2765 = vmatmul.mubr.f32.gmra.mrb[0].mxu0 %v609
      %v2766 = vpop.f32.mrb[0].mxu0
      %v2767 = vadd.f32 %v2382, %v2766
      %v2768 = vpop.f32.mrb[0].mxu0
      %2769 = vmatprep.mubr.f32.mxu0 0.0
      %2770 = vmatmul.mubr.f32.gmra.mrb[0].mxu0 %v618
      %v2771 = vpop.f32.mrb[0].mxu0
      %v2772 = vadd.f32 %v2387, %v2771
      %v2773 = vpop.f32.mrb[0].mxu0
      %2774 = vmatprep.mubr.f32.mxu0 0.0
      %2775 = vmatmul.mubr.f32.gmra.mrb[0].mxu0 %v627
      %v2776 = vpop.f32.mrb[0].mxu0
      %v2777 = vadd.f32 %v2392, %v2776
      %v2778 = vpop.f32.mrb[0].mxu0
      %2779 = vmatprep.mubr.f32.mxu0 0.0
      %2780 = vmatmul.mubr.f32.gmra.mrb[0].mxu0 %v636
      %v2781 = vpop.f32.mrb[0].mxu0
      %v2782 = vadd.f32 %v2397, %v2781
      %v2783 = vpop.f32.mrb[0].mxu0
      %2784 = vmatprep.mubr.f32.mxu0 0.0
      %2785 = vmatmul.mubr.f32.gmra.mrb[0].mxu0 %v645
      %v2786 = vpop.f32.mrb[0].mxu0
      %v2787 = vadd.f32 %v2402, %v2786
      %v2788 = vpop.f32.mrb[0].mxu0
      %2789 = vmatprep.mubr.f32.mxu0 0.0
      %2790 = vmatmul.mubr.f32.gmra.mrb[0].mxu0 %v654
      %v2791 = vpop.f32.mrb[0].mxu0
      %v2792 = vadd.f32 %v2407, %v2791
      %v2793 = vpop.f32.mrb[0].mxu0
      %2794 = vmatprep.mubr.f32.mxu0 0.0
      %2795 = vmatmul.mubr.f32.gmra.mrb[0].mxu0 %v663
      %v2796 = vpop.f32.mrb[0].mxu0
      %v2797 = vadd.f32 %v2412, %v2796
      %v2798 = vpop.f32.mrb[0].mxu0
      %2799 = vmatprep.mubr.f32.mxu0 0.0
      %2800 = vmatmul.mubr.f32.gmra.mrb[0].mxu0 %v672
      %v2801 = vpop.f32.mrb[0].mxu0
      %v2802 = vadd.f32 %v2417, %v2801
      %v2803 = vpop.f32.mrb[0].mxu0
      %2804 = vmatprep.mubr.f32.mxu0 0.0
      %2805 = vmatmul.mubr.f32.gmra.mrb[0].mxu0 %v681
      %v2806 = vpop.f32.mrb[0].mxu0
      %v2807 = vadd.f32 %v2422, %v2806
      %v2808 = vpop.f32.mrb[0].mxu0
      %2809 = vmatprep.mubr.f32.mxu0 0.0
      %2810 = vmatmul.mubr.f32.gmra.mrb[0].mxu0 %v690
      %v2811 = vpop.f32.mrb[0].mxu0
      %v2812 = vadd.f32 %v2427, %v2811
      %v2813 = vpop.f32.mrb[0].mxu0
      %2814 = vmatprep.mubr.f32.mxu0 0.0
      %2815 = vmatmul.mubr.f32.gmra.mrb[0].mxu0 %v699
      %v2816 = vpop.f32.mrb[0].mxu0
      %v2817 = vadd.f32 %v2432, %v2816
      %v2818 = vpop.f32.mrb[0].mxu0
      %2819 = vmatprep.mubr.f32.mxu0 0.0
      %2820 = vmatmul.mubr.f32.gmra.mrb[0].mxu0 %v708
      %v2821 = vpop.f32.mrb[0].mxu0
      %v2822 = vadd.f32 %v2437, %v2821
      %v2823 = vpop.f32.mrb[0].mxu0
      %2824 = vmatprep.mubr.f32.mxu0 0.0
      %2825 = vmatmul.mubr.f32.gmra.mrb[0].mxu0 %v717
      %v2826 = vpop.f32.mrb[0].mxu0
      %v2827 = vadd.f32 %v2442, %v2826
      %v2828 = vpop.f32.mrb[0].mxu0
      %2829 = vmatprep.mubr.f32.mxu0 0.0
      %2830 = vmatmul.mubr.f32.gmra.mrb[0].mxu0 %v726
      %v2831 = vpop.f32.mrb[0].mxu0
      %v2832 = vadd.f32 %v2447, %v2831
      %v2833 = vpop.f32.mrb[0].mxu0
      %2834 = vmatprep.mubr.f32.mxu0 0.0
      %2835 = vmatmul.mubr.f32.gmra.mrb[0].mxu0 %v735
      %v2836 = vpop.f32.mrb[0].mxu0
      %v2837 = vadd.f32 %v2452, %v2836
      %v2838 = vpop.f32.mrb[0].mxu0
      %2839 = vmatprep.mubr.f32.mxu0 0.0
      %2840 = vmatmul.mubr.f32.gmra.mrb[0].mxu0 %v744
      %v2841 = vpop.f32.mrb[0].mxu0
      %v2842 = vadd.f32 %v2457, %v2841
      %v2843 = vpop.f32.mrb[0].mxu0
      %2844 = vmatprep.mubr.f32.mxu0 0.0
      %2845 = vmatmul.mubr.f32.gmra.mrb[0].mxu0 %v753
      %v2846 = vpop.f32.mrb[0].mxu0
      %v2847 = vadd.f32 %v2462, %v2846
      %v2848 = vpop.f32.mrb[0].mxu0
      %2849 = vmatprep.mubr.f32.mxu0 0.0
      %2850 = vmatmul.mubr.f32.gmra.mrb[0].mxu0 %v762
      %v2851 = vpop.f32.mrb[0].mxu0
      %v2852 = vadd.f32 %v2467, %v2851
      %v2853 = vpop.f32.mrb[0].mxu0
      %2854 = vmatprep.mubr.f32.mxu0 0.0
      %2855 = vmatmul.mubr.f32.gmra.mrb[0].mxu0 %v771
      %v2856 = vpop.f32.mrb[0].mxu0
      %v2857 = vadd.f32 %v2472, %v2856
      %v2858 = vpop.f32.mrb[0].mxu0
      %2859 = vmatprep.mubr.f32.mxu0 0.0
      %2860 = vmatmul.mubr.f32.gmra.mrb[0].mxu0 %v780
      %v2861 = vpop.f32.mrb[0].mxu0
      %v2862 = vadd.f32 %v2477, %v2861
      %v2863 = vpop.f32.mrb[0].mxu0
      %2864 = vmatprep.mubr.f32.mxu0 0.0
      %2865 = vmatmul.mubr.f32.gmra.mrb[0].mxu0 %v789
      %v2866 = vpop.f32.mrb[0].mxu0
      %v2867 = vadd.f32 %v2482, %v2866
      %v2868 = vpop.f32.mrb[0].mxu0
      %2869 = vmatprep.mubr.f32.mxu0 0.0
      %2870 = vmatmul.mubr.f32.gmra.mrb[0].mxu0 %v798
      %v2871 = vpop.f32.mrb[0].mxu0
      %v2872 = vadd.f32 %v2487, %v2871
      %v2873 = vpop.f32.mrb[0].mxu0
      %2874 = vdwg.mxu0
      %v2875 = vld [vmem:[%s217] sm:$0xff]
      %v2876 = vld [vmem:[%s217 + $0x8] sm:$0xff]
      %v2877 = vld [vmem:[%s217 + $0x10] sm:$0xff]
      %v2878 = vld [vmem:[%s217 + $0x18] sm:$0xff]
      %v2879 = vld [vmem:[%s217 + $0x20] sm:$0xff]
      %v2880 = vld [vmem:[%s217 + $0x28] sm:$0xff]
      %v2881 = vld [vmem:[%s217 + $0x30] sm:$0xff]
      %v2882 = vld [vmem:[%s217 + $0x38] sm:$0xff]
      %v2883 = vld [vmem:[%s217 + $0x40] sm:$0xff]
      %v2884 = vld [vmem:[%s217 + $0x48] sm:$0xff]
      %v2885 = vld [vmem:[%s217 + $0x50] sm:$0xff]
      %v2886 = vld [vmem:[%s217 + $0x58] sm:$0xff]
      %v2887 = vld [vmem:[%s217 + $0x60] sm:$0xff]
      %v2888 = vld [vmem:[%s217 + $0x68] sm:$0xff]
      %v2889 = vld [vmem:[%s217 + $0x70] sm:$0xff]
      %v2890 = vld [vmem:[%s217 + $0x78] sm:$0xff]
      %v2891 = vld [vmem:[%s217 + $0x80] sm:$0xff]
      %v2892 = vld [vmem:[%s217 + $0x88] sm:$0xff]
      %v2893 = vld [vmem:[%s217 + $0x90] sm:$0xff]
      %v2894 = vld [vmem:[%s217 + $0x98] sm:$0xff]
      %v2895 = vld [vmem:[%s217 + $0xa0] sm:$0xff]
      %v2896 = vld [vmem:[%s217 + $0xa8] sm:$0xff]
      %v2897 = vld [vmem:[%s217 + $0xb0] sm:$0xff]
      %v2898 = vld [vmem:[%s217 + $0xb8] sm:$0xff]
      %v2899 = vld [vmem:[%s217 + $0xc0] sm:$0xff]
      %v2900 = vld [vmem:[%s217 + $0xc8] sm:$0xff]
      %v2901 = vld [vmem:[%s217 + $0xd0] sm:$0xff]
      %v2902 = vld [vmem:[%s217 + $0xd8] sm:$0xff]
      %v2903 = vld [vmem:[%s217 + $0xe0] sm:$0xff]
      %v2904 = vld [vmem:[%s217 + $0xe8] sm:$0xff]
      %v2905 = vld [vmem:[%s217 + $0xf0] sm:$0xff]
      %v2906 = vld [vmem:[%s217 + $0xf8] sm:$0xff]
      %v2907 = vld [vmem:[%s217 + $0x100] sm:$0xff]
      %v2908 = vld [vmem:[%s217 + $0x108] sm:$0xff]
      %v2909 = vld [vmem:[%s217 + $0x110] sm:$0xff]
      %v2910 = vld [vmem:[%s217 + $0x118] sm:$0xff]
      %v2911 = vld [vmem:[%s217 + $0x120] sm:$0xff]
      %v2912 = vld [vmem:[%s217 + $0x128] sm:$0xff]
      %v2913 = vld [vmem:[%s217 + $0x130] sm:$0xff]
      %v2914 = vld [vmem:[%s217 + $0x138] sm:$0xff]
      %v2915 = vld [vmem:[%s217 + $0x140] sm:$0xff]
      %v2916 = vld [vmem:[%s217 + $0x148] sm:$0xff]
      %v2917 = vld [vmem:[%s217 + $0x150] sm:$0xff]
      %v2918 = vld [vmem:[%s217 + $0x158] sm:$0xff]
      %v2919 = vld [vmem:[%s217 + $0x160] sm:$0xff]
      %v2920 = vld [vmem:[%s217 + $0x168] sm:$0xff]
      %v2921 = vld [vmem:[%s217 + $0x170] sm:$0xff]
      %v2922 = vld [vmem:[%s217 + $0x178] sm:$0xff]
      %v2923 = vld [vmem:[%s217 + $0x180] sm:$0xff]
      %v2924 = vld [vmem:[%s217 + $0x188] sm:$0xff]
      %v2925 = vld [vmem:[%s217 + $0x190] sm:$0xff]
      %v2926 = vld [vmem:[%s217 + $0x198] sm:$0xff]
      %v2927 = vld [vmem:[%s217 + $0x1a0] sm:$0xff]
      %v2928 = vld [vmem:[%s217 + $0x1a8] sm:$0xff]
      %v2929 = vld [vmem:[%s217 + $0x1b0] sm:$0xff]
      %v2930 = vld [vmem:[%s217 + $0x1b8] sm:$0xff]
      %v2931 = vld [vmem:[%s217 + $0x1c0] sm:$0xff]
      %v2932 = vld [vmem:[%s217 + $0x1c8] sm:$0xff]
      %v2933 = vld [vmem:[%s217 + $0x1d0] sm:$0xff]
      %v2934 = vld [vmem:[%s217 + $0x1d8] sm:$0xff]
      %v2935 = vld [vmem:[%s217 + $0x1e0] sm:$0xff]
      %v2936 = vld [vmem:[%s217 + $0x1e8] sm:$0xff]
      %v2937 = vld [vmem:[%s217 + $0x1f0] sm:$0xff]
      %v2938 = vld [vmem:[%s217 + $0x1f8] sm:$0xff]
      %v2939 = vadd.f32 %v2557, %v2875
      %v2940 = vadd.f32 %v2562, %v2876
      %v2941 = vadd.f32 %v2567, %v2877
      %v2942 = vadd.f32 %v2572, %v2878
      %v2943 = vadd.f32 %v2577, %v2879
      %v2944 = vadd.f32 %v2582, %v2880
      %v2945 = vadd.f32 %v2587, %v2881
      %v2946 = vadd.f32 %v2592, %v2882
      %v2947 = vadd.f32 %v2597, %v2883
      %v2948 = vadd.f32 %v2602, %v2884
      %v2949 = vadd.f32 %v2607, %v2885
      %v2950 = vadd.f32 %v2612, %v2886
      %v2951 = vadd.f32 %v2617, %v2887
      %v2952 = vadd.f32 %v2622, %v2888
      %v2953 = vadd.f32 %v2627, %v2889
      %v2954 = vadd.f32 %v2632, %v2890
      %v2955 = vadd.f32 %v2637, %v2891
      %v2956 = vadd.f32 %v2642, %v2892
      %v2957 = vadd.f32 %v2647, %v2893
      %v2958 = vadd.f32 %v2652, %v2894
      %v2959 = vadd.f32 %v2657, %v2895
      %v2960 = vadd.f32 %v2662, %v2896
      %v2961 = vadd.f32 %v2667, %v2897
      %v2962 = vadd.f32 %v2672, %v2898
      %v2963 = vadd.f32 %v2677, %v2899
      %v2964 = vadd.f32 %v2682, %v2900
      %v2965 = vadd.f32 %v2687, %v2901
      %v2966 = vadd.f32 %v2692, %v2902
      %v2967 = vadd.f32 %v2697, %v2903
      %v2968 = vadd.f32 %v2702, %v2904
      %v2969 = vadd.f32 %v2707, %v2905
      %v2970 = vadd.f32 %v2712, %v2906
      %v2971 = vadd.f32 %v2717, %v2907
      %v2972 = vadd.f32 %v2722, %v2908
      %v2973 = vadd.f32 %v2727, %v2909
      %v2974 = vadd.f32 %v2732, %v2910
      %v2975 = vadd.f32 %v2737, %v2911
      %v2976 = vadd.f32 %v2742, %v2912
      %v2977 = vadd.f32 %v2747, %v2913
      %v2978 = vadd.f32 %v2752, %v2914
      %v2979 = vadd.f32 %v2757, %v2915
      %v2980 = vadd.f32 %v2762, %v2916
      %v2981 = vadd.f32 %v2767, %v2917
      %v2982 = vadd.f32 %v2772, %v2918
      %v2983 = vadd.f32 %v2777, %v2919
      %v2984 = vadd.f32 %v2782, %v2920
      %v2985 = vadd.f32 %v2787, %v2921
      %v2986 = vadd.f32 %v2792, %v2922
      %v2987 = vadd.f32 %v2797, %v2923
      %v2988 = vadd.f32 %v2802, %v2924
      %v2989 = vadd.f32 %v2807, %v2925
      %v2990 = vadd.f32 %v2812, %v2926
      %v2991 = vadd.f32 %v2817, %v2927
      %v2992 = vadd.f32 %v2822, %v2928
      %v2993 = vadd.f32 %v2827, %v2929
      %v2994 = vadd.f32 %v2832, %v2930
      %v2995 = vadd.f32 %v2837, %v2931
      %v2996 = vadd.f32 %v2842, %v2932
      %v2997 = vadd.f32 %v2847, %v2933
      %v2998 = vadd.f32 %v2852, %v2934
      %v2999 = vadd.f32 %v2857, %v2935
      %v3000 = vadd.f32 %v2862, %v2936
      %v3001 = vadd.f32 %v2867, %v2937
      %v3002 = vadd.f32 %v2872, %v2938
      %v3003 = vmax.f32 %v2939, 0.0
      %v3004 = vmax.f32 %v2940, 0.0
      %v3005 = vmax.f32 %v2941, 0.0
      %v3006 = vmax.f32 %v2942, 0.0
      %v3007 = vmax.f32 %v2943, 0.0
      %v3008 = vmax.f32 %v2944, 0.0
      %v3009 = vmax.f32 %v2945, 0.0
      %v3010 = vmax.f32 %v2946, 0.0
      %v3011 = vmax.f32 %v2947, 0.0
      %v3012 = vmax.f32 %v2948, 0.0
      %v3013 = vmax.f32 %v2949, 0.0
      %v3014 = vmax.f32 %v2950, 0.0
      %v3015 = vmax.f32 %v2951, 0.0
      %v3016 = vmax.f32 %v2952, 0.0
      %v3017 = vmax.f32 %v2953, 0.0
      %v3018 = vmax.f32 %v2954, 0.0
      %v3019 = vmax.f32 %v2955, 0.0
      %v3020 = vmax.f32 %v2956, 0.0
      %v3021 = vmax.f32 %v2957, 0.0
      %v3022 = vmax.f32 %v2958, 0.0
      %v3023 = vmax.f32 %v2959, 0.0
      %v3024 = vmax.f32 %v2960, 0.0
      %v3025 = vmax.f32 %v2961, 0.0
      %v3026 = vmax.f32 %v2962, 0.0
      %v3027 = vmax.f32 %v2963, 0.0
      %v3028 = vmax.f32 %v2964, 0.0
      %v3029 = vmax.f32 %v2965, 0.0
      %v3030 = vmax.f32 %v2966, 0.0
      %v3031 = vmax.f32 %v2967, 0.0
      %v3032 = vmax.f32 %v2968, 0.0
      %v3033 = vmax.f32 %v2969, 0.0
      %v3034 = vmax.f32 %v2970, 0.0
      %v3035 = vmax.f32 %v2971, 0.0
      %v3036 = vmax.f32 %v2972, 0.0
      %v3037 = vmax.f32 %v2973, 0.0
      %v3038 = vmax.f32 %v2974, 0.0
      %v3039 = vmax.f32 %v2975, 0.0
      %v3040 = vmax.f32 %v2976, 0.0
      %v3041 = vmax.f32 %v2977, 0.0
      %v3042 = vmax.f32 %v2978, 0.0
      %v3043 = vmax.f32 %v2979, 0.0
      %v3044 = vmax.f32 %v2980, 0.0
      %v3045 = vmax.f32 %v2981, 0.0
      %v3046 = vmax.f32 %v2982, 0.0
      %v3047 = vmax.f32 %v2983, 0.0
      %v3048 = vmax.f32 %v2984, 0.0
      %v3049 = vmax.f32 %v2985, 0.0
      %v3050 = vmax.f32 %v2986, 0.0
      %v3051 = vmax.f32 %v2987, 0.0
      %v3052 = vmax.f32 %v2988, 0.0
      %v3053 = vmax.f32 %v2989, 0.0
      %v3054 = vmax.f32 %v2990, 0.0
      %v3055 = vmax.f32 %v2991, 0.0
      %v3056 = vmax.f32 %v2992, 0.0
      %v3057 = vmax.f32 %v2993, 0.0
      %v3058 = vmax.f32 %v2994, 0.0
      %v3059 = vmax.f32 %v2995, 0.0
      %v3060 = vmax.f32 %v2996, 0.0
      %v3061 = vmax.f32 %v2997, 0.0
      %v3062 = vmax.f32 %v2998, 0.0
      %v3063 = vmax.f32 %v2999, 0.0
      %v3064 = vmax.f32 %v3000, 0.0
      %v3065 = vmax.f32 %v3001, 0.0
      %v3066 = vmax.f32 %v3002, 0.0
      %v3067 = vadd.f32 %v3003, %v3004
      %v3068 = vadd.f32 %v3067, %v3005
      %v3069 = vadd.f32 %v3068, %v3006
      %v3070 = vadd.f32 %v3069, %v3007
      %v3071 = vadd.f32 %v3070, %v3008
      %v3072 = vadd.f32 %v3071, %v3009
      %v3073 = vadd.f32 %v3072, %v3010
      %v3074 = vadd.f32 %v3073, %v3011
      %v3075 = vadd.f32 %v3074, %v3012
      %v3076 = vadd.f32 %v3075, %v3013
      %v3077 = vadd.f32 %v3076, %v3014
      %v3078 = vadd.f32 %v3077, %v3015
      %v3079 = vadd.f32 %v3078, %v3016
      %v3080 = vadd.f32 %v3079, %v3017
      %v3081 = vadd.f32 %v3080, %v3018
      %v3082 = vadd.f32 %v3081, %v3019
      %v3083 = vadd.f32 %v3082, %v3020
      %v3084 = vadd.f32 %v3083, %v3021
      %v3085 = vadd.f32 %v3084, %v3022
      %v3086 = vadd.f32 %v3085, %v3023
      %v3087 = vadd.f32 %v3086, %v3024
      %v3088 = vadd.f32 %v3087, %v3025
      %v3089 = vadd.f32 %v3088, %v3026
      %v3090 = vadd.f32 %v3089, %v3027
      %v3091 = vadd.f32 %v3090, %v3028
      %v3092 = vadd.f32 %v3091, %v3029
      %v3093 = vadd.f32 %v3092, %v3030
      %v3094 = vadd.f32 %v3093, %v3031
      %v3095 = vadd.f32 %v3094, %v3032
      %v3096 = vadd.f32 %v3095, %v3033
      %v3097 = vadd.f32 %v3096, %v3034
      %v3098 = vrot.slane %v3097, 4
      %v3099 = vadd.f32 %v3097, %v3098
      %v3100 = vrot.slane %v3099, 2
      %v3101 = vadd.f32 %v3099, %v3100
      %v3102 = vrot.slane %v3101, 1
      %v3103 = vadd.f32 %v3101, %v3102
      %v3104 = vadd.f32 %v3035, %v3036
      %v3105 = vadd.f32 %v3104, %v3037
      %v3106 = vadd.f32 %v3105, %v3038
      %v3107 = vadd.f32 %v3106, %v3039
      %v3108 = vadd.f32 %v3107, %v3040
      %v3109 = vadd.f32 %v3108, %v3041
      %v3110 = vadd.f32 %v3109, %v3042
      %v3111 = vadd.f32 %v3110, %v3043
      %v3112 = vadd.f32 %v3111, %v3044
      %v3113 = vadd.f32 %v3112, %v3045
      %v3114 = vadd.f32 %v3113, %v3046
      %v3115 = vadd.f32 %v3114, %v3047
      %v3116 = vadd.f32 %v3115, %v3048
      %v3117 = vadd.f32 %v3116, %v3049
      %v3118 = vadd.f32 %v3117, %v3050
      %v3119 = vadd.f32 %v3118, %v3051
      %v3120 = vadd.f32 %v3119, %v3052
      %v3121 = vadd.f32 %v3120, %v3053
      %v3122 = vadd.f32 %v3121, %v3054
      %v3123 = vadd.f32 %v3122, %v3055
      %v3124 = vadd.f32 %v3123, %v3056
      %v3125 = vadd.f32 %v3124, %v3057
      %v3126 = vadd.f32 %v3125, %v3058
      %v3127 = vadd.f32 %v3126, %v3059
      %v3128 = vadd.f32 %v3127, %v3060
      %v3129 = vadd.f32 %v3128, %v3061
      %v3130 = vadd.f32 %v3129, %v3062
      %v3131 = vadd.f32 %v3130, %v3063
      %v3132 = vadd.f32 %v3131, %v3064
      %v3133 = vadd.f32 %v3132, %v3065
      %v3134 = vadd.f32 %v3133, %v3066
      %v3135 = vrot.slane %v3134, 4
      %v3136 = vadd.f32 %v3134, %v3135
      %v3137 = vrot.slane %v3136, 2
      %v3138 = vadd.f32 %v3136, %v3137
      %v3139 = vrot.slane %v3138, 1
      %v3140 = vadd.f32 %v3138, %v3139
      %v3141 = vrcp.pop 256.0
      %v3142 = vmul.f32 %v3103, %v3141
      %v3143 = vmul.f32 %v3140, %v3141
      %vm3146 = vcmask 1041409
      %v3147 = vsel %vm3146, %v3143, %v3142
      %3149 = vst [vmem:[%s222] sm:$0x3] %v3147
      %p3150 = scmp.lt.s32.totalorder %s15, 3
      %s3151 = scalar_select %p3150, %s15, 3
      %s3152 = smul.addr %s3151, 2
      %s3153 = scalar_lea.vmem %s4, %s3152
      // Predicated region
      $region37: #{_lambda_.7} parent=35 // pred_check
        %p3154 = pneg %p127
      $region38: #{_lambda_.7} parent=35 // pred_check_branch
        %3156 = sbr.rel (%p3154) target = $region40
      $region39: #{_lambda_.7} parent=35 // pred_region
        _
      $region40: #{_lambda_.7} parent=35 // pred_fallthru
        _
    $region36: #{_lambda_.7} parent=5 // pred_fallthru
      _
    %p3157 = scmp.le.s32.totalorder 2, %s10
    // Predicated region
    $region41: #{_lambda_.7} parent=5 // pred_check
      %p3158 = pneg %p3157
    $region42: #{_lambda_.7} parent=5 // pred_check_branch
      %3160 = sbr.rel (%p3158) target = $region44
    $region43: #{_lambda_.7} parent=5 // pred_region
      %s3161 = ssub.s32 %s10, 2
      // Predicated region
      $region45: #{_lambda_.7} parent=43 // pred_check
        %p3162 = pneg %p133
      $region46: #{_lambda_.7} parent=43 // pred_check_branch
        %3164 = sbr.rel (%p3162) target = $region48
      $region47: #{_lambda_.7} parent=43 // pred_region
        %p3165 = scmp.lt.s32.totalorder %s16, 3
        %s3166 = scalar_select %p3165, %s16, 3
        %s3167 = smul.addr %s3166, 2
        %s3168 = scalar_lea.vmem %s4, %s3167
      $region48: #{_lambda_.7} parent=43 // pred_fallthru
        _
    $region44: #{_lambda_.7} parent=5 // pred_fallthru
      _
  $region6: #{_lambda_.7} parent=0 // loop_footer
    %s14 = sadd.s32 1, %s10
  $region7: #{_lambda_.7} parent=0 // loop_footer_branch
    %9 = sbr.rel target = $region3
  $region8: #{_lambda_.7} parent=0 // loop_exit
    _

// kernel: _lambda_.9
$region0: #{_lambda_.9}
  #allocation0 [shape = 'u32[]', space=smem, size = 0x4, offset = 0x4, fixed_abs, tag = 'smem constant byte address 0x4 - core index']
  #allocation1 [shape = 'u32[144,128]{1,0:T(1,128)}', space=vmem, size = 0x12000, scoped, tag = 'internal scratch']
  #allocation2 [shape = 'f32[3,2,128]{2,1,0:T(2,128)}', space=vmem, size = 0xc00, scoped, tag = 'scratch operand']
  #allocation3 [shape = 'f32[3,2,128]{2,1,0:T(2,128)}', space=vmem, size = 0xc00, scoped, tag = 'scratch operand']
  %s0 = inlined_call_operand.vmem [shape: f32[4,2,512], index: 0, kind: input, shape index: {}]
  %s1 = inlined_call_operand.vmem [shape: f32[2,128,512], index: 1, kind: input, shape index: {}]
  %s2 = inlined_call_operand.vmem [shape: f32[3,128,512], index: 2, kind: input, shape index: {}]
  %s3 = inlined_call_operand.vmem [shape: f32[2,1,512], index: 3, kind: input, shape index: {}]
  %s4 = inlined_call_operand.vmem [shape: f32[128,128], index: 4, kind: input, shape index: {}]
  %s5 = inlined_call_operand.vmem [shape: f32[1,128], index: 5, kind: input, shape index: {}]
  %s6 = inlined_call_operand.vmem [shape: f32[128,2], index: 6, kind: input, shape index: {}]
  %s7 = inlined_call_operand.vmem [shape: f32[1,2], index: 7, kind: input, shape index: {}]
  %s8 = inlined_call_operand.hbm [shape: f32[2,2], index: 8, kind: output, shape index: {}]
  %s9 = sld [smem:[#allocation0]]
  $region73: #{_lambda_.9} parent=0
    _
  %s11 = ssub.s32 1, %s9
  %s12 = scalar_select 0, %s11, %s9
  $region1: #{_lambda_.9} parent=0
    #allocation4 [shape = 'u8[1024]{0}', space=vmem, size = 0x400, scoped, tag = 'output window, operand 0, single buffered']
    #allocation5 [shape = 's32[2]{0}', space=sflag, size = 0x8, scoped, tag = 'scoped memory for _lambda_.9']
    %13 = vsyncpa [#allocation5], 0
    loop: start=0, step=1, limit=6
    $region2: #{_lambda_.9} parent=1 // loop_pre_header
      _
    $region3: #{_lambda_.9} parent=1 // loop_header
      %s15 = sphi 0, %s19
      %p16 = scmp.ge.s32.totalorder %s15, 6
      %s25 = sphi 0, %s27
      %s28 = sphi 0, %s25
      %s29 = sphi 0, %s28
      %s45 = sphi 0, %s29
      %s49 = sphi 0, %s49
      %s51 = sphi 0, %s49
      %s52 = sphi 0, %s51
      %s66 = sphi 0, %s52
      %s70 = sphi 0, %s70
      %s72 = sphi 0, %s70
      %s73 = sphi 0, %s72
      %s87 = sphi 0, %s73
      %s91 = sphi 0, %s91
      %s93 = sphi 0, %s91
      %s94 = sphi 0, %s93
      %s108 = sphi 0, %s94
      %s112 = sphi 0, %s112
      %s114 = sphi 0, %s112
      %s115 = sphi 0, %s114
      %s129 = sphi 0, %s115
      %s133 = sphi 0, %s133
      %s135 = sphi 0, %s133
      %s136 = sphi 0, %s135
      %s150 = sphi 0, %s136
      %s154 = sphi 0, %s154
      %s156 = sphi 0, %s154
      %s157 = sphi 0, %s156
      %s171 = sphi 0, %s157
      %s175 = sphi 0, %s175
      %s177 = sphi 0, %s175
      %s178 = sphi 0, %s177
      %s192 = sphi 0, %s178
      %s196 = sphi 0, %s196
      %s198 = sphi 0, %s196
      %s199 = sphi 0, %s198
      %s213 = sphi 0, %s199
    $region4: #{_lambda_.9} parent=1 // loop_header_branch
      %18 = sbr.rel (%p16) target = $region8
    $region5: #{_lambda_.9} parent=1 // loop_body
      %s20 = ssub.s32 %s15, 1
      %s21 = ssub.s32 %s15, 2
      %s22 = sadd.s32 %s15, 1
      %s23 = ssub.s32 %s15, %s22
      %p24 = scmp.eq.s32.totalorder %s23, 0
      %s26 = sadd.s32 %s25, 1
      %s27 = scalar_select %p24, %s25, %s26
      %p30 = pneg %p24
      %p31 = scmp.eq.s32.totalorder %s15, 3
      %p32 = por %p30, %p31
      %p33 = scmp.ne.s32.totalorder %s25, %s28
      %p34 = scmp.eq.s32.totalorder %s15, 0
      %p35 = por %p33, %p34
      %p36 = scmp.ne.s32.totalorder %s25, %s28
      %p37 = scmp.eq.s32.totalorder %s20, 3
      %p38 = por %p36, %p37
      %p39 = scmp.ne.s32.totalorder %s28, %s29
      %p40 = scmp.eq.s32.totalorder %s20, 0
      %p41 = por %p39, %p40
      %p42 = scmp.ne.s32.totalorder %s28, %s29
      %p43 = scmp.eq.s32.totalorder %s21, 3
      %p44 = por %p42, %p43
      %p46 = scmp.ne.s32.totalorder %s29, %s45
      %p47 = scmp.eq.s32.totalorder %s21, 0
      %p48 = por %p46, %p47
      %s50 = sadd.s32 %s49, 1
      %p53 = scmp.eq.s32.totalorder %s15, 3
      %p54 = scmp.ne.s32.totalorder %s49, %s51
      %p55 = scmp.eq.s32.totalorder %s15, 0
      %p56 = por %p54, %p55
      %p57 = scmp.ne.s32.totalorder %s49, %s51
      %p58 = scmp.eq.s32.totalorder %s20, 3
      %p59 = por %p57, %p58
      %p60 = scmp.ne.s32.totalorder %s51, %s52
      %p61 = scmp.eq.s32.totalorder %s20, 0
      %p62 = por %p60, %p61
      %p63 = scmp.ne.s32.totalorder %s51, %s52
      %p64 = scmp.eq.s32.totalorder %s21, 3
      %p65 = por %p63, %p64
      %p67 = scmp.ne.s32.totalorder %s52, %s66
      %p68 = scmp.eq.s32.totalorder %s21, 0
      %p69 = por %p67, %p68
      %s71 = sadd.s32 %s70, 1
      %p74 = scmp.eq.s32.totalorder %s15, 3
      %p75 = scmp.ne.s32.totalorder %s70, %s72
      %p76 = scmp.eq.s32.totalorder %s15, 0
      %p77 = por %p75, %p76
      %p78 = scmp.ne.s32.totalorder %s70, %s72
      %p79 = scmp.eq.s32.totalorder %s20, 3
      %p80 = por %p78, %p79
      %p81 = scmp.ne.s32.totalorder %s72, %s73
      %p82 = scmp.eq.s32.totalorder %s20, 0
      %p83 = por %p81, %p82
      %p84 = scmp.ne.s32.totalorder %s72, %s73
      %p85 = scmp.eq.s32.totalorder %s21, 3
      %p86 = por %p84, %p85
      %p88 = scmp.ne.s32.totalorder %s73, %s87
      %p89 = scmp.eq.s32.totalorder %s21, 0
      %p90 = por %p88, %p89
      %s92 = sadd.s32 %s91, 1
      %p95 = scmp.eq.s32.totalorder %s15, 3
      %p96 = scmp.ne.s32.totalorder %s91, %s93
      %p97 = scmp.eq.s32.totalorder %s15, 0
      %p98 = por %p96, %p97
      %p99 = scmp.ne.s32.totalorder %s91, %s93
      %p100 = scmp.eq.s32.totalorder %s20, 3
      %p101 = por %p99, %p100
      %p102 = scmp.ne.s32.totalorder %s93, %s94
      %p103 = scmp.eq.s32.totalorder %s20, 0
      %p104 = por %p102, %p103
      %p105 = scmp.ne.s32.totalorder %s93, %s94
      %p106 = scmp.eq.s32.totalorder %s21, 3
      %p107 = por %p105, %p106
      %p109 = scmp.ne.s32.totalorder %s94, %s108
      %p110 = scmp.eq.s32.totalorder %s21, 0
      %p111 = por %p109, %p110
      %s113 = sadd.s32 %s112, 1
      %p116 = scmp.eq.s32.totalorder %s15, 3
      %p117 = scmp.ne.s32.totalorder %s112, %s114
      %p118 = scmp.eq.s32.totalorder %s15, 0
      %p119 = por %p117, %p118
      %p120 = scmp.ne.s32.totalorder %s112, %s114
      %p121 = scmp.eq.s32.totalorder %s20, 3
      %p122 = por %p120, %p121
      %p123 = scmp.ne.s32.totalorder %s114, %s115
      %p124 = scmp.eq.s32.totalorder %s20, 0
      %p125 = por %p123, %p124
      %p126 = scmp.ne.s32.totalorder %s114, %s115
      %p127 = scmp.eq.s32.totalorder %s21, 3
      %p128 = por %p126, %p127
      %p130 = scmp.ne.s32.totalorder %s115, %s129
      %p131 = scmp.eq.s32.totalorder %s21, 0
      %p132 = por %p130, %p131
      %s134 = sadd.s32 %s133, 1
      %p137 = scmp.eq.s32.totalorder %s15, 3
      %p138 = scmp.ne.s32.totalorder %s133, %s135
      %p139 = scmp.eq.s32.totalorder %s15, 0
      %p140 = por %p138, %p139
      %p141 = scmp.ne.s32.totalorder %s133, %s135
      %p142 = scmp.eq.s32.totalorder %s20, 3
      %p143 = por %p141, %p142
      %p144 = scmp.ne.s32.totalorder %s135, %s136
      %p145 = scmp.eq.s32.totalorder %s20, 0
      %p146 = por %p144, %p145
      %p147 = scmp.ne.s32.totalorder %s135, %s136
      %p148 = scmp.eq.s32.totalorder %s21, 3
      %p149 = por %p147, %p148
      %p151 = scmp.ne.s32.totalorder %s136, %s150
      %p152 = scmp.eq.s32.totalorder %s21, 0
      %p153 = por %p151, %p152
      %s155 = sadd.s32 %s154, 1
      %p158 = scmp.eq.s32.totalorder %s15, 3
      %p159 = scmp.ne.s32.totalorder %s154, %s156
      %p160 = scmp.eq.s32.totalorder %s15, 0
      %p161 = por %p159, %p160
      %p162 = scmp.ne.s32.totalorder %s154, %s156
      %p163 = scmp.eq.s32.totalorder %s20, 3
      %p164 = por %p162, %p163
      %p165 = scmp.ne.s32.totalorder %s156, %s157
      %p166 = scmp.eq.s32.totalorder %s20, 0
      %p167 = por %p165, %p166
      %p168 = scmp.ne.s32.totalorder %s156, %s157
      %p169 = scmp.eq.s32.totalorder %s21, 3
      %p170 = por %p168, %p169
      %p172 = scmp.ne.s32.totalorder %s157, %s171
      %p173 = scmp.eq.s32.totalorder %s21, 0
      %p174 = por %p172, %p173
      %s176 = sadd.s32 %s175, 1
      %p179 = scmp.eq.s32.totalorder %s15, 3
      %p180 = scmp.ne.s32.totalorder %s175, %s177
      %p181 = scmp.eq.s32.totalorder %s15, 0
      %p182 = por %p180, %p181
      %p183 = scmp.ne.s32.totalorder %s175, %s177
      %p184 = scmp.eq.s32.totalorder %s20, 3
      %p185 = por %p183, %p184
      %p186 = scmp.ne.s32.totalorder %s177, %s178
      %p187 = scmp.eq.s32.totalorder %s20, 0
      %p188 = por %p186, %p187
      %p189 = scmp.ne.s32.totalorder %s177, %s178
      %p190 = scmp.eq.s32.totalorder %s21, 3
      %p191 = por %p189, %p190
      %p193 = scmp.ne.s32.totalorder %s178, %s192
      %p194 = scmp.eq.s32.totalorder %s21, 0
      %p195 = por %p193, %p194
      %s197 = sadd.s32 %s196, 1
      %p200 = scmp.eq.s32.totalorder %s15, 3
      %p201 = scmp.ne.s32.totalorder %s196, %s198
      %p202 = scmp.eq.s32.totalorder %s15, 0
      %p203 = por %p201, %p202
      %p204 = scmp.ne.s32.totalorder %s196, %s198
      %p205 = scmp.eq.s32.totalorder %s20, 3
      %p206 = por %p204, %p205
      %p207 = scmp.ne.s32.totalorder %s198, %s199
      %p208 = scmp.eq.s32.totalorder %s20, 0
      %p209 = por %p207, %p208
      %p210 = scmp.ne.s32.totalorder %s198, %s199
      %p211 = scmp.eq.s32.totalorder %s21, 3
      %p212 = por %p210, %p211
      %p214 = scmp.ne.s32.totalorder %s199, %s213
      %p215 = scmp.eq.s32.totalorder %s21, 0
      %p216 = por %p214, %p215
      %p217 = scmp.le.s32.totalorder 1, %s15
      %p218 = scmp.lt.s32.totalorder %s15, 5
      %p219 = pnand %p217, %p218
      %p220 = pneg %p219
      // Predicated region
      $region9: #{_lambda_.9} parent=5 // pred_check
        _
      $region10: #{_lambda_.9} parent=5 // pred_check_branch
        %222 = sbr.rel (%p219) target = $region12
      $region11: #{_lambda_.9} parent=5 // pred_region
        %s223 = ssub.s32 %s15, 1
        // Predicated region
        $region13: #{_lambda_.9} parent=11 // pred_check
          %p224 = pneg %p62
        $region14: #{_lambda_.9} parent=11 // pred_check_branch
          %226 = sbr.rel (%p224) target = $region16
        $region15: #{_lambda_.9} parent=11 // pred_region
          _
        $region16: #{_lambda_.9} parent=11 // pred_fallthru
          _
        // Predicated region
        $region17: #{_lambda_.9} parent=11 // pred_check
          %p227 = pneg %p83
        $region18: #{_lambda_.9} parent=11 // pred_check_branch
          %229 = sbr.rel (%p227) target = $region20
        $region19: #{_lambda_.9} parent=11 // pred_region
          _
        $region20: #{_lambda_.9} parent=11 // pred_fallthru
          _
        // Predicated region
        $region21: #{_lambda_.9} parent=11 // pred_check
          %p230 = pneg %p104
        $region22: #{_lambda_.9} parent=11 // pred_check_branch
          %232 = sbr.rel (%p230) target = $region24
        $region23: #{_lambda_.9} parent=11 // pred_region
          _
        $region24: #{_lambda_.9} parent=11 // pred_fallthru
          _
        // Predicated region
        $region25: #{_lambda_.9} parent=11 // pred_check
          %p233 = pneg %p125
        $region26: #{_lambda_.9} parent=11 // pred_check_branch
          %235 = sbr.rel (%p233) target = $region28
        $region27: #{_lambda_.9} parent=11 // pred_region
          _
        $region28: #{_lambda_.9} parent=11 // pred_fallthru
          _
        // Predicated region
        $region29: #{_lambda_.9} parent=11 // pred_check
          %p236 = pneg %p146
        $region30: #{_lambda_.9} parent=11 // pred_check_branch
          %238 = sbr.rel (%p236) target = $region32
        $region31: #{_lambda_.9} parent=11 // pred_region
          _
        $region32: #{_lambda_.9} parent=11 // pred_fallthru
          _
        // Predicated region
        $region33: #{_lambda_.9} parent=11 // pred_check
          %p239 = pneg %p167
        $region34: #{_lambda_.9} parent=11 // pred_check_branch
          %241 = sbr.rel (%p239) target = $region36
        $region35: #{_lambda_.9} parent=11 // pred_region
          _
        $region36: #{_lambda_.9} parent=11 // pred_fallthru
          _
        // Predicated region
        $region37: #{_lambda_.9} parent=11 // pred_check
          %p242 = pneg %p188
        $region38: #{_lambda_.9} parent=11 // pred_check_branch
          %244 = sbr.rel (%p242) target = $region40
        $region39: #{_lambda_.9} parent=11 // pred_region
          _
        $region40: #{_lambda_.9} parent=11 // pred_fallthru
          _
      $region12: #{_lambda_.9} parent=5 // pred_fallthru
        _
      %p245 = scmp.lt.s32.totalorder %s15, 4
      // Predicated region
      $region41: #{_lambda_.9} parent=5 // pred_check
        %p246 = pneg %p245
      $region42: #{_lambda_.9} parent=5 // pred_check_branch
        %248 = sbr.rel (%p246) target = $region44
      $region43: #{_lambda_.9} parent=5 // pred_region
        // Predicated region
        $region45: #{_lambda_.9} parent=43 // pred_check
          %p249 = pneg %p35
        $region46: #{_lambda_.9} parent=43 // pred_check_branch
          %251 = sbr.rel (%p249) target = $region48
        $region47: #{_lambda_.9} parent=43 // pred_region
          %p252 = scmp.lt.s32.totalorder %s15, 3
          %s253 = scalar_select %p252, %s15, 3
          %s254 = smul.addr %s253, 4
          %s255 = smul.addr %s254, 2
          %s256 = scalar_lea.vmem %s0, %s255
        $region48: #{_lambda_.9} parent=43 // pred_fallthru
          _
      $region44: #{_lambda_.9} parent=5 // pred_fallthru
        _
      %p257 = scmp.le.s32.totalorder 1, %s15
      %p258 = scmp.lt.s32.totalorder %s15, 5
      %p259 = pnand %p257, %p258
      %p260 = pneg %p259
      // Predicated region
      $region49: #{_lambda_.9} parent=5 // pred_check
        _
      $region50: #{_lambda_.9} parent=5 // pred_check_branch
        %262 = sbr.rel (%p259) target = $region52
      $region51: #{_lambda_.9} parent=5 // pred_region
        %s263 = ssub.s32 %s15, 1
        %p264 = scmp.lt.s32.totalorder %s20, 3
        %s265 = scalar_select %p264, %s20, 3
        %s266 = smul.addr %s265, 4
        %s267 = smul.addr %s266, 2
        %s268 = scalar_lea.vmem %s0, %s267
        %p269 = pneg %p41
        %p270 = pneg %p38
        %p271 = pneg %p62
        %p272 = pneg %p59
        %p273 = pneg %p83
        %p274 = pneg %p80
        %p275 = pneg %p104
        %p276 = pneg %p101
        %p277 = pneg %p125
        %p278 = pneg %p122
        %p279 = pneg %p146
        %p280 = pneg %p143
        %p281 = pneg %p167
        %p282 = pneg %p164
        %p283 = pneg %p188
        %p284 = pneg %p185
        %p285 = pneg %p209
        %p286 = pneg %p206
        %p287 = scmp.lt.s32.totalorder %s20, 3
        %s288 = scalar_select %p287, %s20, 3
        %s289 = smul.addr %s288, 4
        %s290 = smul.addr %s289, 2
        %s291 = scalar_lea.vmem %s0, %s290
        %p292 = scmp.eq.s32.totalorder %s20, 0
        // Predicated region
        $region53: #{_lambda_.9} parent=51 // pred_check
          %p293 = pneg %p292
        $region54: #{_lambda_.9} parent=51 // pred_check_branch
          %295 = sbr.rel (%p293) target = $region56
        $region55: #{_lambda_.9} parent=51 // pred_region
          %296 = vst [vmem:[#allocation2] sm:$0x3] 0.0
          %297 = vst [vmem:[#allocation2 + $0x2] sm:$0x3] 0.0
          %298 = vst [vmem:[#allocation2 + $0x4] sm:$0x3] 0.0
          %299 = vst [vmem:[#allocation3] sm:$0x3] 0.0
          %300 = vst [vmem:[#allocation3 + $0x2] sm:$0x3] 0.0
          %301 = vst [vmem:[#allocation3 + $0x4] sm:$0x3] 0.0
        $region56: #{_lambda_.9} parent=51 // pred_fallthru
          _
        %v302 = vld [vmem:[%s291] sm:$0xff]
        %v303 = vld [vmem:[#allocation2] sm:$0x3]
        %v304 = vld [vmem:[%s2] sm:$0xff]
        %v305 = vld [vmem:[%s2 + $0x8] sm:$0xff]
        %v306 = vld [vmem:[%s2 + $0x10] sm:$0xff]
        %v307 = vld [vmem:[%s2 + $0x18] sm:$0xff]
        %v308 = vld [vmem:[%s2 + $0x20] sm:$0xff]
        %v309 = vld [vmem:[%s2 + $0x28] sm:$0xff]
        %v310 = vld [vmem:[%s2 + $0x30] sm:$0xff]
        %v311 = vld [vmem:[%s2 + $0x38] sm:$0xff]
        %v312 = vld [vmem:[%s2 + $0x40] sm:$0xff]
        %v313 = vld [vmem:[%s2 + $0x48] sm:$0xff]
        %v314 = vld [vmem:[%s2 + $0x50] sm:$0xff]
        %v315 = vld [vmem:[%s2 + $0x58] sm:$0xff]
        %v316 = vld [vmem:[%s2 + $0x60] sm:$0xff]
        %v317 = vld [vmem:[%s2 + $0x68] sm:$0xff]
        %v318 = vld [vmem:[%s2 + $0x70] sm:$0xff]
        %v319 = vld [vmem:[%s2 + $0x78] sm:$0xff]
        %v320 = vld [vmem:[%s2 + $0x80] sm:$0xff]
        %v321 = vld [vmem:[%s2 + $0x88] sm:$0xff]
        %v322 = vld [vmem:[%s2 + $0x90] sm:$0xff]
        %v323 = vld [vmem:[%s2 + $0x98] sm:$0xff]
        %v324 = vld [vmem:[%s2 + $0xa0] sm:$0xff]
        %v325 = vld [vmem:[%s2 + $0xa8] sm:$0xff]
        %v326 = vld [vmem:[%s2 + $0xb0] sm:$0xff]
        %v327 = vld [vmem:[%s2 + $0xb8] sm:$0xff]
        %v328 = vld [vmem:[%s2 + $0xc0] sm:$0xff]
        %v329 = vld [vmem:[%s2 + $0xc8] sm:$0xff]
        %v330 = vld [vmem:[%s2 + $0xd0] sm:$0xff]
        %v331 = vld [vmem:[%s2 + $0xd8] sm:$0xff]
        %v332 = vld [vmem:[%s2 + $0xe0] sm:$0xff]
        %v333 = vld [vmem:[%s2 + $0xe8] sm:$0xff]
        %v334 = vld [vmem:[%s2 + $0xf0] sm:$0xff]
        %v335 = vld [vmem:[%s2 + $0xf8] sm:$0xff]
        %v336 = vld [vmem:[%s2 + $0x100] sm:$0xff]
        %v337 = vld [vmem:[%s2 + $0x108] sm:$0xff]
        %v338 = vld [vmem:[%s2 + $0x110] sm:$0xff]
        %v339 = vld [vmem:[%s2 + $0x118] sm:$0xff]
        %v340 = vld [vmem:[%s2 + $0x120] sm:$0xff]
        %v341 = vld [vmem:[%s2 + $0x128] sm:$0xff]
        %v342 = vld [vmem:[%s2 + $0x130] sm:$0xff]
        %v343 = vld [vmem:[%s2 + $0x138] sm:$0xff]
        %v344 = vld [vmem:[%s2 + $0x140] sm:$0xff]
        %v345 = vld [vmem:[%s2 + $0x148] sm:$0xff]
        %v346 = vld [vmem:[%s2 + $0x150] sm:$0xff]
        %v347 = vld [vmem:[%s2 + $0x158] sm:$0xff]
        %v348 = vld [vmem:[%s2 + $0x160] sm:$0xff]
        %v349 = vld [vmem:[%s2 + $0x168] sm:$0xff]
        %v350 = vld [vmem:[%s2 + $0x170] sm:$0xff]
        %v351 = vld [vmem:[%s2 + $0x178] sm:$0xff]
        %v352 = vld [vmem:[%s2 + $0x180] sm:$0xff]
        %v353 = vld [vmem:[%s2 + $0x188] sm:$0xff]
        %v354 = vld [vmem:[%s2 + $0x190] sm:$0xff]
        %v355 = vld [vmem:[%s2 + $0x198] sm:$0xff]
        %v356 = vld [vmem:[%s2 + $0x1a0] sm:$0xff]
        %v357 = vld [vmem:[%s2 + $0x1a8] sm:$0xff]
        %v358 = vld [vmem:[%s2 + $0x1b0] sm:$0xff]
        %v359 = vld [vmem:[%s2 + $0x1b8] sm:$0xff]
        %v360 = vld [vmem:[%s2 + $0x1c0] sm:$0xff]
        %v361 = vld [vmem:[%s2 + $0x1c8] sm:$0xff]
        %v362 = vld [vmem:[%s2 + $0x1d0] sm:$0xff]
        %v363 = vld [vmem:[%s2 + $0x1d8] sm:$0xff]
        %v364 = vld [vmem:[%s2 + $0x1e0] sm:$0xff]
        %v365 = vld [vmem:[%s2 + $0x1e8] sm:$0xff]
        %v366 = vld [vmem:[%s2 + $0x1f0] sm:$0xff]
        %v367 = vld [vmem:[%s2 + $0x1f8] sm:$0xff]
        %368 = vmatprep.subr.mxu0 %v305
        %369 = vmatpush1.msra.mxu0 %v304
        %370 = vmatprep.subr.mxu0 %v309
        %371 = vmatpush1.msra.mxu0 %v308
        %372 = vmatprep.subr.mxu0 %v313
        %373 = vmatpush1.msra.mxu0 %v312
        %374 = vmatprep.subr.mxu0 %v317
        %375 = vmatpush1.msra.mxu0 %v316
        %376 = vmatprep.subr.mxu0 %v321
        %377 = vmatpush1.msra.mxu0 %v320
        %378 = vmatprep.subr.mxu0 %v325
        %379 = vmatpush1.msra.mxu0 %v324
        %380 = vmatprep.subr.mxu0 %v329
        %381 = vmatpush1.msra.mxu0 %v328
        %382 = vmatprep.subr.mxu0 %v333
        %383 = vmatpush1.msra.mxu0 %v332
        %384 = vmatprep.subr.mxu0 %v337
        %385 = vmatpush1.msra.mxu0 %v336
        %386 = vmatprep.subr.mxu0 %v341
        %387 = vmatpush1.msra.mxu0 %v340
        %388 = vmatprep.subr.mxu0 %v345
        %389 = vmatpush1.msra.mxu0 %v344
        %390 = vmatprep.subr.mxu0 %v349
        %391 = vmatpush1.msra.mxu0 %v348
        %392 = vmatprep.subr.mxu0 %v353
        %393 = vmatpush1.msra.mxu0 %v352
        %394 = vmatprep.subr.mxu0 %v357
        %395 = vmatpush1.msra.mxu0 %v356
        %396 = vmatprep.subr.mxu0 %v361
        %397 = vmatpush1.msra.mxu0 %v360
        %398 = vmatprep.subr.mxu0 %v365
        %399 = vmatpush1.msra.mxu0 %v364
        %400 = vmatprep.subr.mxu0 0.0
        %401 = vmatpush1.msra.mxu0 0.0
        %402 = vmatprep.subr.mxu0 0.0
        %403 = vmatpush1.msra.mxu0 0.0
        %404 = vmatprep.subr.mxu0 0.0
        %405 = vmatpush1.msra.mxu0 0.0
        %406 = vmatprep.subr.mxu0 0.0
        %407 = vmatpush1.msra.mxu0 0.0
        %408 = vmatprep.subr.mxu0 0.0
        %409 = vmatpush1.msra.mxu0 0.0
        %410 = vmatprep.subr.mxu0 0.0
        %411 = vmatpush1.msra.mxu0 0.0
        %412 = vmatprep.subr.mxu0 0.0
        %413 = vmatpush1.msra.mxu0 0.0
        %414 = vmatprep.subr.mxu0 0.0
        %415 = vmatpush1.msra.mxu0 0.0
        %416 = vmatprep.subr.mxu0 0.0
        %417 = vmatpush1.msra.mxu0 0.0
        %418 = vmatprep.subr.mxu0 0.0
        %419 = vmatpush1.msra.mxu0 0.0
        %420 = vmatprep.subr.mxu0 0.0
        %421 = vmatpush1.msra.mxu0 0.0
        %422 = vmatprep.subr.mxu0 0.0
        %423 = vmatpush1.msra.mxu0 0.0
        %424 = vmatprep.subr.mxu0 0.0
        %425 = vmatpush1.msra.mxu0 0.0
        %426 = vmatprep.subr.mxu0 0.0
        %427 = vmatpush1.msra.mxu0 0.0
        %428 = vmatprep.subr.mxu0 0.0
        %429 = vmatpush1.msra.mxu0 0.0
        %430 = vmatprep.subr.mxu0 0.0
        %431 = vmatpush1.msra.mxu0 0.0
        %432 = vmatprep.mubr.f32.mxu0 0.0
        %433 = vmatmul.mubr.f32.gmra.mrb[0].mxu0 %v303
        %v434 = vpop.f32.mrb[0].mxu0
        %v435 = vadd.f32 0.0, %v434
        %v436 = vpop.f32.mrb[0].mxu0
        %v437 = vadd.f32 0.0, %v436
        %438 = vdwg.mxu0
        %439 = vmatprep.subr.mxu0 %v307
        %440 = vmatpush1.msra.mxu0 %v306
        %441 = vmatprep.subr.mxu0 %v311
        %442 = vmatpush1.msra.mxu0 %v310
        %443 = vmatprep.subr.mxu0 %v315
        %444 = vmatpush1.msra.mxu0 %v314
        %445 = vmatprep.subr.mxu0 %v319
        %446 = vmatpush1.msra.mxu0 %v318
        %447 = vmatprep.subr.mxu0 %v323
        %448 = vmatpush1.msra.mxu0 %v322
        %449 = vmatprep.subr.mxu0 %v327
        %450 = vmatpush1.msra.mxu0 %v326
        %451 = vmatprep.subr.mxu0 %v331
        %452 = vmatpush1.msra.mxu0 %v330
        %453 = vmatprep.subr.mxu0 %v335
        %454 = vmatpush1.msra.mxu0 %v334
        %455 = vmatprep.subr.mxu0 %v339
        %456 = vmatpush1.msra.mxu0 %v338
        %457 = vmatprep.subr.mxu0 %v343
        %458 = vmatpush1.msra.mxu0 %v342
        %459 = vmatprep.subr.mxu0 %v347
        %460 = vmatpush1.msra.mxu0 %v346
        %461 = vmatprep.subr.mxu0 %v351
        %462 = vmatpush1.msra.mxu0 %v350
        %463 = vmatprep.subr.mxu0 %v355
        %464 = vmatpush1.msra.mxu0 %v354
        %465 = vmatprep.subr.mxu0 %v359
        %466 = vmatpush1.msra.mxu0 %v358
        %467 = vmatprep.subr.mxu0 %v363
        %468 = vmatpush1.msra.mxu0 %v362
        %469 = vmatprep.subr.mxu0 %v367
        %470 = vmatpush1.msra.mxu0 %v366
        %471 = vmatprep.subr.mxu0 0.0
        %472 = vmatpush1.msra.mxu0 0.0
        %473 = vmatprep.subr.mxu0 0.0
        %474 = vmatpush1.msra.mxu0 0.0
        %475 = vmatprep.subr.mxu0 0.0
        %476 = vmatpush1.msra.mxu0 0.0
        %477 = vmatprep.subr.mxu0 0.0
        %478 = vmatpush1.msra.mxu0 0.0
        %479 = vmatprep.subr.mxu0 0.0
        %480 = vmatpush1.msra.mxu0 0.0
        %481 = vmatprep.subr.mxu0 0.0
        %482 = vmatpush1.msra.mxu0 0.0
        %483 = vmatprep.subr.mxu0 0.0
        %484 = vmatpush1.msra.mxu0 0.0
        %485 = vmatprep.subr.mxu0 0.0
        %486 = vmatpush1.msra.mxu0 0.0
        %487 = vmatprep.subr.mxu0 0.0
        %488 = vmatpush1.msra.mxu0 0.0
        %489 = vmatprep.subr.mxu0 0.0
        %490 = vmatpush1.msra.mxu0 0.0
        %491 = vmatprep.subr.mxu0 0.0
        %492 = vmatpush1.msra.mxu0 0.0
        %493 = vmatprep.subr.mxu0 0.0
        %494 = vmatpush1.msra.mxu0 0.0
        %495 = vmatprep.subr.mxu0 0.0
        %496 = vmatpush1.msra.mxu0 0.0
        %497 = vmatprep.subr.mxu0 0.0
        %498 = vmatpush1.msra.mxu0 0.0
        %499 = vmatprep.subr.mxu0 0.0
        %500 = vmatpush1.msra.mxu0 0.0
        %501 = vmatprep.subr.mxu0 0.0
        %502 = vmatpush1.msra.mxu0 0.0
        %503 = vmatprep.mubr.f32.mxu0 0.0
        %504 = vmatmul.mubr.f32.gmra.mrb[0].mxu0 %v303
        %v505 = vpop.f32.mrb[0].mxu0
        %v506 = vadd.f32 0.0, %v505
        %v507 = vpop.f32.mrb[0].mxu0
        %v508 = vadd.f32 0.0, %v507
        %509 = vdwg.mxu0
        %v514 = vcombine.low %v435, %v437
        %v515 = vcombine.low %v506, %v508
        %v517 = vunpack.c.l.s4 1983009808
        %v518 = vunpack.c.0.s8 %v517
        %v519 = vlaneseq
        %v520 = vshrl.u32 %v519, 7
        %v521 = vsub.s32 %v518, %v520
        %v522 = vrot.slane %v514, %v521
        %v524 = vunpack.c.l.s4 1983009808
        %v525 = vunpack.c.0.s8 %v524
        %v526 = vlaneseq
        %v527 = vshrl.u32 %v526, 7
        %v528 = vsub.s32 %v525, %v527
        %v529 = vrot.slane %v515, %v528
        %v530 = vcombine.low %v522, %v529
        %v532 = vadd.f32 %v302, %v530
        %v533 = vxor.u32 %v532, 2147483648
        %v534 = vmul.f32 %v533, 1.442695
        %v535 = vpow.pop %v534
        %v536 = vadd.f32 %v535, 1.0
        %v537 = vrcp.pop %v536
        %v538 = vmul.f32 1.0, %v537
        %v540 = vrot.slane %v532, 2
        %v542 = vxor.u32 %v540, 2147483648
        %v543 = vmul.f32 %v542, 1.442695
        %v544 = vpow.pop %v543
        %v545 = vadd.f32 %v544, 1.0
        %v546 = vrcp.pop %v545
        %v547 = vmul.f32 1.0, %v546
        %v548 = vrot.slane %v532, 4
        %v550 = vtanh.pop %v548
        %v551 = vrot.slane %v532, 6
        %v553 = vxor.u32 %v551, 2147483648
        %v554 = vmul.f32 %v553, 1.442695
        %v555 = vpow.pop %v554
        %v556 = vadd.f32 %v555, 1.0
        %v557 = vrcp.pop %v556
        %v558 = vmul.f32 1.0, %v557
        %v559 = vld [vmem:[#allocation3] sm:$0x3]
        %v560 = vmul.f32 %v547, %v559
        %v561 = vmul.f32 %v538, %v550
        %v562 = vadd.f32 %v560, %v561
        %v563 = vtanh.pop %v562
        %v564 = vmul.f32 %v558, %v563
        %565 = vst [vmem:[#allocation3] sm:$0x3] %v562
        %566 = vst [vmem:[#allocation2] sm:$0x3] %v564
        %v567 = vld [vmem:[%s1] sm:$0xff]
        %v568 = vld [vmem:[%s1 + $0x8] sm:$0xff]
        %v569 = vld [vmem:[%s1 + $0x10] sm:$0xff]
        %v570 = vld [vmem:[%s1 + $0x18] sm:$0xff]
        %v571 = vld [vmem:[%s1 + $0x20] sm:$0xff]
        %v572 = vld [vmem:[%s1 + $0x28] sm:$0xff]
        %v573 = vld [vmem:[%s1 + $0x30] sm:$0xff]
        %v574 = vld [vmem:[%s1 + $0x38] sm:$0xff]
        %v575 = vld [vmem:[%s1 + $0x40] sm:$0xff]
        %v576 = vld [vmem:[%s1 + $0x48] sm:$0xff]
        %v577 = vld [vmem:[%s1 + $0x50] sm:$0xff]
        %v578 = vld [vmem:[%s1 + $0x58] sm:$0xff]
        %v579 = vld [vmem:[%s1 + $0x60] sm:$0xff]
        %v580 = vld [vmem:[%s1 + $0x68] sm:$0xff]
        %v581 = vld [vmem:[%s1 + $0x70] sm:$0xff]
        %v582 = vld [vmem:[%s1 + $0x78] sm:$0xff]
        %v583 = vld [vmem:[%s1 + $0x80] sm:$0xff]
        %v584 = vld [vmem:[%s1 + $0x88] sm:$0xff]
        %v585 = vld [vmem:[%s1 + $0x90] sm:$0xff]
        %v586 = vld [vmem:[%s1 + $0x98] sm:$0xff]
        %v587 = vld [vmem:[%s1 + $0xa0] sm:$0xff]
        %v588 = vld [vmem:[%s1 + $0xa8] sm:$0xff]
        %v589 = vld [vmem:[%s1 + $0xb0] sm:$0xff]
        %v590 = vld [vmem:[%s1 + $0xb8] sm:$0xff]
        %v591 = vld [vmem:[%s1 + $0xc0] sm:$0xff]
        %v592 = vld [vmem:[%s1 + $0xc8] sm:$0xff]
        %v593 = vld [vmem:[%s1 + $0xd0] sm:$0xff]
        %v594 = vld [vmem:[%s1 + $0xd8] sm:$0xff]
        %v595 = vld [vmem:[%s1 + $0xe0] sm:$0xff]
        %v596 = vld [vmem:[%s1 + $0xe8] sm:$0xff]
        %v597 = vld [vmem:[%s1 + $0xf0] sm:$0xff]
        %v598 = vld [vmem:[%s1 + $0xf8] sm:$0xff]
        %v599 = vld [vmem:[%s1 + $0x100] sm:$0xff]
        %v600 = vld [vmem:[%s1 + $0x108] sm:$0xff]
        %v601 = vld [vmem:[%s1 + $0x110] sm:$0xff]
        %v602 = vld [vmem:[%s1 + $0x118] sm:$0xff]
        %v603 = vld [vmem:[%s1 + $0x120] sm:$0xff]
        %v604 = vld [vmem:[%s1 + $0x128] sm:$0xff]
        %v605 = vld [vmem:[%s1 + $0x130] sm:$0xff]
        %v606 = vld [vmem:[%s1 + $0x138] sm:$0xff]
        %v607 = vld [vmem:[%s1 + $0x140] sm:$0xff]
        %v608 = vld [vmem:[%s1 + $0x148] sm:$0xff]
        %v609 = vld [vmem:[%s1 + $0x150] sm:$0xff]
        %v610 = vld [vmem:[%s1 + $0x158] sm:$0xff]
        %v611 = vld [vmem:[%s1 + $0x160] sm:$0xff]
        %v612 = vld [vmem:[%s1 + $0x168] sm:$0xff]
        %v613 = vld [vmem:[%s1 + $0x170] sm:$0xff]
        %v614 = vld [vmem:[%s1 + $0x178] sm:$0xff]
        %v615 = vld [vmem:[%s1 + $0x180] sm:$0xff]
        %v616 = vld [vmem:[%s1 + $0x188] sm:$0xff]
        %v617 = vld [vmem:[%s1 + $0x190] sm:$0xff]
        %v618 = vld [vmem:[%s1 + $0x198] sm:$0xff]
        %v619 = vld [vmem:[%s1 + $0x1a0] sm:$0xff]
        %v620 = vld [vmem:[%s1 + $0x1a8] sm:$0xff]
        %v621 = vld [vmem:[%s1 + $0x1b0] sm:$0xff]
        %v622 = vld [vmem:[%s1 + $0x1b8] sm:$0xff]
        %v623 = vld [vmem:[%s1 + $0x1c0] sm:$0xff]
        %v624 = vld [vmem:[%s1 + $0x1c8] sm:$0xff]
        %v625 = vld [vmem:[%s1 + $0x1d0] sm:$0xff]
        %v626 = vld [vmem:[%s1 + $0x1d8] sm:$0xff]
        %v627 = vld [vmem:[%s1 + $0x1e0] sm:$0xff]
        %v628 = vld [vmem:[%s1 + $0x1e8] sm:$0xff]
        %v629 = vld [vmem:[%s1 + $0x1f0] sm:$0xff]
        %v630 = vld [vmem:[%s1 + $0x1f8] sm:$0xff]
        %s631 = scalar_lea.vmem [#allocation2], 2
        %v632 = vld [vmem:[%s631] sm:$0x3]
        %s633 = scalar_lea.vmem %s2, 512
        %v634 = vld [vmem:[%s633] sm:$0xff]
        %v635 = vld [vmem:[%s633 + $0x8] sm:$0xff]
        %v636 = vld [vmem:[%s633 + $0x10] sm:$0xff]
        %v637 = vld [vmem:[%s633 + $0x18] sm:$0xff]
        %v638 = vld [vmem:[%s633 + $0x20] sm:$0xff]
        %v639 = vld [vmem:[%s633 + $0x28] sm:$0xff]
        %v640 = vld [vmem:[%s633 + $0x30] sm:$0xff]
        %v641 = vld [vmem:[%s633 + $0x38] sm:$0xff]
        %v642 = vld [vmem:[%s633 + $0x40] sm:$0xff]
        %v643 = vld [vmem:[%s633 + $0x48] sm:$0xff]
        %v644 = vld [vmem:[%s633 + $0x50] sm:$0xff]
        %v645 = vld [vmem:[%s633 + $0x58] sm:$0xff]
        %v646 = vld [vmem:[%s633 + $0x60] sm:$0xff]
        %v647 = vld [vmem:[%s633 + $0x68] sm:$0xff]
        %v648 = vld [vmem:[%s633 + $0x70] sm:$0xff]
        %v649 = vld [vmem:[%s633 + $0x78] sm:$0xff]
        %v650 = vld [vmem:[%s633 + $0x80] sm:$0xff]
        %v651 = vld [vmem:[%s633 + $0x88] sm:$0xff]
        %v652 = vld [vmem:[%s633 + $0x90] sm:$0xff]
        %v653 = vld [vmem:[%s633 + $0x98] sm:$0xff]
        %v654 = vld [vmem:[%s633 + $0xa0] sm:$0xff]
        %v655 = vld [vmem:[%s633 + $0xa8] sm:$0xff]
        %v656 = vld [vmem:[%s633 + $0xb0] sm:$0xff]
        %v657 = vld [vmem:[%s633 + $0xb8] sm:$0xff]
        %v658 = vld [vmem:[%s633 + $0xc0] sm:$0xff]
        %v659 = vld [vmem:[%s633 + $0xc8] sm:$0xff]
        %v660 = vld [vmem:[%s633 + $0xd0] sm:$0xff]
        %v661 = vld [vmem:[%s633 + $0xd8] sm:$0xff]
        %v662 = vld [vmem:[%s633 + $0xe0] sm:$0xff]
        %v663 = vld [vmem:[%s633 + $0xe8] sm:$0xff]
        %v664 = vld [vmem:[%s633 + $0xf0] sm:$0xff]
        %v665 = vld [vmem:[%s633 + $0xf8] sm:$0xff]
        %v666 = vld [vmem:[%s633 + $0x100] sm:$0xff]
        %v667 = vld [vmem:[%s633 + $0x108] sm:$0xff]
        %v668 = vld [vmem:[%s633 + $0x110] sm:$0xff]
        %v669 = vld [vmem:[%s633 + $0x118] sm:$0xff]
        %v670 = vld [vmem:[%s633 + $0x120] sm:$0xff]
        %v671 = vld [vmem:[%s633 + $0x128] sm:$0xff]
        %v672 = vld [vmem:[%s633 + $0x130] sm:$0xff]
        %v673 = vld [vmem:[%s633 + $0x138] sm:$0xff]
        %v674 = vld [vmem:[%s633 + $0x140] sm:$0xff]
        %v675 = vld [vmem:[%s633 + $0x148] sm:$0xff]
        %v676 = vld [vmem:[%s633 + $0x150] sm:$0xff]
        %v677 = vld [vmem:[%s633 + $0x158] sm:$0xff]
        %v678 = vld [vmem:[%s633 + $0x160] sm:$0xff]
        %v679 = vld [vmem:[%s633 + $0x168] sm:$0xff]
        %v680 = vld [vmem:[%s633 + $0x170] sm:$0xff]
        %v681 = vld [vmem:[%s633 + $0x178] sm:$0xff]
        %v682 = vld [vmem:[%s633 + $0x180] sm:$0xff]
        %v683 = vld [vmem:[%s633 + $0x188] sm:$0xff]
        %v684 = vld [vmem:[%s633 + $0x190] sm:$0xff]
        %v685 = vld [vmem:[%s633 + $0x198] sm:$0xff]
        %v686 = vld [vmem:[%s633 + $0x1a0] sm:$0xff]
        %v687 = vld [vmem:[%s633 + $0x1a8] sm:$0xff]
        %v688 = vld [vmem:[%s633 + $0x1b0] sm:$0xff]
        %v689 = vld [vmem:[%s633 + $0x1b8] sm:$0xff]
        %v690 = vld [vmem:[%s633 + $0x1c0] sm:$0xff]
        %v691 = vld [vmem:[%s633 + $0x1c8] sm:$0xff]
        %v692 = vld [vmem:[%s633 + $0x1d0] sm:$0xff]
        %v693 = vld [vmem:[%s633 + $0x1d8] sm:$0xff]
        %v694 = vld [vmem:[%s633 + $0x1e0] sm:$0xff]
        %v695 = vld [vmem:[%s633 + $0x1e8] sm:$0xff]
        %v696 = vld [vmem:[%s633 + $0x1f0] sm:$0xff]
        %v697 = vld [vmem:[%s633 + $0x1f8] sm:$0xff]
        %698 = vmatprep.subr.mxu0 %v635
        %699 = vmatpush1.msra.mxu0 %v634
        %700 = vmatprep.subr.mxu0 %v639
        %701 = vmatpush1.msra.mxu0 %v638
        %702 = vmatprep.subr.mxu0 %v643
        %703 = vmatpush1.msra.mxu0 %v642
        %704 = vmatprep.subr.mxu0 %v647
        %705 = vmatpush1.msra.mxu0 %v646
        %706 = vmatprep.subr.mxu0 %v651
        %707 = vmatpush1.msra.mxu0 %v650
        %708 = vmatprep.subr.mxu0 %v655
        %709 = vmatpush1.msra.mxu0 %v654
        %710 = vmatprep.subr.mxu0 %v659
        %711 = vmatpush1.msra.mxu0 %v658
        %712 = vmatprep.subr.mxu0 %v663
        %713 = vmatpush1.msra.mxu0 %v662
        %714 = vmatprep.subr.mxu0 %v667
        %715 = vmatpush1.msra.mxu0 %v666
        %716 = vmatprep.subr.mxu0 %v671
        %717 = vmatpush1.msra.mxu0 %v670
        %718 = vmatprep.subr.mxu0 %v675
        %719 = vmatpush1.msra.mxu0 %v674
        %720 = vmatprep.subr.mxu0 %v679
        %721 = vmatpush1.msra.mxu0 %v678
        %722 = vmatprep.subr.mxu0 %v683
        %723 = vmatpush1.msra.mxu0 %v682
        %724 = vmatprep.subr.mxu0 %v687
        %725 = vmatpush1.msra.mxu0 %v686
        %726 = vmatprep.subr.mxu0 %v691
        %727 = vmatpush1.msra.mxu0 %v690
        %728 = vmatprep.subr.mxu0 %v695
        %729 = vmatpush1.msra.mxu0 %v694
        %730 = vmatprep.subr.mxu0 0.0
        %731 = vmatpush1.msra.mxu0 0.0
        %732 = vmatprep.subr.mxu0 0.0
        %733 = vmatpush1.msra.mxu0 0.0
        %734 = vmatprep.subr.mxu0 0.0
        %735 = vmatpush1.msra.mxu0 0.0
        %736 = vmatprep.subr.mxu0 0.0
        %737 = vmatpush1.msra.mxu0 0.0
        %738 = vmatprep.subr.mxu0 0.0
        %739 = vmatpush1.msra.mxu0 0.0
        %740 = vmatprep.subr.mxu0 0.0
        %741 = vmatpush1.msra.mxu0 0.0
        %742 = vmatprep.subr.mxu0 0.0
        %743 = vmatpush1.msra.mxu0 0.0
        %744 = vmatprep.subr.mxu0 0.0
        %745 = vmatpush1.msra.mxu0 0.0
        %746 = vmatprep.subr.mxu0 0.0
        %747 = vmatpush1.msra.mxu0 0.0
        %748 = vmatprep.subr.mxu0 0.0
        %749 = vmatpush1.msra.mxu0 0.0
        %750 = vmatprep.subr.mxu0 0.0
        %751 = vmatpush1.msra.mxu0 0.0
        %752 = vmatprep.subr.mxu0 0.0
        %753 = vmatpush1.msra.mxu0 0.0
        %754 = vmatprep.subr.mxu0 0.0
        %755 = vmatpush1.msra.mxu0 0.0
        %756 = vmatprep.subr.mxu0 0.0
        %757 = vmatpush1.msra.mxu0 0.0
        %758 = vmatprep.subr.mxu0 0.0
        %759 = vmatpush1.msra.mxu0 0.0
        %760 = vmatprep.subr.mxu0 0.0
        %761 = vmatpush1.msra.mxu0 0.0
        %762 = vmatprep.mubr.f32.mxu0 0.0
        %763 = vmatmul.mubr.f32.gmra.mrb[0].mxu0 %v632
        %v764 = vpop.f32.mrb[0].mxu0
        %v765 = vadd.f32 0.0, %v764
        %v766 = vpop.f32.mrb[0].mxu0
        %v767 = vadd.f32 0.0, %v766
        %768 = vdwg.mxu0
        %769 = vmatprep.subr.mxu0 %v637
        %770 = vmatpush1.msra.mxu0 %v636
        %771 = vmatprep.subr.mxu0 %v641
        %772 = vmatpush1.msra.mxu0 %v640
        %773 = vmatprep.subr.mxu0 %v645
        %774 = vmatpush1.msra.mxu0 %v644
        %775 = vmatprep.subr.mxu0 %v649
        %776 = vmatpush1.msra.mxu0 %v648
        %777 = vmatprep.subr.mxu0 %v653
        %778 = vmatpush1.msra.mxu0 %v652
        %779 = vmatprep.subr.mxu0 %v657
        %780 = vmatpush1.msra.mxu0 %v656
        %781 = vmatprep.subr.mxu0 %v661
        %782 = vmatpush1.msra.mxu0 %v660
        %783 = vmatprep.subr.mxu0 %v665
        %784 = vmatpush1.msra.mxu0 %v664
        %785 = vmatprep.subr.mxu0 %v669
        %786 = vmatpush1.msra.mxu0 %v668
        %787 = vmatprep.subr.mxu0 %v673
        %788 = vmatpush1.msra.mxu0 %v672
        %789 = vmatprep.subr.mxu0 %v677
        %790 = vmatpush1.msra.mxu0 %v676
        %791 = vmatprep.subr.mxu0 %v681
        %792 = vmatpush1.msra.mxu0 %v680
        %793 = vmatprep.subr.mxu0 %v685
        %794 = vmatpush1.msra.mxu0 %v684
        %795 = vmatprep.subr.mxu0 %v689
        %796 = vmatpush1.msra.mxu0 %v688
        %797 = vmatprep.subr.mxu0 %v693
        %798 = vmatpush1.msra.mxu0 %v692
        %799 = vmatprep.subr.mxu0 %v697
        %800 = vmatpush1.msra.mxu0 %v696
        %801 = vmatprep.subr.mxu0 0.0
        %802 = vmatpush1.msra.mxu0 0.0
        %803 = vmatprep.subr.mxu0 0.0
        %804 = vmatpush1.msra.mxu0 0.0
        %805 = vmatprep.subr.mxu0 0.0
        %806 = vmatpush1.msra.mxu0 0.0
        %807 = vmatprep.subr.mxu0 0.0
        %808 = vmatpush1.msra.mxu0 0.0
        %809 = vmatprep.subr.mxu0 0.0
        %810 = vmatpush1.msra.mxu0 0.0
        %811 = vmatprep.subr.mxu0 0.0
        %812 = vmatpush1.msra.mxu0 0.0
        %813 = vmatprep.subr.mxu0 0.0
        %814 = vmatpush1.msra.mxu0 0.0
        %815 = vmatprep.subr.mxu0 0.0
        %816 = vmatpush1.msra.mxu0 0.0
        %817 = vmatprep.subr.mxu0 0.0
        %818 = vmatpush1.msra.mxu0 0.0
        %819 = vmatprep.subr.mxu0 0.0
        %820 = vmatpush1.msra.mxu0 0.0
        %821 = vmatprep.subr.mxu0 0.0
        %822 = vmatpush1.msra.mxu0 0.0
        %823 = vmatprep.subr.mxu0 0.0
        %824 = vmatpush1.msra.mxu0 0.0
        %825 = vmatprep.subr.mxu0 0.0
        %826 = vmatpush1.msra.mxu0 0.0
        %827 = vmatprep.subr.mxu0 0.0
        %828 = vmatpush1.msra.mxu0 0.0
        %829 = vmatprep.subr.mxu0 0.0
        %830 = vmatpush1.msra.mxu0 0.0
        %831 = vmatprep.subr.mxu0 0.0
        %832 = vmatpush1.msra.mxu0 0.0
        %833 = vmatprep.mubr.f32.mxu0 0.0
        %834 = vmatmul.mubr.f32.gmra.mrb[0].mxu0 %v632
        %v835 = vpop.f32.mrb[0].mxu0
        %v836 = vadd.f32 0.0, %v835
        %v837 = vpop.f32.mrb[0].mxu0
        %v838 = vadd.f32 0.0, %v837
        %839 = vdwg.mxu0
        %840 = vmatprep.subr.mxu0 %v568
        %841 = vmatpush1.msra.mxu0 %v567
        %842 = vmatprep.subr.mxu0 %v572
        %843 = vmatpush1.msra.mxu0 %v571
        %844 = vmatprep.subr.mxu0 %v576
        %845 = vmatpush1.msra.mxu0 %v575
        %846 = vmatprep.subr.mxu0 %v580
        %847 = vmatpush1.msra.mxu0 %v579
        %848 = vmatprep.subr.mxu0 %v584
        %849 = vmatpush1.msra.mxu0 %v583
        %850 = vmatprep.subr.mxu0 %v588
        %851 = vmatpush1.msra.mxu0 %v587
        %852 = vmatprep.subr.mxu0 %v592
        %853 = vmatpush1.msra.mxu0 %v591
        %854 = vmatprep.subr.mxu0 %v596
        %855 = vmatpush1.msra.mxu0 %v595
        %856 = vmatprep.subr.mxu0 %v600
        %857 = vmatpush1.msra.mxu0 %v599
        %858 = vmatprep.subr.mxu0 %v604
        %859 = vmatpush1.msra.mxu0 %v603
        %860 = vmatprep.subr.mxu0 %v608
        %861 = vmatpush1.msra.mxu0 %v607
        %862 = vmatprep.subr.mxu0 %v612
        %863 = vmatpush1.msra.mxu0 %v611
        %864 = vmatprep.subr.mxu0 %v616
        %865 = vmatpush1.msra.mxu0 %v615
        %866 = vmatprep.subr.mxu0 %v620
        %867 = vmatpush1.msra.mxu0 %v619
        %868 = vmatprep.subr.mxu0 %v624
        %869 = vmatpush1.msra.mxu0 %v623
        %870 = vmatprep.subr.mxu0 %v628
        %871 = vmatpush1.msra.mxu0 %v627
        %872 = vmatprep.subr.mxu0 0.0
        %873 = vmatpush1.msra.mxu0 0.0
        %874 = vmatprep.subr.mxu0 0.0
        %875 = vmatpush1.msra.mxu0 0.0
        %876 = vmatprep.subr.mxu0 0.0
        %877 = vmatpush1.msra.mxu0 0.0
        %878 = vmatprep.subr.mxu0 0.0
        %879 = vmatpush1.msra.mxu0 0.0
        %880 = vmatprep.subr.mxu0 0.0
        %881 = vmatpush1.msra.mxu0 0.0
        %882 = vmatprep.subr.mxu0 0.0
        %883 = vmatpush1.msra.mxu0 0.0
        %884 = vmatprep.subr.mxu0 0.0
        %885 = vmatpush1.msra.mxu0 0.0
        %886 = vmatprep.subr.mxu0 0.0
        %887 = vmatpush1.msra.mxu0 0.0
        %888 = vmatprep.subr.mxu0 0.0
        %889 = vmatpush1.msra.mxu0 0.0
        %890 = vmatprep.subr.mxu0 0.0
        %891 = vmatpush1.msra.mxu0 0.0
        %892 = vmatprep.subr.mxu0 0.0
        %893 = vmatpush1.msra.mxu0 0.0
        %894 = vmatprep.subr.mxu0 0.0
        %895 = vmatpush1.msra.mxu0 0.0
        %896 = vmatprep.subr.mxu0 0.0
        %897 = vmatpush1.msra.mxu0 0.0
        %898 = vmatprep.subr.mxu0 0.0
        %899 = vmatpush1.msra.mxu0 0.0
        %900 = vmatprep.subr.mxu0 0.0
        %901 = vmatpush1.msra.mxu0 0.0
        %902 = vmatprep.subr.mxu0 0.0
        %903 = vmatpush1.msra.mxu0 0.0
        %904 = vmatprep.mubr.f32.mxu0 0.0
        %905 = vmatmul.mubr.f32.gmra.mrb[0].mxu0 %v564
        %v906 = vpop.f32.mrb[0].mxu0
        %v907 = vadd.f32 %v765, %v906
        %v908 = vpop.f32.mrb[0].mxu0
        %v909 = vadd.f32 %v767, %v908
        %910 = vdwg.mxu0
        %911 = vmatprep.subr.mxu0 %v570
        %912 = vmatpush1.msra.mxu0 %v569
        %913 = vmatprep.subr.mxu0 %v574
        %914 = vmatpush1.msra.mxu0 %v573
        %915 = vmatprep.subr.mxu0 %v578
        %916 = vmatpush1.msra.mxu0 %v577
        %917 = vmatprep.subr.mxu0 %v582
        %918 = vmatpush1.msra.mxu0 %v581
        %919 = vmatprep.subr.mxu0 %v586
        %920 = vmatpush1.msra.mxu0 %v585
        %921 = vmatprep.subr.mxu0 %v590
        %922 = vmatpush1.msra.mxu0 %v589
        %923 = vmatprep.subr.mxu0 %v594
        %924 = vmatpush1.msra.mxu0 %v593
        %925 = vmatprep.subr.mxu0 %v598
        %926 = vmatpush1.msra.mxu0 %v597
        %927 = vmatprep.subr.mxu0 %v602
        %928 = vmatpush1.msra.mxu0 %v601
        %929 = vmatprep.subr.mxu0 %v606
        %930 = vmatpush1.msra.mxu0 %v605
        %931 = vmatprep.subr.mxu0 %v610
        %932 = vmatpush1.msra.mxu0 %v609
        %933 = vmatprep.subr.mxu0 %v614
        %934 = vmatpush1.msra.mxu0 %v613
        %935 = vmatprep.subr.mxu0 %v618
        %936 = vmatpush1.msra.mxu0 %v617
        %937 = vmatprep.subr.mxu0 %v622
        %938 = vmatpush1.msra.mxu0 %v621
        %939 = vmatprep.subr.mxu0 %v626
        %940 = vmatpush1.msra.mxu0 %v625
        %941 = vmatprep.subr.mxu0 %v630
        %942 = vmatpush1.msra.mxu0 %v629
        %943 = vmatprep.subr.mxu0 0.0
        %944 = vmatpush1.msra.mxu0 0.0
        %945 = vmatprep.subr.mxu0 0.0
        %946 = vmatpush1.msra.mxu0 0.0
        %947 = vmatprep.subr.mxu0 0.0
        %948 = vmatpush1.msra.mxu0 0.0
        %949 = vmatprep.subr.mxu0 0.0
        %950 = vmatpush1.msra.mxu0 0.0
        %951 = vmatprep.subr.mxu0 0.0
        %952 = vmatpush1.msra.mxu0 0.0
        %953 = vmatprep.subr.mxu0 0.0
        %954 = vmatpush1.msra.mxu0 0.0
        %955 = vmatprep.subr.mxu0 0.0
        %956 = vmatpush1.msra.mxu0 0.0
        %957 = vmatprep.subr.mxu0 0.0
        %958 = vmatpush1.msra.mxu0 0.0
        %959 = vmatprep.subr.mxu0 0.0
        %960 = vmatpush1.msra.mxu0 0.0
        %961 = vmatprep.subr.mxu0 0.0
        %962 = vmatpush1.msra.mxu0 0.0
        %963 = vmatprep.subr.mxu0 0.0
        %964 = vmatpush1.msra.mxu0 0.0
        %965 = vmatprep.subr.mxu0 0.0
        %966 = vmatpush1.msra.mxu0 0.0
        %967 = vmatprep.subr.mxu0 0.0
        %968 = vmatpush1.msra.mxu0 0.0
        %969 = vmatprep.subr.mxu0 0.0
        %970 = vmatpush1.msra.mxu0 0.0
        %971 = vmatprep.subr.mxu0 0.0
        %972 = vmatpush1.msra.mxu0 0.0
        %973 = vmatprep.subr.mxu0 0.0
        %974 = vmatpush1.msra.mxu0 0.0
        %975 = vmatprep.mubr.f32.mxu0 0.0
        %976 = vmatmul.mubr.f32.gmra.mrb[0].mxu0 %v564
        %v977 = vpop.f32.mrb[0].mxu0
        %v978 = vadd.f32 %v836, %v977
        %v979 = vpop.f32.mrb[0].mxu0
        %v980 = vadd.f32 %v838, %v979
        %981 = vdwg.mxu0
        %v982 = vld [vmem:[%s3] sm:$0xf]
        %v984 = vlaneseq
        %v985 = vshrl.u32 %v984, 7
        %v986 = vsub.s32 0, %v985
        %v987 = vrot.slane %v982, %v986
        %v988 = vlaneseq
        %v989 = vshrl.u32 %v988, 7
        %v990 = vsub.s32 1, %v989
        %v991 = vrot.slane %v982, %v990
        %v992 = vlaneseq
        %v993 = vshrl.u32 %v992, 7
        %v994 = vsub.s32 2, %v993
        %v995 = vrot.slane %v982, %v994
        %v996 = vlaneseq
        %v997 = vshrl.u32 %v996, 7
        %v998 = vsub.s32 3, %v997
        %v999 = vrot.slane %v982, %v998
        %v1004 = vadd.f32 %v907, %v987
        %v1005 = vadd.f32 %v909, %v991
        %v1006 = vadd.f32 %v978, %v995
        %v1007 = vadd.f32 %v980, %v999
        %v1008 = vxor.u32 %v1004, 2147483648
        %v1009 = vmul.f32 %v1008, 1.442695
        %v1010 = vpow.pop %v1009
        %v1011 = vadd.f32 %v1010, 1.0
        %v1012 = vrcp.pop %v1011
        %v1013 = vmul.f32 1.0, %v1012
        %v1014 = vxor.u32 %v1005, 2147483648
        %v1015 = vmul.f32 %v1014, 1.442695
        %v1016 = vpow.pop %v1015
        %v1017 = vadd.f32 %v1016, 1.0
        %v1018 = vrcp.pop %v1017
        %v1019 = vmul.f32 1.0, %v1018
        %v1020 = vtanh.pop %v1006
        %v1021 = vxor.u32 %v1007, 2147483648
        %v1022 = vmul.f32 %v1021, 1.442695
        %v1023 = vpow.pop %v1022
        %v1024 = vadd.f32 %v1023, 1.0
        %v1025 = vrcp.pop %v1024
        %v1026 = vmul.f32 1.0, %v1025
        %s1027 = scalar_lea.vmem [#allocation3], 2
        %v1028 = vld [vmem:[%s1027] sm:$0x3]
        %v1029 = vmul.f32 %v1019, %v1028
        %v1030 = vmul.f32 %v1013, %v1020
        %v1031 = vadd.f32 %v1029, %v1030
        %v1032 = vtanh.pop %v1031
        %v1033 = vmul.f32 %v1026, %v1032
        %1034 = vst [vmem:[%s1027] sm:$0x3] %v1031
        %1035 = vst [vmem:[%s631] sm:$0x3] %v1033
        %s1036 = scalar_lea.vmem %s1, 512
        %v1037 = vld [vmem:[%s1036] sm:$0xff]
        %v1038 = vld [vmem:[%s1036 + $0x8] sm:$0xff]
        %v1039 = vld [vmem:[%s1036 + $0x10] sm:$0xff]
        %v1040 = vld [vmem:[%s1036 + $0x18] sm:$0xff]
        %v1041 = vld [vmem:[%s1036 + $0x20] sm:$0xff]
        %v1042 = vld [vmem:[%s1036 + $0x28] sm:$0xff]
        %v1043 = vld [vmem:[%s1036 + $0x30] sm:$0xff]
        %v1044 = vld [vmem:[%s1036 + $0x38] sm:$0xff]
        %v1045 = vld [vmem:[%s1036 + $0x40] sm:$0xff]
        %v1046 = vld [vmem:[%s1036 + $0x48] sm:$0xff]
        %v1047 = vld [vmem:[%s1036 + $0x50] sm:$0xff]
        %v1048 = vld [vmem:[%s1036 + $0x58] sm:$0xff]
        %v1049 = vld [vmem:[%s1036 + $0x60] sm:$0xff]
        %v1050 = vld [vmem:[%s1036 + $0x68] sm:$0xff]
        %v1051 = vld [vmem:[%s1036 + $0x70] sm:$0xff]
        %v1052 = vld [vmem:[%s1036 + $0x78] sm:$0xff]
        %v1053 = vld [vmem:[%s1036 + $0x80] sm:$0xff]
        %v1054 = vld [vmem:[%s1036 + $0x88] sm:$0xff]
        %v1055 = vld [vmem:[%s1036 + $0x90] sm:$0xff]
        %v1056 = vld [vmem:[%s1036 + $0x98] sm:$0xff]
        %v1057 = vld [vmem:[%s1036 + $0xa0] sm:$0xff]
        %v1058 = vld [vmem:[%s1036 + $0xa8] sm:$0xff]
        %v1059 = vld [vmem:[%s1036 + $0xb0] sm:$0xff]
        %v1060 = vld [vmem:[%s1036 + $0xb8] sm:$0xff]
        %v1061 = vld [vmem:[%s1036 + $0xc0] sm:$0xff]
        %v1062 = vld [vmem:[%s1036 + $0xc8] sm:$0xff]
        %v1063 = vld [vmem:[%s1036 + $0xd0] sm:$0xff]
        %v1064 = vld [vmem:[%s1036 + $0xd8] sm:$0xff]
        %v1065 = vld [vmem:[%s1036 + $0xe0] sm:$0xff]
        %v1066 = vld [vmem:[%s1036 + $0xe8] sm:$0xff]
        %v1067 = vld [vmem:[%s1036 + $0xf0] sm:$0xff]
        %v1068 = vld [vmem:[%s1036 + $0xf8] sm:$0xff]
        %v1069 = vld [vmem:[%s1036 + $0x100] sm:$0xff]
        %v1070 = vld [vmem:[%s1036 + $0x108] sm:$0xff]
        %v1071 = vld [vmem:[%s1036 + $0x110] sm:$0xff]
        %v1072 = vld [vmem:[%s1036 + $0x118] sm:$0xff]
        %v1073 = vld [vmem:[%s1036 + $0x120] sm:$0xff]
        %v1074 = vld [vmem:[%s1036 + $0x128] sm:$0xff]
        %v1075 = vld [vmem:[%s1036 + $0x130] sm:$0xff]
        %v1076 = vld [vmem:[%s1036 + $0x138] sm:$0xff]
        %v1077 = vld [vmem:[%s1036 + $0x140] sm:$0xff]
        %v1078 = vld [vmem:[%s1036 + $0x148] sm:$0xff]
        %v1079 = vld [vmem:[%s1036 + $0x150] sm:$0xff]
        %v1080 = vld [vmem:[%s1036 + $0x158] sm:$0xff]
        %v1081 = vld [vmem:[%s1036 + $0x160] sm:$0xff]
        %v1082 = vld [vmem:[%s1036 + $0x168] sm:$0xff]
        %v1083 = vld [vmem:[%s1036 + $0x170] sm:$0xff]
        %v1084 = vld [vmem:[%s1036 + $0x178] sm:$0xff]
        %v1085 = vld [vmem:[%s1036 + $0x180] sm:$0xff]
        %v1086 = vld [vmem:[%s1036 + $0x188] sm:$0xff]
        %v1087 = vld [vmem:[%s1036 + $0x190] sm:$0xff]
        %v1088 = vld [vmem:[%s1036 + $0x198] sm:$0xff]
        %v1089 = vld [vmem:[%s1036 + $0x1a0] sm:$0xff]
        %v1090 = vld [vmem:[%s1036 + $0x1a8] sm:$0xff]
        %v1091 = vld [vmem:[%s1036 + $0x1b0] sm:$0xff]
        %v1092 = vld [vmem:[%s1036 + $0x1b8] sm:$0xff]
        %v1093 = vld [vmem:[%s1036 + $0x1c0] sm:$0xff]
        %v1094 = vld [vmem:[%s1036 + $0x1c8] sm:$0xff]
        %v1095 = vld [vmem:[%s1036 + $0x1d0] sm:$0xff]
        %v1096 = vld [vmem:[%s1036 + $0x1d8] sm:$0xff]
        %v1097 = vld [vmem:[%s1036 + $0x1e0] sm:$0xff]
        %v1098 = vld [vmem:[%s1036 + $0x1e8] sm:$0xff]
        %v1099 = vld [vmem:[%s1036 + $0x1f0] sm:$0xff]
        %v1100 = vld [vmem:[%s1036 + $0x1f8] sm:$0xff]
        %s1101 = scalar_lea.vmem [#allocation2], 4
        %v1102 = vld [vmem:[%s1101] sm:$0x3]
        %s1103 = scalar_lea.vmem %s2, 1024
        %v1104 = vld [vmem:[%s1103] sm:$0xff]
        %v1105 = vld [vmem:[%s1103 + $0x8] sm:$0xff]
        %v1106 = vld [vmem:[%s1103 + $0x10] sm:$0xff]
        %v1107 = vld [vmem:[%s1103 + $0x18] sm:$0xff]
        %v1108 = vld [vmem:[%s1103 + $0x20] sm:$0xff]
        %v1109 = vld [vmem:[%s1103 + $0x28] sm:$0xff]
        %v1110 = vld [vmem:[%s1103 + $0x30] sm:$0xff]
        %v1111 = vld [vmem:[%s1103 + $0x38] sm:$0xff]
        %v1112 = vld [vmem:[%s1103 + $0x40] sm:$0xff]
        %v1113 = vld [vmem:[%s1103 + $0x48] sm:$0xff]
        %v1114 = vld [vmem:[%s1103 + $0x50] sm:$0xff]
        %v1115 = vld [vmem:[%s1103 + $0x58] sm:$0xff]
        %v1116 = vld [vmem:[%s1103 + $0x60] sm:$0xff]
        %v1117 = vld [vmem:[%s1103 + $0x68] sm:$0xff]
        %v1118 = vld [vmem:[%s1103 + $0x70] sm:$0xff]
        %v1119 = vld [vmem:[%s1103 + $0x78] sm:$0xff]
        %v1120 = vld [vmem:[%s1103 + $0x80] sm:$0xff]
        %v1121 = vld [vmem:[%s1103 + $0x88] sm:$0xff]
        %v1122 = vld [vmem:[%s1103 + $0x90] sm:$0xff]
        %v1123 = vld [vmem:[%s1103 + $0x98] sm:$0xff]
        %v1124 = vld [vmem:[%s1103 + $0xa0] sm:$0xff]
        %v1125 = vld [vmem:[%s1103 + $0xa8] sm:$0xff]
        %v1126 = vld [vmem:[%s1103 + $0xb0] sm:$0xff]
        %v1127 = vld [vmem:[%s1103 + $0xb8] sm:$0xff]
        %v1128 = vld [vmem:[%s1103 + $0xc0] sm:$0xff]
        %v1129 = vld [vmem:[%s1103 + $0xc8] sm:$0xff]
        %v1130 = vld [vmem:[%s1103 + $0xd0] sm:$0xff]
        %v1131 = vld [vmem:[%s1103 + $0xd8] sm:$0xff]
        %v1132 = vld [vmem:[%s1103 + $0xe0] sm:$0xff]
        %v1133 = vld [vmem:[%s1103 + $0xe8] sm:$0xff]
        %v1134 = vld [vmem:[%s1103 + $0xf0] sm:$0xff]
        %v1135 = vld [vmem:[%s1103 + $0xf8] sm:$0xff]
        %v1136 = vld [vmem:[%s1103 + $0x100] sm:$0xff]
        %v1137 = vld [vmem:[%s1103 + $0x108] sm:$0xff]
        %v1138 = vld [vmem:[%s1103 + $0x110] sm:$0xff]
        %v1139 = vld [vmem:[%s1103 + $0x118] sm:$0xff]
        %v1140 = vld [vmem:[%s1103 + $0x120] sm:$0xff]
        %v1141 = vld [vmem:[%s1103 + $0x128] sm:$0xff]
        %v1142 = vld [vmem:[%s1103 + $0x130] sm:$0xff]
        %v1143 = vld [vmem:[%s1103 + $0x138] sm:$0xff]
        %v1144 = vld [vmem:[%s1103 + $0x140] sm:$0xff]
        %v1145 = vld [vmem:[%s1103 + $0x148] sm:$0xff]
        %v1146 = vld [vmem:[%s1103 + $0x150] sm:$0xff]
        %v1147 = vld [vmem:[%s1103 + $0x158] sm:$0xff]
        %v1148 = vld [vmem:[%s1103 + $0x160] sm:$0xff]
        %v1149 = vld [vmem:[%s1103 + $0x168] sm:$0xff]
        %v1150 = vld [vmem:[%s1103 + $0x170] sm:$0xff]
        %v1151 = vld [vmem:[%s1103 + $0x178] sm:$0xff]
        %v1152 = vld [vmem:[%s1103 + $0x180] sm:$0xff]
        %v1153 = vld [vmem:[%s1103 + $0x188] sm:$0xff]
        %v1154 = vld [vmem:[%s1103 + $0x190] sm:$0xff]
        %v1155 = vld [vmem:[%s1103 + $0x198] sm:$0xff]
        %v1156 = vld [vmem:[%s1103 + $0x1a0] sm:$0xff]
        %v1157 = vld [vmem:[%s1103 + $0x1a8] sm:$0xff]
        %v1158 = vld [vmem:[%s1103 + $0x1b0] sm:$0xff]
        %v1159 = vld [vmem:[%s1103 + $0x1b8] sm:$0xff]
        %v1160 = vld [vmem:[%s1103 + $0x1c0] sm:$0xff]
        %v1161 = vld [vmem:[%s1103 + $0x1c8] sm:$0xff]
        %v1162 = vld [vmem:[%s1103 + $0x1d0] sm:$0xff]
        %v1163 = vld [vmem:[%s1103 + $0x1d8] sm:$0xff]
        %v1164 = vld [vmem:[%s1103 + $0x1e0] sm:$0xff]
        %v1165 = vld [vmem:[%s1103 + $0x1e8] sm:$0xff]
        %v1166 = vld [vmem:[%s1103 + $0x1f0] sm:$0xff]
        %v1167 = vld [vmem:[%s1103 + $0x1f8] sm:$0xff]
        %1168 = vmatprep.subr.mxu0 %v1105
        %1169 = vmatpush1.msra.mxu0 %v1104
        %1170 = vmatprep.subr.mxu0 %v1109
        %1171 = vmatpush1.msra.mxu0 %v1108
        %1172 = vmatprep.subr.mxu0 %v1113
        %1173 = vmatpush1.msra.mxu0 %v1112
        %1174 = vmatprep.subr.mxu0 %v1117
        %1175 = vmatpush1.msra.mxu0 %v1116
        %1176 = vmatprep.subr.mxu0 %v1121
        %1177 = vmatpush1.msra.mxu0 %v1120
        %1178 = vmatprep.subr.mxu0 %v1125
        %1179 = vmatpush1.msra.mxu0 %v1124
        %1180 = vmatprep.subr.mxu0 %v1129
        %1181 = vmatpush1.msra.mxu0 %v1128
        %1182 = vmatprep.subr.mxu0 %v1133
        %1183 = vmatpush1.msra.mxu0 %v1132
        %1184 = vmatprep.subr.mxu0 %v1137
        %1185 = vmatpush1.msra.mxu0 %v1136
        %1186 = vmatprep.subr.mxu0 %v1141
        %1187 = vmatpush1.msra.mxu0 %v1140
        %1188 = vmatprep.subr.mxu0 %v1145
        %1189 = vmatpush1.msra.mxu0 %v1144
        %1190 = vmatprep.subr.mxu0 %v1149
        %1191 = vmatpush1.msra.mxu0 %v1148
        %1192 = vmatprep.subr.mxu0 %v1153
        %1193 = vmatpush1.msra.mxu0 %v1152
        %1194 = vmatprep.subr.mxu0 %v1157
        %1195 = vmatpush1.msra.mxu0 %v1156
        %1196 = vmatprep.subr.mxu0 %v1161
        %1197 = vmatpush1.msra.mxu0 %v1160
        %1198 = vmatprep.subr.mxu0 %v1165
        %1199 = vmatpush1.msra.mxu0 %v1164
        %1200 = vmatprep.subr.mxu0 0.0
        %1201 = vmatpush1.msra.mxu0 0.0
        %1202 = vmatprep.subr.mxu0 0.0
        %1203 = vmatpush1.msra.mxu0 0.0
        %1204 = vmatprep.subr.mxu0 0.0
        %1205 = vmatpush1.msra.mxu0 0.0
        %1206 = vmatprep.subr.mxu0 0.0
        %1207 = vmatpush1.msra.mxu0 0.0
        %1208 = vmatprep.subr.mxu0 0.0
        %1209 = vmatpush1.msra.mxu0 0.0
        %1210 = vmatprep.subr.mxu0 0.0
        %1211 = vmatpush1.msra.mxu0 0.0
        %1212 = vmatprep.subr.mxu0 0.0
        %1213 = vmatpush1.msra.mxu0 0.0
        %1214 = vmatprep.subr.mxu0 0.0
        %1215 = vmatpush1.msra.mxu0 0.0
        %1216 = vmatprep.subr.mxu0 0.0
        %1217 = vmatpush1.msra.mxu0 0.0
        %1218 = vmatprep.subr.mxu0 0.0
        %1219 = vmatpush1.msra.mxu0 0.0
        %1220 = vmatprep.subr.mxu0 0.0
        %1221 = vmatpush1.msra.mxu0 0.0
        %1222 = vmatprep.subr.mxu0 0.0
        %1223 = vmatpush1.msra.mxu0 0.0
        %1224 = vmatprep.subr.mxu0 0.0
        %1225 = vmatpush1.msra.mxu0 0.0
        %1226 = vmatprep.subr.mxu0 0.0
        %1227 = vmatpush1.msra.mxu0 0.0
        %1228 = vmatprep.subr.mxu0 0.0
        %1229 = vmatpush1.msra.mxu0 0.0
        %1230 = vmatprep.subr.mxu0 0.0
        %1231 = vmatpush1.msra.mxu0 0.0
        %1232 = vmatprep.mubr.f32.mxu0 0.0
        %1233 = vmatmul.mubr.f32.gmra.mrb[0].mxu0 %v1102
        %v1234 = vpop.f32.mrb[0].mxu0
        %v1235 = vadd.f32 0.0, %v1234
        %v1236 = vpop.f32.mrb[0].mxu0
        %v1237 = vadd.f32 0.0, %v1236
        %1238 = vdwg.mxu0
        %1239 = vmatprep.subr.mxu0 %v1107
        %1240 = vmatpush1.msra.mxu0 %v1106
        %1241 = vmatprep.subr.mxu0 %v1111
        %1242 = vmatpush1.msra.mxu0 %v1110
        %1243 = vmatprep.subr.mxu0 %v1115
        %1244 = vmatpush1.msra.mxu0 %v1114
        %1245 = vmatprep.subr.mxu0 %v1119
        %1246 = vmatpush1.msra.mxu0 %v1118
        %1247 = vmatprep.subr.mxu0 %v1123
        %1248 = vmatpush1.msra.mxu0 %v1122
        %1249 = vmatprep.subr.mxu0 %v1127
        %1250 = vmatpush1.msra.mxu0 %v1126
        %1251 = vmatprep.subr.mxu0 %v1131
        %1252 = vmatpush1.msra.mxu0 %v1130
        %1253 = vmatprep.subr.mxu0 %v1135
        %1254 = vmatpush1.msra.mxu0 %v1134
        %1255 = vmatprep.subr.mxu0 %v1139
        %1256 = vmatpush1.msra.mxu0 %v1138
        %1257 = vmatprep.subr.mxu0 %v1143
        %1258 = vmatpush1.msra.mxu0 %v1142
        %1259 = vmatprep.subr.mxu0 %v1147
        %1260 = vmatpush1.msra.mxu0 %v1146
        %1261 = vmatprep.subr.mxu0 %v1151
        %1262 = vmatpush1.msra.mxu0 %v1150
        %1263 = vmatprep.subr.mxu0 %v1155
        %1264 = vmatpush1.msra.mxu0 %v1154
        %1265 = vmatprep.subr.mxu0 %v1159
        %1266 = vmatpush1.msra.mxu0 %v1158
        %1267 = vmatprep.subr.mxu0 %v1163
        %1268 = vmatpush1.msra.mxu0 %v1162
        %1269 = vmatprep.subr.mxu0 %v1167
        %1270 = vmatpush1.msra.mxu0 %v1166
        %1271 = vmatprep.subr.mxu0 0.0
        %1272 = vmatpush1.msra.mxu0 0.0
        %1273 = vmatprep.subr.mxu0 0.0
        %1274 = vmatpush1.msra.mxu0 0.0
        %1275 = vmatprep.subr.mxu0 0.0
        %1276 = vmatpush1.msra.mxu0 0.0
        %1277 = vmatprep.subr.mxu0 0.0
        %1278 = vmatpush1.msra.mxu0 0.0
        %1279 = vmatprep.subr.mxu0 0.0
        %1280 = vmatpush1.msra.mxu0 0.0
        %1281 = vmatprep.subr.mxu0 0.0
        %1282 = vmatpush1.msra.mxu0 0.0
        %1283 = vmatprep.subr.mxu0 0.0
        %1284 = vmatpush1.msra.mxu0 0.0
        %1285 = vmatprep.subr.mxu0 0.0
        %1286 = vmatpush1.msra.mxu0 0.0
        %1287 = vmatprep.subr.mxu0 0.0
        %1288 = vmatpush1.msra.mxu0 0.0
        %1289 = vmatprep.subr.mxu0 0.0
        %1290 = vmatpush1.msra.mxu0 0.0
        %1291 = vmatprep.subr.mxu0 0.0
        %1292 = vmatpush1.msra.mxu0 0.0
        %1293 = vmatprep.subr.mxu0 0.0
        %1294 = vmatpush1.msra.mxu0 0.0
        %1295 = vmatprep.subr.mxu0 0.0
        %1296 = vmatpush1.msra.mxu0 0.0
        %1297 = vmatprep.subr.mxu0 0.0
        %1298 = vmatpush1.msra.mxu0 0.0
        %1299 = vmatprep.subr.mxu0 0.0
        %1300 = vmatpush1.msra.mxu0 0.0
        %1301 = vmatprep.subr.mxu0 0.0
        %1302 = vmatpush1.msra.mxu0 0.0
        %1303 = vmatprep.mubr.f32.mxu0 0.0
        %1304 = vmatmul.mubr.f32.gmra.mrb[0].mxu0 %v1102
        %v1305 = vpop.f32.mrb[0].mxu0
        %v1306 = vadd.f32 0.0, %v1305
        %v1307 = vpop.f32.mrb[0].mxu0
        %v1308 = vadd.f32 0.0, %v1307
        %1309 = vdwg.mxu0
        %1310 = vmatprep.subr.mxu0 %v1038
        %1311 = vmatpush1.msra.mxu0 %v1037
        %1312 = vmatprep.subr.mxu0 %v1042
        %1313 = vmatpush1.msra.mxu0 %v1041
        %1314 = vmatprep.subr.mxu0 %v1046
        %1315 = vmatpush1.msra.mxu0 %v1045
        %1316 = vmatprep.subr.mxu0 %v1050
        %1317 = vmatpush1.msra.mxu0 %v1049
        %1318 = vmatprep.subr.mxu0 %v1054
        %1319 = vmatpush1.msra.mxu0 %v1053
        %1320 = vmatprep.subr.mxu0 %v1058
        %1321 = vmatpush1.msra.mxu0 %v1057
        %1322 = vmatprep.subr.mxu0 %v1062
        %1323 = vmatpush1.msra.mxu0 %v1061
        %1324 = vmatprep.subr.mxu0 %v1066
        %1325 = vmatpush1.msra.mxu0 %v1065
        %1326 = vmatprep.subr.mxu0 %v1070
        %1327 = vmatpush1.msra.mxu0 %v1069
        %1328 = vmatprep.subr.mxu0 %v1074
        %1329 = vmatpush1.msra.mxu0 %v1073
        %1330 = vmatprep.subr.mxu0 %v1078
        %1331 = vmatpush1.msra.mxu0 %v1077
        %1332 = vmatprep.subr.mxu0 %v1082
        %1333 = vmatpush1.msra.mxu0 %v1081
        %1334 = vmatprep.subr.mxu0 %v1086
        %1335 = vmatpush1.msra.mxu0 %v1085
        %1336 = vmatprep.subr.mxu0 %v1090
        %1337 = vmatpush1.msra.mxu0 %v1089
        %1338 = vmatprep.subr.mxu0 %v1094
        %1339 = vmatpush1.msra.mxu0 %v1093
        %1340 = vmatprep.subr.mxu0 %v1098
        %1341 = vmatpush1.msra.mxu0 %v1097
        %1342 = vmatprep.subr.mxu0 0.0
        %1343 = vmatpush1.msra.mxu0 0.0
        %1344 = vmatprep.subr.mxu0 0.0
        %1345 = vmatpush1.msra.mxu0 0.0
        %1346 = vmatprep.subr.mxu0 0.0
        %1347 = vmatpush1.msra.mxu0 0.0
        %1348 = vmatprep.subr.mxu0 0.0
        %1349 = vmatpush1.msra.mxu0 0.0
        %1350 = vmatprep.subr.mxu0 0.0
        %1351 = vmatpush1.msra.mxu0 0.0
        %1352 = vmatprep.subr.mxu0 0.0
        %1353 = vmatpush1.msra.mxu0 0.0
        %1354 = vmatprep.subr.mxu0 0.0
        %1355 = vmatpush1.msra.mxu0 0.0
        %1356 = vmatprep.subr.mxu0 0.0
        %1357 = vmatpush1.msra.mxu0 0.0
        %1358 = vmatprep.subr.mxu0 0.0
        %1359 = vmatpush1.msra.mxu0 0.0
        %1360 = vmatprep.subr.mxu0 0.0
        %1361 = vmatpush1.msra.mxu0 0.0
        %1362 = vmatprep.subr.mxu0 0.0
        %1363 = vmatpush1.msra.mxu0 0.0
        %1364 = vmatprep.subr.mxu0 0.0
        %1365 = vmatpush1.msra.mxu0 0.0
        %1366 = vmatprep.subr.mxu0 0.0
        %1367 = vmatpush1.msra.mxu0 0.0
        %1368 = vmatprep.subr.mxu0 0.0
        %1369 = vmatpush1.msra.mxu0 0.0
        %1370 = vmatprep.subr.mxu0 0.0
        %1371 = vmatpush1.msra.mxu0 0.0
        %1372 = vmatprep.subr.mxu0 0.0
        %1373 = vmatpush1.msra.mxu0 0.0
        %1374 = vmatprep.mubr.f32.mxu0 0.0
        %1375 = vmatmul.mubr.f32.gmra.mrb[0].mxu0 %v1033
        %v1376 = vpop.f32.mrb[0].mxu0
        %v1377 = vadd.f32 %v1235, %v1376
        %v1378 = vpop.f32.mrb[0].mxu0
        %v1379 = vadd.f32 %v1237, %v1378
        %1380 = vdwg.mxu0
        %1381 = vmatprep.subr.mxu0 %v1040
        %1382 = vmatpush1.msra.mxu0 %v1039
        %1383 = vmatprep.subr.mxu0 %v1044
        %1384 = vmatpush1.msra.mxu0 %v1043
        %1385 = vmatprep.subr.mxu0 %v1048
        %1386 = vmatpush1.msra.mxu0 %v1047
        %1387 = vmatprep.subr.mxu0 %v1052
        %1388 = vmatpush1.msra.mxu0 %v1051
        %1389 = vmatprep.subr.mxu0 %v1056
        %1390 = vmatpush1.msra.mxu0 %v1055
        %1391 = vmatprep.subr.mxu0 %v1060
        %1392 = vmatpush1.msra.mxu0 %v1059
        %1393 = vmatprep.subr.mxu0 %v1064
        %1394 = vmatpush1.msra.mxu0 %v1063
        %1395 = vmatprep.subr.mxu0 %v1068
        %1396 = vmatpush1.msra.mxu0 %v1067
        %1397 = vmatprep.subr.mxu0 %v1072
        %1398 = vmatpush1.msra.mxu0 %v1071
        %1399 = vmatprep.subr.mxu0 %v1076
        %1400 = vmatpush1.msra.mxu0 %v1075
        %1401 = vmatprep.subr.mxu0 %v1080
        %1402 = vmatpush1.msra.mxu0 %v1079
        %1403 = vmatprep.subr.mxu0 %v1084
        %1404 = vmatpush1.msra.mxu0 %v1083
        %1405 = vmatprep.subr.mxu0 %v1088
        %1406 = vmatpush1.msra.mxu0 %v1087
        %1407 = vmatprep.subr.mxu0 %v1092
        %1408 = vmatpush1.msra.mxu0 %v1091
        %1409 = vmatprep.subr.mxu0 %v1096
        %1410 = vmatpush1.msra.mxu0 %v1095
        %1411 = vmatprep.subr.mxu0 %v1100
        %1412 = vmatpush1.msra.mxu0 %v1099
        %1413 = vmatprep.subr.mxu0 0.0
        %1414 = vmatpush1.msra.mxu0 0.0
        %1415 = vmatprep.subr.mxu0 0.0
        %1416 = vmatpush1.msra.mxu0 0.0
        %1417 = vmatprep.subr.mxu0 0.0
        %1418 = vmatpush1.msra.mxu0 0.0
        %1419 = vmatprep.subr.mxu0 0.0
        %1420 = vmatpush1.msra.mxu0 0.0
        %1421 = vmatprep.subr.mxu0 0.0
        %1422 = vmatpush1.msra.mxu0 0.0
        %1423 = vmatprep.subr.mxu0 0.0
        %1424 = vmatpush1.msra.mxu0 0.0
        %1425 = vmatprep.subr.mxu0 0.0
        %1426 = vmatpush1.msra.mxu0 0.0
        %1427 = vmatprep.subr.mxu0 0.0
        %1428 = vmatpush1.msra.mxu0 0.0
        %1429 = vmatprep.subr.mxu0 0.0
        %1430 = vmatpush1.msra.mxu0 0.0
        %1431 = vmatprep.subr.mxu0 0.0
        %1432 = vmatpush1.msra.mxu0 0.0
        %1433 = vmatprep.subr.mxu0 0.0
        %1434 = vmatpush1.msra.mxu0 0.0
        %1435 = vmatprep.subr.mxu0 0.0
        %1436 = vmatpush1.msra.mxu0 0.0
        %1437 = vmatprep.subr.mxu0 0.0
        %1438 = vmatpush1.msra.mxu0 0.0
        %1439 = vmatprep.subr.mxu0 0.0
        %1440 = vmatpush1.msra.mxu0 0.0
        %1441 = vmatprep.subr.mxu0 0.0
        %1442 = vmatpush1.msra.mxu0 0.0
        %1443 = vmatprep.subr.mxu0 0.0
        %1444 = vmatpush1.msra.mxu0 0.0
        %1445 = vmatprep.mubr.f32.mxu0 0.0
        %1446 = vmatmul.mubr.f32.gmra.mrb[0].mxu0 %v1033
        %v1447 = vpop.f32.mrb[0].mxu0
        %v1448 = vadd.f32 %v1306, %v1447
        %v1449 = vpop.f32.mrb[0].mxu0
        %v1450 = vadd.f32 %v1308, %v1449
        %1451 = vdwg.mxu0
        %s1452 = scalar_lea.vmem %s3, 4
        %v1453 = vld [vmem:[%s1452] sm:$0xf]
        %v1455 = vlaneseq
        %v1456 = vshrl.u32 %v1455, 7
        %v1457 = vsub.s32 0, %v1456
        %v1458 = vrot.slane %v1453, %v1457
        %v1459 = vlaneseq
        %v1460 = vshrl.u32 %v1459, 7
        %v1461 = vsub.s32 1, %v1460
        %v1462 = vrot.slane %v1453, %v1461
        %v1463 = vlaneseq
        %v1464 = vshrl.u32 %v1463, 7
        %v1465 = vsub.s32 2, %v1464
        %v1466 = vrot.slane %v1453, %v1465
        %v1467 = vlaneseq
        %v1468 = vshrl.u32 %v1467, 7
        %v1469 = vsub.s32 3, %v1468
        %v1470 = vrot.slane %v1453, %v1469
        %v1475 = vadd.f32 %v1377, %v1458
        %v1476 = vadd.f32 %v1379, %v1462
        %v1477 = vadd.f32 %v1448, %v1466
        %v1478 = vadd.f32 %v1450, %v1470
        %v1479 = vxor.u32 %v1475, 2147483648
        %v1480 = vmul.f32 %v1479, 1.442695
        %v1481 = vpow.pop %v1480
        %v1482 = vadd.f32 %v1481, 1.0
        %v1483 = vrcp.pop %v1482
        %v1484 = vmul.f32 1.0, %v1483
        %v1485 = vxor.u32 %v1476, 2147483648
        %v1486 = vmul.f32 %v1485, 1.442695
        %v1487 = vpow.pop %v1486
        %v1488 = vadd.f32 %v1487, 1.0
        %v1489 = vrcp.pop %v1488
        %v1490 = vmul.f32 1.0, %v1489
        %v1491 = vtanh.pop %v1477
        %v1492 = vxor.u32 %v1478, 2147483648
        %v1493 = vmul.f32 %v1492, 1.442695
        %v1494 = vpow.pop %v1493
        %v1495 = vadd.f32 %v1494, 1.0
        %v1496 = vrcp.pop %v1495
        %v1497 = vmul.f32 1.0, %v1496
        %s1498 = scalar_lea.vmem [#allocation3], 4
        %v1499 = vld [vmem:[%s1498] sm:$0x3]
        %v1500 = vmul.f32 %v1490, %v1499
        %v1501 = vmul.f32 %v1484, %v1491
        %v1502 = vadd.f32 %v1500, %v1501
        %v1503 = vtanh.pop %v1502
        %v1504 = vmul.f32 %v1497, %v1503
        %1505 = vst [vmem:[%s1498] sm:$0x3] %v1502
        %1506 = vst [vmem:[%s1101] sm:$0x3] %v1504
        %p1507 = scmp.eq.s32.totalorder %s20, 3
        // Predicated region
        $region57: #{_lambda_.9} parent=51 // pred_check
          %p1508 = pneg %p1507
        $region58: #{_lambda_.9} parent=51 // pred_check_branch
          %1510 = sbr.rel (%p1508) target = $region60
        $region59: #{_lambda_.9} parent=51 // pred_region
          %v1511 = vld [vmem:[%s4] sm:$0xff]
          %v1512 = vld [vmem:[%s4 + $0x8] sm:$0xff]
          %v1513 = vld [vmem:[%s4 + $0x10] sm:$0xff]
          %v1514 = vld [vmem:[%s4 + $0x18] sm:$0xff]
          %v1515 = vld [vmem:[%s4 + $0x20] sm:$0xff]
          %v1516 = vld [vmem:[%s4 + $0x28] sm:$0xff]
          %v1517 = vld [vmem:[%s4 + $0x30] sm:$0xff]
          %v1518 = vld [vmem:[%s4 + $0x38] sm:$0xff]
          %v1519 = vld [vmem:[%s4 + $0x40] sm:$0xff]
          %v1520 = vld [vmem:[%s4 + $0x48] sm:$0xff]
          %v1521 = vld [vmem:[%s4 + $0x50] sm:$0xff]
          %v1522 = vld [vmem:[%s4 + $0x58] sm:$0xff]
          %v1523 = vld [vmem:[%s4 + $0x60] sm:$0xff]
          %v1524 = vld [vmem:[%s4 + $0x68] sm:$0xff]
          %v1525 = vld [vmem:[%s4 + $0x70] sm:$0xff]
          %v1526 = vld [vmem:[%s4 + $0x78] sm:$0xff]
          %v1527 = vld [vmem:[%s5] sm:$0x1]
          %v1529 = vlaneseq
          %v1530 = vshrl.u32 %v1529, 7
          %v1531 = vsub.s32 0, %v1530
          %v1532 = vrot.slane %v1527, %v1531
          %1534 = vmatprep.subr.mxu0 0.0
          %1535 = vmatpush1.msra.mxu0 %v1511
          %1536 = vmatprep.subr.mxu0 0.0
          %1537 = vmatpush1.msra.mxu0 %v1512
          %1538 = vmatprep.subr.mxu0 0.0
          %1539 = vmatpush1.msra.mxu0 %v1513
          %1540 = vmatprep.subr.mxu0 0.0
          %1541 = vmatpush1.msra.mxu0 %v1514
          %1542 = vmatprep.subr.mxu0 0.0
          %1543 = vmatpush1.msra.mxu0 %v1515
          %1544 = vmatprep.subr.mxu0 0.0
          %1545 = vmatpush1.msra.mxu0 %v1516
          %1546 = vmatprep.subr.mxu0 0.0
          %1547 = vmatpush1.msra.mxu0 %v1517
          %1548 = vmatprep.subr.mxu0 0.0
          %1549 = vmatpush1.msra.mxu0 %v1518
          %1550 = vmatprep.subr.mxu0 0.0
          %1551 = vmatpush1.msra.mxu0 %v1519
          %1552 = vmatprep.subr.mxu0 0.0
          %1553 = vmatpush1.msra.mxu0 %v1520
          %1554 = vmatprep.subr.mxu0 0.0
          %1555 = vmatpush1.msra.mxu0 %v1521
          %1556 = vmatprep.subr.mxu0 0.0
          %1557 = vmatpush1.msra.mxu0 %v1522
          %1558 = vmatprep.subr.mxu0 0.0
          %1559 = vmatpush1.msra.mxu0 %v1523
          %1560 = vmatprep.subr.mxu0 0.0
          %1561 = vmatpush1.msra.mxu0 %v1524
          %1562 = vmatprep.subr.mxu0 0.0
          %1563 = vmatpush1.msra.mxu0 %v1525
          %1564 = vmatprep.subr.mxu0 0.0
          %1565 = vmatpush1.msra.mxu0 %v1526
          %1566 = vmatprep.subr.mxu0 0.0
          %1567 = vmatpush1.msra.mxu0 0.0
          %1568 = vmatprep.subr.mxu0 0.0
          %1569 = vmatpush1.msra.mxu0 0.0
          %1570 = vmatprep.subr.mxu0 0.0
          %1571 = vmatpush1.msra.mxu0 0.0
          %1572 = vmatprep.subr.mxu0 0.0
          %1573 = vmatpush1.msra.mxu0 0.0
          %1574 = vmatprep.subr.mxu0 0.0
          %1575 = vmatpush1.msra.mxu0 0.0
          %1576 = vmatprep.subr.mxu0 0.0
          %1577 = vmatpush1.msra.mxu0 0.0
          %1578 = vmatprep.subr.mxu0 0.0
          %1579 = vmatpush1.msra.mxu0 0.0
          %1580 = vmatprep.subr.mxu0 0.0
          %1581 = vmatpush1.msra.mxu0 0.0
          %1582 = vmatprep.subr.mxu0 0.0
          %1583 = vmatpush1.msra.mxu0 0.0
          %1584 = vmatprep.subr.mxu0 0.0
          %1585 = vmatpush1.msra.mxu0 0.0
          %1586 = vmatprep.subr.mxu0 0.0
          %1587 = vmatpush1.msra.mxu0 0.0
          %1588 = vmatprep.subr.mxu0 0.0
          %1589 = vmatpush1.msra.mxu0 0.0
          %1590 = vmatprep.subr.mxu0 0.0
          %1591 = vmatpush1.msra.mxu0 0.0
          %1592 = vmatprep.subr.mxu0 0.0
          %1593 = vmatpush1.msra.mxu0 0.0
          %1594 = vmatprep.subr.mxu0 0.0
          %1595 = vmatpush1.msra.mxu0 0.0
          %1596 = vmatprep.subr.mxu0 0.0
          %1597 = vmatpush1.msra.mxu0 0.0
          %1598 = vmatprep.mubr.f32.mxu0 0.0
          %1599 = vmatmul.mubr.f32.gmra.mrb[0].mxu0 %v1504
          %v1600 = vpop.f32.mrb[0].mxu0
          %v1601 = vadd.f32 %v1532, %v1600
          %v1602 = vpop.f32.mrb[0].mxu0
          %1603 = vdwg.mxu0
          %v1604 = vmax.f32 %v1601, 0.0
          %v1605 = vld [vmem:[%s6] sm:$0xff]
          %v1606 = vld [vmem:[%s6 + $0x8] sm:$0xff]
          %v1607 = vld [vmem:[%s6 + $0x10] sm:$0xff]
          %v1608 = vld [vmem:[%s6 + $0x18] sm:$0xff]
          %v1609 = vld [vmem:[%s6 + $0x20] sm:$0xff]
          %v1610 = vld [vmem:[%s6 + $0x28] sm:$0xff]
          %v1611 = vld [vmem:[%s6 + $0x30] sm:$0xff]
          %v1612 = vld [vmem:[%s6 + $0x38] sm:$0xff]
          %v1613 = vld [vmem:[%s6 + $0x40] sm:$0xff]
          %v1614 = vld [vmem:[%s6 + $0x48] sm:$0xff]
          %v1615 = vld [vmem:[%s6 + $0x50] sm:$0xff]
          %v1616 = vld [vmem:[%s6 + $0x58] sm:$0xff]
          %v1617 = vld [vmem:[%s6 + $0x60] sm:$0xff]
          %v1618 = vld [vmem:[%s6 + $0x68] sm:$0xff]
          %v1619 = vld [vmem:[%s6 + $0x70] sm:$0xff]
          %v1620 = vld [vmem:[%s6 + $0x78] sm:$0xff]
          %v1621 = vld [vmem:[%s7] sm:$0x1]
          %v1623 = vlaneseq
          %v1624 = vshrl.u32 %v1623, 7
          %v1625 = vsub.s32 0, %v1624
          %v1626 = vrot.slane %v1621, %v1625
          %1628 = vmatprep.subr.mxu0 0.0
          %1629 = vmatpush1.msra.mxu0 %v1605
          %1630 = vmatprep.subr.mxu0 0.0
          %1631 = vmatpush1.msra.mxu0 %v1606
          %1632 = vmatprep.subr.mxu0 0.0
          %1633 = vmatpush1.msra.mxu0 %v1607
          %1634 = vmatprep.subr.mxu0 0.0
          %1635 = vmatpush1.msra.mxu0 %v1608
          %1636 = vmatprep.subr.mxu0 0.0
          %1637 = vmatpush1.msra.mxu0 %v1609
          %1638 = vmatprep.subr.mxu0 0.0
          %1639 = vmatpush1.msra.mxu0 %v1610
          %1640 = vmatprep.subr.mxu0 0.0
          %1641 = vmatpush1.msra.mxu0 %v1611
          %1642 = vmatprep.subr.mxu0 0.0
          %1643 = vmatpush1.msra.mxu0 %v1612
          %1644 = vmatprep.subr.mxu0 0.0
          %1645 = vmatpush1.msra.mxu0 %v1613
          %1646 = vmatprep.subr.mxu0 0.0
          %1647 = vmatpush1.msra.mxu0 %v1614
          %1648 = vmatprep.subr.mxu0 0.0
          %1649 = vmatpush1.msra.mxu0 %v1615
          %1650 = vmatprep.subr.mxu0 0.0
          %1651 = vmatpush1.msra.mxu0 %v1616
          %1652 = vmatprep.subr.mxu0 0.0
          %1653 = vmatpush1.msra.mxu0 %v1617
          %1654 = vmatprep.subr.mxu0 0.0
          %1655 = vmatpush1.msra.mxu0 %v1618
          %1656 = vmatprep.subr.mxu0 0.0
          %1657 = vmatpush1.msra.mxu0 %v1619
          %1658 = vmatprep.subr.mxu0 0.0
          %1659 = vmatpush1.msra.mxu0 %v1620
          %1660 = vmatprep.subr.mxu0 0.0
          %1661 = vmatpush1.msra.mxu0 0.0
          %1662 = vmatprep.subr.mxu0 0.0
          %1663 = vmatpush1.msra.mxu0 0.0
          %1664 = vmatprep.subr.mxu0 0.0
          %1665 = vmatpush1.msra.mxu0 0.0
          %1666 = vmatprep.subr.mxu0 0.0
          %1667 = vmatpush1.msra.mxu0 0.0
          %1668 = vmatprep.subr.mxu0 0.0
          %1669 = vmatpush1.msra.mxu0 0.0
          %1670 = vmatprep.subr.mxu0 0.0
          %1671 = vmatpush1.msra.mxu0 0.0
          %1672 = vmatprep.subr.mxu0 0.0
          %1673 = vmatpush1.msra.mxu0 0.0
          %1674 = vmatprep.subr.mxu0 0.0
          %1675 = vmatpush1.msra.mxu0 0.0
          %1676 = vmatprep.subr.mxu0 0.0
          %1677 = vmatpush1.msra.mxu0 0.0
          %1678 = vmatprep.subr.mxu0 0.0
          %1679 = vmatpush1.msra.mxu0 0.0
          %1680 = vmatprep.subr.mxu0 0.0
          %1681 = vmatpush1.msra.mxu0 0.0
          %1682 = vmatprep.subr.mxu0 0.0
          %1683 = vmatpush1.msra.mxu0 0.0
          %1684 = vmatprep.subr.mxu0 0.0
          %1685 = vmatpush1.msra.mxu0 0.0
          %1686 = vmatprep.subr.mxu0 0.0
          %1687 = vmatpush1.msra.mxu0 0.0
          %1688 = vmatprep.subr.mxu0 0.0
          %1689 = vmatpush1.msra.mxu0 0.0
          %1690 = vmatprep.subr.mxu0 0.0
          %1691 = vmatpush1.msra.mxu0 0.0
          %1692 = vmatprep.mubr.f32.mxu0 0.0
          %1693 = vmatmul.mubr.f32.gmra.mrb[0].mxu0 %v1604
          %v1694 = vpop.f32.mrb[0].mxu0
          %v1695 = vadd.f32 %v1626, %v1694
          %v1696 = vpop.f32.mrb[0].mxu0
          %1697 = vdwg.mxu0
          %vm1698 = vcmask 9216
          %1699 = vst.msk [vmem:[#allocation4] sm:$0x3] %vm1698, %v1695
        $region60: #{_lambda_.9} parent=51 // pred_fallthru
          _
        // Predicated region
        $region61: #{_lambda_.9} parent=51 // pred_check
          %p1700 = pneg %p206
        $region62: #{_lambda_.9} parent=51 // pred_check_branch
          %1702 = sbr.rel (%p1700) target = $region64
        $region63: #{_lambda_.9} parent=51 // pred_region
          %s1704 = ssub.s32 32, 32
          %1705 = vsyncadd [#allocation5], %s1704
          %s1707 = sshll.u32 [#allocation4], 4
          %s1708 = int_to_ptr.vmem [resolvable:$true] %s1707
          %1710 = dma.vmem_to_hbm [thread:$0]  %s1708, 32, %s8, [#allocation5]
        $region64: #{_lambda_.9} parent=51 // pred_fallthru
          _
        // Predicated region
        $region65: #{_lambda_.9} parent=51 // pred_check
          %p1711 = pneg %p206
        $region66: #{_lambda_.9} parent=51 // pred_check_branch
          %1713 = sbr.rel (%p1711) target = $region68
        $region67: #{_lambda_.9} parent=51 // pred_region
          %1714 = dma.done [#allocation5], 32
        $region68: #{_lambda_.9} parent=51 // pred_fallthru
          _
      $region52: #{_lambda_.9} parent=5 // pred_fallthru
        _
      %p1715 = scmp.le.s32.totalorder 2, %s15
      // Predicated region
      $region69: #{_lambda_.9} parent=5 // pred_check
        %p1716 = pneg %p1715
      $region70: #{_lambda_.9} parent=5 // pred_check_branch
        %1718 = sbr.rel (%p1716) target = $region72
      $region71: #{_lambda_.9} parent=5 // pred_region
        %s1719 = ssub.s32 %s15, 2
      $region72: #{_lambda_.9} parent=5 // pred_fallthru
        _
    $region6: #{_lambda_.9} parent=1 // loop_footer
      %s19 = sadd.s32 1, %s15
    $region7: #{_lambda_.9} parent=1 // loop_footer_branch
      %14 = sbr.rel target = $region3
    $region8: #{_lambda_.9} parent=1 // loop_exit
      _
    %1720 = vsyncpa [#allocation5], 1
    %s1721 = scalar_lea.sflag [#allocation5], 1
    %1722 = vsyncpa %s1721, 1

</llo_original>
